<compile_context>
chip_gen: v7x
topology: tpu7x:2x2x1
jax: 0.10.0
libtpu: 0.0.40
codegen_flags: <defaults>
</compile_context>

<pallas_src>
import functools

import numpy as np

import jax
import jax.numpy as jnp
from jax.experimental import pallas as pl
from jax.experimental.pallas import tpu as pltpu


# ----------------------------- small helpers -------------------------------

def _round_up(x, m):
    return (x + m - 1) // m * m


def _row_tiling(m):
    """Padded row count and row tile (single block up to 512 rows)."""
    if m <= 512:
        mp = _round_up(max(m, 8), 8)
        return mp, mp
    mp = _round_up(m, 256)
    return mp, 256


def _col_tile(n):
    """Column tile: lane-aligned, >=128, keeps >=2 parallel blocks when cheap."""
    if n <= 256:
        return n
    return 256 if n % 256 == 0 else 128


# ----------------------------- Pallas kernels ------------------------------

def _mm_act_kernel(a_ref, b_ref, scale_ref, shift_ref, o_ref, *, act):
    """out = act((A @ B) * scale + shift); full-K block, f32 accumulation."""
    y = jnp.dot(a_ref[...], b_ref[...], preferred_element_type=jnp.float32)
    y = y * scale_ref[...] + shift_ref[...]
    if act == "relu":
        y = jnp.maximum(y, 0.0)
    elif act == "tanh":
        y = jnp.tanh(y)
    o_ref[...] = y.astype(o_ref.dtype)


def pallas_matmul_act(a, b, scale, shift, act="none", out_dtype=jnp.float32):
    m, k = a.shape
    kb, n = b.shape
    assert k == kb and n % 128 == 0
    mp, tm = _row_tiling(m)
    tn = _col_tile(n)
    a = a.astype(jnp.bfloat16)
    if mp != m:
        a = jnp.pad(a, ((0, mp - m), (0, 0)))
    scale = scale.reshape(1, n).astype(jnp.float32)
    shift = shift.reshape(1, n).astype(jnp.float32)
    return pl.pallas_call(
        functools.partial(_mm_act_kernel, act=act),
        out_shape=jax.ShapeDtypeStruct((mp, n), out_dtype),
        grid_spec=pltpu.PrefetchScalarGridSpec(
            num_scalar_prefetch=0,
            grid=(mp // tm, n // tn),
            in_specs=[pl.BlockSpec((tm, k), lambda i, j: (i, 0)),
                      pl.BlockSpec((k, tn), lambda i, j: (0, j)),
                      pl.BlockSpec((1, tn), lambda i, j: (0, j)),
                      pl.BlockSpec((1, tn), lambda i, j: (0, j))],
            out_specs=pl.BlockSpec((tm, tn), lambda i, j: (i, j))),
        compiler_params=pltpu.CompilerParams(
            dimension_semantics=("parallel", "parallel")),
    )(a, b.astype(jnp.bfloat16), scale, shift)


def _mm_stats_kernel(a_ref, b_ref, mask_ref, o_ref, sum_ref, ssq_ref):
    """Y = A @ B plus masked per-column sum / sum-of-squares (BatchNorm stats)."""
    @pl.when(pl.program_id(1) == 0)          # row-block axis (innermost)
    def _():
        sum_ref[...] = jnp.zeros_like(sum_ref)
        ssq_ref[...] = jnp.zeros_like(ssq_ref)

    y = jnp.dot(a_ref[...], b_ref[...], preferred_element_type=jnp.float32)
    o_ref[...] = y
    ym = y * mask_ref[...]
    sum_ref[...] += jnp.sum(ym, axis=0, keepdims=True)
    ssq_ref[...] += jnp.sum(y * ym, axis=0, keepdims=True)


def pallas_matmul_stats(a, b, mask):
    m, k = a.shape
    kb, n = b.shape
    assert k == kb and n % 128 == 0
    mp, tm = _row_tiling(m)
    tn = _col_tile(n)
    assert mask.shape == (mp, n)
    a = a.astype(jnp.bfloat16)
    if mp != m:
        a = jnp.pad(a, ((0, mp - m), (0, 0)))
    y, s, ss = pl.pallas_call(
        _mm_stats_kernel,
        out_shape=(jax.ShapeDtypeStruct((mp, n), jnp.float32),
                   jax.ShapeDtypeStruct((1, n), jnp.float32),
                   jax.ShapeDtypeStruct((1, n), jnp.float32)),
        grid_spec=pltpu.PrefetchScalarGridSpec(
            num_scalar_prefetch=0,
            grid=(n // tn, mp // tm),        # rows innermost: stats stay resident
            in_specs=[pl.BlockSpec((tm, k), lambda j, i: (i, 0)),
                      pl.BlockSpec((k, tn), lambda j, i: (0, j)),
                      pl.BlockSpec((tm, tn), lambda j, i: (i, j))],
            out_specs=[pl.BlockSpec((tm, tn), lambda j, i: (i, j)),
                       pl.BlockSpec((1, tn), lambda j, i: (0, j)),
                       pl.BlockSpec((1, tn), lambda j, i: (0, j))]),
        compiler_params=pltpu.CompilerParams(
            dimension_semantics=("parallel", "arbitrary")),
    )(a, b.astype(jnp.bfloat16), mask)
    return y, s[0], ss[0]


def _affine_act_kernel(y_ref, scale_ref, shift_ref, o_ref, *, act):
    y = y_ref[...].astype(jnp.float32) * scale_ref[...] + shift_ref[...]
    if act == "relu":
        y = jnp.maximum(y, 0.0)
    elif act == "tanh":
        y = jnp.tanh(y)
    o_ref[...] = y.astype(o_ref.dtype)


def pallas_affine_act(y, scale, shift, act, out_dtype=jnp.bfloat16):
    m, n = y.shape                           # already padded / lane aligned
    tm = m if m <= 512 else 256
    tn = _col_tile(n)
    scale = scale.reshape(1, n).astype(jnp.float32)
    shift = shift.reshape(1, n).astype(jnp.float32)
    return pl.pallas_call(
        functools.partial(_affine_act_kernel, act=act),
        out_shape=jax.ShapeDtypeStruct((m, n), out_dtype),
        grid_spec=pltpu.PrefetchScalarGridSpec(
            num_scalar_prefetch=0,
            grid=(m // tm, n // tn),
            in_specs=[pl.BlockSpec((tm, tn), lambda i, j: (i, j)),
                      pl.BlockSpec((1, tn), lambda i, j: (0, j)),
                      pl.BlockSpec((1, tn), lambda i, j: (0, j))],
            out_specs=pl.BlockSpec((tm, tn), lambda i, j: (i, j))),
        compiler_params=pltpu.CompilerParams(
            dimension_semantics=("parallel", "parallel")),
    )(y, scale, shift)


# ------------------- stride-2 ConvTranspose2d (sub-pixel) -------------------
# out[b, 2m+a, 2n+c, co] = sum_{dh,dw,ci} x_pad[b, m+a+dh, n+c+dw, ci]
#                                          * W[ci, co, 3-a-2dh, 3-c-2dw]
# so one 2x2-window im2col over the 1-padded input feeds all four sub-grids.

def _subpixel_patches(x_nhwc):
    """2x2-window im2col over the 1-padded input: (B*(H+1)*(W+1), 4*Cin)."""
    bsz, h, w, cin = x_nhwc.shape
    hp, wq = h + 1, w + 1
    xp = jnp.pad(x_nhwc, ((0, 0), (1, 1), (1, 1), (0, 0)))
    cols = [xp[:, dh:dh + hp, dw:dw + wq, :]
            for dh in (0, 1) for dw in (0, 1)]
    return jnp.concatenate(cols, axis=-1).reshape(bsz * hp * wq, 4 * cin)


def _subpixel_assemble(y, bsz, h, w, cout):
    """Interleave the 4 sub-pixel outputs back into (B, 2h, 2w, cout)."""
    hp, wq = h + 1, w + 1
    yr = y[:bsz * hp * wq, :4 * cout].reshape(bsz, hp, wq, 2, 2, cout)
    sub = jnp.stack(
        [jnp.stack([yr[:, a:a + h, b:b + w, a, b, :] for b in (0, 1)], axis=3)
         for a in (0, 1)], axis=2)                    # (B, h, 2, w, 2, cout)
    return sub.reshape(bsz, 2 * h, 2 * w, cout)


def _subpixel_stats_mask(bsz, h, w, cout, mp, npad):
    """Which Y entries belong to the real output (per sub-pixel column group)."""
    hp, wq = h + 1, w + 1
    rows = np.arange(mp)
    p0 = (rows // wq) % hp
    q0 = rows % wq
    rvalid = rows < bsz * hp * wq
    cols = np.arange(npad)
    grp = cols // cout
    a, b = grp // 2, grp % 2
    mask = ((p0[:, None] >= a[None, :]) & (p0[:, None] < a[None, :] + h)
            & (q0[:, None] >= b[None, :]) & (q0[:, None] < b[None, :] + w)
            & rvalid[:, None] & (cols[None, :] < 4 * cout))
    return jnp.asarray(mask, dtype=jnp.float32)


def _tconv_s2_bn_relu(x_nhwc, wmat, gamma, beta, eps=1e-5):
    """ConvTranspose2d(Cin,Cout,4,2,1,bias=False) + BatchNorm2d + ReLU."""
    bsz, h, w, _ = x_nhwc.shape
    cout = gamma.shape[0]
    npad = wmat.shape[1]
    patches = _subpixel_patches(x_nhwc)
    mp = _row_tiling(patches.shape[0])[0]
    mask = _subpixel_stats_mask(bsz, h, w, cout, mp, npad)
    y, s, ss = pallas_matmul_stats(patches, wmat, mask)
    # training-mode BatchNorm batch statistics (biased variance)
    cnt = bsz * (2 * h) * (2 * w)
    mean = s[:4 * cout].reshape(4, cout).sum(axis=0) / cnt
    msq = ss[:4 * cout].reshape(4, cout).sum(axis=0) / cnt
    var = jnp.maximum(msq - mean * mean, 0.0)
    sc = gamma / jnp.sqrt(var + eps)
    sh = beta - mean * sc
    scale = jnp.pad(jnp.tile(sc, 4), (0, npad - 4 * cout))
    shift = jnp.pad(jnp.tile(sh, 4), (0, npad - 4 * cout))
    ya = pallas_affine_act(y, scale, shift, act="relu")     # bf16
    return _subpixel_assemble(ya, bsz, h, w, cout)


# ------------------------------ Generator ----------------------------------

def generator_forward(params, noise, channels=3):
    """noise (B, 100, 1, 1) -> output NCHW (B, channels, 32, 32)."""
    eps = 1e-5
    bsz = noise.shape[0]
    x = noise.reshape(bsz, -1)
    kfc = params["fc_w"].shape[0]
    x = jnp.pad(x, ((0, 0), (0, kfc - x.shape[1])))          # latent 100 -> 128

    # fc1: Linear(100 -> 384), bias fused into the matmul epilogue
    nfc = params["fc_w"].shape[1]
    fc = pallas_matmul_act(x, params["fc_w"], jnp.ones((nfc,), jnp.float32),
                           params["fc_b"], act="none")[:bsz]          # (B, 384)

    # tconv2: ConvT(384,192,4,1,0) on a 1x1 map == plain matmul; + BN + ReLU
    n2 = params["w2mat"].shape[1]
    c2 = params["g2"].shape[0]
    g2 = n2 // c2                                            # 16 = Kh*Kw groups
    mp2 = _row_tiling(bsz)[0]
    mask2 = jnp.asarray(np.broadcast_to((np.arange(mp2) < bsz)[:, None],
                                        (mp2, n2)).astype(np.float32))
    y2, s2, ss2 = pallas_matmul_stats(fc, params["w2mat"], mask2)
    cnt2 = bsz * g2
    mean2 = s2.reshape(g2, c2).sum(axis=0) / cnt2
    msq2 = ss2.reshape(g2, c2).sum(axis=0) / cnt2
    var2 = jnp.maximum(msq2 - mean2 * mean2, 0.0)
    sc2 = params["g2"] / jnp.sqrt(var2 + eps)
    sh2 = params["b2"] - mean2 * sc2
    h2 = pallas_affine_act(y2, jnp.tile(sc2, g2), jnp.tile(sh2, g2), act="relu")
    h = h2[:bsz].reshape(bsz, 4, 4, c2)                      # NHWC, bf16

    # tconv3 / tconv4: stride-2 ConvT (sub-pixel matmul) + BN + ReLU
    h = _tconv_s2_bn_relu(h, params["w3mat"], params["g3"], params["b3"], eps)
    h = _tconv_s2_bn_relu(h, params["w4mat"], params["g4"], params["b4"], eps)

    # tconv5: stride-2 ConvT with tanh fused into the matmul epilogue
    n5 = params["w5mat"].shape[1]
    p5 = _subpixel_patches(h)
    y5 = pallas_matmul_act(p5, params["w5mat"], jnp.ones((n5,), jnp.float32),
                           jnp.zeros((n5,), jnp.float32), act="tanh")
    out = _subpixel_assemble(y5, bsz, h.shape[1], h.shape[2], channels)
    return jnp.transpose(out, (0, 3, 1, 2))                  # back to NCHW


# ----------------------- parameter init / pre-packing -----------------------

def _subpixel_weight(w):
    """PyTorch ConvT weight (Cin,Cout,4,4), stride=2, pad=1 -> (4*Cin, 4*Cout).

    rows flatten (dh, dw, ci); cols flatten (a, b, co); entry =
    W[ci, co, 3-a-2dh, 3-b-2dw] so it matches _subpixel_patches ordering.
    """
    cin, cout = w.shape[0], w.shape[1]
    wp = jnp.transpose(w, (2, 3, 0, 1))                           # (kh,kw,ci,co)
    tab = 3 - np.arange(2)[None, :] - 2 * np.arange(2)[:, None]   # [dh/dw, a/b]
    w6 = wp[tab[:, :, None, None], tab[None, None, :, :]]         # [dh,a,dw,b,ci,co]
    w6 = jnp.transpose(w6, (0, 2, 4, 1, 3, 5))                    # [dh,dw,ci,a,b,co]
    return w6.reshape(4 * cin, 4 * cout)


def _pad_cols(mat, n):
    return jnp.pad(mat, ((0, 0), (0, n - mat.shape[1])))


def init_params(key, latent_dim=100, channels=3):
    ks = jax.random.split(key, 6)

    def nrm(k, shape, s):
        return s * jax.random.normal(k, shape, jnp.float32)

    fc_w = nrm(ks[0], (latent_dim, 384), 0.1)
    fc_b = nrm(ks[1], (384,), 0.1)
    w2 = nrm(ks[2], (384, 192, 4, 4), 0.05)      # PyTorch ConvTranspose2d layout
    w3 = nrm(ks[3], (192, 96, 4, 4), 0.05)
    w4 = nrm(ks[4], (96, 48, 4, 4), 0.05)
    w5 = nrm(ks[5], (48, channels, 4, 4), 0.05)

    kfc = _round_up(latent_dim, 128)
    w2mat = jnp.transpose(w2, (0, 2, 3, 1)).reshape(384, 16 * 192)
    return {
        # fc weight pre-padded on K (latent) to a lane multiple, stored bf16
        "fc_w": jnp.pad(fc_w, ((0, kfc - latent_dim), (0, 0))).astype(jnp.bfloat16),
        "fc_b": fc_b,
        # tconv2 acts on a 1x1 map -> plain (Cin, Kh*Kw*Cout) matrix
        "w2mat": w2mat.astype(jnp.bfloat16),
        # stride-2 layers -> sub-pixel matrices, N padded to lane multiples
        "w3mat": _subpixel_weight(w3).astype(jnp.bfloat16),                 # (768, 384)
        "w4mat": _pad_cols(_subpixel_weight(w4), 256).astype(jnp.bfloat16),  # (384, 256)
        "w5mat": _pad_cols(_subpixel_weight(w5), 128).astype(jnp.bfloat16),  # (192, 128)
        # BatchNorm affine params (PyTorch default init: weight=1, bias=0)
        "g2": jnp.ones((192,), jnp.float32), "b2": jnp.zeros((192,), jnp.float32),
        "g3": jnp.ones((96,), jnp.float32), "b3": jnp.zeros((96,), jnp.float32),
        "g4": jnp.ones((48,), jnp.float32), "b4": jnp.zeros((48,), jnp.float32),
    }


if __name__ == "__main__":
    key = jax.random.PRNGKey(0)
    pkey, nkey = jax.random.split(key)
    batch, latent_dim, channels = 2, 100, 3
    params = init_params(pkey, latent_dim=latent_dim, channels=channels)
    noise = jax.random.normal(nkey, (batch, latent_dim, 1, 1), jnp.float32)

    fwd = jax.jit(functools.partial(generator_forward, channels=channels))
    out = jax.block_until_ready(fwd(params, noise))

    assert out.shape == (batch, channels, 32, 32), out.shape
    assert bool(jnp.all(jnp.isfinite(out)))
    assert bool(jnp.all(jnp.abs(out) <= 1.0 + 1e-6))        # tanh output range
    print("KERNEL_OK")
</pallas_src>

<mosaic_0001>
module attributes {stable_mosaic.version = 11 : i64} {
  func.func @_mm_act_kernel(%arg0: i32, %arg1: i32, %arg2: memref<8x128xbf16, #tpu.memory_space<vmem>>, %arg3: memref<128x128xbf16, #tpu.memory_space<vmem>>, %arg4: memref<1x128xf32, #tpu.memory_space<vmem>>, %arg5: memref<1x128xf32, #tpu.memory_space<vmem>>, %arg6: memref<8x128xf32, #tpu.memory_space<vmem>>) attributes {dimension_semantics = [#tpu.dimension_semantics<parallel>, #tpu.dimension_semantics<parallel>], iteration_bounds = array<i64: 1, 3>, scalar_prefetch = 0 : i64, scratch_operands = 0 : i64, tpu.core_type = #tpu.core_type<tc>, window_params = [{transform_indices = @transform_0, window_bounds = array<i64: 8, 128>}, {transform_indices = @transform_1, window_bounds = array<i64: 128, 128>}, {transform_indices = @transform_2, window_bounds = array<i64: 1, 128>}, {transform_indices = @transform_3, window_bounds = array<i64: 1, 128>}, {transform_indices = @transform_4, window_bounds = array<i64: 8, 128>}]} {
    %c0 = arith.constant 0 : index
    %c0_0 = arith.constant 0 : index
    %0 = vector.load %arg2[%c0, %c0_0] : memref<8x128xbf16, #tpu.memory_space<vmem>>, vector<8x128xbf16>
    %c0_1 = arith.constant 0 : index
    %c0_2 = arith.constant 0 : index
    %1 = vector.load %arg3[%c0_1, %c0_2] : memref<128x128xbf16, #tpu.memory_space<vmem>>, vector<128x128xbf16>
    %cst = arith.constant dense<0.000000e+00> : vector<8x128xf32>
    %2 = tpu.matmul %0, %1, %cst {dimension_numbers = #tpu.dot_dimension_numbers<[1], [0], [0], [1], [0, 0, 1, 1], [], []>} : vector<8x128xbf16>, vector<128x128xbf16>, vector<8x128xf32> -> vector<8x128xf32>
    %c0_3 = arith.constant 0 : index
    %c0_4 = arith.constant 0 : index
    %3 = vector.load %arg4[%c0_3, %c0_4] : memref<1x128xf32, #tpu.memory_space<vmem>>, vector<1x128xf32>
    %4 = vector.broadcast %3 : vector<1x128xf32> to vector<8x128xf32>
    %5 = arith.mulf %2, %4 : vector<8x128xf32>
    %c0_5 = arith.constant 0 : index
    %c0_6 = arith.constant 0 : index
    %6 = vector.load %arg5[%c0_5, %c0_6] : memref<1x128xf32, #tpu.memory_space<vmem>>, vector<1x128xf32>
    %7 = vector.broadcast %6 : vector<1x128xf32> to vector<8x128xf32>
    %8 = arith.addf %5, %7 : vector<8x128xf32>
    %c0_7 = arith.constant 0 : index
    %c0_8 = arith.constant 0 : index
    %9 = vector.load %arg6[%c0_7, %c0_8] : memref<8x128xf32, #tpu.memory_space<vmem>>, vector<8x128xf32>
    tpu.vector_store %arg6[%c0_7, %c0_8], %8 {strides = array<i32>} : memref<8x128xf32, #tpu.memory_space<vmem>>, vector<8x128xf32>,
    return
  }
  func.func @transform_0(%arg0: i32, %arg1: i32) -> (i32, i32) {
    %c0_i32 = arith.constant 0 : i32
    %c0_i32_0 = arith.constant 0 : i32
    return %arg0, %c0_i32 : i32, i32
  }
  func.func @transform_1(%arg0: i32, %arg1: i32) -> (i32, i32) {
    %c0_i32 = arith.constant 0 : i32
    %c0_i32_0 = arith.constant 0 : i32
    return %c0_i32, %arg1 : i32, i32
  }
  func.func @transform_2(%arg0: i32, %arg1: i32) -> (i32, i32) {
    %c0_i32 = arith.constant 0 : i32
    %c0_i32_0 = arith.constant 0 : i32
    return %c0_i32, %arg1 : i32, i32
  }
  func.func @transform_3(%arg0: i32, %arg1: i32) -> (i32, i32) {
    %c0_i32 = arith.constant 0 : i32
    %c0_i32_0 = arith.constant 0 : i32
    return %c0_i32, %arg1 : i32, i32
  }
  func.func @transform_4(%arg0: i32, %arg1: i32) -> (i32, i32) {
    %c0_i32 = arith.constant 0 : i32
    return %arg0, %arg1 : i32, i32
  }
}

module attributes {stable_mosaic.version = 11 : i64} {
  func.func @_mm_stats_kernel(%arg0: i32, %arg1: i32, %arg2: memref<8x384xbf16, #tpu.memory_space<vmem>>, %arg3: memref<384x256xbf16, #tpu.memory_space<vmem>>, %arg4: memref<8x256xf32, #tpu.memory_space<vmem>>, %arg5: memref<8x256xf32, #tpu.memory_space<vmem>>, %arg6: memref<1x256xf32, #tpu.memory_space<vmem>>, %arg7: memref<1x256xf32, #tpu.memory_space<vmem>>) attributes {dimension_semantics = [#tpu.dimension_semantics<parallel>, #tpu.dimension_semantics<arbitrary>], iteration_bounds = array<i64: 12, 1>, scalar_prefetch = 0 : i64, scratch_operands = 0 : i64, tpu.core_type = #tpu.core_type<tc>, window_params = [{transform_indices = @transform_0, window_bounds = array<i64: 8, 384>}, {transform_indices = @transform_1, window_bounds = array<i64: 384, 256>}, {transform_indices = @transform_2, window_bounds = array<i64: 8, 256>}, {transform_indices = @transform_3, window_bounds = array<i64: 8, 256>}, {transform_indices = @transform_4, window_bounds = array<i64: 1, 256>}, {transform_indices = @transform_5, window_bounds = array<i64: 1, 256>}]} {
    %c0_i32 = arith.constant 0 : i32
    %0 = arith.cmpi eq, %arg1, %c0_i32 : i32
    %1 = arith.extui %0 : i1 to i32
    %c0_i32_0 = arith.constant 0 : i32
    %2 = arith.cmpi ne, %1, %c0_i32_0 : i32
    scf.if %2 {
      %cst_18 = arith.constant 0.000000e+00 : f32
      %20 = vector.broadcast %cst_18 : f32 to vector<1x256xf32>
      %c0_19 = arith.constant 0 : index
      %c0_20 = arith.constant 0 : index
      %21 = vector.load %arg6[%c0_19, %c0_20] : memref<1x256xf32, #tpu.memory_space<vmem>>, vector<1x256xf32>
      tpu.vector_store %arg6[%c0_19, %c0_20], %20 {strides = array<i32>} : memref<1x256xf32, #tpu.memory_space<vmem>>, vector<1x256xf32>,
      %cst_21 = arith.constant 0.000000e+00 : f32
      %22 = vector.broadcast %cst_21 : f32 to vector<1x256xf32>
      %c0_22 = arith.constant 0 : index
      %c0_23 = arith.constant 0 : index
      %23 = vector.load %arg7[%c0_22, %c0_23] : memref<1x256xf32, #tpu.memory_space<vmem>>, vector<1x256xf32>
      tpu.vector_store %arg7[%c0_22, %c0_23], %22 {strides = array<i32>} : memref<1x256xf32, #tpu.memory_space<vmem>>, vector<1x256xf32>,
    } else {
    }
    %c0 = arith.constant 0 : index
    %c0_1 = arith.constant 0 : index
    %3 = vector.load %arg2[%c0, %c0_1] : memref<8x384xbf16, #tpu.memory_space<vmem>>, vector<8x384xbf16>
    %c0_2 = arith.constant 0 : index
    %c0_3 = arith.constant 0 : index
    %4 = vector.load %arg3[%c0_2, %c0_3] : memref<384x256xbf16, #tpu.memory_space<vmem>>, vector<384x256xbf16>
    %cst = arith.constant dense<0.000000e+00> : vector<8x256xf32>
    %5 = tpu.matmul %3, %4, %cst {dimension_numbers = #tpu.dot_dimension_numbers<[1], [0], [0], [1], [0, 0, 1, 1], [], []>} : vector<8x384xbf16>, vector<384x256xbf16>, vector<8x256xf32> -> vector<8x256xf32>
    %c0_4 = arith.constant 0 : index
    %c0_5 = arith.constant 0 : index
    %6 = vector.load %arg5[%c0_4, %c0_5] : memref<8x256xf32, #tpu.memory_space<vmem>>, vector<8x256xf32>
    tpu.vector_store %arg5[%c0_4, %c0_5], %5 {strides = array<i32>} : memref<8x256xf32, #tpu.memory_space<vmem>>, vector<8x256xf32>,
    %c0_6 = arith.constant 0 : index
    %c0_7 = arith.constant 0 : index
    %7 = vector.load %arg4[%c0_6, %c0_7] : memref<8x256xf32, #tpu.memory_space<vmem>>, vector<8x256xf32>
    %8 = arith.mulf %5, %7 : vector<8x256xf32>
    %c0_8 = arith.constant 0 : index
    %c0_9 = arith.constant 0 : index
    %9 = vector.load %arg6[%c0_8, %c0_9] : memref<1x256xf32, #tpu.memory_space<vmem>>, vector<1x256xf32>
    %cst_10 = arith.constant dense<0.000000e+00> : vector<256xf32>
    %10 = vector.multi_reduction <add>, %8, %cst_10 [0] : vector<8x256xf32> to vector<256xf32>
    %11 = vector.shape_cast %10 : vector<256xf32> to vector<1x256xf32>
    %12 = arith.addf %9, %11 : vector<1x256xf32>
    %c0_11 = arith.constant 0 : index
    %c0_12 = arith.constant 0 : index
    %13 = vector.load %arg6[%c0_11, %c0_12] : memref<1x256xf32, #tpu.memory_space<vmem>>, vector<1x256xf32>
    tpu.vector_store %arg6[%c0_11, %c0_12], %12 {strides = array<i32>} : memref<1x256xf32, #tpu.memory_space<vmem>>, vector<1x256xf32>,
    %c0_13 = arith.constant 0 : index
    %c0_14 = arith.constant 0 : index
    %14 = vector.load %arg7[%c0_13, %c0_14] : memref<1x256xf32, #tpu.memory_space<vmem>>, vector<1x256xf32>
    %15 = arith.mulf %5, %8 : vector<8x256xf32>
    %cst_15 = arith.constant dense<0.000000e+00> : vector<256xf32>
    %16 = vector.multi_reduction <add>, %15, %cst_15 [0] : vector<8x256xf32> to vector<256xf32>
    %17 = vector.shape_cast %16 : vector<256xf32> to vector<1x256xf32>
    %18 = arith.addf %14, %17 : vector<1x256xf32>
    %c0_16 = arith.constant 0 : index
    %c0_17 = arith.constant 0 : index
    %19 = vector.load %arg7[%c0_16, %c0_17] : memref<1x256xf32, #tpu.memory_space<vmem>>, vector<1x256xf32>
    tpu.vector_store %arg7[%c0_16, %c0_17], %18 {strides = array<i32>} : memref<1x256xf32, #tpu.memory_space<vmem>>, vector<1x256xf32>,
    return
  }
  func.func @transform_0(%arg0: i32, %arg1: i32) -> (i32, i32) {
    %c0_i32 = arith.constant 0 : i32
    %c0_i32_0 = arith.constant 0 : i32
    return %arg1, %c0_i32 : i32, i32
  }
  func.func @transform_1(%arg0: i32, %arg1: i32) -> (i32, i32) {
    %c0_i32 = arith.constant 0 : i32
    %c0_i32_0 = arith.constant 0 : i32
    return %c0_i32, %arg0 : i32, i32
  }
  func.func @transform_2(%arg0: i32, %arg1: i32) -> (i32, i32) {
    %c0_i32 = arith.constant 0 : i32
    return %arg1, %arg0 : i32, i32
  }
  func.func @transform_3(%arg0: i32, %arg1: i32) -> (i32, i32) {
    %c0_i32 = arith.constant 0 : i32
    return %arg1, %arg0 : i32, i32
  }
  func.func @transform_4(%arg0: i32, %arg1: i32) -> (i32, i32) {
    %c0_i32 = arith.constant 0 : i32
    %c0_i32_0 = arith.constant 0 : i32
    return %c0_i32, %arg0 : i32, i32
  }
  func.func @transform_5(%arg0: i32, %arg1: i32) -> (i32, i32) {
    %c0_i32 = arith.constant 0 : i32
    %c0_i32_0 = arith.constant 0 : i32
    return %c0_i32, %arg0 : i32, i32
  }
}

module attributes {stable_mosaic.version = 11 : i64} {
  func.func @_affine_act_kernel(%arg0: i32, %arg1: i32, %arg2: memref<8x256xf32, #tpu.memory_space<vmem>>, %arg3: memref<1x256xf32, #tpu.memory_space<vmem>>, %arg4: memref<1x256xf32, #tpu.memory_space<vmem>>, %arg5: memref<8x256xbf16, #tpu.memory_space<vmem>>) attributes {dimension_semantics = [#tpu.dimension_semantics<parallel>, #tpu.dimension_semantics<parallel>], iteration_bounds = array<i64: 1, 12>, scalar_prefetch = 0 : i64, scratch_operands = 0 : i64, tpu.core_type = #tpu.core_type<tc>, window_params = [{transform_indices = @transform_0, window_bounds = array<i64: 8, 256>}, {transform_indices = @transform_1, window_bounds = array<i64: 1, 256>}, {transform_indices = @transform_2, window_bounds = array<i64: 1, 256>}, {transform_indices = @transform_3, window_bounds = array<i64: 8, 256>}]} {
    %c0 = arith.constant 0 : index
    %c0_0 = arith.constant 0 : index
    %0 = vector.load %arg2[%c0, %c0_0] : memref<8x256xf32, #tpu.memory_space<vmem>>, vector<8x256xf32>
    %c0_1 = arith.constant 0 : index
    %c0_2 = arith.constant 0 : index
    %1 = vector.load %arg3[%c0_1, %c0_2] : memref<1x256xf32, #tpu.memory_space<vmem>>, vector<1x256xf32>
    %2 = vector.broadcast %1 : vector<1x256xf32> to vector<8x256xf32>
    %3 = arith.mulf %0, %2 : vector<8x256xf32>
    %c0_3 = arith.constant 0 : index
    %c0_4 = arith.constant 0 : index
    %4 = vector.load %arg4[%c0_3, %c0_4] : memref<1x256xf32, #tpu.memory_space<vmem>>, vector<1x256xf32>
    %5 = vector.broadcast %4 : vector<1x256xf32> to vector<8x256xf32>
    %6 = arith.addf %3, %5 : vector<8x256xf32>
    %cst = arith.constant 0.000000e+00 : f32
    %7 = vector.broadcast %cst : f32 to vector<8x256xf32>
    %8 = arith.maximumf %6, %7 : vector<8x256xf32>
    %9 = arith.truncf %8 : vector<8x256xf32> to vector<8x256xbf16>
    %c0_5 = arith.constant 0 : index
    %c0_6 = arith.constant 0 : index
    %10 = vector.load %arg5[%c0_5, %c0_6] : memref<8x256xbf16, #tpu.memory_space<vmem>>, vector<8x256xbf16>
    tpu.vector_store %arg5[%c0_5, %c0_6], %9 {strides = array<i32>} : memref<8x256xbf16, #tpu.memory_space<vmem>>, vector<8x256xbf16>,
    return
  }
  func.func @transform_0(%arg0: i32, %arg1: i32) -> (i32, i32) {
    %c0_i32 = arith.constant 0 : i32
    return %arg0, %arg1 : i32, i32
  }
  func.func @transform_1(%arg0: i32, %arg1: i32) -> (i32, i32) {
    %c0_i32 = arith.constant 0 : i32
    %c0_i32_0 = arith.constant 0 : i32
    return %c0_i32, %arg1 : i32, i32
  }
  func.func @transform_2(%arg0: i32, %arg1: i32) -> (i32, i32) {
    %c0_i32 = arith.constant 0 : i32
    %c0_i32_0 = arith.constant 0 : i32
    return %c0_i32, %arg1 : i32, i32
  }
  func.func @transform_3(%arg0: i32, %arg1: i32) -> (i32, i32) {
    %c0_i32 = arith.constant 0 : i32
    return %arg0, %arg1 : i32, i32
  }
}

module attributes {stable_mosaic.version = 11 : i64} {
  func.func @_mm_stats_kernel(%arg0: i32, %arg1: i32, %arg2: memref<56x768xbf16, #tpu.memory_space<vmem>>, %arg3: memref<768x128xbf16, #tpu.memory_space<vmem>>, %arg4: memref<56x128xf32, #tpu.memory_space<vmem>>, %arg5: memref<56x128xf32, #tpu.memory_space<vmem>>, %arg6: memref<1x128xf32, #tpu.memory_space<vmem>>, %arg7: memref<1x128xf32, #tpu.memory_space<vmem>>) attributes {dimension_semantics = [#tpu.dimension_semantics<parallel>, #tpu.dimension_semantics<arbitrary>], iteration_bounds = array<i64: 3, 1>, scalar_prefetch = 0 : i64, scratch_operands = 0 : i64, tpu.core_type = #tpu.core_type<tc>, window_params = [{transform_indices = @transform_0, window_bounds = array<i64: 56, 768>}, {transform_indices = @transform_1, window_bounds = array<i64: 768, 128>}, {transform_indices = @transform_2, window_bounds = array<i64: 56, 128>}, {transform_indices = @transform_3, window_bounds = array<i64: 56, 128>}, {transform_indices = @transform_4, window_bounds = array<i64: 1, 128>}, {transform_indices = @transform_5, window_bounds = array<i64: 1, 128>}]} {
    %c0_i32 = arith.constant 0 : i32
    %0 = arith.cmpi eq, %arg1, %c0_i32 : i32
    %1 = arith.extui %0 : i1 to i32
    %c0_i32_0 = arith.constant 0 : i32
    %2 = arith.cmpi ne, %1, %c0_i32_0 : i32
    scf.if %2 {
      %cst_18 = arith.constant 0.000000e+00 : f32
      %20 = vector.broadcast %cst_18 : f32 to vector<1x128xf32>
      %c0_19 = arith.constant 0 : index
      %c0_20 = arith.constant 0 : index
      %21 = vector.load %arg6[%c0_19, %c0_20] : memref<1x128xf32, #tpu.memory_space<vmem>>, vector<1x128xf32>
      tpu.vector_store %arg6[%c0_19, %c0_20], %20 {strides = array<i32>} : memref<1x128xf32, #tpu.memory_space<vmem>>, vector<1x128xf32>,
      %cst_21 = arith.constant 0.000000e+00 : f32
      %22 = vector.broadcast %cst_21 : f32 to vector<1x128xf32>
      %c0_22 = arith.constant 0 : index
      %c0_23 = arith.constant 0 : index
      %23 = vector.load %arg7[%c0_22, %c0_23] : memref<1x128xf32, #tpu.memory_space<vmem>>, vector<1x128xf32>
      tpu.vector_store %arg7[%c0_22, %c0_23], %22 {strides = array<i32>} : memref<1x128xf32, #tpu.memory_space<vmem>>, vector<1x128xf32>,
    } else {
    }
    %c0 = arith.constant 0 : index
    %c0_1 = arith.constant 0 : index
    %3 = vector.load %arg2[%c0, %c0_1] : memref<56x768xbf16, #tpu.memory_space<vmem>>, vector<56x768xbf16>
    %c0_2 = arith.constant 0 : index
    %c0_3 = arith.constant 0 : index
    %4 = vector.load %arg3[%c0_2, %c0_3] : memref<768x128xbf16, #tpu.memory_space<vmem>>, vector<768x128xbf16>
    %cst = arith.constant dense<0.000000e+00> : vector<56x128xf32>
    %5 = tpu.matmul %3, %4, %cst {dimension_numbers = #tpu.dot_dimension_numbers<[1], [0], [0], [1], [0, 0, 1, 1], [], []>} : vector<56x768xbf16>, vector<768x128xbf16>, vector<56x128xf32> -> vector<56x128xf32>
    %c0_4 = arith.constant 0 : index
    %c0_5 = arith.constant 0 : index
    %6 = vector.load %arg5[%c0_4, %c0_5] : memref<56x128xf32, #tpu.memory_space<vmem>>, vector<56x128xf32>
    tpu.vector_store %arg5[%c0_4, %c0_5], %5 {strides = array<i32>} : memref<56x128xf32, #tpu.memory_space<vmem>>, vector<56x128xf32>,
    %c0_6 = arith.constant 0 : index
    %c0_7 = arith.constant 0 : index
    %7 = vector.load %arg4[%c0_6, %c0_7] : memref<56x128xf32, #tpu.memory_space<vmem>>, vector<56x128xf32>
    %8 = arith.mulf %5, %7 : vector<56x128xf32>
    %c0_8 = arith.constant 0 : index
    %c0_9 = arith.constant 0 : index
    %9 = vector.load %arg6[%c0_8, %c0_9] : memref<1x128xf32, #tpu.memory_space<vmem>>, vector<1x128xf32>
    %cst_10 = arith.constant dense<0.000000e+00> : vector<128xf32>
    %10 = vector.multi_reduction <add>, %8, %cst_10 [0] : vector<56x128xf32> to vector<128xf32>
    %11 = vector.shape_cast %10 : vector<128xf32> to vector<1x128xf32>
    %12 = arith.addf %9, %11 : vector<1x128xf32>
    %c0_11 = arith.constant 0 : index
    %c0_12 = arith.constant 0 : index
    %13 = vector.load %arg6[%c0_11, %c0_12] : memref<1x128xf32, #tpu.memory_space<vmem>>, vector<1x128xf32>
    tpu.vector_store %arg6[%c0_11, %c0_12], %12 {strides = array<i32>} : memref<1x128xf32, #tpu.memory_space<vmem>>, vector<1x128xf32>,
    %c0_13 = arith.constant 0 : index
    %c0_14 = arith.constant 0 : index
    %14 = vector.load %arg7[%c0_13, %c0_14] : memref<1x128xf32, #tpu.memory_space<vmem>>, vector<1x128xf32>
    %15 = arith.mulf %5, %8 : vector<56x128xf32>
    %cst_15 = arith.constant dense<0.000000e+00> : vector<128xf32>
    %16 = vector.multi_reduction <add>, %15, %cst_15 [0] : vector<56x128xf32> to vector<128xf32>
    %17 = vector.shape_cast %16 : vector<128xf32> to vector<1x128xf32>
    %18 = arith.addf %14, %17 : vector<1x128xf32>
    %c0_16 = arith.constant 0 : index
    %c0_17 = arith.constant 0 : index
    %19 = vector.load %arg7[%c0_16, %c0_17] : memref<1x128xf32, #tpu.memory_space<vmem>>, vector<1x128xf32>
    tpu.vector_store %arg7[%c0_16, %c0_17], %18 {strides = array<i32>} : memref<1x128xf32, #tpu.memory_space<vmem>>, vector<1x128xf32>,
    return
  }
  func.func @transform_0(%arg0: i32, %arg1: i32) -> (i32, i32) {
    %c0_i32 = arith.constant 0 : i32
    %c0_i32_0 = arith.constant 0 : i32
    return %arg1, %c0_i32 : i32, i32
  }
  func.func @transform_1(%arg0: i32, %arg1: i32) -> (i32, i32) {
    %c0_i32 = arith.constant 0 : i32
    %c0_i32_0 = arith.constant 0 : i32
    return %c0_i32, %arg0 : i32, i32
  }
  func.func @transform_2(%arg0: i32, %arg1: i32) -> (i32, i32) {
    %c0_i32 = arith.constant 0 : i32
    return %arg1, %arg0 : i32, i32
  }
  func.func @transform_3(%arg0: i32, %arg1: i32) -> (i32, i32) {
    %c0_i32 = arith.constant 0 : i32
    return %arg1, %arg0 : i32, i32
  }
  func.func @transform_4(%arg0: i32, %arg1: i32) -> (i32, i32) {
    %c0_i32 = arith.constant 0 : i32
    %c0_i32_0 = arith.constant 0 : i32
    return %c0_i32, %arg0 : i32, i32
  }
  func.func @transform_5(%arg0: i32, %arg1: i32) -> (i32, i32) {
    %c0_i32 = arith.constant 0 : i32
    %c0_i32_0 = arith.constant 0 : i32
    return %c0_i32, %arg0 : i32, i32
  }
}

module attributes {stable_mosaic.version = 11 : i64} {
  func.func @_affine_act_kernel(%arg0: i32, %arg1: i32, %arg2: memref<56x128xf32, #tpu.memory_space<vmem>>, %arg3: memref<1x128xf32, #tpu.memory_space<vmem>>, %arg4: memref<1x128xf32, #tpu.memory_space<vmem>>, %arg5: memref<56x128xbf16, #tpu.memory_space<vmem>>) attributes {dimension_semantics = [#tpu.dimension_semantics<parallel>, #tpu.dimension_semantics<parallel>], iteration_bounds = array<i64: 1, 3>, scalar_prefetch = 0 : i64, scratch_operands = 0 : i64, tpu.core_type = #tpu.core_type<tc>, window_params = [{transform_indices = @transform_0, window_bounds = array<i64: 56, 128>}, {transform_indices = @transform_1, window_bounds = array<i64: 1, 128>}, {transform_indices = @transform_2, window_bounds = array<i64: 1, 128>}, {transform_indices = @transform_3, window_bounds = array<i64: 56, 128>}]} {
    %c0 = arith.constant 0 : index
    %c0_0 = arith.constant 0 : index
    %0 = vector.load %arg2[%c0, %c0_0] : memref<56x128xf32, #tpu.memory_space<vmem>>, vector<56x128xf32>
    %c0_1 = arith.constant 0 : index
    %c0_2 = arith.constant 0 : index
    %1 = vector.load %arg3[%c0_1, %c0_2] : memref<1x128xf32, #tpu.memory_space<vmem>>, vector<1x128xf32>
    %2 = vector.broadcast %1 : vector<1x128xf32> to vector<56x128xf32>
    %3 = arith.mulf %0, %2 : vector<56x128xf32>
    %c0_3 = arith.constant 0 : index
    %c0_4 = arith.constant 0 : index
    %4 = vector.load %arg4[%c0_3, %c0_4] : memref<1x128xf32, #tpu.memory_space<vmem>>, vector<1x128xf32>
    %5 = vector.broadcast %4 : vector<1x128xf32> to vector<56x128xf32>
    %6 = arith.addf %3, %5 : vector<56x128xf32>
    %cst = arith.constant 0.000000e+00 : f32
    %7 = vector.broadcast %cst : f32 to vector<56x128xf32>
    %8 = arith.maximumf %6, %7 : vector<56x128xf32>
    %9 = arith.truncf %8 : vector<56x128xf32> to vector<56x128xbf16>
    %c0_5 = arith.constant 0 : index
    %c0_6 = arith.constant 0 : index
    %10 = vector.load %arg5[%c0_5, %c0_6] : memref<56x128xbf16, #tpu.memory_space<vmem>>, vector<56x128xbf16>
    tpu.vector_store %arg5[%c0_5, %c0_6], %9 {strides = array<i32>} : memref<56x128xbf16, #tpu.memory_space<vmem>>, vector<56x128xbf16>,
    return
  }
  func.func @transform_0(%arg0: i32, %arg1: i32) -> (i32, i32) {
    %c0_i32 = arith.constant 0 : i32
    return %arg0, %arg1 : i32, i32
  }
  func.func @transform_1(%arg0: i32, %arg1: i32) -> (i32, i32) {
    %c0_i32 = arith.constant 0 : i32
    %c0_i32_0 = arith.constant 0 : i32
    return %c0_i32, %arg1 : i32, i32
  }
  func.func @transform_2(%arg0: i32, %arg1: i32) -> (i32, i32) {
    %c0_i32 = arith.constant 0 : i32
    %c0_i32_0 = arith.constant 0 : i32
    return %c0_i32, %arg1 : i32, i32
  }
  func.func @transform_3(%arg0: i32, %arg1: i32) -> (i32, i32) {
    %c0_i32 = arith.constant 0 : i32
    return %arg0, %arg1 : i32, i32
  }
}

module attributes {stable_mosaic.version = 11 : i64} {
  func.func @_mm_stats_kernel(%arg0: i32, %arg1: i32, %arg2: memref<168x384xbf16, #tpu.memory_space<vmem>>, %arg3: memref<384x256xbf16, #tpu.memory_space<vmem>>, %arg4: memref<168x256xf32, #tpu.memory_space<vmem>>, %arg5: memref<168x256xf32, #tpu.memory_space<vmem>>, %arg6: memref<1x256xf32, #tpu.memory_space<vmem>>, %arg7: memref<1x256xf32, #tpu.memory_space<vmem>>) attributes {dimension_semantics = [#tpu.dimension_semantics<parallel>, #tpu.dimension_semantics<arbitrary>], iteration_bounds = array<i64: 1, 1>, scalar_prefetch = 0 : i64, scratch_operands = 0 : i64, tpu.core_type = #tpu.core_type<tc>, window_params = [{transform_indices = @transform_0, window_bounds = array<i64: 168, 384>}, {transform_indices = @transform_1, window_bounds = array<i64: 384, 256>}, {transform_indices = @transform_2, window_bounds = array<i64: 168, 256>}, {transform_indices = @transform_3, window_bounds = array<i64: 168, 256>}, {transform_indices = @transform_4, window_bounds = array<i64: 1, 256>}, {transform_indices = @transform_5, window_bounds = array<i64: 1, 256>}]} {
    %c0_i32 = arith.constant 0 : i32
    %0 = arith.cmpi eq, %arg1, %c0_i32 : i32
    %1 = arith.extui %0 : i1 to i32
    %c0_i32_0 = arith.constant 0 : i32
    %2 = arith.cmpi ne, %1, %c0_i32_0 : i32
    scf.if %2 {
      %cst_18 = arith.constant 0.000000e+00 : f32
      %20 = vector.broadcast %cst_18 : f32 to vector<1x256xf32>
      %c0_19 = arith.constant 0 : index
      %c0_20 = arith.constant 0 : index
      %21 = vector.load %arg6[%c0_19, %c0_20] : memref<1x256xf32, #tpu.memory_space<vmem>>, vector<1x256xf32>
      tpu.vector_store %arg6[%c0_19, %c0_20], %20 {strides = array<i32>} : memref<1x256xf32, #tpu.memory_space<vmem>>, vector<1x256xf32>,
      %cst_21 = arith.constant 0.000000e+00 : f32
      %22 = vector.broadcast %cst_21 : f32 to vector<1x256xf32>
      %c0_22 = arith.constant 0 : index
      %c0_23 = arith.constant 0 : index
      %23 = vector.load %arg7[%c0_22, %c0_23] : memref<1x256xf32, #tpu.memory_space<vmem>>, vector<1x256xf32>
      tpu.vector_store %arg7[%c0_22, %c0_23], %22 {strides = array<i32>} : memref<1x256xf32, #tpu.memory_space<vmem>>, vector<1x256xf32>,
    } else {
    }
    %c0 = arith.constant 0 : index
    %c0_1 = arith.constant 0 : index
    %3 = vector.load %arg2[%c0, %c0_1] : memref<168x384xbf16, #tpu.memory_space<vmem>>, vector<168x384xbf16>
    %c0_2 = arith.constant 0 : index
    %c0_3 = arith.constant 0 : index
    %4 = vector.load %arg3[%c0_2, %c0_3] : memref<384x256xbf16, #tpu.memory_space<vmem>>, vector<384x256xbf16>
    %cst = arith.constant dense<0.000000e+00> : vector<168x256xf32>
    %5 = tpu.matmul %3, %4, %cst {dimension_numbers = #tpu.dot_dimension_numbers<[1], [0], [0], [1], [0, 0, 1, 1], [], []>} : vector<168x384xbf16>, vector<384x256xbf16>, vector<168x256xf32> -> vector<168x256xf32>
    %c0_4 = arith.constant 0 : index
    %c0_5 = arith.constant 0 : index
    %6 = vector.load %arg5[%c0_4, %c0_5] : memref<168x256xf32, #tpu.memory_space<vmem>>, vector<168x256xf32>
    tpu.vector_store %arg5[%c0_4, %c0_5], %5 {strides = array<i32>} : memref<168x256xf32, #tpu.memory_space<vmem>>, vector<168x256xf32>,
    %c0_6 = arith.constant 0 : index
    %c0_7 = arith.constant 0 : index
    %7 = vector.load %arg4[%c0_6, %c0_7] : memref<168x256xf32, #tpu.memory_space<vmem>>, vector<168x256xf32>
    %8 = arith.mulf %5, %7 : vector<168x256xf32>
    %c0_8 = arith.constant 0 : index
    %c0_9 = arith.constant 0 : index
    %9 = vector.load %arg6[%c0_8, %c0_9] : memref<1x256xf32, #tpu.memory_space<vmem>>, vector<1x256xf32>
    %cst_10 = arith.constant dense<0.000000e+00> : vector<256xf32>
    %10 = vector.multi_reduction <add>, %8, %cst_10 [0] : vector<168x256xf32> to vector<256xf32>
    %11 = vector.shape_cast %10 : vector<256xf32> to vector<1x256xf32>
    %12 = arith.addf %9, %11 : vector<1x256xf32>
    %c0_11 = arith.constant 0 : index
    %c0_12 = arith.constant 0 : index
    %13 = vector.load %arg6[%c0_11, %c0_12] : memref<1x256xf32, #tpu.memory_space<vmem>>, vector<1x256xf32>
    tpu.vector_store %arg6[%c0_11, %c0_12], %12 {strides = array<i32>} : memref<1x256xf32, #tpu.memory_space<vmem>>, vector<1x256xf32>,
    %c0_13 = arith.constant 0 : index
    %c0_14 = arith.constant 0 : index
    %14 = vector.load %arg7[%c0_13, %c0_14] : memref<1x256xf32, #tpu.memory_space<vmem>>, vector<1x256xf32>
    %15 = arith.mulf %5, %8 : vector<168x256xf32>
    %cst_15 = arith.constant dense<0.000000e+00> : vector<256xf32>
    %16 = vector.multi_reduction <add>, %15, %cst_15 [0] : vector<168x256xf32> to vector<256xf32>
    %17 = vector.shape_cast %16 : vector<256xf32> to vector<1x256xf32>
    %18 = arith.addf %14, %17 : vector<1x256xf32>
    %c0_16 = arith.constant 0 : index
    %c0_17 = arith.constant 0 : index
    %19 = vector.load %arg7[%c0_16, %c0_17] : memref<1x256xf32, #tpu.memory_space<vmem>>, vector<1x256xf32>
    tpu.vector_store %arg7[%c0_16, %c0_17], %18 {strides = array<i32>} : memref<1x256xf32, #tpu.memory_space<vmem>>, vector<1x256xf32>,
    return
  }
  func.func @transform_0(%arg0: i32, %arg1: i32) -> (i32, i32) {
    %c0_i32 = arith.constant 0 : i32
    %c0_i32_0 = arith.constant 0 : i32
    return %arg1, %c0_i32 : i32, i32
  }
  func.func @transform_1(%arg0: i32, %arg1: i32) -> (i32, i32) {
    %c0_i32 = arith.constant 0 : i32
    %c0_i32_0 = arith.constant 0 : i32
    return %c0_i32, %arg0 : i32, i32
  }
  func.func @transform_2(%arg0: i32, %arg1: i32) -> (i32, i32) {
    %c0_i32 = arith.constant 0 : i32
    return %arg1, %arg0 : i32, i32
  }
  func.func @transform_3(%arg0: i32, %arg1: i32) -> (i32, i32) {
    %c0_i32 = arith.constant 0 : i32
    return %arg1, %arg0 : i32, i32
  }
  func.func @transform_4(%arg0: i32, %arg1: i32) -> (i32, i32) {
    %c0_i32 = arith.constant 0 : i32
    %c0_i32_0 = arith.constant 0 : i32
    return %c0_i32, %arg0 : i32, i32
  }
  func.func @transform_5(%arg0: i32, %arg1: i32) -> (i32, i32) {
    %c0_i32 = arith.constant 0 : i32
    %c0_i32_0 = arith.constant 0 : i32
    return %c0_i32, %arg0 : i32, i32
  }
}

module attributes {stable_mosaic.version = 11 : i64} {
  func.func @_affine_act_kernel(%arg0: i32, %arg1: i32, %arg2: memref<168x256xf32, #tpu.memory_space<vmem>>, %arg3: memref<1x256xf32, #tpu.memory_space<vmem>>, %arg4: memref<1x256xf32, #tpu.memory_space<vmem>>, %arg5: memref<168x256xbf16, #tpu.memory_space<vmem>>) attributes {dimension_semantics = [#tpu.dimension_semantics<parallel>, #tpu.dimension_semantics<parallel>], iteration_bounds = array<i64: 1, 1>, scalar_prefetch = 0 : i64, scratch_operands = 0 : i64, tpu.core_type = #tpu.core_type<tc>, window_params = [{transform_indices = @transform_0, window_bounds = array<i64: 168, 256>}, {transform_indices = @transform_1, window_bounds = array<i64: 1, 256>}, {transform_indices = @transform_2, window_bounds = array<i64: 1, 256>}, {transform_indices = @transform_3, window_bounds = array<i64: 168, 256>}]} {
    %c0 = arith.constant 0 : index
    %c0_0 = arith.constant 0 : index
    %0 = vector.load %arg2[%c0, %c0_0] : memref<168x256xf32, #tpu.memory_space<vmem>>, vector<168x256xf32>
    %c0_1 = arith.constant 0 : index
    %c0_2 = arith.constant 0 : index
    %1 = vector.load %arg3[%c0_1, %c0_2] : memref<1x256xf32, #tpu.memory_space<vmem>>, vector<1x256xf32>
    %2 = vector.broadcast %1 : vector<1x256xf32> to vector<168x256xf32>
    %3 = arith.mulf %0, %2 : vector<168x256xf32>
    %c0_3 = arith.constant 0 : index
    %c0_4 = arith.constant 0 : index
    %4 = vector.load %arg4[%c0_3, %c0_4] : memref<1x256xf32, #tpu.memory_space<vmem>>, vector<1x256xf32>
    %5 = vector.broadcast %4 : vector<1x256xf32> to vector<168x256xf32>
    %6 = arith.addf %3, %5 : vector<168x256xf32>
    %cst = arith.constant 0.000000e+00 : f32
    %7 = vector.broadcast %cst : f32 to vector<168x256xf32>
    %8 = arith.maximumf %6, %7 : vector<168x256xf32>
    %9 = arith.truncf %8 : vector<168x256xf32> to vector<168x256xbf16>
    %c0_5 = arith.constant 0 : index
    %c0_6 = arith.constant 0 : index
    %10 = vector.load %arg5[%c0_5, %c0_6] : memref<168x256xbf16, #tpu.memory_space<vmem>>, vector<168x256xbf16>
    tpu.vector_store %arg5[%c0_5, %c0_6], %9 {strides = array<i32>} : memref<168x256xbf16, #tpu.memory_space<vmem>>, vector<168x256xbf16>,
    return
  }
  func.func @transform_0(%arg0: i32, %arg1: i32) -> (i32, i32) {
    %c0_i32 = arith.constant 0 : i32
    return %arg0, %arg1 : i32, i32
  }
  func.func @transform_1(%arg0: i32, %arg1: i32) -> (i32, i32) {
    %c0_i32 = arith.constant 0 : i32
    %c0_i32_0 = arith.constant 0 : i32
    return %c0_i32, %arg1 : i32, i32
  }
  func.func @transform_2(%arg0: i32, %arg1: i32) -> (i32, i32) {
    %c0_i32 = arith.constant 0 : i32
    %c0_i32_0 = arith.constant 0 : i32
    return %c0_i32, %arg1 : i32, i32
  }
  func.func @transform_3(%arg0: i32, %arg1: i32) -> (i32, i32) {
    %c0_i32 = arith.constant 0 : i32
    return %arg0, %arg1 : i32, i32
  }
}

module attributes {stable_mosaic.version = 11 : i64} {
  func.func @_mm_act_kernel(%arg0: i32, %arg1: i32, %arg2: memref<256x192xbf16, #tpu.memory_space<vmem>>, %arg3: memref<192x128xbf16, #tpu.memory_space<vmem>>, %arg4: memref<1x128xf32, #tpu.memory_space<vmem>>, %arg5: memref<1x128xf32, #tpu.memory_space<vmem>>, %arg6: memref<256x128xf32, #tpu.memory_space<vmem>>) attributes {dimension_semantics = [#tpu.dimension_semantics<parallel>, #tpu.dimension_semantics<parallel>], iteration_bounds = array<i64: 3, 1>, scalar_prefetch = 0 : i64, scratch_operands = 0 : i64, tpu.core_type = #tpu.core_type<tc>, window_params = [{transform_indices = @transform_0, window_bounds = array<i64: 256, 192>}, {transform_indices = @transform_1, window_bounds = array<i64: 192, 128>}, {transform_indices = @transform_2, window_bounds = array<i64: 1, 128>}, {transform_indices = @transform_3, window_bounds = array<i64: 1, 128>}, {transform_indices = @transform_4, window_bounds = array<i64: 256, 128>}]} {
    %c0 = arith.constant 0 : index
    %c0_0 = arith.constant 0 : index
    %0 = vector.load %arg2[%c0, %c0_0] : memref<256x192xbf16, #tpu.memory_space<vmem>>, vector<256x192xbf16>
    %c0_1 = arith.constant 0 : index
    %c0_2 = arith.constant 0 : index
    %1 = vector.load %arg3[%c0_1, %c0_2] : memref<192x128xbf16, #tpu.memory_space<vmem>>, vector<192x128xbf16>
    %cst = arith.constant dense<0.000000e+00> : vector<256x128xf32>
    %2 = tpu.matmul %0, %1, %cst {dimension_numbers = #tpu.dot_dimension_numbers<[1], [0], [0], [1], [0, 0, 1, 1], [], []>} : vector<256x192xbf16>, vector<192x128xbf16>, vector<256x128xf32> -> vector<256x128xf32>
    %c0_3 = arith.constant 0 : index
    %c0_4 = arith.constant 0 : index
    %3 = vector.load %arg4[%c0_3, %c0_4] : memref<1x128xf32, #tpu.memory_space<vmem>>, vector<1x128xf32>
    %4 = vector.broadcast %3 : vector<1x128xf32> to vector<256x128xf32>
    %5 = arith.mulf %2, %4 : vector<256x128xf32>
    %c0_5 = arith.constant 0 : index
    %c0_6 = arith.constant 0 : index
    %6 = vector.load %arg5[%c0_5, %c0_6] : memref<1x128xf32, #tpu.memory_space<vmem>>, vector<1x128xf32>
    %7 = vector.broadcast %6 : vector<1x128xf32> to vector<256x128xf32>
    %8 = arith.addf %5, %7 : vector<256x128xf32>
    %9 = math.tanh %8 : vector<256x128xf32>
    %c0_7 = arith.constant 0 : index
    %c0_8 = arith.constant 0 : index
    %10 = vector.load %arg6[%c0_7, %c0_8] : memref<256x128xf32, #tpu.memory_space<vmem>>, vector<256x128xf32>
    tpu.vector_store %arg6[%c0_7, %c0_8], %9 {strides = array<i32>} : memref<256x128xf32, #tpu.memory_space<vmem>>, vector<256x128xf32>,
    return
  }
  func.func @transform_0(%arg0: i32, %arg1: i32) -> (i32, i32) {
    %c0_i32 = arith.constant 0 : i32
    %c0_i32_0 = arith.constant 0 : i32
    return %arg0, %c0_i32 : i32, i32
  }
  func.func @transform_1(%arg0: i32, %arg1: i32) -> (i32, i32) {
    %c0_i32 = arith.constant 0 : i32
    %c0_i32_0 = arith.constant 0 : i32
    return %c0_i32, %arg1 : i32, i32
  }
  func.func @transform_2(%arg0: i32, %arg1: i32) -> (i32, i32) {
    %c0_i32 = arith.constant 0 : i32
    %c0_i32_0 = arith.constant 0 : i32
    return %c0_i32, %arg1 : i32, i32
  }
  func.func @transform_3(%arg0: i32, %arg1: i32) -> (i32, i32) {
    %c0_i32 = arith.constant 0 : i32
    %c0_i32_0 = arith.constant 0 : i32
    return %c0_i32, %arg1 : i32, i32
  }
  func.func @transform_4(%arg0: i32, %arg1: i32) -> (i32, i32) {
    %c0_i32 = arith.constant 0 : i32
    return %arg0, %arg1 : i32, i32
  }
}

</mosaic_0001>

<llo_original>
// kernel: squeeze.18
$region0: #{squeeze.18}
  %s0 = inlined_call_operand.vmem [shape: f32[3072], index: 0, kind: input, shape index: {}]
  %s1 = inlined_call_operand.vmem [shape: f32[16,192], index: 1, kind: output, shape index: {}]
  %s2 = scalar_lea.vmem %s0, 1
  %v3 = vld [vmem:[%s2] ss:$3 sm:$0xff]
  %vm4 = vcmask 523264
  %s5 = scalar_lea.vmem %s1, 8
  %6 = vst.msk [vmem:[%s5] ss:$2 sm:$0xf] %vm4, %v3
  %s7 = scalar_lea.vmem %s1, 16
  %8 = vst.msk [vmem:[%s7] ss:$2 sm:$0xf0] %vm4, %v3
  %v9 = vld [vmem:[%s0] ss:$3 sm:$0xff]
  %10 = vst [vmem:[%s1] ss:$2 sm:$0xf] %v9
  %s11 = scalar_lea.vmem %s1, 8
  %12 = vst [vmem:[%s11] ss:$2 sm:$0xf0] %v9
  %s13 = scalar_lea.vmem %s0, 1
  %v14 = vld.sshfl [vmem:[%s13] sm:$0xff pattern:$0xa7419630]
  %s15 = scalar_lea.vmem %s0, 2
  %v16 = vld [vmem:[%s15] ss:$3 sm:$0xff]
  %vm17 = vcmask 523264
  %v18 = vsel %vm17, %v16, %v14
  %19 = vrot.lane.b32.xlu0 %v18, 64
  %v20 = vpop.permute.xlu0 %19
  %vm21 = vcmask 523264
  %s22 = scalar_lea.vmem %s1, 1
  %23 = vst.msk [vmem:[%s22] ss:$2 sm:$0xff] %vm21, %v20
  %vm24 = vcmask 1048064
  %s25 = scalar_lea.vmem %s1, 1
  %26 = vst.msk [vmem:[%s25] ss:$2 sm:$0xf] %vm24, %v20
  %s27 = scalar_lea.vmem %s1, 9
  %28 = vst.msk [vmem:[%s27] ss:$2 sm:$0xf0] %vm24, %v20
  %s29 = scalar_lea.vmem %s0, 13
  %v30 = vld.sshfl [vmem:[%s29] sm:$0xff pattern:$0xa7419630]
  %31 = vrot.lane.b32.xlu0 %v30, 64
  %v32 = vpop.permute.xlu0 %31
  %vm33 = vcmask 523264
  %s34 = scalar_lea.vmem %s1, 17
  %35 = vst.msk [vmem:[%s34] ss:$2 sm:$0xff] %vm33, %v32

// kernel: tile.37
$region0: #{tile.37}
  #allocation0 [shape = 's32[1]{0}', space=sflag, size = 0x4, scoped, tag = 'scoped memory for tile.37']
  %s0 = inlined_call_operand.vmem [shape: f32[192], index: 0, kind: input, shape index: {}]
  %s1 = inlined_call_operand.vmem [shape: f32[16,192], index: 1, kind: output, shape index: {}]
  // Predicated region
  $region2: #{tile.37} parent=0 // pred_check
    _
  $region3: #{tile.37} parent=0 // pred_check_branch
    %3 = sbr.rel (0) target = $region5
  $region4: #{tile.37} parent=0 // pred_region
    _
  $region5: #{tile.37} parent=0 // pred_fallthru
    _
  %v4 = vld [vmem:[%s0] ss:$0 sm:$0xff]
  %5 = vst [vmem:[%s1] sm:$0xff] %v4
  %s6 = scalar_lea.vmem %s1, 16
  %7 = vst [vmem:[%s6] sm:$0xff] %v4
  %s8 = scalar_lea.vmem %s0, 1
  %v9 = vld [vmem:[%s8] ss:$0 sm:$0xff]
  %s10 = scalar_lea.vmem %s1, 8
  %11 = vst [vmem:[%s10] sm:$0xff] %v9
  %s12 = scalar_lea.vmem %s1, 24
  %13 = vst [vmem:[%s12] sm:$0xff] %v9

// kernel: tile.39
$region0: #{tile.39}
  %s0 = inlined_call_operand.vmem [shape: f32[16,192], index: 0, kind: input, shape index: {}]
  %s1 = inlined_call_operand.vmem [shape: f32[1,3072], index: 1, kind: output, shape index: {}]
  $region1: #{tile.39} parent=0
    #allocation0 [shape = 'u8[98304]{0}', space=vmem, size = 0x18000, scoped, tag = 'scoped mem for output reshape']
    %s2 = scalar_lea.vmem %s0, 8
    %v3 = vld [vmem:[%s2] ss:$2 sm:$0xf]
    %vm4 = vcmask 523264
    %s5 = scalar_lea.vmem [#allocation0], 8
    %6 = vst.msk [vmem:[%s5] ss:$24 sm:$0xf] %vm4, %v3
    %s7 = scalar_lea.vmem %s0, 24
    %v8 = vld [vmem:[%s7] ss:$2 sm:$0xf]
    %vm9 = vcmask 523264
    %s10 = scalar_lea.vmem [#allocation0], 104
    %11 = vst.msk [vmem:[%s10] ss:$24 sm:$0xf] %vm9, %v8
    %v12 = vld [vmem:[%s0] ss:$2 sm:$0xf]
    %13 = vst [vmem:[#allocation0] ss:$24 sm:$0xf] %v12
    %s14 = scalar_lea.vmem %s0, 16
    %v15 = vld [vmem:[%s14] ss:$2 sm:$0xf]
    %s16 = scalar_lea.vmem [#allocation0], 96
    %17 = vst [vmem:[%s16] ss:$24 sm:$0xf] %v15
    %s18 = scalar_lea.vmem %s0, 1
    %v19 = vld.sshfl [vmem:[%s18] sm:$0xff pattern:$0x66666024]
    %s20 = scalar_lea.vmem %s0, 17
    %v21 = vld.sshfl [vmem:[%s20] sm:$0xff pattern:$0x60244444]
    %vm22 = vcmask 1047556
    %v23 = vsel %vm22, %v21, %v19
    %s24 = scalar_lea.vmem %s0, 1
    %v25 = vld.sshfl [vmem:[%s24] sm:$0xff pattern:$0xe8ac4602]
    %vm26 = vcmask 523264
    %v27 = vsel %vm26, %v25, %v23
    %28 = vrot.lane.b32.xlu0 %v27, 64
    %v29 = vpop.permute.xlu0 %28
    %vm30 = vcmask 523264
    %s31 = scalar_lea.vmem [#allocation0], 64
    %32 = vst.msk [vmem:[%s31] ss:$-24 sm:$0x7] %vm30, %v29
    %s33 = scalar_lea.vmem [#allocation0], 4294967168
    %34 = vst.msk [vmem:[%s33] ss:$72 sm:$0x18] %vm30, %v29
    %s35 = scalar_lea.vmem [#allocation0], 256
    %36 = vst.msk [vmem:[%s35] ss:$-24 sm:$0x60] %vm30, %v29
    %s37 = scalar_lea.vmem [#allocation0], 177
    %38 = vst.msk [vmem:[%s37] sm:$0x80] %vm30, %v29
    %vm39 = vcmask 1048064
    %s40 = scalar_lea.vmem [#allocation0], 32
    %41 = vst.msk [vmem:[%s40] ss:$-24 sm:$0x3] %vm39, %v29
    %s42 = scalar_lea.vmem [#allocation0], 128
    %43 = vst.msk [vmem:[%s42] ss:$-24 sm:$0xc] %vm39, %v29
    %s44 = scalar_lea.vmem [#allocation0], 160
    %45 = vst.msk [vmem:[%s44] ss:$-24 sm:$0x70] %vm39, %v29
    %s46 = scalar_lea.vmem [#allocation0], 81
    %47 = vst.msk [vmem:[%s46] sm:$0x80] %vm39, %v29
    %s48 = scalar_lea.vmem %s0, 17
    %v49 = vld.sshfl [vmem:[%s48] sm:$0xff pattern:$0xe8ac4602]
    %50 = vrot.lane.b32.xlu0 %v49, 64
    %v51 = vpop.permute.xlu0 %50
    %vm52 = vcmask 1048064
    %s53 = scalar_lea.vmem [#allocation0], 128
    %54 = vst.msk [vmem:[%s53] ss:$-24 sm:$0x3] %vm52, %v51
    %s55 = scalar_lea.vmem [#allocation0], 224
    %56 = vst.msk [vmem:[%s55] ss:$-24 sm:$0xc] %vm52, %v51
    %s57 = scalar_lea.vmem [#allocation0], 256
    %58 = vst.msk [vmem:[%s57] ss:$-24 sm:$0x70] %vm52, %v51
    %s59 = scalar_lea.vmem [#allocation0], 177
    %60 = vst.msk [vmem:[%s59] sm:$0x80] %vm52, %v51
    %s62 = sshllo.u32 0, 1
    %v64 = vld [vmem:[#allocation0] sm:%s62]
    %s65 = sshllo.u32 0, 1
    %66 = vst [vmem:[%s1] sm:%s65] %v64
    %s67 = scalar_lea.vmem [#allocation0], 8
    %v68 = vld [vmem:[%s67] sm:%s62]
    %s69 = sshllo.u32 0, 1
    %s70 = scalar_lea.vmem %s1, 1
    %71 = vst [vmem:[%s70] sm:%s69] %v68
    %s72 = scalar_lea.vmem [#allocation0], 16
    %v73 = vld [vmem:[%s72] sm:%s62]
    %s74 = sshllo.u32 0, 1
    %s75 = smul.addr 1, 2
    %s76 = scalar_lea.vmem %s1, %s75
    %77 = vst [vmem:[%s76] sm:%s74] %v73
    %s78 = scalar_lea.vmem [#allocation0], 24
    %v79 = vld [vmem:[%s78] sm:%s62]
    %s80 = sshllo.u32 0, 1
    %s81 = smul.addr 1, 3
    %s82 = scalar_lea.vmem %s1, %s81
    %83 = vst [vmem:[%s82] sm:%s80] %v79
    %s84 = scalar_lea.vmem [#allocation0], 32
    %v85 = vld [vmem:[%s84] sm:%s62]
    %s86 = sshllo.u32 0, 1
    %s87 = smul.addr 1, 4
    %s88 = scalar_lea.vmem %s1, %s87
    %89 = vst [vmem:[%s88] sm:%s86] %v85
    %s90 = scalar_lea.vmem [#allocation0], 40
    %v91 = vld [vmem:[%s90] sm:%s62]
    %s92 = sshllo.u32 0, 1
    %s93 = smul.addr 1, 5
    %s94 = scalar_lea.vmem %s1, %s93
    %95 = vst [vmem:[%s94] sm:%s92] %v91
    %s96 = scalar_lea.vmem [#allocation0], 48
    %v97 = vld [vmem:[%s96] sm:%s62]
    %s98 = sshllo.u32 0, 1
    %s99 = smul.addr 1, 6
    %s100 = scalar_lea.vmem %s1, %s99
    %101 = vst [vmem:[%s100] sm:%s98] %v97
    %s102 = scalar_lea.vmem [#allocation0], 56
    %v103 = vld [vmem:[%s102] sm:%s62]
    %s104 = sshllo.u32 0, 1
    %s105 = smul.addr 1, 7
    %s106 = scalar_lea.vmem %s1, %s105
    %107 = vst [vmem:[%s106] sm:%s104] %v103
    %s108 = scalar_lea.vmem [#allocation0], 64
    %v109 = vld [vmem:[%s108] sm:%s62]
    %s110 = sshllo.u32 0, 1
    %s111 = smul.addr 1, 8
    %s112 = scalar_lea.vmem %s1, %s111
    %113 = vst [vmem:[%s112] sm:%s110] %v109
    %s114 = scalar_lea.vmem [#allocation0], 72
    %v115 = vld [vmem:[%s114] sm:%s62]
    %s116 = sshllo.u32 0, 1
    %s117 = smul.addr 1, 9
    %s118 = scalar_lea.vmem %s1, %s117
    %119 = vst [vmem:[%s118] sm:%s116] %v115
    %s120 = scalar_lea.vmem [#allocation0], 80
    %v121 = vld [vmem:[%s120] sm:%s62]
    %s122 = sshllo.u32 0, 1
    %s123 = smul.addr 1, 10
    %s124 = scalar_lea.vmem %s1, %s123
    %125 = vst [vmem:[%s124] sm:%s122] %v121
    %s126 = scalar_lea.vmem [#allocation0], 88
    %v127 = vld [vmem:[%s126] sm:%s62]
    %s128 = sshllo.u32 0, 1
    %s129 = smul.addr 1, 11
    %s130 = scalar_lea.vmem %s1, %s129
    %131 = vst [vmem:[%s130] sm:%s128] %v127
    %s132 = scalar_lea.vmem [#allocation0], 96
    %v133 = vld [vmem:[%s132] sm:%s62]
    %s134 = sshllo.u32 0, 1
    %s135 = smul.addr 1, 12
    %s136 = scalar_lea.vmem %s1, %s135
    %137 = vst [vmem:[%s136] sm:%s134] %v133
    %s138 = scalar_lea.vmem [#allocation0], 104
    %v139 = vld [vmem:[%s138] sm:%s62]
    %s140 = sshllo.u32 0, 1
    %s141 = smul.addr 1, 13
    %s142 = scalar_lea.vmem %s1, %s141
    %143 = vst [vmem:[%s142] sm:%s140] %v139
    %s144 = scalar_lea.vmem [#allocation0], 112
    %v145 = vld [vmem:[%s144] sm:%s62]
    %s146 = sshllo.u32 0, 1
    %s147 = smul.addr 1, 14
    %s148 = scalar_lea.vmem %s1, %s147
    %149 = vst [vmem:[%s148] sm:%s146] %v145
    %s150 = scalar_lea.vmem [#allocation0], 120
    %v151 = vld [vmem:[%s150] sm:%s62]
    %s152 = sshllo.u32 0, 1
    %s153 = smul.addr 1, 15
    %s154 = scalar_lea.vmem %s1, %s153
    %155 = vst [vmem:[%s154] sm:%s152] %v151
    %s156 = scalar_lea.vmem [#allocation0], 128
    %v157 = vld [vmem:[%s156] sm:%s62]
    %s158 = sshllo.u32 0, 1
    %s159 = smul.addr 1, 16
    %s160 = scalar_lea.vmem %s1, %s159
    %161 = vst [vmem:[%s160] sm:%s158] %v157
    %s162 = scalar_lea.vmem [#allocation0], 136
    %v163 = vld [vmem:[%s162] sm:%s62]
    %s164 = sshllo.u32 0, 1
    %s165 = smul.addr 1, 17
    %s166 = scalar_lea.vmem %s1, %s165
    %167 = vst [vmem:[%s166] sm:%s164] %v163
    %s168 = scalar_lea.vmem [#allocation0], 144
    %v169 = vld [vmem:[%s168] sm:%s62]
    %s170 = sshllo.u32 0, 1
    %s171 = smul.addr 1, 18
    %s172 = scalar_lea.vmem %s1, %s171
    %173 = vst [vmem:[%s172] sm:%s170] %v169
    %s174 = scalar_lea.vmem [#allocation0], 152
    %v175 = vld [vmem:[%s174] sm:%s62]
    %s176 = sshllo.u32 0, 1
    %s177 = smul.addr 1, 19
    %s178 = scalar_lea.vmem %s1, %s177
    %179 = vst [vmem:[%s178] sm:%s176] %v175
    %s180 = scalar_lea.vmem [#allocation0], 160
    %v181 = vld [vmem:[%s180] sm:%s62]
    %s182 = sshllo.u32 0, 1
    %s183 = smul.addr 1, 20
    %s184 = scalar_lea.vmem %s1, %s183
    %185 = vst [vmem:[%s184] sm:%s182] %v181
    %s186 = scalar_lea.vmem [#allocation0], 168
    %v187 = vld [vmem:[%s186] sm:%s62]
    %s188 = sshllo.u32 0, 1
    %s189 = smul.addr 1, 21
    %s190 = scalar_lea.vmem %s1, %s189
    %191 = vst [vmem:[%s190] sm:%s188] %v187
    %s192 = scalar_lea.vmem [#allocation0], 176
    %v193 = vld [vmem:[%s192] sm:%s62]
    %s194 = sshllo.u32 0, 1
    %s195 = smul.addr 1, 22
    %s196 = scalar_lea.vmem %s1, %s195
    %197 = vst [vmem:[%s196] sm:%s194] %v193
    %s198 = scalar_lea.vmem [#allocation0], 184
    %v199 = vld [vmem:[%s198] sm:%s62]
    %s200 = sshllo.u32 0, 1
    %s201 = smul.addr 1, 23
    %s202 = scalar_lea.vmem %s1, %s201
    %203 = vst [vmem:[%s202] sm:%s200] %v199

// kernel: generator_forward.8
$region0: #{generator_forward.8}
  #allocation0 [shape = 'u32[]', space=smem, size = 0x4, offset = 0x4, fixed_abs, tag = 'smem constant byte address 0x4 - core index']
  #allocation1 [shape = 'u32[144,128]{1,0:T(1,128)}', space=vmem, size = 0x12000, scoped, tag = 'internal scratch']
  %s0 = inlined_call_operand.vmem [shape: bf16[8,128], index: 0, kind: input, shape index: {}]
  %s1 = inlined_call_operand.hbm [shape: bf16[128,384], index: 1, kind: input, shape index: {}]
  %s2 = inlined_call_operand.vmem [shape: f32[1,384], index: 2, kind: input, shape index: {}]
  %s3 = inlined_call_operand.vmem [shape: f32[1,384], index: 3, kind: input, shape index: {}]
  %s4 = inlined_call_operand.vmem [shape: f32[8,384], index: 4, kind: output, shape index: {}]
  %s5 = sld [smem:[#allocation0]]
  $region53: #{generator_forward.8} parent=0
    _
  %s7 = ssub.s32 1, %s5
  %s8 = scalar_select 0, %s7, %s5
  $region1: #{generator_forward.8} parent=0
    #allocation2 [shape = 'u8[65536]{0}', space=vmem, size = 0x10000, scoped, tag = 'input window, operand 1']
    #allocation3 [shape = 's32[2]{0}', space=sflag, size = 0x8, scoped, tag = 'scoped memory for generator_forward.8']
    %9 = vsyncpa [#allocation3], 0
    %s10 = scalar_lea.sflag [#allocation3], 1
    %11 = vsyncpa %s10, 0
    loop: start=0, step=1, limit=5
    $region2: #{generator_forward.8} parent=1 // loop_pre_header
      _
    $region3: #{generator_forward.8} parent=1 // loop_header
      %s13 = sphi 0, %s17
      %p14 = scmp.ge.s32.totalorder %s13, 5
      %s20 = sphi 0, %s32
      %s21 = sphi 0, %s28
      %s22 = sphi 0, %s20
      %s23 = sphi 0, %s21
      %s24 = sphi 0, %s22
      %s25 = sphi 0, %s23
      %s35 = sphi 0, %s37
      %s38 = sphi 0, %s35
      %s39 = sphi 0, %s38
      %s55 = sphi 0, %s39
      %s61 = sphi 0, %s63
      %s64 = sphi 0, %s61
      %s65 = sphi 0, %s64
      %s81 = sphi 0, %s65
      %s87 = sphi 0, %s89
      %s90 = sphi 0, %s87
      %s91 = sphi 0, %s90
      %s107 = sphi 0, %s91
      %s113 = sphi 0, %s115
      %s116 = sphi 0, %s113
      %s117 = sphi 0, %s116
      %s133 = sphi 0, %s117
      %s141 = sphi 0, %s143
      %s144 = sphi 0, %s141
      %s145 = sphi 0, %s144
      %s161 = sphi 0, %s145
    $region4: #{generator_forward.8} parent=1 // loop_header_branch
      %16 = sbr.rel (%p14) target = $region8
    $region5: #{generator_forward.8} parent=1 // loop_body
      %s18 = ssub.s32 %s13, 1
      %s19 = ssub.s32 %s13, 2
      %s26 = sadd.s32 1, %s21
      %p27 = scmp.ge.s32.totalorder %s26, 3
      %s28 = scalar_select %p27, 0, %s26
      %s29 = sadd.s32 1, %s20
      %s30 = scalar_select %p27, %s29, %s20
      %p31 = scmp.ge.s32.totalorder %s30, 1
      %s32 = scalar_select %p31, 0, %s30
      %s33 = ssub.s32 %s20, %s32
      %p34 = scmp.eq.s32.totalorder %s33, 0
      %s36 = sadd.s32 %s35, 1
      %s37 = scalar_select %p34, %s35, %s36
      %p40 = pneg %p34
      %p41 = scmp.eq.s32.totalorder %s13, 2
      %p42 = por %p40, %p41
      %p43 = scmp.ne.s32.totalorder %s35, %s38
      %p44 = scmp.eq.s32.totalorder %s13, 0
      %p45 = por %p43, %p44
      %p46 = scmp.ne.s32.totalorder %s35, %s38
      %p47 = scmp.eq.s32.totalorder %s18, 2
      %p48 = por %p46, %p47
      %p49 = scmp.ne.s32.totalorder %s38, %s39
      %p50 = scmp.eq.s32.totalorder %s18, 0
      %p51 = por %p49, %p50
      %p52 = scmp.ne.s32.totalorder %s38, %s39
      %p53 = scmp.eq.s32.totalorder %s19, 2
      %p54 = por %p52, %p53
      %p56 = scmp.ne.s32.totalorder %s39, %s55
      %p57 = scmp.eq.s32.totalorder %s19, 0
      %p58 = por %p56, %p57
      %s59 = ssub.s32 %s21, %s28
      %p60 = scmp.eq.s32.totalorder %s59, 0
      %s62 = sadd.s32 %s61, 1
      %s63 = scalar_select %p60, %s61, %s62
      %p66 = pneg %p60
      %p67 = scmp.eq.s32.totalorder %s13, 2
      %p68 = por %p66, %p67
      %p69 = scmp.ne.s32.totalorder %s61, %s64
      %p70 = scmp.eq.s32.totalorder %s13, 0
      %p71 = por %p69, %p70
      %p72 = scmp.ne.s32.totalorder %s61, %s64
      %p73 = scmp.eq.s32.totalorder %s18, 2
      %p74 = por %p72, %p73
      %p75 = scmp.ne.s32.totalorder %s64, %s65
      %p76 = scmp.eq.s32.totalorder %s18, 0
      %p77 = por %p75, %p76
      %p78 = scmp.ne.s32.totalorder %s64, %s65
      %p79 = scmp.eq.s32.totalorder %s19, 2
      %p80 = por %p78, %p79
      %p82 = scmp.ne.s32.totalorder %s65, %s81
      %p83 = scmp.eq.s32.totalorder %s19, 0
      %p84 = por %p82, %p83
      %s85 = ssub.s32 %s21, %s28
      %p86 = scmp.eq.s32.totalorder %s85, 0
      %s88 = sadd.s32 %s87, 1
      %s89 = scalar_select %p86, %s87, %s88
      %p92 = pneg %p86
      %p93 = scmp.eq.s32.totalorder %s13, 2
      %p94 = por %p92, %p93
      %p95 = scmp.ne.s32.totalorder %s87, %s90
      %p96 = scmp.eq.s32.totalorder %s13, 0
      %p97 = por %p95, %p96
      %p98 = scmp.ne.s32.totalorder %s87, %s90
      %p99 = scmp.eq.s32.totalorder %s18, 2
      %p100 = por %p98, %p99
      %p101 = scmp.ne.s32.totalorder %s90, %s91
      %p102 = scmp.eq.s32.totalorder %s18, 0
      %p103 = por %p101, %p102
      %p104 = scmp.ne.s32.totalorder %s90, %s91
      %p105 = scmp.eq.s32.totalorder %s19, 2
      %p106 = por %p104, %p105
      %p108 = scmp.ne.s32.totalorder %s91, %s107
      %p109 = scmp.eq.s32.totalorder %s19, 0
      %p110 = por %p108, %p109
      %s111 = ssub.s32 %s21, %s28
      %p112 = scmp.eq.s32.totalorder %s111, 0
      %s114 = sadd.s32 %s113, 1
      %s115 = scalar_select %p112, %s113, %s114
      %p118 = pneg %p112
      %p119 = scmp.eq.s32.totalorder %s13, 2
      %p120 = por %p118, %p119
      %p121 = scmp.ne.s32.totalorder %s113, %s116
      %p122 = scmp.eq.s32.totalorder %s13, 0
      %p123 = por %p121, %p122
      %p124 = scmp.ne.s32.totalorder %s113, %s116
      %p125 = scmp.eq.s32.totalorder %s18, 2
      %p126 = por %p124, %p125
      %p127 = scmp.ne.s32.totalorder %s116, %s117
      %p128 = scmp.eq.s32.totalorder %s18, 0
      %p129 = por %p127, %p128
      %p130 = scmp.ne.s32.totalorder %s116, %s117
      %p131 = scmp.eq.s32.totalorder %s19, 2
      %p132 = por %p130, %p131
      %p134 = scmp.ne.s32.totalorder %s117, %s133
      %p135 = scmp.eq.s32.totalorder %s19, 0
      %p136 = por %p134, %p135
      %s137 = ssub.s32 %s20, %s32
      %s138 = ssub.s32 %s21, %s28
      %s139 = sor.u32 %s137, %s138
      %p140 = scmp.eq.s32.totalorder %s139, 0
      %s142 = sadd.s32 %s141, 1
      %s143 = scalar_select %p140, %s141, %s142
      %p146 = pneg %p140
      %p147 = scmp.eq.s32.totalorder %s13, 2
      %p148 = por %p146, %p147
      %p149 = scmp.ne.s32.totalorder %s141, %s144
      %p150 = scmp.eq.s32.totalorder %s13, 0
      %p151 = por %p149, %p150
      %p152 = scmp.ne.s32.totalorder %s141, %s144
      %p153 = scmp.eq.s32.totalorder %s18, 2
      %p154 = por %p152, %p153
      %p155 = scmp.ne.s32.totalorder %s144, %s145
      %p156 = scmp.eq.s32.totalorder %s18, 0
      %p157 = por %p155, %p156
      %p158 = scmp.ne.s32.totalorder %s144, %s145
      %p159 = scmp.eq.s32.totalorder %s19, 2
      %p160 = por %p158, %p159
      %p162 = scmp.ne.s32.totalorder %s145, %s161
      %p163 = scmp.eq.s32.totalorder %s19, 0
      %p164 = por %p162, %p163
      %p165 = scmp.le.s32.totalorder 1, %s13
      %p166 = scmp.lt.s32.totalorder %s13, 4
      %p167 = pnand %p165, %p166
      %p168 = pneg %p167
      // Predicated region
      $region9: #{generator_forward.8} parent=5 // pred_check
        _
      $region10: #{generator_forward.8} parent=5 // pred_check_branch
        %170 = sbr.rel (%p167) target = $region12
      $region11: #{generator_forward.8} parent=5 // pred_region
        %s171 = ssub.s32 %s13, 1
        // Predicated region
        $region13: #{generator_forward.8} parent=11 // pred_check
          %p172 = pneg %p51
        $region14: #{generator_forward.8} parent=11 // pred_check_branch
          %174 = sbr.rel (%p172) target = $region16
        $region15: #{generator_forward.8} parent=11 // pred_region
          %p175 = scmp.lt.s32.totalorder %s22, 0
          %s176 = scalar_select %p175, %s22, 0
          %s177 = smul.addr %s176, 4
          %s178 = scalar_lea.vmem %s0, %s177
        $region16: #{generator_forward.8} parent=11 // pred_fallthru
          _
      $region12: #{generator_forward.8} parent=5 // pred_fallthru
        _
      %p179 = scmp.lt.s32.totalorder %s13, 3
      // Predicated region
      $region17: #{generator_forward.8} parent=5 // pred_check
        %p180 = pneg %p179
      $region18: #{generator_forward.8} parent=5 // pred_check_branch
        %182 = sbr.rel (%p180) target = $region20
      $region19: #{generator_forward.8} parent=5 // pred_region
        // Predicated region
        $region21: #{generator_forward.8} parent=19 // pred_check
          %p183 = pneg %p71
        $region22: #{generator_forward.8} parent=19 // pred_check_branch
          %185 = sbr.rel (%p183) target = $region24
        $region23: #{generator_forward.8} parent=19 // pred_region
          %s186 = sand.u32 %s61, 1
          %s187 = scalar_lea.sflag [#allocation3], %s186
          %s188 = sand.u32 %s61, 1
          %s189 = smul.addr %s188, 64
          %s190 = scalar_lea.vmem [#allocation2], %s189
          %s192 = ssub.s32 1024, 1024
          %193 = vsyncadd %s187, %s192
          %s194 = smul.addr %s21, 64
          %s195 = scalar_lea.hbm %s1, %s194
          %s196 = sshll.u32 %s190, 4
          %s197 = int_to_ptr.vmem [resolvable:$true] %s196
          %202 = dma.hbm_to_vmem [thread:$0]  %s195, 1024, %s197, %s187, 192, 64, 4
        $region24: #{generator_forward.8} parent=19 // pred_fallthru
          _
        // Predicated region
        $region25: #{generator_forward.8} parent=19 // pred_check
          %p203 = pneg %p97
        $region26: #{generator_forward.8} parent=19 // pred_check_branch
          %205 = sbr.rel (%p203) target = $region28
        $region27: #{generator_forward.8} parent=19 // pred_region
          %p206 = scmp.lt.s32.totalorder %s21, 2
          %s207 = scalar_select %p206, %s21, 2
          %s208 = scalar_lea.vmem %s2, %s207
        $region28: #{generator_forward.8} parent=19 // pred_fallthru
          _
        // Predicated region
        $region29: #{generator_forward.8} parent=19 // pred_check
          %p209 = pneg %p123
        $region30: #{generator_forward.8} parent=19 // pred_check_branch
          %211 = sbr.rel (%p209) target = $region32
        $region31: #{generator_forward.8} parent=19 // pred_region
          %p212 = scmp.lt.s32.totalorder %s21, 2
          %s213 = scalar_select %p212, %s21, 2
          %s214 = scalar_lea.vmem %s3, %s213
        $region32: #{generator_forward.8} parent=19 // pred_fallthru
          _
      $region20: #{generator_forward.8} parent=5 // pred_fallthru
        _
      %p215 = scmp.le.s32.totalorder 1, %s13
      %p216 = scmp.lt.s32.totalorder %s13, 4
      %p217 = pnand %p215, %p216
      %p218 = pneg %p217
      // Predicated region
      $region33: #{generator_forward.8} parent=5 // pred_check
        _
      $region34: #{generator_forward.8} parent=5 // pred_check_branch
        %220 = sbr.rel (%p217) target = $region36
      $region35: #{generator_forward.8} parent=5 // pred_region
        %s221 = ssub.s32 %s13, 1
        %s222 = sand.u32 %s64, 1
        %s223 = scalar_lea.sflag [#allocation3], %s222
        %s224 = sand.u32 %s64, 1
        %s225 = smul.addr %s224, 64
        %s226 = scalar_lea.vmem [#allocation2], %s225
        // Predicated region
        $region37: #{generator_forward.8} parent=35 // pred_check
          %p227 = pneg %p77
        $region38: #{generator_forward.8} parent=35 // pred_check_branch
          %229 = sbr.rel (%p227) target = $region40
        $region39: #{generator_forward.8} parent=35 // pred_region
          %230 = dma.done %s223, 1024
        $region40: #{generator_forward.8} parent=35 // pred_fallthru
          _
        %p231 = scmp.lt.s32.totalorder %s22, 0
        %s232 = scalar_select %p231, %s22, 0
        %s233 = smul.addr %s232, 4
        %s234 = scalar_lea.vmem %s0, %s233
        %p235 = pneg %p51
        %p236 = pneg %p48
        %s237 = sand.u32 %s64, 1
        %s238 = scalar_lea.sflag [#allocation3], %s237
        %s239 = sand.u32 %s64, 1
        %s240 = smul.addr %s239, 64
        %s241 = scalar_lea.vmem [#allocation2], %s240
        %p242 = pneg %p77
        %p243 = pneg %p74
        %p244 = scmp.lt.s32.totalorder %s23, 2
        %s245 = scalar_select %p244, %s23, 2
        %s246 = scalar_lea.vmem %s2, %s245
        %p247 = pneg %p103
        %p248 = pneg %p100
        %p249 = scmp.lt.s32.totalorder %s23, 2
        %s250 = scalar_select %p249, %s23, 2
        %s251 = scalar_lea.vmem %s3, %s250
        %p252 = pneg %p129
        %p253 = pneg %p126
        %p254 = pneg %p157
        %p255 = pneg %p154
        %p256 = scmp.lt.s32.totalorder %s22, 0
        %s257 = scalar_select %p256, %s22, 0
        %p258 = scmp.lt.s32.totalorder %s23, 2
        %s259 = scalar_select %p258, %s23, 2
        %s260 = smul.addr %s257, 3
        %s261 = sadd.s32 %s259, %s260
        %s262 = smul.addr %s261, 8
        %s263 = scalar_lea.vmem %s4, %s262
        %p264 = scmp.lt.s32.totalorder %s22, 0
        %s265 = scalar_select %p264, %s22, 0
        %s266 = smul.addr %s265, 4
        %s267 = scalar_lea.vmem %s0, %s266
        %p268 = scmp.lt.s32.totalorder %s23, 2
        %s269 = scalar_select %p268, %s23, 2
        %s270 = scalar_lea.vmem %s2, %s269
        %p271 = scmp.lt.s32.totalorder %s23, 2
        %s272 = scalar_select %p271, %s23, 2
        %s273 = scalar_lea.vmem %s3, %s272
        %p274 = scmp.lt.s32.totalorder %s22, 0
        %s275 = scalar_select %p274, %s22, 0
        %p276 = scmp.lt.s32.totalorder %s23, 2
        %s277 = scalar_select %p276, %s23, 2
        %s278 = smul.addr %s275, 3
        %s279 = sadd.s32 %s277, %s278
        %s280 = smul.addr %s279, 8
        %s281 = scalar_lea.vmem %s4, %s280
        %v283 = vld [vmem:[%s267] sm:$0xf]
        %v284 = vld [vmem:[%s226] sm:$0xf]
        %v285 = vld [vmem:[%s226 + $0x4] sm:$0xf]
        %v286 = vld [vmem:[%s226 + $0x8] sm:$0xf]
        %v287 = vld [vmem:[%s226 + $0xc] sm:$0xf]
        %v288 = vld [vmem:[%s226 + $0x10] sm:$0xf]
        %v289 = vld [vmem:[%s226 + $0x14] sm:$0xf]
        %v290 = vld [vmem:[%s226 + $0x18] sm:$0xf]
        %v291 = vld [vmem:[%s226 + $0x1c] sm:$0xf]
        %v292 = vld [vmem:[%s226 + $0x20] sm:$0xf]
        %v293 = vld [vmem:[%s226 + $0x24] sm:$0xf]
        %v294 = vld [vmem:[%s226 + $0x28] sm:$0xf]
        %v295 = vld [vmem:[%s226 + $0x2c] sm:$0xf]
        %v296 = vld [vmem:[%s226 + $0x30] sm:$0xf]
        %v297 = vld [vmem:[%s226 + $0x34] sm:$0xf]
        %v298 = vld [vmem:[%s226 + $0x38] sm:$0xf]
        %v299 = vld [vmem:[%s226 + $0x3c] sm:$0xf]
        %v316 = vunpack.c.l.b16 %v284
        %v317 = vunpack.c.l.b16 %v285
        %v318 = vunpack.c.l.b16 %v286
        %v319 = vunpack.c.l.b16 %v287
        %v320 = vunpack.c.l.b16 %v288
        %v321 = vunpack.c.l.b16 %v289
        %v322 = vunpack.c.l.b16 %v290
        %v323 = vunpack.c.l.b16 %v291
        %v324 = vunpack.c.l.b16 %v292
        %v325 = vunpack.c.l.b16 %v293
        %v326 = vunpack.c.l.b16 %v294
        %v327 = vunpack.c.l.b16 %v295
        %v328 = vunpack.c.l.b16 %v296
        %v329 = vunpack.c.l.b16 %v297
        %v330 = vunpack.c.l.b16 %v298
        %v331 = vunpack.c.l.b16 %v299
        %v332 = vpack.c.b16 %v317, %v316
        %v333 = vpack.c.b16 %v319, %v318
        %v334 = vpack.c.b16 %v321, %v320
        %v335 = vpack.c.b16 %v323, %v322
        %v336 = vpack.c.b16 %v325, %v324
        %v337 = vpack.c.b16 %v327, %v326
        %v338 = vpack.c.b16 %v329, %v328
        %v339 = vpack.c.b16 %v331, %v330
        %348 = vmatprep.subr.bf16.mxu0 0
        %349 = vmatpush1.bf16.msra.mxu0 %v332
        %350 = vmatprep.subr.bf16.mxu0 0
        %351 = vmatpush1.bf16.msra.mxu0 %v333
        %352 = vmatprep.subr.bf16.mxu0 0
        %353 = vmatpush1.bf16.msra.mxu0 %v334
        %354 = vmatprep.subr.bf16.mxu0 0
        %355 = vmatpush1.bf16.msra.mxu0 %v335
        %356 = vmatprep.subr.bf16.mxu0 0
        %357 = vmatpush1.bf16.msra.mxu0 %v336
        %358 = vmatprep.subr.bf16.mxu0 0
        %359 = vmatpush1.bf16.msra.mxu0 %v337
        %360 = vmatprep.subr.bf16.mxu0 0
        %361 = vmatpush1.bf16.msra.mxu0 %v338
        %362 = vmatprep.subr.bf16.mxu0 0
        %363 = vmatpush1.bf16.msra.mxu0 %v339
        %364 = vmatprep.subr.bf16.mxu0 0
        %365 = vmatpush1.bf16.msra.mxu0 0
        %366 = vmatprep.subr.bf16.mxu0 0
        %367 = vmatpush1.bf16.msra.mxu0 0
        %368 = vmatprep.subr.bf16.mxu0 0
        %369 = vmatpush1.bf16.msra.mxu0 0
        %370 = vmatprep.subr.bf16.mxu0 0
        %371 = vmatpush1.bf16.msra.mxu0 0
        %372 = vmatprep.subr.bf16.mxu0 0
        %373 = vmatpush1.bf16.msra.mxu0 0
        %374 = vmatprep.subr.bf16.mxu0 0
        %375 = vmatpush1.bf16.msra.mxu0 0
        %376 = vmatprep.subr.bf16.mxu0 0
        %377 = vmatpush1.bf16.msra.mxu0 0
        %378 = vmatprep.subr.bf16.mxu0 0
        %379 = vmatpush1.bf16.msra.mxu0 0
        %380 = vmatprep.mubr.bf16.mxu0 0
        %381 = vmatmul.mubr.bf16.gmra.mrb[0].mxu0 %v283
        %v382 = vpop.f32.mrb[0].mxu0
        %v383 = vadd.f32 0.0, %v382
        %v384 = vpop.f32.mrb[0].mxu0
        %v385 = vpop.f32.mrb[0].mxu0
        %v386 = vpop.f32.mrb[0].mxu0
        %387 = vdwg.mxu0
        %v388 = vld [vmem:[%s270] sm:$0x1]
        %v390 = vlaneseq
        %v391 = vshrl.u32 %v390, 7
        %v392 = vsub.s32 0, %v391
        %v393 = vrot.slane %v388, %v392
        %v395 = vmul.f32 %v383, %v393
        %v396 = vld [vmem:[%s273] sm:$0x1]
        %v398 = vlaneseq
        %v399 = vshrl.u32 %v398, 7
        %v400 = vsub.s32 0, %v399
        %v401 = vrot.slane %v396, %v400
        %v403 = vadd.f32 %v395, %v401
        %404 = vst [vmem:[%s281] sm:$0xff] %v403
        %p405 = scmp.lt.s32.totalorder %s22, 0
        %s406 = scalar_select %p405, %s22, 0
        %p407 = scmp.lt.s32.totalorder %s23, 2
        %s408 = scalar_select %p407, %s23, 2
        %s409 = smul.addr %s406, 3
        %s410 = sadd.s32 %s408, %s409
        %s411 = smul.addr %s410, 8
        %s412 = scalar_lea.vmem %s4, %s411
        // Predicated region
        $region41: #{generator_forward.8} parent=35 // pred_check
          %p413 = pneg %p154
        $region42: #{generator_forward.8} parent=35 // pred_check_branch
          %415 = sbr.rel (%p413) target = $region44
        $region43: #{generator_forward.8} parent=35 // pred_region
          _
        $region44: #{generator_forward.8} parent=35 // pred_fallthru
          _
      $region36: #{generator_forward.8} parent=5 // pred_fallthru
        _
      %p416 = scmp.le.s32.totalorder 2, %s13
      // Predicated region
      $region45: #{generator_forward.8} parent=5 // pred_check
        %p417 = pneg %p416
      $region46: #{generator_forward.8} parent=5 // pred_check_branch
        %419 = sbr.rel (%p417) target = $region48
      $region47: #{generator_forward.8} parent=5 // pred_region
        %s420 = ssub.s32 %s13, 2
        // Predicated region
        $region49: #{generator_forward.8} parent=47 // pred_check
          %p421 = pneg %p160
        $region50: #{generator_forward.8} parent=47 // pred_check_branch
          %423 = sbr.rel (%p421) target = $region52
        $region51: #{generator_forward.8} parent=47 // pred_region
          %p424 = scmp.lt.s32.totalorder %s24, 0
          %s425 = scalar_select %p424, %s24, 0
          %p426 = scmp.lt.s32.totalorder %s25, 2
          %s427 = scalar_select %p426, %s25, 2
          %s428 = smul.addr %s425, 3
          %s429 = sadd.s32 %s427, %s428
          %s430 = smul.addr %s429, 8
          %s431 = scalar_lea.vmem %s4, %s430
        $region52: #{generator_forward.8} parent=47 // pred_fallthru
          _
      $region48: #{generator_forward.8} parent=5 // pred_fallthru
        _
    $region6: #{generator_forward.8} parent=1 // loop_footer
      %s17 = sadd.s32 1, %s13
    $region7: #{generator_forward.8} parent=1 // loop_footer_branch
      %12 = sbr.rel target = $region3
    $region8: #{generator_forward.8} parent=1 // loop_exit
      _
    %432 = vsyncpa [#allocation3], 1
    %s433 = scalar_lea.sflag [#allocation3], 1
    %434 = vsyncpa %s433, 1

// kernel: generator_forward.10
$region0: #{generator_forward.10}
  #allocation0 [shape = 'u32[]', space=smem, size = 0x4, offset = 0x4, fixed_abs, tag = 'smem constant byte address 0x4 - core index']
  #allocation1 [shape = 'u32[144,128]{1,0:T(1,128)}', space=vmem, size = 0x12000, scoped, tag = 'internal scratch']
  %s0 = inlined_call_operand.vmem [shape: f32[8,3072], index: 0, kind: input, shape index: {}]
  %s1 = inlined_call_operand.vmem [shape: f32[1,3072], index: 1, kind: input, shape index: {}]
  %s2 = inlined_call_operand.vmem [shape: f32[1,3072], index: 2, kind: input, shape index: {}]
  %s3 = inlined_call_operand.vmem [shape: bf16[8,3072], index: 3, kind: output, shape index: {}]
  %s4 = sld [smem:[#allocation0]]
  $region45: #{generator_forward.10} parent=0
    _
  %s6 = ssub.s32 1, %s4
  %s7 = scalar_select 0, %s6, %s4
  loop: start=0, step=1, limit=14
  $region2: #{generator_forward.10} parent=0 // loop_pre_header
    _
  $region3: #{generator_forward.10} parent=0 // loop_header
    %s9 = sphi 0, %s13
    %p10 = scmp.ge.s32.totalorder %s9, 14
    %s16 = sphi 0, %s28
    %s17 = sphi 0, %s24
    %s18 = sphi 0, %s16
    %s19 = sphi 0, %s17
    %s20 = sphi 0, %s18
    %s21 = sphi 0, %s19
    %s33 = sphi 0, %s35
    %s36 = sphi 0, %s33
    %s37 = sphi 0, %s36
    %s53 = sphi 0, %s37
    %s59 = sphi 0, %s61
    %s62 = sphi 0, %s59
    %s63 = sphi 0, %s62
    %s79 = sphi 0, %s63
    %s85 = sphi 0, %s87
    %s88 = sphi 0, %s85
    %s89 = sphi 0, %s88
    %s105 = sphi 0, %s89
    %s113 = sphi 0, %s115
    %s116 = sphi 0, %s113
    %s117 = sphi 0, %s116
    %s133 = sphi 0, %s117
  $region4: #{generator_forward.10} parent=0 // loop_header_branch
    %12 = sbr.rel (%p10) target = $region8
  $region5: #{generator_forward.10} parent=0 // loop_body
    %s14 = ssub.s32 %s9, 1
    %s15 = ssub.s32 %s9, 2
    %s22 = sadd.s32 1, %s17
    %p23 = scmp.ge.s32.totalorder %s22, 12
    %s24 = scalar_select %p23, 0, %s22
    %s25 = sadd.s32 1, %s16
    %s26 = scalar_select %p23, %s25, %s16
    %p27 = scmp.ge.s32.totalorder %s26, 1
    %s28 = scalar_select %p27, 0, %s26
    %s29 = ssub.s32 %s16, %s28
    %s30 = ssub.s32 %s17, %s24
    %s31 = sor.u32 %s29, %s30
    %p32 = scmp.eq.s32.totalorder %s31, 0
    %s34 = sadd.s32 %s33, 1
    %s35 = scalar_select %p32, %s33, %s34
    %p38 = pneg %p32
    %p39 = scmp.eq.s32.totalorder %s9, 11
    %p40 = por %p38, %p39
    %p41 = scmp.ne.s32.totalorder %s33, %s36
    %p42 = scmp.eq.s32.totalorder %s9, 0
    %p43 = por %p41, %p42
    %p44 = scmp.ne.s32.totalorder %s33, %s36
    %p45 = scmp.eq.s32.totalorder %s14, 11
    %p46 = por %p44, %p45
    %p47 = scmp.ne.s32.totalorder %s36, %s37
    %p48 = scmp.eq.s32.totalorder %s14, 0
    %p49 = por %p47, %p48
    %p50 = scmp.ne.s32.totalorder %s36, %s37
    %p51 = scmp.eq.s32.totalorder %s15, 11
    %p52 = por %p50, %p51
    %p54 = scmp.ne.s32.totalorder %s37, %s53
    %p55 = scmp.eq.s32.totalorder %s15, 0
    %p56 = por %p54, %p55
    %s57 = ssub.s32 %s17, %s24
    %p58 = scmp.eq.s32.totalorder %s57, 0
    %s60 = sadd.s32 %s59, 1
    %s61 = scalar_select %p58, %s59, %s60
    %p64 = pneg %p58
    %p65 = scmp.eq.s32.totalorder %s9, 11
    %p66 = por %p64, %p65
    %p67 = scmp.ne.s32.totalorder %s59, %s62
    %p68 = scmp.eq.s32.totalorder %s9, 0
    %p69 = por %p67, %p68
    %p70 = scmp.ne.s32.totalorder %s59, %s62
    %p71 = scmp.eq.s32.totalorder %s14, 11
    %p72 = por %p70, %p71
    %p73 = scmp.ne.s32.totalorder %s62, %s63
    %p74 = scmp.eq.s32.totalorder %s14, 0
    %p75 = por %p73, %p74
    %p76 = scmp.ne.s32.totalorder %s62, %s63
    %p77 = scmp.eq.s32.totalorder %s15, 11
    %p78 = por %p76, %p77
    %p80 = scmp.ne.s32.totalorder %s63, %s79
    %p81 = scmp.eq.s32.totalorder %s15, 0
    %p82 = por %p80, %p81
    %s83 = ssub.s32 %s17, %s24
    %p84 = scmp.eq.s32.totalorder %s83, 0
    %s86 = sadd.s32 %s85, 1
    %s87 = scalar_select %p84, %s85, %s86
    %p90 = pneg %p84
    %p91 = scmp.eq.s32.totalorder %s9, 11
    %p92 = por %p90, %p91
    %p93 = scmp.ne.s32.totalorder %s85, %s88
    %p94 = scmp.eq.s32.totalorder %s9, 0
    %p95 = por %p93, %p94
    %p96 = scmp.ne.s32.totalorder %s85, %s88
    %p97 = scmp.eq.s32.totalorder %s14, 11
    %p98 = por %p96, %p97
    %p99 = scmp.ne.s32.totalorder %s88, %s89
    %p100 = scmp.eq.s32.totalorder %s14, 0
    %p101 = por %p99, %p100
    %p102 = scmp.ne.s32.totalorder %s88, %s89
    %p103 = scmp.eq.s32.totalorder %s15, 11
    %p104 = por %p102, %p103
    %p106 = scmp.ne.s32.totalorder %s89, %s105
    %p107 = scmp.eq.s32.totalorder %s15, 0
    %p108 = por %p106, %p107
    %s109 = ssub.s32 %s16, %s28
    %s110 = ssub.s32 %s17, %s24
    %s111 = sor.u32 %s109, %s110
    %p112 = scmp.eq.s32.totalorder %s111, 0
    %s114 = sadd.s32 %s113, 1
    %s115 = scalar_select %p112, %s113, %s114
    %p118 = pneg %p112
    %p119 = scmp.eq.s32.totalorder %s9, 11
    %p120 = por %p118, %p119
    %p121 = scmp.ne.s32.totalorder %s113, %s116
    %p122 = scmp.eq.s32.totalorder %s9, 0
    %p123 = por %p121, %p122
    %p124 = scmp.ne.s32.totalorder %s113, %s116
    %p125 = scmp.eq.s32.totalorder %s14, 11
    %p126 = por %p124, %p125
    %p127 = scmp.ne.s32.totalorder %s116, %s117
    %p128 = scmp.eq.s32.totalorder %s14, 0
    %p129 = por %p127, %p128
    %p130 = scmp.ne.s32.totalorder %s116, %s117
    %p131 = scmp.eq.s32.totalorder %s15, 11
    %p132 = por %p130, %p131
    %p134 = scmp.ne.s32.totalorder %s117, %s133
    %p135 = scmp.eq.s32.totalorder %s15, 0
    %p136 = por %p134, %p135
    %p137 = scmp.le.s32.totalorder 1, %s9
    %p138 = scmp.lt.s32.totalorder %s9, 13
    %p139 = pnand %p137, %p138
    %p140 = pneg %p139
    // Predicated region
    $region9: #{generator_forward.10} parent=5 // pred_check
      _
    $region10: #{generator_forward.10} parent=5 // pred_check_branch
      %142 = sbr.rel (%p139) target = $region12
    $region11: #{generator_forward.10} parent=5 // pred_region
      %s143 = ssub.s32 %s9, 1
    $region12: #{generator_forward.10} parent=5 // pred_fallthru
      _
    %p144 = scmp.lt.s32.totalorder %s9, 12
    // Predicated region
    $region13: #{generator_forward.10} parent=5 // pred_check
      %p145 = pneg %p144
    $region14: #{generator_forward.10} parent=5 // pred_check_branch
      %147 = sbr.rel (%p145) target = $region16
    $region15: #{generator_forward.10} parent=5 // pred_region
      // Predicated region
      $region17: #{generator_forward.10} parent=15 // pred_check
        %p148 = pneg %p43
      $region18: #{generator_forward.10} parent=15 // pred_check_branch
        %150 = sbr.rel (%p148) target = $region20
      $region19: #{generator_forward.10} parent=15 // pred_region
        %s151 = smul.u32 2, %s17
        %p152 = scmp.lt.s32.totalorder %s16, 0
        %s153 = scalar_select %p152, %s16, 0
        %p154 = scmp.lt.s32.totalorder %s151, 23
        %s155 = scalar_select %p154, %s151, 23
        %s156 = smul.addr %s153, 24
        %s157 = sadd.s32 %s155, %s156
        %s158 = smul.addr %s157, 8
        %s159 = scalar_lea.vmem %s0, %s158
        %s160 = smul.u32 2, %s17
      $region20: #{generator_forward.10} parent=15 // pred_fallthru
        _
      // Predicated region
      $region21: #{generator_forward.10} parent=15 // pred_check
        %p161 = pneg %p69
      $region22: #{generator_forward.10} parent=15 // pred_check_branch
        %163 = sbr.rel (%p161) target = $region24
      $region23: #{generator_forward.10} parent=15 // pred_region
        %s164 = smul.u32 2, %s17
        %p165 = scmp.lt.s32.totalorder %s164, 23
        %s166 = scalar_select %p165, %s164, 23
        %s167 = scalar_lea.vmem %s1, %s166
        %s168 = smul.u32 2, %s17
      $region24: #{generator_forward.10} parent=15 // pred_fallthru
        _
      // Predicated region
      $region25: #{generator_forward.10} parent=15 // pred_check
        %p169 = pneg %p95
      $region26: #{generator_forward.10} parent=15 // pred_check_branch
        %171 = sbr.rel (%p169) target = $region28
      $region27: #{generator_forward.10} parent=15 // pred_region
        %s172 = smul.u32 2, %s17
        %p173 = scmp.lt.s32.totalorder %s172, 23
        %s174 = scalar_select %p173, %s172, 23
        %s175 = scalar_lea.vmem %s2, %s174
        %s176 = smul.u32 2, %s17
      $region28: #{generator_forward.10} parent=15 // pred_fallthru
        _
    $region16: #{generator_forward.10} parent=5 // pred_fallthru
      _
    %p177 = scmp.le.s32.totalorder 1, %s9
    %p178 = scmp.lt.s32.totalorder %s9, 13
    %p179 = pnand %p177, %p178
    %p180 = pneg %p179
    // Predicated region
    $region29: #{generator_forward.10} parent=5 // pred_check
      _
    $region30: #{generator_forward.10} parent=5 // pred_check_branch
      %182 = sbr.rel (%p179) target = $region32
    $region31: #{generator_forward.10} parent=5 // pred_region
      %s183 = ssub.s32 %s9, 1
      %s184 = smul.u32 2, %s19
      %p185 = scmp.lt.s32.totalorder %s18, 0
      %s186 = scalar_select %p185, %s18, 0
      %p187 = scmp.lt.s32.totalorder %s184, 23
      %s188 = scalar_select %p187, %s184, 23
      %s189 = smul.addr %s186, 24
      %s190 = sadd.s32 %s188, %s189
      %s191 = smul.addr %s190, 8
      %s192 = scalar_lea.vmem %s0, %s191
      %p193 = pneg %p49
      %p194 = pneg %p46
      %s195 = smul.u32 2, %s19
      %p196 = scmp.lt.s32.totalorder %s195, 23
      %s197 = scalar_select %p196, %s195, 23
      %s198 = scalar_lea.vmem %s1, %s197
      %p199 = pneg %p75
      %p200 = pneg %p72
      %s201 = smul.u32 2, %s19
      %p202 = scmp.lt.s32.totalorder %s201, 23
      %s203 = scalar_select %p202, %s201, 23
      %s204 = scalar_lea.vmem %s2, %s203
      %p205 = pneg %p101
      %p206 = pneg %p98
      %p207 = pneg %p129
      %p208 = pneg %p126
      %s209 = smul.u32 2, %s19
      %p210 = scmp.lt.s32.totalorder %s18, 0
      %s211 = scalar_select %p210, %s18, 0
      %p212 = scmp.lt.s32.totalorder %s209, 23
      %s213 = scalar_select %p212, %s209, 23
      %s214 = smul.addr %s211, 24
      %s215 = sadd.s32 %s213, %s214
      %s216 = smul.addr %s215, 4
      %s217 = scalar_lea.vmem %s3, %s216
      %s218 = smul.u32 2, %s19
      %p219 = scmp.lt.s32.totalorder %s18, 0
      %s220 = scalar_select %p219, %s18, 0
      %p221 = scmp.lt.s32.totalorder %s218, 23
      %s222 = scalar_select %p221, %s218, 23
      %s223 = smul.addr %s220, 24
      %s224 = sadd.s32 %s222, %s223
      %s225 = smul.addr %s224, 8
      %s226 = scalar_lea.vmem %s0, %s225
      %s227 = smul.u32 2, %s19
      %s228 = smul.u32 2, %s19
      %p229 = scmp.lt.s32.totalorder %s228, 23
      %s230 = scalar_select %p229, %s228, 23
      %s231 = scalar_lea.vmem %s1, %s230
      %s232 = smul.u32 2, %s19
      %s233 = smul.u32 2, %s19
      %p234 = scmp.lt.s32.totalorder %s233, 23
      %s235 = scalar_select %p234, %s233, 23
      %s236 = scalar_lea.vmem %s2, %s235
      %s237 = smul.u32 2, %s19
      %s238 = smul.u32 2, %s19
      %p239 = scmp.lt.s32.totalorder %s18, 0
      %s240 = scalar_select %p239, %s18, 0
      %p241 = scmp.lt.s32.totalorder %s238, 23
      %s242 = scalar_select %p241, %s238, 23
      %s243 = smul.addr %s240, 24
      %s244 = sadd.s32 %s242, %s243
      %s245 = smul.addr %s244, 4
      %s246 = scalar_lea.vmem %s3, %s245
      %s247 = smul.u32 2, %s19
      %v248 = vld [vmem:[%s226] sm:$0xff]
      %v249 = vld [vmem:[%s226 + $0x8] sm:$0xff]
      %v250 = vld [vmem:[%s231] sm:$0x3]
      %v252 = vlaneseq
      %v253 = vshrl.u32 %v252, 7
      %v254 = vsub.s32 0, %v253
      %v255 = vrot.slane %v250, %v254
      %v256 = vlaneseq
      %v257 = vshrl.u32 %v256, 7
      %v258 = vsub.s32 1, %v257
      %v259 = vrot.slane %v250, %v258
      %v262 = vmul.f32 %v248, %v255
      %v263 = vmul.f32 %v249, %v259
      %v264 = vld [vmem:[%s236] sm:$0x3]
      %v266 = vlaneseq
      %v267 = vshrl.u32 %v266, 7
      %v268 = vsub.s32 0, %v267
      %v269 = vrot.slane %v264, %v268
      %v270 = vlaneseq
      %v271 = vshrl.u32 %v270, 7
      %v272 = vsub.s32 1, %v271
      %v273 = vrot.slane %v264, %v272
      %v276 = vadd.f32 %v262, %v269
      %v277 = vadd.f32 %v263, %v273
      %v278 = vmax.f32 %v276, 0.0
      %v279 = vmax.f32 %v277, 0.0
      %v280 = vpack.c.bf16 %v278, %v278
      %v281 = vpack.c.bf16 %v279, %v279
      %v284 = vunpack.c.l.b16 %v280
      %v285 = vunpack.c.l.b16 %v281
      %v286 = vpack.c.b16 %v285, %v284
      %288 = vst [vmem:[%s246] sm:$0xff] %v286
      %s289 = smul.u32 2, %s19
      %p290 = scmp.lt.s32.totalorder %s18, 0
      %s291 = scalar_select %p290, %s18, 0
      %p292 = scmp.lt.s32.totalorder %s289, 23
      %s293 = scalar_select %p292, %s289, 23
      %s294 = smul.addr %s291, 24
      %s295 = sadd.s32 %s293, %s294
      %s296 = smul.addr %s295, 4
      %s297 = scalar_lea.vmem %s3, %s296
      // Predicated region
      $region33: #{generator_forward.10} parent=31 // pred_check
        %p298 = pneg %p126
      $region34: #{generator_forward.10} parent=31 // pred_check_branch
        %300 = sbr.rel (%p298) target = $region36
      $region35: #{generator_forward.10} parent=31 // pred_region
        %s301 = smul.u32 2, %s19
      $region36: #{generator_forward.10} parent=31 // pred_fallthru
        _
    $region32: #{generator_forward.10} parent=5 // pred_fallthru
      _
    %p302 = scmp.le.s32.totalorder 2, %s9
    // Predicated region
    $region37: #{generator_forward.10} parent=5 // pred_check
      %p303 = pneg %p302
    $region38: #{generator_forward.10} parent=5 // pred_check_branch
      %305 = sbr.rel (%p303) target = $region40
    $region39: #{generator_forward.10} parent=5 // pred_region
      %s306 = ssub.s32 %s9, 2
      // Predicated region
      $region41: #{generator_forward.10} parent=39 // pred_check
        %p307 = pneg %p132
      $region42: #{generator_forward.10} parent=39 // pred_check_branch
        %309 = sbr.rel (%p307) target = $region44
      $region43: #{generator_forward.10} parent=39 // pred_region
        %s310 = smul.u32 2, %s21
        %p311 = scmp.lt.s32.totalorder %s20, 0
        %s312 = scalar_select %p311, %s20, 0
        %p313 = scmp.lt.s32.totalorder %s310, 23
        %s314 = scalar_select %p313, %s310, 23
        %s315 = smul.addr %s312, 24
        %s316 = sadd.s32 %s314, %s315
        %s317 = smul.addr %s316, 4
        %s318 = scalar_lea.vmem %s3, %s317
      $region44: #{generator_forward.10} parent=39 // pred_fallthru
        _
    $region40: #{generator_forward.10} parent=5 // pred_fallthru
      _
  $region6: #{generator_forward.10} parent=0 // loop_footer
    %s13 = sadd.s32 1, %s9
  $region7: #{generator_forward.10} parent=0 // loop_footer_branch
    %8 = sbr.rel target = $region3
  $region8: #{generator_forward.10} parent=0 // loop_exit
    _

// kernel: generator_forward.9
$region0: #{generator_forward.9}
  #allocation0 [shape = 'u32[]', space=smem, size = 0x4, offset = 0x4, fixed_abs, tag = 'smem constant byte address 0x4 - core index']
  #allocation1 [shape = 'u32[144,128]{1,0:T(1,128)}', space=vmem, size = 0x12000, scoped, tag = 'internal scratch']
  %s0 = inlined_call_operand.vmem [shape: bf16[8,384], index: 0, kind: input, shape index: {}]
  %s1 = inlined_call_operand.hbm [shape: bf16[384,3072], index: 1, kind: input, shape index: {}]
  %s2 = inlined_call_operand.hbm [shape: f32[8,3072], index: 2, kind: input, shape index: {}]
  %s3 = inlined_call_operand.vmem [shape: f32[8,3072], index: 3, kind: output, shape index: {0}]
  %s4 = inlined_call_operand.vmem [shape: f32[1,3072], index: 4, kind: output, shape index: {1}]
  %s5 = inlined_call_operand.vmem [shape: f32[1,3072], index: 5, kind: output, shape index: {2}]
  %6 = xla_tuple %s3, %s4, %s5
  %s7 = sld [smem:[#allocation0]]
  $region73: #{generator_forward.9} parent=0
    _
  %s9 = ssub.s32 1, %s7
  %s10 = scalar_select 0, %s9, %s7
  $region1: #{generator_forward.9} parent=0
    #allocation2 [shape = 'u8[393216]{0}', space=vmem, size = 0x60000, scoped, tag = 'input window, operand 1']
    #allocation3 [shape = 's32[2]{0}', space=sflag, size = 0x8, scoped, tag = 'scoped memory for generator_forward.9']
    #allocation4 [shape = 'u8[16384]{0}', space=vmem, size = 0x4000, scoped, tag = 'input window, operand 2']
    #allocation5 [shape = 's32[2]{0}', space=sflag, size = 0x8, scoped, tag = 'scoped memory for generator_forward.9']
    %11 = vsyncpa [#allocation3], 0
    %s12 = scalar_lea.sflag [#allocation3], 1
    %13 = vsyncpa %s12, 0
    %14 = vsyncpa [#allocation5], 0
    %s15 = scalar_lea.sflag [#allocation5], 1
    %16 = vsyncpa %s15, 0
    loop: start=0, step=1, limit=14
    $region2: #{generator_forward.9} parent=1 // loop_pre_header
      _
    $region3: #{generator_forward.9} parent=1 // loop_header
      %s18 = sphi 0, %s22
      %p19 = scmp.ge.s32.totalorder %s18, 14
      %s25 = sphi 0, %s37
      %s26 = sphi 0, %s33
      %s27 = sphi 0, %s25
      %s28 = sphi 0, %s26
      %s29 = sphi 0, %s27
      %s30 = sphi 0, %s28
      %s40 = sphi 0, %s42
      %s43 = sphi 0, %s40
      %s44 = sphi 0, %s43
      %s60 = sphi 0, %s44
      %s66 = sphi 0, %s68
      %s69 = sphi 0, %s66
      %s70 = sphi 0, %s69
      %s86 = sphi 0, %s70
      %s94 = sphi 0, %s96
      %s97 = sphi 0, %s94
      %s98 = sphi 0, %s97
      %s114 = sphi 0, %s98
      %s122 = sphi 0, %s124
      %s125 = sphi 0, %s122
      %s126 = sphi 0, %s125
      %s142 = sphi 0, %s126
      %s148 = sphi 0, %s150
      %s151 = sphi 0, %s148
      %s152 = sphi 0, %s151
      %s168 = sphi 0, %s152
      %s174 = sphi 0, %s176
      %s177 = sphi 0, %s174
      %s178 = sphi 0, %s177
      %s194 = sphi 0, %s178
    $region4: #{generator_forward.9} parent=1 // loop_header_branch
      %21 = sbr.rel (%p19) target = $region8
    $region5: #{generator_forward.9} parent=1 // loop_body
      %s23 = ssub.s32 %s18, 1
      %s24 = ssub.s32 %s18, 2
      %s31 = sadd.s32 1, %s26
      %p32 = scmp.ge.s32.totalorder %s31, 1
      %s33 = scalar_select %p32, 0, %s31
      %s34 = sadd.s32 1, %s25
      %s35 = scalar_select %p32, %s34, %s25
      %p36 = scmp.ge.s32.totalorder %s35, 12
      %s37 = scalar_select %p36, 0, %s35
      %s38 = ssub.s32 %s26, %s33
      %p39 = scmp.eq.s32.totalorder %s38, 0
      %s41 = sadd.s32 %s40, 1
      %s42 = scalar_select %p39, %s40, %s41
      %p45 = pneg %p39
      %p46 = scmp.eq.s32.totalorder %s18, 11
      %p47 = por %p45, %p46
      %p48 = scmp.ne.s32.totalorder %s40, %s43
      %p49 = scmp.eq.s32.totalorder %s18, 0
      %p50 = por %p48, %p49
      %p51 = scmp.ne.s32.totalorder %s40, %s43
      %p52 = scmp.eq.s32.totalorder %s23, 11
      %p53 = por %p51, %p52
      %p54 = scmp.ne.s32.totalorder %s43, %s44
      %p55 = scmp.eq.s32.totalorder %s23, 0
      %p56 = por %p54, %p55
      %p57 = scmp.ne.s32.totalorder %s43, %s44
      %p58 = scmp.eq.s32.totalorder %s24, 11
      %p59 = por %p57, %p58
      %p61 = scmp.ne.s32.totalorder %s44, %s60
      %p62 = scmp.eq.s32.totalorder %s24, 0
      %p63 = por %p61, %p62
      %s64 = ssub.s32 %s25, %s37
      %p65 = scmp.eq.s32.totalorder %s64, 0
      %s67 = sadd.s32 %s66, 1
      %s68 = scalar_select %p65, %s66, %s67
      %p71 = pneg %p65
      %p72 = scmp.eq.s32.totalorder %s18, 11
      %p73 = por %p71, %p72
      %p74 = scmp.ne.s32.totalorder %s66, %s69
      %p75 = scmp.eq.s32.totalorder %s18, 0
      %p76 = por %p74, %p75
      %p77 = scmp.ne.s32.totalorder %s66, %s69
      %p78 = scmp.eq.s32.totalorder %s23, 11
      %p79 = por %p77, %p78
      %p80 = scmp.ne.s32.totalorder %s69, %s70
      %p81 = scmp.eq.s32.totalorder %s23, 0
      %p82 = por %p80, %p81
      %p83 = scmp.ne.s32.totalorder %s69, %s70
      %p84 = scmp.eq.s32.totalorder %s24, 11
      %p85 = por %p83, %p84
      %p87 = scmp.ne.s32.totalorder %s70, %s86
      %p88 = scmp.eq.s32.totalorder %s24, 0
      %p89 = por %p87, %p88
      %s90 = ssub.s32 %s26, %s33
      %s91 = ssub.s32 %s25, %s37
      %s92 = sor.u32 %s90, %s91
      %p93 = scmp.eq.s32.totalorder %s92, 0
      %s95 = sadd.s32 %s94, 1
      %s96 = scalar_select %p93, %s94, %s95
      %p99 = pneg %p93
      %p100 = scmp.eq.s32.totalorder %s18, 11
      %p101 = por %p99, %p100
      %p102 = scmp.ne.s32.totalorder %s94, %s97
      %p103 = scmp.eq.s32.totalorder %s18, 0
      %p104 = por %p102, %p103
      %p105 = scmp.ne.s32.totalorder %s94, %s97
      %p106 = scmp.eq.s32.totalorder %s23, 11
      %p107 = por %p105, %p106
      %p108 = scmp.ne.s32.totalorder %s97, %s98
      %p109 = scmp.eq.s32.totalorder %s23, 0
      %p110 = por %p108, %p109
      %p111 = scmp.ne.s32.totalorder %s97, %s98
      %p112 = scmp.eq.s32.totalorder %s24, 11
      %p113 = por %p111, %p112
      %p115 = scmp.ne.s32.totalorder %s98, %s114
      %p116 = scmp.eq.s32.totalorder %s24, 0
      %p117 = por %p115, %p116
      %s118 = ssub.s32 %s26, %s33
      %s119 = ssub.s32 %s25, %s37
      %s120 = sor.u32 %s118, %s119
      %p121 = scmp.eq.s32.totalorder %s120, 0
      %s123 = sadd.s32 %s122, 1
      %s124 = scalar_select %p121, %s122, %s123
      %p127 = pneg %p121
      %p128 = scmp.eq.s32.totalorder %s18, 11
      %p129 = por %p127, %p128
      %p130 = scmp.ne.s32.totalorder %s122, %s125
      %p131 = scmp.eq.s32.totalorder %s18, 0
      %p132 = por %p130, %p131
      %p133 = scmp.ne.s32.totalorder %s122, %s125
      %p134 = scmp.eq.s32.totalorder %s23, 11
      %p135 = por %p133, %p134
      %p136 = scmp.ne.s32.totalorder %s125, %s126
      %p137 = scmp.eq.s32.totalorder %s23, 0
      %p138 = por %p136, %p137
      %p139 = scmp.ne.s32.totalorder %s125, %s126
      %p140 = scmp.eq.s32.totalorder %s24, 11
      %p141 = por %p139, %p140
      %p143 = scmp.ne.s32.totalorder %s126, %s142
      %p144 = scmp.eq.s32.totalorder %s24, 0
      %p145 = por %p143, %p144
      %s146 = ssub.s32 %s25, %s37
      %p147 = scmp.eq.s32.totalorder %s146, 0
      %s149 = sadd.s32 %s148, 1
      %s150 = scalar_select %p147, %s148, %s149
      %p153 = pneg %p147
      %p154 = scmp.eq.s32.totalorder %s18, 11
      %p155 = por %p153, %p154
      %p156 = scmp.ne.s32.totalorder %s148, %s151
      %p157 = scmp.eq.s32.totalorder %s18, 0
      %p158 = por %p156, %p157
      %p159 = scmp.ne.s32.totalorder %s148, %s151
      %p160 = scmp.eq.s32.totalorder %s23, 11
      %p161 = por %p159, %p160
      %p162 = scmp.ne.s32.totalorder %s151, %s152
      %p163 = scmp.eq.s32.totalorder %s23, 0
      %p164 = por %p162, %p163
      %p165 = scmp.ne.s32.totalorder %s151, %s152
      %p166 = scmp.eq.s32.totalorder %s24, 11
      %p167 = por %p165, %p166
      %p169 = scmp.ne.s32.totalorder %s152, %s168
      %p170 = scmp.eq.s32.totalorder %s24, 0
      %p171 = por %p169, %p170
      %s172 = ssub.s32 %s25, %s37
      %p173 = scmp.eq.s32.totalorder %s172, 0
      %s175 = sadd.s32 %s174, 1
      %s176 = scalar_select %p173, %s174, %s175
      %p179 = pneg %p173
      %p180 = scmp.eq.s32.totalorder %s18, 11
      %p181 = por %p179, %p180
      %p182 = scmp.ne.s32.totalorder %s174, %s177
      %p183 = scmp.eq.s32.totalorder %s18, 0
      %p184 = por %p182, %p183
      %p185 = scmp.ne.s32.totalorder %s174, %s177
      %p186 = scmp.eq.s32.totalorder %s23, 11
      %p187 = por %p185, %p186
      %p188 = scmp.ne.s32.totalorder %s177, %s178
      %p189 = scmp.eq.s32.totalorder %s23, 0
      %p190 = por %p188, %p189
      %p191 = scmp.ne.s32.totalorder %s177, %s178
      %p192 = scmp.eq.s32.totalorder %s24, 11
      %p193 = por %p191, %p192
      %p195 = scmp.ne.s32.totalorder %s178, %s194
      %p196 = scmp.eq.s32.totalorder %s24, 0
      %p197 = por %p195, %p196
      %p198 = scmp.le.s32.totalorder 1, %s18
      %p199 = scmp.lt.s32.totalorder %s18, 13
      %p200 = pnand %p198, %p199
      %p201 = pneg %p200
      // Predicated region
      $region9: #{generator_forward.9} parent=5 // pred_check
        _
      $region10: #{generator_forward.9} parent=5 // pred_check_branch
        %203 = sbr.rel (%p200) target = $region12
      $region11: #{generator_forward.9} parent=5 // pred_region
        %s204 = ssub.s32 %s18, 1
        // Predicated region
        $region13: #{generator_forward.9} parent=11 // pred_check
          %p205 = pneg %p56
        $region14: #{generator_forward.9} parent=11 // pred_check_branch
          %207 = sbr.rel (%p205) target = $region16
        $region15: #{generator_forward.9} parent=11 // pred_region
          %p208 = scmp.lt.s32.totalorder %s28, 0
          %s209 = scalar_select %p208, %s28, 0
          %s210 = smul.addr %s209, 3
          %s211 = smul.addr %s210, 4
          %s212 = scalar_lea.vmem %s0, %s211
        $region16: #{generator_forward.9} parent=11 // pred_fallthru
          _
      $region12: #{generator_forward.9} parent=5 // pred_fallthru
        _
      %p213 = scmp.lt.s32.totalorder %s18, 12
      // Predicated region
      $region17: #{generator_forward.9} parent=5 // pred_check
        %p214 = pneg %p213
      $region18: #{generator_forward.9} parent=5 // pred_check_branch
        %216 = sbr.rel (%p214) target = $region20
      $region19: #{generator_forward.9} parent=5 // pred_region
        // Predicated region
        $region21: #{generator_forward.9} parent=19 // pred_check
          %p217 = pneg %p76
        $region22: #{generator_forward.9} parent=19 // pred_check_branch
          %219 = sbr.rel (%p217) target = $region24
        $region23: #{generator_forward.9} parent=19 // pred_region
          %s220 = sand.u32 %s66, 1
          %s221 = scalar_lea.sflag [#allocation3], %s220
          %s222 = sand.u32 %s66, 1
          %s223 = smul.addr %s222, 384
          %s224 = scalar_lea.vmem [#allocation2], %s223
          %s225 = smul.u32 2, %s25
          %s227 = ssub.s32 6144, 6144
          %228 = vsyncadd %s221, %s227
          %s229 = smul.addr %s225, 64
          %s230 = scalar_lea.hbm %s1, %s229
          %s231 = sshll.u32 %s224, 4
          %s232 = int_to_ptr.vmem [resolvable:$true] %s231
          %237 = dma.hbm_to_vmem [thread:$0]  %s230, 6144, %s232, %s221, 1536, 128, 8
        $region24: #{generator_forward.9} parent=19 // pred_fallthru
          _
        // Predicated region
        $region25: #{generator_forward.9} parent=19 // pred_check
          %p238 = pneg %p104
        $region26: #{generator_forward.9} parent=19 // pred_check_branch
          %240 = sbr.rel (%p238) target = $region28
        $region27: #{generator_forward.9} parent=19 // pred_region
          %s241 = sand.u32 %s94, 1
          %s242 = scalar_lea.sflag [#allocation5], %s241
          %s243 = sand.u32 %s94, 1
          %s244 = smul.addr %s243, 16
          %s245 = scalar_lea.vmem [#allocation4], %s244
          %s246 = smul.u32 2, %s25
          %s248 = ssub.s32 256, 256
          %249 = vsyncadd %s242, %s248
          %s250 = smul.addr %s26, 24
          %s251 = sadd.s32 %s246, %s250
          %s252 = smul.addr %s251, 128
          %s253 = scalar_lea.hbm %s2, %s252
          %s255 = sshll.u32 %s245, 4
          %s256 = int_to_ptr.vmem [resolvable:$true] %s255
          %258 = dma.hbm_to_vmem [thread:$0]  %s253, 256, %s256, %s242
        $region28: #{generator_forward.9} parent=19 // pred_fallthru
          _
      $region20: #{generator_forward.9} parent=5 // pred_fallthru
        _
      %p259 = scmp.le.s32.totalorder 1, %s18
      %p260 = scmp.lt.s32.totalorder %s18, 13
      %p261 = pnand %p259, %p260
      %p262 = pneg %p261
      // Predicated region
      $region29: #{generator_forward.9} parent=5 // pred_check
        _
      $region30: #{generator_forward.9} parent=5 // pred_check_branch
        %264 = sbr.rel (%p261) target = $region32
      $region31: #{generator_forward.9} parent=5 // pred_region
        %s265 = ssub.s32 %s18, 1
        %s266 = sand.u32 %s69, 1
        %s267 = scalar_lea.sflag [#allocation3], %s266
        %s268 = sand.u32 %s69, 1
        %s269 = smul.addr %s268, 384
        %s270 = scalar_lea.vmem [#allocation2], %s269
        // Predicated region
        $region33: #{generator_forward.9} parent=31 // pred_check
          %p271 = pneg %p82
        $region34: #{generator_forward.9} parent=31 // pred_check_branch
          %273 = sbr.rel (%p271) target = $region36
        $region35: #{generator_forward.9} parent=31 // pred_region
          %274 = dma.done %s267, 6144
        $region36: #{generator_forward.9} parent=31 // pred_fallthru
          _
        %s275 = sand.u32 %s97, 1
        %s276 = scalar_lea.sflag [#allocation5], %s275
        %s277 = sand.u32 %s97, 1
        %s278 = smul.addr %s277, 16
        %s279 = scalar_lea.vmem [#allocation4], %s278
        // Predicated region
        $region37: #{generator_forward.9} parent=31 // pred_check
          %p280 = pneg %p110
        $region38: #{generator_forward.9} parent=31 // pred_check_branch
          %282 = sbr.rel (%p280) target = $region40
        $region39: #{generator_forward.9} parent=31 // pred_region
          %283 = dma.done %s276, 256
        $region40: #{generator_forward.9} parent=31 // pred_fallthru
          _
        %p284 = scmp.lt.s32.totalorder %s28, 0
        %s285 = scalar_select %p284, %s28, 0
        %s286 = smul.addr %s285, 3
        %s287 = smul.addr %s286, 4
        %s288 = scalar_lea.vmem %s0, %s287
        %p289 = pneg %p56
        %p290 = pneg %p53
        %s291 = sand.u32 %s69, 1
        %s292 = scalar_lea.sflag [#allocation3], %s291
        %s293 = sand.u32 %s69, 1
        %s294 = smul.addr %s293, 384
        %s295 = scalar_lea.vmem [#allocation2], %s294
        %p296 = pneg %p82
        %p297 = pneg %p79
        %s298 = sand.u32 %s97, 1
        %s299 = scalar_lea.sflag [#allocation5], %s298
        %s300 = sand.u32 %s97, 1
        %s301 = smul.addr %s300, 16
        %s302 = scalar_lea.vmem [#allocation4], %s301
        %p303 = pneg %p110
        %p304 = pneg %p107
        %p305 = pneg %p138
        %p306 = pneg %p135
        %s307 = smul.u32 2, %s27
        %p308 = scmp.lt.s32.totalorder %s28, 0
        %s309 = scalar_select %p308, %s28, 0
        %p310 = scmp.lt.s32.totalorder %s307, 23
        %s311 = scalar_select %p310, %s307, 23
        %s312 = smul.addr %s309, 24
        %s313 = sadd.s32 %s311, %s312
        %s314 = smul.addr %s313, 8
        %s315 = scalar_lea.vmem %s3, %s314
        %p316 = pneg %p164
        %p317 = pneg %p161
        %s318 = smul.u32 2, %s27
        %p319 = scmp.lt.s32.totalorder %s318, 23
        %s320 = scalar_select %p319, %s318, 23
        %s321 = scalar_lea.vmem %s4, %s320
        %p322 = pneg %p190
        %p323 = pneg %p187
        %s324 = smul.u32 2, %s27
        %p325 = scmp.lt.s32.totalorder %s324, 23
        %s326 = scalar_select %p325, %s324, 23
        %s327 = scalar_lea.vmem %s5, %s326
        %p328 = scmp.lt.s32.totalorder %s28, 0
        %s329 = scalar_select %p328, %s28, 0
        %s330 = smul.addr %s329, 3
        %s331 = smul.addr %s330, 4
        %s332 = scalar_lea.vmem %s0, %s331
        %s333 = smul.u32 2, %s27
        %s334 = smul.u32 2, %s27
        %s335 = smul.u32 2, %s27
        %p336 = scmp.lt.s32.totalorder %s28, 0
        %s337 = scalar_select %p336, %s28, 0
        %p338 = scmp.lt.s32.totalorder %s335, 23
        %s339 = scalar_select %p338, %s335, 23
        %s340 = smul.addr %s337, 24
        %s341 = sadd.s32 %s339, %s340
        %s342 = smul.addr %s341, 8
        %s343 = scalar_lea.vmem %s3, %s342
        %s344 = smul.u32 2, %s27
        %s345 = smul.u32 2, %s27
        %p346 = scmp.lt.s32.totalorder %s345, 23
        %s347 = scalar_select %p346, %s345, 23
        %s348 = scalar_lea.vmem %s4, %s347
        %s349 = smul.u32 2, %s27
        %s350 = smul.u32 2, %s27
        %p351 = scmp.lt.s32.totalorder %s350, 23
        %s352 = scalar_select %p351, %s350, 23
        %s353 = scalar_lea.vmem %s5, %s352
        %s354 = smul.u32 2, %s27
        %p356 = scmp.eq.s32.totalorder %s28, 0
        // Predicated region
        $region41: #{generator_forward.9} parent=31 // pred_check
          %p357 = pneg %p356
        $region42: #{generator_forward.9} parent=31 // pred_check_branch
          %359 = sbr.rel (%p357) target = $region44
        $region43: #{generator_forward.9} parent=31 // pred_region
          %v360 = vlaneseq
          %vm361 = vcmp.ge.s32.totalorder %v360, 0
          %vm362 = vcmp.lt.s32.totalorder %v360, 256
          %vm363 = vmand %vm361, %vm362
          %364 = vst.msk [vmem:[%s348] sm:$0x3] %vm363, 0.0
          %365 = vst.msk [vmem:[%s353] sm:$0x3] %vm363, 0.0
        $region44: #{generator_forward.9} parent=31 // pred_fallthru
          _
        %v366 = vld [vmem:[%s332] sm:$0xff]
        %v367 = vld [vmem:[%s332 + $0x8] sm:$0xf]
        %v368 = vld [vmem:[%s270] sm:$0xff]
        %v369 = vld [vmem:[%s270 + $0x8] sm:$0xff]
        %v370 = vld [vmem:[%s270 + $0x10] sm:$0xff]
        %v371 = vld [vmem:[%s270 + $0x18] sm:$0xff]
        %v372 = vld [vmem:[%s270 + $0x20] sm:$0xff]
        %v373 = vld [vmem:[%s270 + $0x28] sm:$0xff]
        %v374 = vld [vmem:[%s270 + $0x30] sm:$0xff]
        %v375 = vld [vmem:[%s270 + $0x38] sm:$0xff]
        %v376 = vld [vmem:[%s270 + $0x40] sm:$0xff]
        %v377 = vld [vmem:[%s270 + $0x48] sm:$0xff]
        %v378 = vld [vmem:[%s270 + $0x50] sm:$0xff]
        %v379 = vld [vmem:[%s270 + $0x58] sm:$0xff]
        %v380 = vld [vmem:[%s270 + $0x60] sm:$0xff]
        %v381 = vld [vmem:[%s270 + $0x68] sm:$0xff]
        %v382 = vld [vmem:[%s270 + $0x70] sm:$0xff]
        %v383 = vld [vmem:[%s270 + $0x78] sm:$0xff]
        %v384 = vld [vmem:[%s270 + $0x80] sm:$0xff]
        %v385 = vld [vmem:[%s270 + $0x88] sm:$0xff]
        %v386 = vld [vmem:[%s270 + $0x90] sm:$0xff]
        %v387 = vld [vmem:[%s270 + $0x98] sm:$0xff]
        %v388 = vld [vmem:[%s270 + $0xa0] sm:$0xff]
        %v389 = vld [vmem:[%s270 + $0xa8] sm:$0xff]
        %v390 = vld [vmem:[%s270 + $0xb0] sm:$0xff]
        %v391 = vld [vmem:[%s270 + $0xb8] sm:$0xff]
        %v392 = vld [vmem:[%s270 + $0xc0] sm:$0xff]
        %v393 = vld [vmem:[%s270 + $0xc8] sm:$0xff]
        %v394 = vld [vmem:[%s270 + $0xd0] sm:$0xff]
        %v395 = vld [vmem:[%s270 + $0xd8] sm:$0xff]
        %v396 = vld [vmem:[%s270 + $0xe0] sm:$0xff]
        %v397 = vld [vmem:[%s270 + $0xe8] sm:$0xff]
        %v398 = vld [vmem:[%s270 + $0xf0] sm:$0xff]
        %v399 = vld [vmem:[%s270 + $0xf8] sm:$0xff]
        %v400 = vld [vmem:[%s270 + $0x100] sm:$0xff]
        %v401 = vld [vmem:[%s270 + $0x108] sm:$0xff]
        %v402 = vld [vmem:[%s270 + $0x110] sm:$0xff]
        %v403 = vld [vmem:[%s270 + $0x118] sm:$0xff]
        %v404 = vld [vmem:[%s270 + $0x120] sm:$0xff]
        %v405 = vld [vmem:[%s270 + $0x128] sm:$0xff]
        %v406 = vld [vmem:[%s270 + $0x130] sm:$0xff]
        %v407 = vld [vmem:[%s270 + $0x138] sm:$0xff]
        %v408 = vld [vmem:[%s270 + $0x140] sm:$0xff]
        %v409 = vld [vmem:[%s270 + $0x148] sm:$0xff]
        %v410 = vld [vmem:[%s270 + $0x150] sm:$0xff]
        %v411 = vld [vmem:[%s270 + $0x158] sm:$0xff]
        %v412 = vld [vmem:[%s270 + $0x160] sm:$0xff]
        %v413 = vld [vmem:[%s270 + $0x168] sm:$0xff]
        %v414 = vld [vmem:[%s270 + $0x170] sm:$0xff]
        %v415 = vld [vmem:[%s270 + $0x178] sm:$0xff]
        %v418 = vunpack.c.l.b16 %v366
        %v419 = vunpack.c.h.b16 %v366
        %v420 = vunpack.c.l.b16 %v367
        %v421 = vpack.c.b16 %v418, %v418
        %v422 = vpack.c.b16 %v419, %v419
        %v423 = vpack.c.b16 %v420, %v420
        %v475 = vunpack.c.l.b16 %v368
        %v476 = vunpack.c.h.b16 %v368
        %v477 = vunpack.c.l.b16 %v369
        %v478 = vunpack.c.h.b16 %v369
        %v479 = vunpack.c.l.b16 %v370
        %v480 = vunpack.c.h.b16 %v370
        %v481 = vunpack.c.l.b16 %v371
        %v482 = vunpack.c.h.b16 %v371
        %v483 = vunpack.c.l.b16 %v372
        %v484 = vunpack.c.h.b16 %v372
        %v485 = vunpack.c.l.b16 %v373
        %v486 = vunpack.c.h.b16 %v373
        %v487 = vunpack.c.l.b16 %v374
        %v488 = vunpack.c.h.b16 %v374
        %v489 = vunpack.c.l.b16 %v375
        %v490 = vunpack.c.h.b16 %v375
        %v491 = vunpack.c.l.b16 %v376
        %v492 = vunpack.c.h.b16 %v376
        %v493 = vunpack.c.l.b16 %v377
        %v494 = vunpack.c.h.b16 %v377
        %v495 = vunpack.c.l.b16 %v378
        %v496 = vunpack.c.h.b16 %v378
        %v497 = vunpack.c.l.b16 %v379
        %v498 = vunpack.c.h.b16 %v379
        %v499 = vunpack.c.l.b16 %v380
        %v500 = vunpack.c.h.b16 %v380
        %v501 = vunpack.c.l.b16 %v381
        %v502 = vunpack.c.h.b16 %v381
        %v503 = vunpack.c.l.b16 %v382
        %v504 = vunpack.c.h.b16 %v382
        %v505 = vunpack.c.l.b16 %v383
        %v506 = vunpack.c.h.b16 %v383
        %v507 = vunpack.c.l.b16 %v384
        %v508 = vunpack.c.h.b16 %v384
        %v509 = vunpack.c.l.b16 %v385
        %v510 = vunpack.c.h.b16 %v385
        %v511 = vunpack.c.l.b16 %v386
        %v512 = vunpack.c.h.b16 %v386
        %v513 = vunpack.c.l.b16 %v387
        %v514 = vunpack.c.h.b16 %v387
        %v515 = vunpack.c.l.b16 %v388
        %v516 = vunpack.c.h.b16 %v388
        %v517 = vunpack.c.l.b16 %v389
        %v518 = vunpack.c.h.b16 %v389
        %v519 = vunpack.c.l.b16 %v390
        %v520 = vunpack.c.h.b16 %v390
        %v521 = vunpack.c.l.b16 %v391
        %v522 = vunpack.c.h.b16 %v391
        %v523 = vunpack.c.l.b16 %v392
        %v524 = vunpack.c.h.b16 %v392
        %v525 = vunpack.c.l.b16 %v393
        %v526 = vunpack.c.h.b16 %v393
        %v527 = vunpack.c.l.b16 %v394
        %v528 = vunpack.c.h.b16 %v394
        %v529 = vunpack.c.l.b16 %v395
        %v530 = vunpack.c.h.b16 %v395
        %v531 = vunpack.c.l.b16 %v396
        %v532 = vunpack.c.h.b16 %v396
        %v533 = vunpack.c.l.b16 %v397
        %v534 = vunpack.c.h.b16 %v397
        %v535 = vunpack.c.l.b16 %v398
        %v536 = vunpack.c.h.b16 %v398
        %v537 = vunpack.c.l.b16 %v399
        %v538 = vunpack.c.h.b16 %v399
        %v539 = vunpack.c.l.b16 %v400
        %v540 = vunpack.c.h.b16 %v400
        %v541 = vunpack.c.l.b16 %v401
        %v542 = vunpack.c.h.b16 %v401
        %v543 = vunpack.c.l.b16 %v402
        %v544 = vunpack.c.h.b16 %v402
        %v545 = vunpack.c.l.b16 %v403
        %v546 = vunpack.c.h.b16 %v403
        %v547 = vunpack.c.l.b16 %v404
        %v548 = vunpack.c.h.b16 %v404
        %v549 = vunpack.c.l.b16 %v405
        %v550 = vunpack.c.h.b16 %v405
        %v551 = vunpack.c.l.b16 %v406
        %v552 = vunpack.c.h.b16 %v406
        %v553 = vunpack.c.l.b16 %v407
        %v554 = vunpack.c.h.b16 %v407
        %v555 = vunpack.c.l.b16 %v408
        %v556 = vunpack.c.h.b16 %v408
        %v557 = vunpack.c.l.b16 %v409
        %v558 = vunpack.c.h.b16 %v409
        %v559 = vunpack.c.l.b16 %v410
        %v560 = vunpack.c.h.b16 %v410
        %v561 = vunpack.c.l.b16 %v411
        %v562 = vunpack.c.h.b16 %v411
        %v563 = vunpack.c.l.b16 %v412
        %v564 = vunpack.c.h.b16 %v412
        %v565 = vunpack.c.l.b16 %v413
        %v566 = vunpack.c.h.b16 %v413
        %v567 = vunpack.c.l.b16 %v414
        %v568 = vunpack.c.h.b16 %v414
        %v569 = vunpack.c.l.b16 %v415
        %v570 = vunpack.c.h.b16 %v415
        %v571 = vpack.c.b16 %v477, %v475
        %v572 = vpack.c.b16 %v478, %v476
        %v573 = vpack.c.b16 %v481, %v479
        %v574 = vpack.c.b16 %v482, %v480
        %v575 = vpack.c.b16 %v485, %v483
        %v576 = vpack.c.b16 %v486, %v484
        %v577 = vpack.c.b16 %v489, %v487
        %v578 = vpack.c.b16 %v490, %v488
        %v579 = vpack.c.b16 %v493, %v491
        %v580 = vpack.c.b16 %v494, %v492
        %v581 = vpack.c.b16 %v497, %v495
        %v582 = vpack.c.b16 %v498, %v496
        %v583 = vpack.c.b16 %v501, %v499
        %v584 = vpack.c.b16 %v502, %v500
        %v585 = vpack.c.b16 %v505, %v503
        %v586 = vpack.c.b16 %v506, %v504
        %v587 = vpack.c.b16 %v509, %v507
        %v588 = vpack.c.b16 %v510, %v508
        %v589 = vpack.c.b16 %v513, %v511
        %v590 = vpack.c.b16 %v514, %v512
        %v591 = vpack.c.b16 %v517, %v515
        %v592 = vpack.c.b16 %v518, %v516
        %v593 = vpack.c.b16 %v521, %v519
        %v594 = vpack.c.b16 %v522, %v520
        %v595 = vpack.c.b16 %v525, %v523
        %v596 = vpack.c.b16 %v526, %v524
        %v597 = vpack.c.b16 %v529, %v527
        %v598 = vpack.c.b16 %v530, %v528
        %v599 = vpack.c.b16 %v533, %v531
        %v600 = vpack.c.b16 %v534, %v532
        %v601 = vpack.c.b16 %v537, %v535
        %v602 = vpack.c.b16 %v538, %v536
        %v603 = vpack.c.b16 %v541, %v539
        %v604 = vpack.c.b16 %v542, %v540
        %v605 = vpack.c.b16 %v545, %v543
        %v606 = vpack.c.b16 %v546, %v544
        %v607 = vpack.c.b16 %v549, %v547
        %v608 = vpack.c.b16 %v550, %v548
        %v609 = vpack.c.b16 %v553, %v551
        %v610 = vpack.c.b16 %v554, %v552
        %v611 = vpack.c.b16 %v557, %v555
        %v612 = vpack.c.b16 %v558, %v556
        %v613 = vpack.c.b16 %v561, %v559
        %v614 = vpack.c.b16 %v562, %v560
        %v615 = vpack.c.b16 %v565, %v563
        %v616 = vpack.c.b16 %v566, %v564
        %v617 = vpack.c.b16 %v569, %v567
        %v618 = vpack.c.b16 %v570, %v568
        %667 = vmatprep.subr.bf16.mxu0 %v572
        %668 = vmatpush1.bf16.msra.mxu0 %v571
        %669 = vmatprep.subr.bf16.mxu0 %v574
        %670 = vmatpush1.bf16.msra.mxu0 %v573
        %671 = vmatprep.subr.bf16.mxu0 %v576
        %672 = vmatpush1.bf16.msra.mxu0 %v575
        %673 = vmatprep.subr.bf16.mxu0 %v578
        %674 = vmatpush1.bf16.msra.mxu0 %v577
        %675 = vmatprep.subr.bf16.mxu0 %v580
        %676 = vmatpush1.bf16.msra.mxu0 %v579
        %677 = vmatprep.subr.bf16.mxu0 %v582
        %678 = vmatpush1.bf16.msra.mxu0 %v581
        %679 = vmatprep.subr.bf16.mxu0 %v584
        %680 = vmatpush1.bf16.msra.mxu0 %v583
        %681 = vmatprep.subr.bf16.mxu0 %v586
        %682 = vmatpush1.bf16.msra.mxu0 %v585
        %683 = vmatprep.subr.bf16.mxu0 %v588
        %684 = vmatpush1.bf16.msra.mxu0 %v587
        %685 = vmatprep.subr.bf16.mxu0 %v590
        %686 = vmatpush1.bf16.msra.mxu0 %v589
        %687 = vmatprep.subr.bf16.mxu0 %v592
        %688 = vmatpush1.bf16.msra.mxu0 %v591
        %689 = vmatprep.subr.bf16.mxu0 %v594
        %690 = vmatpush1.bf16.msra.mxu0 %v593
        %691 = vmatprep.subr.bf16.mxu0 %v596
        %692 = vmatpush1.bf16.msra.mxu0 %v595
        %693 = vmatprep.subr.bf16.mxu0 %v598
        %694 = vmatpush1.bf16.msra.mxu0 %v597
        %695 = vmatprep.subr.bf16.mxu0 %v600
        %696 = vmatpush1.bf16.msra.mxu0 %v599
        %697 = vmatprep.subr.bf16.mxu0 %v602
        %698 = vmatpush1.bf16.msra.mxu0 %v601
        %699 = vmatprep.mubr.bf16.mxu0 %v422
        %700 = vmatmul.mubr.bf16.gmra.mrb[0].mxu0 %v421
        %v701 = vpop.f32.mrb[0].mxu0
        %v702 = vadd.f32 0.0, %v701
        %v703 = vpop.f32.mrb[0].mxu0
        %v704 = vadd.f32 0.0, %v703
        %v705 = vpop.f32.mrb[0].mxu0
        %v706 = vpop.f32.mrb[0].mxu0
        %707 = vdwg.mxu0
        %708 = vmatprep.subr.bf16.mxu0 %v604
        %709 = vmatpush1.bf16.msra.mxu0 %v603
        %710 = vmatprep.subr.bf16.mxu0 %v606
        %711 = vmatpush1.bf16.msra.mxu0 %v605
        %712 = vmatprep.subr.bf16.mxu0 %v608
        %713 = vmatpush1.bf16.msra.mxu0 %v607
        %714 = vmatprep.subr.bf16.mxu0 %v610
        %715 = vmatpush1.bf16.msra.mxu0 %v609
        %716 = vmatprep.subr.bf16.mxu0 %v612
        %717 = vmatpush1.bf16.msra.mxu0 %v611
        %718 = vmatprep.subr.bf16.mxu0 %v614
        %719 = vmatpush1.bf16.msra.mxu0 %v613
        %720 = vmatprep.subr.bf16.mxu0 %v616
        %721 = vmatpush1.bf16.msra.mxu0 %v615
        %722 = vmatprep.subr.bf16.mxu0 %v618
        %723 = vmatpush1.bf16.msra.mxu0 %v617
        %724 = vmatprep.subr.bf16.mxu0 0
        %725 = vmatpush1.bf16.msra.mxu0 0
        %726 = vmatprep.subr.bf16.mxu0 0
        %727 = vmatpush1.bf16.msra.mxu0 0
        %728 = vmatprep.subr.bf16.mxu0 0
        %729 = vmatpush1.bf16.msra.mxu0 0
        %730 = vmatprep.subr.bf16.mxu0 0
        %731 = vmatpush1.bf16.msra.mxu0 0
        %732 = vmatprep.subr.bf16.mxu0 0
        %733 = vmatpush1.bf16.msra.mxu0 0
        %734 = vmatprep.subr.bf16.mxu0 0
        %735 = vmatpush1.bf16.msra.mxu0 0
        %736 = vmatprep.subr.bf16.mxu0 0
        %737 = vmatpush1.bf16.msra.mxu0 0
        %738 = vmatprep.subr.bf16.mxu0 0
        %739 = vmatpush1.bf16.msra.mxu0 0
        %740 = vmatprep.mubr.bf16.mxu0 0
        %741 = vmatmul.mubr.bf16.gmra.mrb[0].mxu0 %v423
        %v742 = vpop.f32.mrb[0].mxu0
        %v743 = vadd.f32 %v702, %v742
        %v744 = vpop.f32.mrb[0].mxu0
        %v745 = vadd.f32 %v704, %v744
        %v746 = vpop.f32.mrb[0].mxu0
        %v747 = vpop.f32.mrb[0].mxu0
        %748 = vdwg.mxu0
        %749 = vst [vmem:[%s343] sm:$0xff] %v743
        %750 = vst [vmem:[%s343 + $0x8] sm:$0xff] %v745
        %v751 = vld [vmem:[%s279] sm:$0xff]
        %v752 = vld [vmem:[%s279 + $0x8] sm:$0xff]
        %v753 = vmul.f32 %v743, %v751
        %v754 = vmul.f32 %v745, %v752
        %v755 = vld [vmem:[%s348] sm:$0x3]
        %v756 = vrot.slane %v753, 4
        %v757 = vadd.f32 %v753, %v756
        %v758 = vrot.slane %v757, 2
        %v759 = vadd.f32 %v757, %v758
        %v760 = vrot.slane %v759, 1
        %v761 = vadd.f32 %v759, %v760
        %v762 = vrot.slane %v754, 4
        %v763 = vadd.f32 %v754, %v762
        %v764 = vrot.slane %v763, 2
        %v765 = vadd.f32 %v763, %v764
        %v766 = vrot.slane %v765, 1
        %v767 = vadd.f32 %v765, %v766
        %v770 = vcombine.low %v761, %v767
        %v772 = vunpack.c.l.s4 1966171168
        %v773 = vunpack.c.0.s8 %v772
        %v774 = vlaneseq
        %v775 = vshrl.u32 %v774, 7
        %v776 = vsub.s32 %v773, %v775
        %v777 = vrot.slane %v770, %v776
        %v779 = vunpack.c.l.s4 1966171168
        %v780 = vunpack.c.0.s8 %v779
        %v781 = vlaneseq
        %v782 = vshrl.u32 %v781, 7
        %v783 = vsub.s32 %v780, %v782
        %v784 = vrot.slane %v777, %v783
        %v786 = vadd.f32 %v755, %v784
        %v787 = vlaneseq
        %vm788 = vcmp.ge.s32.totalorder %v787, 0
        %vm789 = vcmp.lt.s32.totalorder %v787, 256
        %vm790 = vmand %vm788, %vm789
        %791 = vst.msk [vmem:[%s348] sm:$0x3] %vm790, %v786
        %v792 = vld [vmem:[%s353] sm:$0x3]
        %v793 = vmul.f32 %v743, %v753
        %v794 = vmul.f32 %v745, %v754
        %v795 = vrot.slane %v793, 4
        %v796 = vadd.f32 %v793, %v795
        %v797 = vrot.slane %v796, 2
        %v798 = vadd.f32 %v796, %v797
        %v799 = vrot.slane %v798, 1
        %v800 = vadd.f32 %v798, %v799
        %v801 = vrot.slane %v794, 4
        %v802 = vadd.f32 %v794, %v801
        %v803 = vrot.slane %v802, 2
        %v804 = vadd.f32 %v802, %v803
        %v805 = vrot.slane %v804, 1
        %v806 = vadd.f32 %v804, %v805
        %v809 = vcombine.low %v800, %v806
        %v811 = vunpack.c.l.s4 1966171168
        %v812 = vunpack.c.0.s8 %v811
        %v813 = vlaneseq
        %v814 = vshrl.u32 %v813, 7
        %v815 = vsub.s32 %v812, %v814
        %v816 = vrot.slane %v809, %v815
        %v818 = vunpack.c.l.s4 1966171168
        %v819 = vunpack.c.0.s8 %v818
        %v820 = vlaneseq
        %v821 = vshrl.u32 %v820, 7
        %v822 = vsub.s32 %v819, %v821
        %v823 = vrot.slane %v816, %v822
        %v825 = vadd.f32 %v792, %v823
        %826 = vst.msk [vmem:[%s353] sm:$0x3] %vm790, %v825
        %s827 = smul.u32 2, %s27
        %p828 = scmp.lt.s32.totalorder %s28, 0
        %s829 = scalar_select %p828, %s28, 0
        %p830 = scmp.lt.s32.totalorder %s827, 23
        %s831 = scalar_select %p830, %s827, 23
        %s832 = smul.addr %s829, 24
        %s833 = sadd.s32 %s831, %s832
        %s834 = smul.addr %s833, 8
        %s835 = scalar_lea.vmem %s3, %s834
        %s836 = smul.u32 2, %s27
        %p837 = scmp.lt.s32.totalorder %s836, 23
        %s838 = scalar_select %p837, %s836, 23
        %s839 = scalar_lea.vmem %s4, %s838
        %s840 = smul.u32 2, %s27
        %p841 = scmp.lt.s32.totalorder %s840, 23
        %s842 = scalar_select %p841, %s840, 23
        %s843 = scalar_lea.vmem %s5, %s842
        // Predicated region
        $region45: #{generator_forward.9} parent=31 // pred_check
          %p844 = pneg %p135
        $region46: #{generator_forward.9} parent=31 // pred_check_branch
          %846 = sbr.rel (%p844) target = $region48
        $region47: #{generator_forward.9} parent=31 // pred_region
          %s847 = smul.u32 2, %s27
        $region48: #{generator_forward.9} parent=31 // pred_fallthru
          _
        // Predicated region
        $region49: #{generator_forward.9} parent=31 // pred_check
          %p848 = pneg %p161
        $region50: #{generator_forward.9} parent=31 // pred_check_branch
          %850 = sbr.rel (%p848) target = $region52
        $region51: #{generator_forward.9} parent=31 // pred_region
          %s851 = smul.u32 2, %s27
        $region52: #{generator_forward.9} parent=31 // pred_fallthru
          _
        // Predicated region
        $region53: #{generator_forward.9} parent=31 // pred_check
          %p852 = pneg %p187
        $region54: #{generator_forward.9} parent=31 // pred_check_branch
          %854 = sbr.rel (%p852) target = $region56
        $region55: #{generator_forward.9} parent=31 // pred_region
          %s855 = smul.u32 2, %s27
        $region56: #{generator_forward.9} parent=31 // pred_fallthru
          _
      $region32: #{generator_forward.9} parent=5 // pred_fallthru
        _
      %p856 = scmp.le.s32.totalorder 2, %s18
      // Predicated region
      $region57: #{generator_forward.9} parent=5 // pred_check
        %p857 = pneg %p856
      $region58: #{generator_forward.9} parent=5 // pred_check_branch
        %859 = sbr.rel (%p857) target = $region60
      $region59: #{generator_forward.9} parent=5 // pred_region
        %s860 = ssub.s32 %s18, 2
        // Predicated region
        $region61: #{generator_forward.9} parent=59 // pred_check
          %p861 = pneg %p141
        $region62: #{generator_forward.9} parent=59 // pred_check_branch
          %863 = sbr.rel (%p861) target = $region64
        $region63: #{generator_forward.9} parent=59 // pred_region
          %s864 = smul.u32 2, %s29
          %p865 = scmp.lt.s32.totalorder %s30, 0
          %s866 = scalar_select %p865, %s30, 0
          %p867 = scmp.lt.s32.totalorder %s864, 23
          %s868 = scalar_select %p867, %s864, 23
          %s869 = smul.addr %s866, 24
          %s870 = sadd.s32 %s868, %s869
          %s871 = smul.addr %s870, 8
          %s872 = scalar_lea.vmem %s3, %s871
        $region64: #{generator_forward.9} parent=59 // pred_fallthru
          _
        // Predicated region
        $region65: #{generator_forward.9} parent=59 // pred_check
          %p873 = pneg %p167
        $region66: #{generator_forward.9} parent=59 // pred_check_branch
          %875 = sbr.rel (%p873) target = $region68
        $region67: #{generator_forward.9} parent=59 // pred_region
          %s876 = smul.u32 2, %s29
          %p877 = scmp.lt.s32.totalorder %s876, 23
          %s878 = scalar_select %p877, %s876, 23
          %s879 = scalar_lea.vmem %s4, %s878
        $region68: #{generator_forward.9} parent=59 // pred_fallthru
          _
        // Predicated region
        $region69: #{generator_forward.9} parent=59 // pred_check
          %p880 = pneg %p193
        $region70: #{generator_forward.9} parent=59 // pred_check_branch
          %882 = sbr.rel (%p880) target = $region72
        $region71: #{generator_forward.9} parent=59 // pred_region
          %s883 = smul.u32 2, %s29
          %p884 = scmp.lt.s32.totalorder %s883, 23
          %s885 = scalar_select %p884, %s883, 23
          %s886 = scalar_lea.vmem %s5, %s885
        $region72: #{generator_forward.9} parent=59 // pred_fallthru
          _
      $region60: #{generator_forward.9} parent=5 // pred_fallthru
        _
    $region6: #{generator_forward.9} parent=1 // loop_footer
      %s22 = sadd.s32 1, %s18
    $region7: #{generator_forward.9} parent=1 // loop_footer_branch
      %17 = sbr.rel target = $region3
    $region8: #{generator_forward.9} parent=1 // loop_exit
      _
    %887 = vsyncpa [#allocation3], 1
    %s888 = scalar_lea.sflag [#allocation3], 1
    %889 = vsyncpa %s888, 1
    %890 = vsyncpa [#allocation5], 1
    %s891 = scalar_lea.sflag [#allocation5], 1
    %892 = vsyncpa %s891, 1

// kernel: squeeze.21
$region0: #{squeeze.21}
  %s0 = inlined_call_operand.vmem [shape: f32[384], index: 0, kind: input, shape index: {}]
  %s1 = inlined_call_operand.vmem [shape: f32[4,96], index: 1, kind: output, shape index: {}]
  $region1: #{squeeze.21} parent=0
    #allocation0 [shape = 'u8[4096]{0}', space=vmem, size = 0x1000, scoped, tag = 'scoped mem for output reshape']
    #allocation1 [shape = 'u8[4096]{0}', space=vmem, size = 0x1000, scoped, tag = 'scoped mem for input reshape']
    %s3 = sshllo.u32 0, 4
    %v4 = vld [vmem:[%s0] sm:%s3]
    %5 = vst [vmem:[#allocation1] sm:%s3] %v4
    %v6 = vld [vmem:[#allocation1] sm:$0x1]
    %vm7 = vcmask 785408
    %8 = vst.msk [vmem:[#allocation0] sm:$0x1] %vm7, %v6
    %s9 = scalar_lea.vmem [#allocation1], 2
    %v10 = vld [vmem:[%s9] sm:$0x1]
    %11 = vrot.lane.b32.xlu0 %v10, 96
    %v12 = vpop.permute.xlu0 %11
    %vm13 = vcmask 785408
    %s14 = scalar_lea.vmem [#allocation0], 3
    %15 = vst.msk [vmem:[%s14] sm:$0x1] %vm13, %v12
    %s16 = scalar_lea.vmem [#allocation1], 1
    %v17 = vld [vmem:[%s16] sm:$0x1]
    %s18 = scalar_lea.vmem [#allocation1], 2
    %v19 = vld [vmem:[%s18] sm:$0x1]
    %vm20 = vcmask 523264
    %v21 = vsel %vm20, %v19, %v17
    %22 = vrot.lane.b32.xlu0 %v21, 64
    %v23 = vpop.permute.xlu0 %22
    %vm24 = vcmask 523264
    %s25 = scalar_lea.vmem [#allocation0], 2
    %26 = vst.msk [vmem:[%s25] sm:$0x1] %vm24, %v23
    %vm27 = vcmask 785920
    %s28 = scalar_lea.vmem [#allocation0], 2
    %29 = vst.msk [vmem:[%s28] sm:$0x1] %vm27, %v23
    %v30 = vld [vmem:[#allocation1] sm:$0x1]
    %s31 = scalar_lea.vmem [#allocation1], 1
    %v32 = vld [vmem:[%s31] sm:$0x1]
    %vm33 = vcmask 785408
    %v34 = vsel %vm33, %v32, %v30
    %35 = vrot.lane.b32.xlu0 %v34, 32
    %v36 = vpop.permute.xlu0 %35
    %vm37 = vcmask 261120
    %s38 = scalar_lea.vmem [#allocation0], 1
    %39 = vst.msk [vmem:[%s38] sm:$0x1] %vm37, %v36
    %vm40 = vcmask 785664
    %s41 = scalar_lea.vmem [#allocation0], 1
    %42 = vst.msk [vmem:[%s41] sm:$0x1] %vm40, %v36
    %s44 = sshllo.u32 0, 4
    %v46 = vld [vmem:[#allocation0] sm:%s44]
    %s47 = sshllo.u32 0, 4
    %48 = vst [vmem:[%s1] sm:%s47] %v46

// kernel: tile.48
$region0: #{tile.48}
  #allocation0 [shape = 's32[1]{0}', space=sflag, size = 0x4, scoped, tag = 'scoped memory for tile.48']
  %s0 = inlined_call_operand.vmem [shape: f32[96], index: 0, kind: input, shape index: {}]
  %s1 = inlined_call_operand.vmem [shape: f32[4,96], index: 1, kind: output, shape index: {}]
  // Predicated region
  $region2: #{tile.48} parent=0 // pred_check
    _
  $region3: #{tile.48} parent=0 // pred_check_branch
    %3 = sbr.rel (0) target = $region5
  $region4: #{tile.48} parent=0 // pred_region
    _
  $region5: #{tile.48} parent=0 // pred_fallthru
    _
  %v4 = vld [vmem:[%s0] ss:$0 sm:$0xff]
  %5 = vst [vmem:[%s1] sm:$0xf] %v4

// kernel: generator_forward.12
$region0: #{generator_forward.12}
  #allocation0 [shape = 'u32[]', space=smem, size = 0x4, offset = 0x4, fixed_abs, tag = 'smem constant byte address 0x4 - core index']
  #allocation1 [shape = 'u32[144,128]{1,0:T(1,128)}', space=vmem, size = 0x12000, scoped, tag = 'internal scratch']
  %s0 = inlined_call_operand.vmem [shape: f32[56,384], index: 0, kind: input, shape index: {}]
  %s1 = inlined_call_operand.vmem [shape: f32[1,384], index: 1, kind: input, shape index: {}]
  %s2 = inlined_call_operand.vmem [shape: f32[1,384], index: 2, kind: input, shape index: {}]
  %s3 = inlined_call_operand.vmem [shape: bf16[56,384], index: 3, kind: output, shape index: {}]
  %s4 = sld [smem:[#allocation0]]
  $region120: #{generator_forward.12} parent=0
    _
  %s6 = ssub.s32 1, %s4
  %s7 = scalar_select 0, %s6, %s4
  $region1: #{generator_forward.12} parent=0
    #allocation2 [shape = 'u8[57344]{0}', space=vmem, size = 0xe000, scoped, tag = 'input window, operand 0']
    #allocation3 [shape = 'u8[28672]{0}', space=vmem, size = 0x7000, scoped, tag = 'output window, operand 0']
    loop: start=0, step=1, limit=5
    $region2: #{generator_forward.12} parent=1 // loop_pre_header
      _
    $region3: #{generator_forward.12} parent=1 // loop_header
      %s9 = sphi 0, %s13
      %p10 = scmp.ge.s32.totalorder %s9, 5
      %s16 = sphi 0, %s28
      %s17 = sphi 0, %s24
      %s18 = sphi 0, %s16
      %s19 = sphi 0, %s17
      %s20 = sphi 0, %s18
      %s21 = sphi 0, %s19
      %s33 = sphi 0, %s35
      %s36 = sphi 0, %s33
      %s37 = sphi 0, %s36
      %s53 = sphi 0, %s37
      %s59 = sphi 0, %s61
      %s62 = sphi 0, %s59
      %s63 = sphi 0, %s62
      %s79 = sphi 0, %s63
      %s85 = sphi 0, %s87
      %s88 = sphi 0, %s85
      %s89 = sphi 0, %s88
      %s105 = sphi 0, %s89
      %s113 = sphi 0, %s115
      %s116 = sphi 0, %s113
      %s117 = sphi 0, %s116
      %s133 = sphi 0, %s117
    $region4: #{generator_forward.12} parent=1 // loop_header_branch
      %12 = sbr.rel (%p10) target = $region8
    $region5: #{generator_forward.12} parent=1 // loop_body
      %s14 = ssub.s32 %s9, 1
      %s15 = ssub.s32 %s9, 2
      %s22 = sadd.s32 1, %s17
      %p23 = scmp.ge.s32.totalorder %s22, 3
      %s24 = scalar_select %p23, 0, %s22
      %s25 = sadd.s32 1, %s16
      %s26 = scalar_select %p23, %s25, %s16
      %p27 = scmp.ge.s32.totalorder %s26, 1
      %s28 = scalar_select %p27, 0, %s26
      %s29 = ssub.s32 %s16, %s28
      %s30 = ssub.s32 %s17, %s24
      %s31 = sor.u32 %s29, %s30
      %p32 = scmp.eq.s32.totalorder %s31, 0
      %s34 = sadd.s32 %s33, 1
      %s35 = scalar_select %p32, %s33, %s34
      %p38 = pneg %p32
      %p39 = scmp.eq.s32.totalorder %s9, 2
      %p40 = por %p38, %p39
      %p41 = scmp.ne.s32.totalorder %s33, %s36
      %p42 = scmp.eq.s32.totalorder %s9, 0
      %p43 = por %p41, %p42
      %p44 = scmp.ne.s32.totalorder %s33, %s36
      %p45 = scmp.eq.s32.totalorder %s14, 2
      %p46 = por %p44, %p45
      %p47 = scmp.ne.s32.totalorder %s36, %s37
      %p48 = scmp.eq.s32.totalorder %s14, 0
      %p49 = por %p47, %p48
      %p50 = scmp.ne.s32.totalorder %s36, %s37
      %p51 = scmp.eq.s32.totalorder %s15, 2
      %p52 = por %p50, %p51
      %p54 = scmp.ne.s32.totalorder %s37, %s53
      %p55 = scmp.eq.s32.totalorder %s15, 0
      %p56 = por %p54, %p55
      %s57 = ssub.s32 %s17, %s24
      %p58 = scmp.eq.s32.totalorder %s57, 0
      %s60 = sadd.s32 %s59, 1
      %s61 = scalar_select %p58, %s59, %s60
      %p64 = pneg %p58
      %p65 = scmp.eq.s32.totalorder %s9, 2
      %p66 = por %p64, %p65
      %p67 = scmp.ne.s32.totalorder %s59, %s62
      %p68 = scmp.eq.s32.totalorder %s9, 0
      %p69 = por %p67, %p68
      %p70 = scmp.ne.s32.totalorder %s59, %s62
      %p71 = scmp.eq.s32.totalorder %s14, 2
      %p72 = por %p70, %p71
      %p73 = scmp.ne.s32.totalorder %s62, %s63
      %p74 = scmp.eq.s32.totalorder %s14, 0
      %p75 = por %p73, %p74
      %p76 = scmp.ne.s32.totalorder %s62, %s63
      %p77 = scmp.eq.s32.totalorder %s15, 2
      %p78 = por %p76, %p77
      %p80 = scmp.ne.s32.totalorder %s63, %s79
      %p81 = scmp.eq.s32.totalorder %s15, 0
      %p82 = por %p80, %p81
      %s83 = ssub.s32 %s17, %s24
      %p84 = scmp.eq.s32.totalorder %s83, 0
      %s86 = sadd.s32 %s85, 1
      %s87 = scalar_select %p84, %s85, %s86
      %p90 = pneg %p84
      %p91 = scmp.eq.s32.totalorder %s9, 2
      %p92 = por %p90, %p91
      %p93 = scmp.ne.s32.totalorder %s85, %s88
      %p94 = scmp.eq.s32.totalorder %s9, 0
      %p95 = por %p93, %p94
      %p96 = scmp.ne.s32.totalorder %s85, %s88
      %p97 = scmp.eq.s32.totalorder %s14, 2
      %p98 = por %p96, %p97
      %p99 = scmp.ne.s32.totalorder %s88, %s89
      %p100 = scmp.eq.s32.totalorder %s14, 0
      %p101 = por %p99, %p100
      %p102 = scmp.ne.s32.totalorder %s88, %s89
      %p103 = scmp.eq.s32.totalorder %s15, 2
      %p104 = por %p102, %p103
      %p106 = scmp.ne.s32.totalorder %s89, %s105
      %p107 = scmp.eq.s32.totalorder %s15, 0
      %p108 = por %p106, %p107
      %s109 = ssub.s32 %s16, %s28
      %s110 = ssub.s32 %s17, %s24
      %s111 = sor.u32 %s109, %s110
      %p112 = scmp.eq.s32.totalorder %s111, 0
      %s114 = sadd.s32 %s113, 1
      %s115 = scalar_select %p112, %s113, %s114
      %p118 = pneg %p112
      %p119 = scmp.eq.s32.totalorder %s9, 2
      %p120 = por %p118, %p119
      %p121 = scmp.ne.s32.totalorder %s113, %s116
      %p122 = scmp.eq.s32.totalorder %s9, 0
      %p123 = por %p121, %p122
      %p124 = scmp.ne.s32.totalorder %s113, %s116
      %p125 = scmp.eq.s32.totalorder %s14, 2
      %p126 = por %p124, %p125
      %p127 = scmp.ne.s32.totalorder %s116, %s117
      %p128 = scmp.eq.s32.totalorder %s14, 0
      %p129 = por %p127, %p128
      %p130 = scmp.ne.s32.totalorder %s116, %s117
      %p131 = scmp.eq.s32.totalorder %s15, 2
      %p132 = por %p130, %p131
      %p134 = scmp.ne.s32.totalorder %s117, %s133
      %p135 = scmp.eq.s32.totalorder %s15, 0
      %p136 = por %p134, %p135
      %p137 = scmp.le.s32.totalorder 1, %s9
      %p138 = scmp.lt.s32.totalorder %s9, 4
      %p139 = pnand %p137, %p138
      %p140 = pneg %p139
      // Predicated region
      $region9: #{generator_forward.12} parent=5 // pred_check
        _
      $region10: #{generator_forward.12} parent=5 // pred_check_branch
        %142 = sbr.rel (%p139) target = $region12
      $region11: #{generator_forward.12} parent=5 // pred_region
        %s143 = ssub.s32 %s9, 1
      $region12: #{generator_forward.12} parent=5 // pred_fallthru
        _
      %p144 = scmp.lt.s32.totalorder %s9, 3
      // Predicated region
      $region13: #{generator_forward.12} parent=5 // pred_check
        %p145 = pneg %p144
      $region14: #{generator_forward.12} parent=5 // pred_check_branch
        %147 = sbr.rel (%p145) target = $region16
      $region15: #{generator_forward.12} parent=5 // pred_region
        // Predicated region
        $region17: #{generator_forward.12} parent=15 // pred_check
          %p148 = pneg %p43
        $region18: #{generator_forward.12} parent=15 // pred_check_branch
          %150 = sbr.rel (%p148) target = $region20
        $region19: #{generator_forward.12} parent=15 // pred_region
          %s151 = sand.u32 %s33, 1
          %s152 = sand.u32 %s33, 1
          %s153 = smul.addr %s152, 56
          %s154 = scalar_lea.vmem [#allocation2], %s153
          %s155 = smul.u32 7, %s16
          %s156 = smul.addr %s155, 3
          %s157 = sadd.s32 %s17, %s156
          %s158 = smul.addr %s157, 8
          %s159 = scalar_lea.vmem %s0, %s158
          // Predicated region
          $region21: #{generator_forward.12} parent=19 // pred_check
            _
          $region22: #{generator_forward.12} parent=19 // pred_check_branch
            %161 = sbr.rel (0) target = $region24
          $region23: #{generator_forward.12} parent=19 // pred_region
            // Predicated region
            $region25: #{generator_forward.12} parent=23 // pred_check
              _
            $region26: #{generator_forward.12} parent=23 // pred_check_branch
              %163 = sbr.rel (0) target = $region28
            $region27: #{generator_forward.12} parent=23 // pred_region
              // Predicated region
              $region40: #{generator_forward.12} parent=27 // pred_check
                _
              $region41: #{generator_forward.12} parent=27 // pred_check_branch
                %190 = sbr.rel (0) target = $region43
              $region42: #{generator_forward.12} parent=27 // pred_region
                loop: start=0, step=1, limit=1
                $region44: #{generator_forward.12} parent=42 // loop_pre_header
                  _
                $region45: #{generator_forward.12} parent=42 // loop_header
                  %s192 = sphi 0, %s196
                  %p193 = scmp.ge.s32.totalorder %s192, 1
                  %s197 = sphi %s159, %s159
                  %s198 = sphi %s154, %s154
                $region46: #{generator_forward.12} parent=42 // loop_header_branch
                  %195 = sbr.rel (%p193) target = $region50
                $region47: #{generator_forward.12} parent=42 // loop_body
                  %v199 = vld [vmem:[%s197] sm:$0xff]
                  %200 = vst [vmem:[%s198] sm:$0xff] %v199
                  %v201 = vld [vmem:[%s197 + $0x18] sm:$0xff]
                  %202 = vst [vmem:[%s198 + $0x8] sm:$0xff] %v201
                  %v203 = vld [vmem:[%s197 + $0x30] sm:$0xff]
                  %204 = vst [vmem:[%s198 + $0x10] sm:$0xff] %v203
                  %v205 = vld [vmem:[%s197 + $0x48] sm:$0xff]
                  %206 = vst [vmem:[%s198 + $0x18] sm:$0xff] %v205
                  %v207 = vld [vmem:[%s197 + $0x60] sm:$0xff]
                  %208 = vst [vmem:[%s198 + $0x20] sm:$0xff] %v207
                  %v209 = vld [vmem:[%s197 + $0x78] sm:$0xff]
                  %210 = vst [vmem:[%s198 + $0x28] sm:$0xff] %v209
                  %v211 = vld [vmem:[%s197 + $0x90] sm:$0xff]
                  %212 = vst [vmem:[%s198 + $0x30] sm:$0xff] %v211
                $region48: #{generator_forward.12} parent=42 // loop_footer
                  %s196 = sadd.s32 1, %s192
                $region49: #{generator_forward.12} parent=42 // loop_footer_branch
                  %191 = sbr.rel target = $region45
                $region50: #{generator_forward.12} parent=42 // loop_exit
                  _
              $region43: #{generator_forward.12} parent=27 // pred_fallthru
                _
              // Predicated region
              $region51: #{generator_forward.12} parent=27 // pred_check
                _
              $region52: #{generator_forward.12} parent=27 // pred_check_branch
                %214 = sbr.rel target = $region54
              $region53: #{generator_forward.12} parent=27 // pred_region
                _
              $region54: #{generator_forward.12} parent=27 // pred_fallthru
                _
            $region28: #{generator_forward.12} parent=23 // pred_fallthru
              _
            // Predicated region
            $region29: #{generator_forward.12} parent=23 // pred_check
              _
            $region30: #{generator_forward.12} parent=23 // pred_check_branch
              %165 = sbr.rel target = $region32
            $region31: #{generator_forward.12} parent=23 // pred_region
              loop: start=0, step=1, limit=1
              $region33: #{generator_forward.12} parent=31 // loop_pre_header
                _
              $region34: #{generator_forward.12} parent=31 // loop_header
                %s168 = sphi 0, %s172
                %p169 = scmp.ge.s32.totalorder %s168, 1
                %s173 = sphi %s159, %s159
                %s174 = sphi %s154, %s154
              $region35: #{generator_forward.12} parent=31 // loop_header_branch
                %171 = sbr.rel (%p169) target = $region39
              $region36: #{generator_forward.12} parent=31 // loop_body
                %v175 = vld [vmem:[%s173] sm:$0xff]
                %176 = vst [vmem:[%s174] sm:$0xff] %v175
                %v177 = vld [vmem:[%s173 + $0x18] sm:$0xff]
                %178 = vst [vmem:[%s174 + $0x8] sm:$0xff] %v177
                %v179 = vld [vmem:[%s173 + $0x30] sm:$0xff]
                %180 = vst [vmem:[%s174 + $0x10] sm:$0xff] %v179
                %v181 = vld [vmem:[%s173 + $0x48] sm:$0xff]
                %182 = vst [vmem:[%s174 + $0x18] sm:$0xff] %v181
                %v183 = vld [vmem:[%s173 + $0x60] sm:$0xff]
                %184 = vst [vmem:[%s174 + $0x20] sm:$0xff] %v183
                %v185 = vld [vmem:[%s173 + $0x78] sm:$0xff]
                %186 = vst [vmem:[%s174 + $0x28] sm:$0xff] %v185
                %v187 = vld [vmem:[%s173 + $0x90] sm:$0xff]
                %188 = vst [vmem:[%s174 + $0x30] sm:$0xff] %v187
              $region37: #{generator_forward.12} parent=31 // loop_footer
                %s172 = sadd.s32 1, %s168
              $region38: #{generator_forward.12} parent=31 // loop_footer_branch
                %167 = sbr.rel target = $region34
              $region39: #{generator_forward.12} parent=31 // loop_exit
                _
            $region32: #{generator_forward.12} parent=23 // pred_fallthru
              _
          $region24: #{generator_forward.12} parent=19 // pred_fallthru
            _
          %215 = vnop
        $region20: #{generator_forward.12} parent=15 // pred_fallthru
          _
        // Predicated region
        $region55: #{generator_forward.12} parent=15 // pred_check
          %p216 = pneg %p69
        $region56: #{generator_forward.12} parent=15 // pred_check_branch
          %218 = sbr.rel (%p216) target = $region58
        $region57: #{generator_forward.12} parent=15 // pred_region
          %p219 = scmp.lt.s32.totalorder %s17, 2
          %s220 = scalar_select %p219, %s17, 2
          %s221 = scalar_lea.vmem %s1, %s220
        $region58: #{generator_forward.12} parent=15 // pred_fallthru
          _
        // Predicated region
        $region59: #{generator_forward.12} parent=15 // pred_check
          %p222 = pneg %p95
        $region60: #{generator_forward.12} parent=15 // pred_check_branch
          %224 = sbr.rel (%p222) target = $region62
        $region61: #{generator_forward.12} parent=15 // pred_region
          %p225 = scmp.lt.s32.totalorder %s17, 2
          %s226 = scalar_select %p225, %s17, 2
          %s227 = scalar_lea.vmem %s2, %s226
        $region62: #{generator_forward.12} parent=15 // pred_fallthru
          _
      $region16: #{generator_forward.12} parent=5 // pred_fallthru
        _
      %p228 = scmp.le.s32.totalorder 1, %s9
      %p229 = scmp.lt.s32.totalorder %s9, 4
      %p230 = pnand %p228, %p229
      %p231 = pneg %p230
      // Predicated region
      $region63: #{generator_forward.12} parent=5 // pred_check
        _
      $region64: #{generator_forward.12} parent=5 // pred_check_branch
        %233 = sbr.rel (%p230) target = $region66
      $region65: #{generator_forward.12} parent=5 // pred_region
        %s234 = ssub.s32 %s9, 1
        %s235 = sand.u32 %s36, 1
        %s236 = sand.u32 %s36, 1
        %s237 = smul.addr %s236, 56
        %s238 = scalar_lea.vmem [#allocation2], %s237
        // Predicated region
        $region67: #{generator_forward.12} parent=65 // pred_check
          %p239 = pneg %p49
        $region68: #{generator_forward.12} parent=65 // pred_check_branch
          %241 = sbr.rel (%p239) target = $region70
        $region69: #{generator_forward.12} parent=65 // pred_region
          _
        $region70: #{generator_forward.12} parent=65 // pred_fallthru
          _
        %s242 = sand.u32 %s36, 1
        %s243 = sand.u32 %s36, 1
        %s244 = smul.addr %s243, 56
        %s245 = scalar_lea.vmem [#allocation2], %s244
        %p246 = pneg %p49
        %p247 = pneg %p46
        %p248 = scmp.lt.s32.totalorder %s19, 2
        %s249 = scalar_select %p248, %s19, 2
        %s250 = scalar_lea.vmem %s1, %s249
        %p251 = pneg %p75
        %p252 = pneg %p72
        %p253 = scmp.lt.s32.totalorder %s19, 2
        %s254 = scalar_select %p253, %s19, 2
        %s255 = scalar_lea.vmem %s2, %s254
        %p256 = pneg %p101
        %p257 = pneg %p98
        %p258 = pneg %p129
        %p259 = pneg %p126
        %s260 = sand.u32 %s116, 1
        %s261 = sand.u32 %s116, 1
        %s262 = smul.addr %s261, 28
        %s263 = scalar_lea.vmem [#allocation3], %s262
        %s264 = smul.u32 7, %s18
        %p265 = scmp.lt.s32.totalorder %s19, 2
        %s266 = scalar_select %p265, %s19, 2
        %s267 = scalar_lea.vmem %s1, %s266
        %p268 = scmp.lt.s32.totalorder %s19, 2
        %s269 = scalar_select %p268, %s19, 2
        %s270 = scalar_lea.vmem %s2, %s269
        %s271 = smul.u32 7, %s18
        %v272 = vld [vmem:[%s238] sm:$0xff]
        %v273 = vld [vmem:[%s238 + $0x8] sm:$0xff]
        %v274 = vld [vmem:[%s238 + $0x10] sm:$0xff]
        %v275 = vld [vmem:[%s238 + $0x18] sm:$0xff]
        %v276 = vld [vmem:[%s238 + $0x20] sm:$0xff]
        %v277 = vld [vmem:[%s238 + $0x28] sm:$0xff]
        %v278 = vld [vmem:[%s238 + $0x30] sm:$0xff]
        %v279 = vld [vmem:[%s267] sm:$0x1]
        %v281 = vlaneseq
        %v282 = vshrl.u32 %v281, 7
        %v283 = vsub.s32 0, %v282
        %v284 = vrot.slane %v279, %v283
        %v286 = vmul.f32 %v272, %v284
        %v287 = vmul.f32 %v273, %v284
        %v288 = vmul.f32 %v274, %v284
        %v289 = vmul.f32 %v275, %v284
        %v290 = vmul.f32 %v276, %v284
        %v291 = vmul.f32 %v277, %v284
        %v292 = vmul.f32 %v278, %v284
        %v293 = vld [vmem:[%s270] sm:$0x1]
        %v295 = vlaneseq
        %v296 = vshrl.u32 %v295, 7
        %v297 = vsub.s32 0, %v296
        %v298 = vrot.slane %v293, %v297
        %v300 = vadd.f32 %v286, %v298
        %v301 = vadd.f32 %v287, %v298
        %v302 = vadd.f32 %v288, %v298
        %v303 = vadd.f32 %v289, %v298
        %v304 = vadd.f32 %v290, %v298
        %v305 = vadd.f32 %v291, %v298
        %v306 = vadd.f32 %v292, %v298
        %v307 = vmax.f32 %v300, 0.0
        %v308 = vmax.f32 %v301, 0.0
        %v309 = vmax.f32 %v302, 0.0
        %v310 = vmax.f32 %v303, 0.0
        %v311 = vmax.f32 %v304, 0.0
        %v312 = vmax.f32 %v305, 0.0
        %v313 = vmax.f32 %v306, 0.0
        %v314 = vpack.c.bf16 %v308, %v307
        %v315 = vpack.c.bf16 %v310, %v309
        %v316 = vpack.c.bf16 %v312, %v311
        %v317 = vpack.c.bf16 %v313, %v313
        %v322 = vunpack.c.l.b16 %v314
        %v323 = vunpack.c.h.b16 %v314
        %v324 = vunpack.c.l.b16 %v315
        %v325 = vunpack.c.h.b16 %v315
        %v326 = vunpack.c.l.b16 %v316
        %v327 = vunpack.c.h.b16 %v316
        %v328 = vunpack.c.l.b16 %v317
        %v329 = vpack.c.b16 %v322, %v322
        %v330 = vpack.c.b16 %v323, %v323
        %v331 = vpack.c.b16 %v324, %v324
        %v332 = vpack.c.b16 %v325, %v325
        %v333 = vpack.c.b16 %v326, %v326
        %v334 = vpack.c.b16 %v327, %v327
        %v335 = vpack.c.b16 %v328, %v328
        %343 = vst [vmem:[%s263] sm:$0xf] %v329
        %344 = vst [vmem:[%s263 + $0x4] sm:$0xf] %v330
        %345 = vst [vmem:[%s263 + $0x8] sm:$0xf] %v331
        %346 = vst [vmem:[%s263 + $0xc] sm:$0xf] %v332
        %347 = vst [vmem:[%s263 + $0x10] sm:$0xf] %v333
        %348 = vst [vmem:[%s263 + $0x14] sm:$0xf] %v334
        %349 = vst [vmem:[%s263 + $0x18] sm:$0xf] %v335
        %s350 = sand.u32 %s116, 1
        %s351 = sand.u32 %s116, 1
        %s352 = smul.addr %s351, 28
        %s353 = scalar_lea.vmem [#allocation3], %s352
        // Predicated region
        $region71: #{generator_forward.12} parent=65 // pred_check
          %p354 = pneg %p126
        $region72: #{generator_forward.12} parent=65 // pred_check_branch
          %356 = sbr.rel (%p354) target = $region74
        $region73: #{generator_forward.12} parent=65 // pred_region
          %s357 = smul.u32 7, %s18
          %s358 = smul.addr %s357, 3
          %s359 = sadd.s32 %s19, %s358
          %s360 = smul.addr %s359, 4
          %s361 = scalar_lea.vmem %s3, %s360
          // Predicated region
          $region75: #{generator_forward.12} parent=73 // pred_check
            _
          $region76: #{generator_forward.12} parent=73 // pred_check_branch
            %363 = sbr.rel (0) target = $region78
          $region77: #{generator_forward.12} parent=73 // pred_region
            // Predicated region
            $region79: #{generator_forward.12} parent=77 // pred_check
              _
            $region80: #{generator_forward.12} parent=77 // pred_check_branch
              %365 = sbr.rel target = $region82
            $region81: #{generator_forward.12} parent=77 // pred_region
              // Predicated region
              $region94: #{generator_forward.12} parent=81 // pred_check
                _
              $region95: #{generator_forward.12} parent=81 // pred_check_branch
                %392 = sbr.rel (0) target = $region97
              $region96: #{generator_forward.12} parent=81 // pred_region
                loop: start=0, step=1, limit=1
                $region98: #{generator_forward.12} parent=96 // loop_pre_header
                  _
                $region99: #{generator_forward.12} parent=96 // loop_header
                  %s394 = sphi 0, %s398
                  %p395 = scmp.ge.s32.totalorder %s394, 1
                  %s399 = sphi %s353, %s353
                  %s400 = sphi %s361, %s361
                $region100: #{generator_forward.12} parent=96 // loop_header_branch
                  %397 = sbr.rel (%p395) target = $region104
                $region101: #{generator_forward.12} parent=96 // loop_body
                  _
                $region102: #{generator_forward.12} parent=96 // loop_footer
                  %s398 = sadd.s32 1, %s394
                $region103: #{generator_forward.12} parent=96 // loop_footer_branch
                  %393 = sbr.rel target = $region99
                $region104: #{generator_forward.12} parent=96 // loop_exit
                  _
                loop: start=0, step=1, limit=1
                $region105: #{generator_forward.12} parent=96 // loop_pre_header
                  _
                $region106: #{generator_forward.12} parent=96 // loop_header
                  %s403 = sphi 0, %s407
                  %p404 = scmp.ge.s32.totalorder %s403, 1
                  %s408 = sphi %s353, %s353
                  %s409 = sphi %s361, %s361
                $region107: #{generator_forward.12} parent=96 // loop_header_branch
                  %406 = sbr.rel (%p404) target = $region111
                $region108: #{generator_forward.12} parent=96 // loop_body
                  %v410 = vld [vmem:[%s408] sm:$0xf]
                  %411 = vst [vmem:[%s409] sm:$0xf] %v410
                  %v412 = vld [vmem:[%s408 + $0x4] sm:$0xf]
                  %413 = vst [vmem:[%s409 + $0xc] sm:$0xf] %v412
                  %v414 = vld [vmem:[%s408 + $0x8] sm:$0xf]
                  %415 = vst [vmem:[%s409 + $0x18] sm:$0xf] %v414
                  %v416 = vld [vmem:[%s408 + $0xc] sm:$0xf]
                  %417 = vst [vmem:[%s409 + $0x24] sm:$0xf] %v416
                  %v418 = vld [vmem:[%s408 + $0x10] sm:$0xf]
                  %419 = vst [vmem:[%s409 + $0x30] sm:$0xf] %v418
                  %v420 = vld [vmem:[%s408 + $0x14] sm:$0xf]
                  %421 = vst [vmem:[%s409 + $0x3c] sm:$0xf] %v420
                  %v422 = vld [vmem:[%s408 + $0x18] sm:$0xf]
                  %423 = vst [vmem:[%s409 + $0x48] sm:$0xf] %v422
                $region109: #{generator_forward.12} parent=96 // loop_footer
                  %s407 = sadd.s32 1, %s403
                $region110: #{generator_forward.12} parent=96 // loop_footer_branch
                  %402 = sbr.rel target = $region106
                $region111: #{generator_forward.12} parent=96 // loop_exit
                  _
              $region97: #{generator_forward.12} parent=81 // pred_fallthru
                _
            $region82: #{generator_forward.12} parent=77 // pred_fallthru
              _
            // Predicated region
            $region83: #{generator_forward.12} parent=77 // pred_check
              _
            $region84: #{generator_forward.12} parent=77 // pred_check_branch
              %367 = sbr.rel (0) target = $region86
            $region85: #{generator_forward.12} parent=77 // pred_region
              loop: start=0, step=1, limit=1
              $region87: #{generator_forward.12} parent=85 // loop_pre_header
                _
              $region88: #{generator_forward.12} parent=85 // loop_header
                %s370 = sphi 0, %s374
                %p371 = scmp.ge.s32.totalorder %s370, 1
                %s375 = sphi %s353, %s353
                %s376 = sphi %s361, %s361
              $region89: #{generator_forward.12} parent=85 // loop_header_branch
                %373 = sbr.rel (%p371) target = $region93
              $region90: #{generator_forward.12} parent=85 // loop_body
                %v377 = vld [vmem:[%s375] sm:$0xf]
                %378 = vst [vmem:[%s376] sm:$0xf] %v377
                %v379 = vld [vmem:[%s375 + $0x4] sm:$0xf]
                %380 = vst [vmem:[%s376 + $0xc] sm:$0xf] %v379
                %v381 = vld [vmem:[%s375 + $0x8] sm:$0xf]
                %382 = vst [vmem:[%s376 + $0x18] sm:$0xf] %v381
                %v383 = vld [vmem:[%s375 + $0xc] sm:$0xf]
                %384 = vst [vmem:[%s376 + $0x24] sm:$0xf] %v383
                %v385 = vld [vmem:[%s375 + $0x10] sm:$0xf]
                %386 = vst [vmem:[%s376 + $0x30] sm:$0xf] %v385
                %v387 = vld [vmem:[%s375 + $0x14] sm:$0xf]
                %388 = vst [vmem:[%s376 + $0x3c] sm:$0xf] %v387
                %v389 = vld [vmem:[%s375 + $0x18] sm:$0xf]
                %390 = vst [vmem:[%s376 + $0x48] sm:$0xf] %v389
              $region91: #{generator_forward.12} parent=85 // loop_footer
                %s374 = sadd.s32 1, %s370
              $region92: #{generator_forward.12} parent=85 // loop_footer_branch
                %369 = sbr.rel target = $region88
              $region93: #{generator_forward.12} parent=85 // loop_exit
                _
            $region86: #{generator_forward.12} parent=77 // pred_fallthru
              _
          $region78: #{generator_forward.12} parent=73 // pred_fallthru
            _
          %424 = vnop
        $region74: #{generator_forward.12} parent=65 // pred_fallthru
          _
      $region66: #{generator_forward.12} parent=5 // pred_fallthru
        _
      %p425 = scmp.le.s32.totalorder 2, %s9
      // Predicated region
      $region112: #{generator_forward.12} parent=5 // pred_check
        %p426 = pneg %p425
      $region113: #{generator_forward.12} parent=5 // pred_check_branch
        %428 = sbr.rel (%p426) target = $region115
      $region114: #{generator_forward.12} parent=5 // pred_region
        %s429 = ssub.s32 %s9, 2
        // Predicated region
        $region116: #{generator_forward.12} parent=114 // pred_check
          %p430 = pneg %p132
        $region117: #{generator_forward.12} parent=114 // pred_check_branch
          %432 = sbr.rel (%p430) target = $region119
        $region118: #{generator_forward.12} parent=114 // pred_region
          %s433 = sand.u32 %s117, 1
          %s434 = sand.u32 %s117, 1
          %s435 = smul.addr %s434, 28
          %s436 = scalar_lea.vmem [#allocation3], %s435
        $region119: #{generator_forward.12} parent=114 // pred_fallthru
          _
      $region115: #{generator_forward.12} parent=5 // pred_fallthru
        _
    $region6: #{generator_forward.12} parent=1 // loop_footer
      %s13 = sadd.s32 1, %s9
    $region7: #{generator_forward.12} parent=1 // loop_footer_branch
      %8 = sbr.rel target = $region3
    $region8: #{generator_forward.12} parent=1 // loop_exit
      _

// kernel: generator_forward.11
$region0: #{generator_forward.11}
  #allocation0 [shape = 'u32[]', space=smem, size = 0x4, offset = 0x4, fixed_abs, tag = 'smem constant byte address 0x4 - core index']
  #allocation1 [shape = 'u32[144,128]{1,0:T(1,128)}', space=vmem, size = 0x12000, scoped, tag = 'internal scratch']
  %s0 = inlined_call_operand.vmem [shape: bf16[56,768], index: 0, kind: input, shape index: {}]
  %s1 = inlined_call_operand.vmem [shape: bf16[768,384], index: 1, kind: input, shape index: {}]
  %s2 = inlined_call_operand.vmem [shape: f32[56,384], index: 2, kind: input, shape index: {}]
  %s3 = inlined_call_operand.vmem [shape: f32[56,384], index: 3, kind: output, shape index: {0}]
  %s4 = inlined_call_operand.vmem [shape: f32[1,384], index: 4, kind: output, shape index: {1}]
  %s5 = inlined_call_operand.vmem [shape: f32[1,384], index: 5, kind: output, shape index: {2}]
  %6 = xla_tuple %s3, %s4, %s5
  %s7 = sld [smem:[#allocation0]]
  $region178: #{generator_forward.11} parent=0
    _
  %s9 = ssub.s32 1, %s7
  %s10 = scalar_select 0, %s9, %s7
  $region1: #{generator_forward.11} parent=0
    #allocation2 [shape = 'u8[393216]{0}', space=vmem, size = 0x60000, scoped, tag = 'input window, operand 1']
    #allocation3 [shape = 'u8[57344]{0}', space=vmem, size = 0xe000, scoped, tag = 'input window, operand 2']
    #allocation4 [shape = 'u8[57344]{0}', space=vmem, size = 0xe000, scoped, tag = 'output window, operand 0']
    loop: start=0, step=1, limit=5
    $region2: #{generator_forward.11} parent=1 // loop_pre_header
      _
    $region3: #{generator_forward.11} parent=1 // loop_header
      %s12 = sphi 0, %s16
      %p13 = scmp.ge.s32.totalorder %s12, 5
      %s19 = sphi 0, %s31
      %s20 = sphi 0, %s27
      %s21 = sphi 0, %s19
      %s22 = sphi 0, %s20
      %s23 = sphi 0, %s21
      %s24 = sphi 0, %s22
      %s34 = sphi 0, %s36
      %s37 = sphi 0, %s34
      %s38 = sphi 0, %s37
      %s54 = sphi 0, %s38
      %s60 = sphi 0, %s62
      %s63 = sphi 0, %s60
      %s64 = sphi 0, %s63
      %s80 = sphi 0, %s64
      %s88 = sphi 0, %s90
      %s91 = sphi 0, %s88
      %s92 = sphi 0, %s91
      %s108 = sphi 0, %s92
      %s116 = sphi 0, %s118
      %s119 = sphi 0, %s116
      %s120 = sphi 0, %s119
      %s136 = sphi 0, %s120
      %s142 = sphi 0, %s144
      %s145 = sphi 0, %s142
      %s146 = sphi 0, %s145
      %s162 = sphi 0, %s146
      %s168 = sphi 0, %s170
      %s171 = sphi 0, %s168
      %s172 = sphi 0, %s171
      %s188 = sphi 0, %s172
    $region4: #{generator_forward.11} parent=1 // loop_header_branch
      %15 = sbr.rel (%p13) target = $region8
    $region5: #{generator_forward.11} parent=1 // loop_body
      %s17 = ssub.s32 %s12, 1
      %s18 = ssub.s32 %s12, 2
      %s25 = sadd.s32 1, %s20
      %p26 = scmp.ge.s32.totalorder %s25, 1
      %s27 = scalar_select %p26, 0, %s25
      %s28 = sadd.s32 1, %s19
      %s29 = scalar_select %p26, %s28, %s19
      %p30 = scmp.ge.s32.totalorder %s29, 3
      %s31 = scalar_select %p30, 0, %s29
      %s32 = ssub.s32 %s20, %s27
      %p33 = scmp.eq.s32.totalorder %s32, 0
      %s35 = sadd.s32 %s34, 1
      %s36 = scalar_select %p33, %s34, %s35
      %p39 = pneg %p33
      %p40 = scmp.eq.s32.totalorder %s12, 2
      %p41 = por %p39, %p40
      %p42 = scmp.ne.s32.totalorder %s34, %s37
      %p43 = scmp.eq.s32.totalorder %s12, 0
      %p44 = por %p42, %p43
      %p45 = scmp.ne.s32.totalorder %s34, %s37
      %p46 = scmp.eq.s32.totalorder %s17, 2
      %p47 = por %p45, %p46
      %p48 = scmp.ne.s32.totalorder %s37, %s38
      %p49 = scmp.eq.s32.totalorder %s17, 0
      %p50 = por %p48, %p49
      %p51 = scmp.ne.s32.totalorder %s37, %s38
      %p52 = scmp.eq.s32.totalorder %s18, 2
      %p53 = por %p51, %p52
      %p55 = scmp.ne.s32.totalorder %s38, %s54
      %p56 = scmp.eq.s32.totalorder %s18, 0
      %p57 = por %p55, %p56
      %s58 = ssub.s32 %s19, %s31
      %p59 = scmp.eq.s32.totalorder %s58, 0
      %s61 = sadd.s32 %s60, 1
      %s62 = scalar_select %p59, %s60, %s61
      %p65 = pneg %p59
      %p66 = scmp.eq.s32.totalorder %s12, 2
      %p67 = por %p65, %p66
      %p68 = scmp.ne.s32.totalorder %s60, %s63
      %p69 = scmp.eq.s32.totalorder %s12, 0
      %p70 = por %p68, %p69
      %p71 = scmp.ne.s32.totalorder %s60, %s63
      %p72 = scmp.eq.s32.totalorder %s17, 2
      %p73 = por %p71, %p72
      %p74 = scmp.ne.s32.totalorder %s63, %s64
      %p75 = scmp.eq.s32.totalorder %s17, 0
      %p76 = por %p74, %p75
      %p77 = scmp.ne.s32.totalorder %s63, %s64
      %p78 = scmp.eq.s32.totalorder %s18, 2
      %p79 = por %p77, %p78
      %p81 = scmp.ne.s32.totalorder %s64, %s80
      %p82 = scmp.eq.s32.totalorder %s18, 0
      %p83 = por %p81, %p82
      %s84 = ssub.s32 %s20, %s27
      %s85 = ssub.s32 %s19, %s31
      %s86 = sor.u32 %s84, %s85
      %p87 = scmp.eq.s32.totalorder %s86, 0
      %s89 = sadd.s32 %s88, 1
      %s90 = scalar_select %p87, %s88, %s89
      %p93 = pneg %p87
      %p94 = scmp.eq.s32.totalorder %s12, 2
      %p95 = por %p93, %p94
      %p96 = scmp.ne.s32.totalorder %s88, %s91
      %p97 = scmp.eq.s32.totalorder %s12, 0
      %p98 = por %p96, %p97
      %p99 = scmp.ne.s32.totalorder %s88, %s91
      %p100 = scmp.eq.s32.totalorder %s17, 2
      %p101 = por %p99, %p100
      %p102 = scmp.ne.s32.totalorder %s91, %s92
      %p103 = scmp.eq.s32.totalorder %s17, 0
      %p104 = por %p102, %p103
      %p105 = scmp.ne.s32.totalorder %s91, %s92
      %p106 = scmp.eq.s32.totalorder %s18, 2
      %p107 = por %p105, %p106
      %p109 = scmp.ne.s32.totalorder %s92, %s108
      %p110 = scmp.eq.s32.totalorder %s18, 0
      %p111 = por %p109, %p110
      %s112 = ssub.s32 %s20, %s27
      %s113 = ssub.s32 %s19, %s31
      %s114 = sor.u32 %s112, %s113
      %p115 = scmp.eq.s32.totalorder %s114, 0
      %s117 = sadd.s32 %s116, 1
      %s118 = scalar_select %p115, %s116, %s117
      %p121 = pneg %p115
      %p122 = scmp.eq.s32.totalorder %s12, 2
      %p123 = por %p121, %p122
      %p124 = scmp.ne.s32.totalorder %s116, %s119
      %p125 = scmp.eq.s32.totalorder %s12, 0
      %p126 = por %p124, %p125
      %p127 = scmp.ne.s32.totalorder %s116, %s119
      %p128 = scmp.eq.s32.totalorder %s17, 2
      %p129 = por %p127, %p128
      %p130 = scmp.ne.s32.totalorder %s119, %s120
      %p131 = scmp.eq.s32.totalorder %s17, 0
      %p132 = por %p130, %p131
      %p133 = scmp.ne.s32.totalorder %s119, %s120
      %p134 = scmp.eq.s32.totalorder %s18, 2
      %p135 = por %p133, %p134
      %p137 = scmp.ne.s32.totalorder %s120, %s136
      %p138 = scmp.eq.s32.totalorder %s18, 0
      %p139 = por %p137, %p138
      %s140 = ssub.s32 %s19, %s31
      %p141 = scmp.eq.s32.totalorder %s140, 0
      %s143 = sadd.s32 %s142, 1
      %s144 = scalar_select %p141, %s142, %s143
      %p147 = pneg %p141
      %p148 = scmp.eq.s32.totalorder %s12, 2
      %p149 = por %p147, %p148
      %p150 = scmp.ne.s32.totalorder %s142, %s145
      %p151 = scmp.eq.s32.totalorder %s12, 0
      %p152 = por %p150, %p151
      %p153 = scmp.ne.s32.totalorder %s142, %s145
      %p154 = scmp.eq.s32.totalorder %s17, 2
      %p155 = por %p153, %p154
      %p156 = scmp.ne.s32.totalorder %s145, %s146
      %p157 = scmp.eq.s32.totalorder %s17, 0
      %p158 = por %p156, %p157
      %p159 = scmp.ne.s32.totalorder %s145, %s146
      %p160 = scmp.eq.s32.totalorder %s18, 2
      %p161 = por %p159, %p160
      %p163 = scmp.ne.s32.totalorder %s146, %s162
      %p164 = scmp.eq.s32.totalorder %s18, 0
      %p165 = por %p163, %p164
      %s166 = ssub.s32 %s19, %s31
      %p167 = scmp.eq.s32.totalorder %s166, 0
      %s169 = sadd.s32 %s168, 1
      %s170 = scalar_select %p167, %s168, %s169
      %p173 = pneg %p167
      %p174 = scmp.eq.s32.totalorder %s12, 2
      %p175 = por %p173, %p174
      %p176 = scmp.ne.s32.totalorder %s168, %s171
      %p177 = scmp.eq.s32.totalorder %s12, 0
      %p178 = por %p176, %p177
      %p179 = scmp.ne.s32.totalorder %s168, %s171
      %p180 = scmp.eq.s32.totalorder %s17, 2
      %p181 = por %p179, %p180
      %p182 = scmp.ne.s32.totalorder %s171, %s172
      %p183 = scmp.eq.s32.totalorder %s17, 0
      %p184 = por %p182, %p183
      %p185 = scmp.ne.s32.totalorder %s171, %s172
      %p186 = scmp.eq.s32.totalorder %s18, 2
      %p187 = por %p185, %p186
      %p189 = scmp.ne.s32.totalorder %s172, %s188
      %p190 = scmp.eq.s32.totalorder %s18, 0
      %p191 = por %p189, %p190
      %p192 = scmp.le.s32.totalorder 1, %s12
      %p193 = scmp.lt.s32.totalorder %s12, 4
      %p194 = pnand %p192, %p193
      %p195 = pneg %p194
      // Predicated region
      $region9: #{generator_forward.11} parent=5 // pred_check
        _
      $region10: #{generator_forward.11} parent=5 // pred_check_branch
        %197 = sbr.rel (%p194) target = $region12
      $region11: #{generator_forward.11} parent=5 // pred_region
        %s198 = ssub.s32 %s12, 1
        // Predicated region
        $region13: #{generator_forward.11} parent=11 // pred_check
          %p199 = pneg %p50
        $region14: #{generator_forward.11} parent=11 // pred_check_branch
          %201 = sbr.rel (%p199) target = $region16
        $region15: #{generator_forward.11} parent=11 // pred_region
          %s202 = smul.u32 7, %s22
          %p203 = scmp.lt.s32.totalorder %s202, 6
          %s204 = scalar_select %p203, %s202, 6
          %s205 = smul.addr %s204, 6
          %s206 = smul.addr %s205, 4
          %s207 = scalar_lea.vmem %s0, %s206
          %s208 = smul.u32 7, %s22
        $region16: #{generator_forward.11} parent=11 // pred_fallthru
          _
      $region12: #{generator_forward.11} parent=5 // pred_fallthru
        _
      %p209 = scmp.lt.s32.totalorder %s12, 3
      // Predicated region
      $region17: #{generator_forward.11} parent=5 // pred_check
        %p210 = pneg %p209
      $region18: #{generator_forward.11} parent=5 // pred_check_branch
        %212 = sbr.rel (%p210) target = $region20
      $region19: #{generator_forward.11} parent=5 // pred_region
        // Predicated region
        $region21: #{generator_forward.11} parent=19 // pred_check
          %p213 = pneg %p70
        $region22: #{generator_forward.11} parent=19 // pred_check_branch
          %215 = sbr.rel (%p213) target = $region24
        $region23: #{generator_forward.11} parent=19 // pred_region
          %s216 = sand.u32 %s60, 1
          %s217 = sand.u32 %s60, 1
          %s218 = smul.addr %s217, 384
          %s219 = scalar_lea.vmem [#allocation2], %s218
          %s220 = smul.addr %s19, 4
          %s221 = scalar_lea.vmem %s1, %s220
          // Predicated region
          $region25: #{generator_forward.11} parent=23 // pred_check
            _
          $region26: #{generator_forward.11} parent=23 // pred_check_branch
            %223 = sbr.rel (0) target = $region28
          $region27: #{generator_forward.11} parent=23 // pred_region
            // Predicated region
            $region29: #{generator_forward.11} parent=27 // pred_check
              _
            $region30: #{generator_forward.11} parent=27 // pred_check_branch
              %225 = sbr.rel target = $region32
            $region31: #{generator_forward.11} parent=27 // pred_region
              // Predicated region
              $region44: #{generator_forward.11} parent=31 // pred_check
                _
              $region45: #{generator_forward.11} parent=31 // pred_check_branch
                %430 = sbr.rel (0) target = $region47
              $region46: #{generator_forward.11} parent=31 // pred_region
                loop: start=0, step=1, limit=1
                $region48: #{generator_forward.11} parent=46 // loop_pre_header
                  _
                $region49: #{generator_forward.11} parent=46 // loop_header
                  %s432 = sphi 0, %s436
                  %p433 = scmp.ge.s32.totalorder %s432, 1
                  %s437 = sphi %s221, %s221
                  %s438 = sphi %s219, %s219
                $region50: #{generator_forward.11} parent=46 // loop_header_branch
                  %435 = sbr.rel (%p433) target = $region54
                $region51: #{generator_forward.11} parent=46 // loop_body
                  _
                $region52: #{generator_forward.11} parent=46 // loop_footer
                  %s436 = sadd.s32 1, %s432
                $region53: #{generator_forward.11} parent=46 // loop_footer_branch
                  %431 = sbr.rel target = $region49
                $region54: #{generator_forward.11} parent=46 // loop_exit
                  _
                loop: start=0, step=1, limit=1
                $region55: #{generator_forward.11} parent=46 // loop_pre_header
                  _
                $region56: #{generator_forward.11} parent=46 // loop_header
                  %s441 = sphi 0, %s445
                  %p442 = scmp.ge.s32.totalorder %s441, 1
                  %s446 = sphi %s221, %s221
                  %s447 = sphi %s219, %s219
                $region57: #{generator_forward.11} parent=46 // loop_header_branch
                  %444 = sbr.rel (%p442) target = $region61
                $region58: #{generator_forward.11} parent=46 // loop_body
                  %v448 = vld [vmem:[%s446] sm:$0xf]
                  %449 = vst [vmem:[%s447] sm:$0xf] %v448
                  %v450 = vld [vmem:[%s446 + $0xc] sm:$0xf]
                  %451 = vst [vmem:[%s447 + $0x4] sm:$0xf] %v450
                  %v452 = vld [vmem:[%s446 + $0x18] sm:$0xf]
                  %453 = vst [vmem:[%s447 + $0x8] sm:$0xf] %v452
                  %v454 = vld [vmem:[%s446 + $0x24] sm:$0xf]
                  %455 = vst [vmem:[%s447 + $0xc] sm:$0xf] %v454
                  %v456 = vld [vmem:[%s446 + $0x30] sm:$0xf]
                  %457 = vst [vmem:[%s447 + $0x10] sm:$0xf] %v456
                  %v458 = vld [vmem:[%s446 + $0x3c] sm:$0xf]
                  %459 = vst [vmem:[%s447 + $0x14] sm:$0xf] %v458
                  %v460 = vld [vmem:[%s446 + $0x48] sm:$0xf]
                  %461 = vst [vmem:[%s447 + $0x18] sm:$0xf] %v460
                  %v462 = vld [vmem:[%s446 + $0x54] sm:$0xf]
                  %463 = vst [vmem:[%s447 + $0x1c] sm:$0xf] %v462
                  %v464 = vld [vmem:[%s446 + $0x60] sm:$0xf]
                  %465 = vst [vmem:[%s447 + $0x20] sm:$0xf] %v464
                  %v466 = vld [vmem:[%s446 + $0x6c] sm:$0xf]
                  %467 = vst [vmem:[%s447 + $0x24] sm:$0xf] %v466
                  %v468 = vld [vmem:[%s446 + $0x78] sm:$0xf]
                  %469 = vst [vmem:[%s447 + $0x28] sm:$0xf] %v468
                  %v470 = vld [vmem:[%s446 + $0x84] sm:$0xf]
                  %471 = vst [vmem:[%s447 + $0x2c] sm:$0xf] %v470
                  %v472 = vld [vmem:[%s446 + $0x90] sm:$0xf]
                  %473 = vst [vmem:[%s447 + $0x30] sm:$0xf] %v472
                  %v474 = vld [vmem:[%s446 + $0x9c] sm:$0xf]
                  %475 = vst [vmem:[%s447 + $0x34] sm:$0xf] %v474
                  %v476 = vld [vmem:[%s446 + $0xa8] sm:$0xf]
                  %477 = vst [vmem:[%s447 + $0x38] sm:$0xf] %v476
                  %v478 = vld [vmem:[%s446 + $0xb4] sm:$0xf]
                  %479 = vst [vmem:[%s447 + $0x3c] sm:$0xf] %v478
                  %v480 = vld [vmem:[%s446 + $0xc0] sm:$0xf]
                  %481 = vst [vmem:[%s447 + $0x40] sm:$0xf] %v480
                  %v482 = vld [vmem:[%s446 + $0xcc] sm:$0xf]
                  %483 = vst [vmem:[%s447 + $0x44] sm:$0xf] %v482
                  %v484 = vld [vmem:[%s446 + $0xd8] sm:$0xf]
                  %485 = vst [vmem:[%s447 + $0x48] sm:$0xf] %v484
                  %v486 = vld [vmem:[%s446 + $0xe4] sm:$0xf]
                  %487 = vst [vmem:[%s447 + $0x4c] sm:$0xf] %v486
                  %v488 = vld [vmem:[%s446 + $0xf0] sm:$0xf]
                  %489 = vst [vmem:[%s447 + $0x50] sm:$0xf] %v488
                  %v490 = vld [vmem:[%s446 + $0xfc] sm:$0xf]
                  %491 = vst [vmem:[%s447 + $0x54] sm:$0xf] %v490
                  %v492 = vld [vmem:[%s446 + $0x108] sm:$0xf]
                  %493 = vst [vmem:[%s447 + $0x58] sm:$0xf] %v492
                  %v494 = vld [vmem:[%s446 + $0x114] sm:$0xf]
                  %495 = vst [vmem:[%s447 + $0x5c] sm:$0xf] %v494
                  %v496 = vld [vmem:[%s446 + $0x120] sm:$0xf]
                  %497 = vst [vmem:[%s447 + $0x60] sm:$0xf] %v496
                  %v498 = vld [vmem:[%s446 + $0x12c] sm:$0xf]
                  %499 = vst [vmem:[%s447 + $0x64] sm:$0xf] %v498
                  %v500 = vld [vmem:[%s446 + $0x138] sm:$0xf]
                  %501 = vst [vmem:[%s447 + $0x68] sm:$0xf] %v500
                  %v502 = vld [vmem:[%s446 + $0x144] sm:$0xf]
                  %503 = vst [vmem:[%s447 + $0x6c] sm:$0xf] %v502
                  %v504 = vld [vmem:[%s446 + $0x150] sm:$0xf]
                  %505 = vst [vmem:[%s447 + $0x70] sm:$0xf] %v504
                  %v506 = vld [vmem:[%s446 + $0x15c] sm:$0xf]
                  %507 = vst [vmem:[%s447 + $0x74] sm:$0xf] %v506
                  %v508 = vld [vmem:[%s446 + $0x168] sm:$0xf]
                  %509 = vst [vmem:[%s447 + $0x78] sm:$0xf] %v508
                  %v510 = vld [vmem:[%s446 + $0x174] sm:$0xf]
                  %511 = vst [vmem:[%s447 + $0x7c] sm:$0xf] %v510
                  %v512 = vld [vmem:[%s446 + $0x180] sm:$0xf]
                  %513 = vst [vmem:[%s447 + $0x80] sm:$0xf] %v512
                  %v514 = vld [vmem:[%s446 + $0x18c] sm:$0xf]
                  %515 = vst [vmem:[%s447 + $0x84] sm:$0xf] %v514
                  %v516 = vld [vmem:[%s446 + $0x198] sm:$0xf]
                  %517 = vst [vmem:[%s447 + $0x88] sm:$0xf] %v516
                  %v518 = vld [vmem:[%s446 + $0x1a4] sm:$0xf]
                  %519 = vst [vmem:[%s447 + $0x8c] sm:$0xf] %v518
                  %v520 = vld [vmem:[%s446 + $0x1b0] sm:$0xf]
                  %521 = vst [vmem:[%s447 + $0x90] sm:$0xf] %v520
                  %v522 = vld [vmem:[%s446 + $0x1bc] sm:$0xf]
                  %523 = vst [vmem:[%s447 + $0x94] sm:$0xf] %v522
                  %v524 = vld [vmem:[%s446 + $0x1c8] sm:$0xf]
                  %525 = vst [vmem:[%s447 + $0x98] sm:$0xf] %v524
                  %v526 = vld [vmem:[%s446 + $0x1d4] sm:$0xf]
                  %527 = vst [vmem:[%s447 + $0x9c] sm:$0xf] %v526
                  %v528 = vld [vmem:[%s446 + $0x1e0] sm:$0xf]
                  %529 = vst [vmem:[%s447 + $0xa0] sm:$0xf] %v528
                  %v530 = vld [vmem:[%s446 + $0x1ec] sm:$0xf]
                  %531 = vst [vmem:[%s447 + $0xa4] sm:$0xf] %v530
                  %v532 = vld [vmem:[%s446 + $0x1f8] sm:$0xf]
                  %533 = vst [vmem:[%s447 + $0xa8] sm:$0xf] %v532
                  %v534 = vld [vmem:[%s446 + $0x204] sm:$0xf]
                  %535 = vst [vmem:[%s447 + $0xac] sm:$0xf] %v534
                  %v536 = vld [vmem:[%s446 + $0x210] sm:$0xf]
                  %537 = vst [vmem:[%s447 + $0xb0] sm:$0xf] %v536
                  %v538 = vld [vmem:[%s446 + $0x21c] sm:$0xf]
                  %539 = vst [vmem:[%s447 + $0xb4] sm:$0xf] %v538
                  %v540 = vld [vmem:[%s446 + $0x228] sm:$0xf]
                  %541 = vst [vmem:[%s447 + $0xb8] sm:$0xf] %v540
                  %v542 = vld [vmem:[%s446 + $0x234] sm:$0xf]
                  %543 = vst [vmem:[%s447 + $0xbc] sm:$0xf] %v542
                  %v544 = vld [vmem:[%s446 + $0x240] sm:$0xf]
                  %545 = vst [vmem:[%s447 + $0xc0] sm:$0xf] %v544
                  %v546 = vld [vmem:[%s446 + $0x24c] sm:$0xf]
                  %547 = vst [vmem:[%s447 + $0xc4] sm:$0xf] %v546
                  %v548 = vld [vmem:[%s446 + $0x258] sm:$0xf]
                  %549 = vst [vmem:[%s447 + $0xc8] sm:$0xf] %v548
                  %v550 = vld [vmem:[%s446 + $0x264] sm:$0xf]
                  %551 = vst [vmem:[%s447 + $0xcc] sm:$0xf] %v550
                  %v552 = vld [vmem:[%s446 + $0x270] sm:$0xf]
                  %553 = vst [vmem:[%s447 + $0xd0] sm:$0xf] %v552
                  %v554 = vld [vmem:[%s446 + $0x27c] sm:$0xf]
                  %555 = vst [vmem:[%s447 + $0xd4] sm:$0xf] %v554
                  %v556 = vld [vmem:[%s446 + $0x288] sm:$0xf]
                  %557 = vst [vmem:[%s447 + $0xd8] sm:$0xf] %v556
                  %v558 = vld [vmem:[%s446 + $0x294] sm:$0xf]
                  %559 = vst [vmem:[%s447 + $0xdc] sm:$0xf] %v558
                  %v560 = vld [vmem:[%s446 + $0x2a0] sm:$0xf]
                  %561 = vst [vmem:[%s447 + $0xe0] sm:$0xf] %v560
                  %v562 = vld [vmem:[%s446 + $0x2ac] sm:$0xf]
                  %563 = vst [vmem:[%s447 + $0xe4] sm:$0xf] %v562
                  %v564 = vld [vmem:[%s446 + $0x2b8] sm:$0xf]
                  %565 = vst [vmem:[%s447 + $0xe8] sm:$0xf] %v564
                  %v566 = vld [vmem:[%s446 + $0x2c4] sm:$0xf]
                  %567 = vst [vmem:[%s447 + $0xec] sm:$0xf] %v566
                  %v568 = vld [vmem:[%s446 + $0x2d0] sm:$0xf]
                  %569 = vst [vmem:[%s447 + $0xf0] sm:$0xf] %v568
                  %v570 = vld [vmem:[%s446 + $0x2dc] sm:$0xf]
                  %571 = vst [vmem:[%s447 + $0xf4] sm:$0xf] %v570
                  %v572 = vld [vmem:[%s446 + $0x2e8] sm:$0xf]
                  %573 = vst [vmem:[%s447 + $0xf8] sm:$0xf] %v572
                  %v574 = vld [vmem:[%s446 + $0x2f4] sm:$0xf]
                  %575 = vst [vmem:[%s447 + $0xfc] sm:$0xf] %v574
                  %v576 = vld [vmem:[%s446 + $0x300] sm:$0xf]
                  %577 = vst [vmem:[%s447 + $0x100] sm:$0xf] %v576
                  %v578 = vld [vmem:[%s446 + $0x30c] sm:$0xf]
                  %579 = vst [vmem:[%s447 + $0x104] sm:$0xf] %v578
                  %v580 = vld [vmem:[%s446 + $0x318] sm:$0xf]
                  %581 = vst [vmem:[%s447 + $0x108] sm:$0xf] %v580
                  %v582 = vld [vmem:[%s446 + $0x324] sm:$0xf]
                  %583 = vst [vmem:[%s447 + $0x10c] sm:$0xf] %v582
                  %v584 = vld [vmem:[%s446 + $0x330] sm:$0xf]
                  %585 = vst [vmem:[%s447 + $0x110] sm:$0xf] %v584
                  %v586 = vld [vmem:[%s446 + $0x33c] sm:$0xf]
                  %587 = vst [vmem:[%s447 + $0x114] sm:$0xf] %v586
                  %v588 = vld [vmem:[%s446 + $0x348] sm:$0xf]
                  %589 = vst [vmem:[%s447 + $0x118] sm:$0xf] %v588
                  %v590 = vld [vmem:[%s446 + $0x354] sm:$0xf]
                  %591 = vst [vmem:[%s447 + $0x11c] sm:$0xf] %v590
                  %v592 = vld [vmem:[%s446 + $0x360] sm:$0xf]
                  %593 = vst [vmem:[%s447 + $0x120] sm:$0xf] %v592
                  %v594 = vld [vmem:[%s446 + $0x36c] sm:$0xf]
                  %595 = vst [vmem:[%s447 + $0x124] sm:$0xf] %v594
                  %v596 = vld [vmem:[%s446 + $0x378] sm:$0xf]
                  %597 = vst [vmem:[%s447 + $0x128] sm:$0xf] %v596
                  %v598 = vld [vmem:[%s446 + $0x384] sm:$0xf]
                  %599 = vst [vmem:[%s447 + $0x12c] sm:$0xf] %v598
                  %v600 = vld [vmem:[%s446 + $0x390] sm:$0xf]
                  %601 = vst [vmem:[%s447 + $0x130] sm:$0xf] %v600
                  %v602 = vld [vmem:[%s446 + $0x39c] sm:$0xf]
                  %603 = vst [vmem:[%s447 + $0x134] sm:$0xf] %v602
                  %v604 = vld [vmem:[%s446 + $0x3a8] sm:$0xf]
                  %605 = vst [vmem:[%s447 + $0x138] sm:$0xf] %v604
                  %v606 = vld [vmem:[%s446 + $0x3b4] sm:$0xf]
                  %607 = vst [vmem:[%s447 + $0x13c] sm:$0xf] %v606
                  %v608 = vld [vmem:[%s446 + $0x3c0] sm:$0xf]
                  %609 = vst [vmem:[%s447 + $0x140] sm:$0xf] %v608
                  %v610 = vld [vmem:[%s446 + $0x3cc] sm:$0xf]
                  %611 = vst [vmem:[%s447 + $0x144] sm:$0xf] %v610
                  %v612 = vld [vmem:[%s446 + $0x3d8] sm:$0xf]
                  %613 = vst [vmem:[%s447 + $0x148] sm:$0xf] %v612
                  %v614 = vld [vmem:[%s446 + $0x3e4] sm:$0xf]
                  %615 = vst [vmem:[%s447 + $0x14c] sm:$0xf] %v614
                  %v616 = vld [vmem:[%s446 + $0x3f0] sm:$0xf]
                  %617 = vst [vmem:[%s447 + $0x150] sm:$0xf] %v616
                  %v618 = vld [vmem:[%s446 + $0x3fc] sm:$0xf]
                  %619 = vst [vmem:[%s447 + $0x154] sm:$0xf] %v618
                  %v620 = vld [vmem:[%s446 + $0x408] sm:$0xf]
                  %621 = vst [vmem:[%s447 + $0x158] sm:$0xf] %v620
                  %v622 = vld [vmem:[%s446 + $0x414] sm:$0xf]
                  %623 = vst [vmem:[%s447 + $0x15c] sm:$0xf] %v622
                  %v624 = vld [vmem:[%s446 + $0x420] sm:$0xf]
                  %625 = vst [vmem:[%s447 + $0x160] sm:$0xf] %v624
                  %v626 = vld [vmem:[%s446 + $0x42c] sm:$0xf]
                  %627 = vst [vmem:[%s447 + $0x164] sm:$0xf] %v626
                  %v628 = vld [vmem:[%s446 + $0x438] sm:$0xf]
                  %629 = vst [vmem:[%s447 + $0x168] sm:$0xf] %v628
                  %v630 = vld [vmem:[%s446 + $0x444] sm:$0xf]
                  %631 = vst [vmem:[%s447 + $0x16c] sm:$0xf] %v630
                  %v632 = vld [vmem:[%s446 + $0x450] sm:$0xf]
                  %633 = vst [vmem:[%s447 + $0x170] sm:$0xf] %v632
                  %v634 = vld [vmem:[%s446 + $0x45c] sm:$0xf]
                  %635 = vst [vmem:[%s447 + $0x174] sm:$0xf] %v634
                  %v636 = vld [vmem:[%s446 + $0x468] sm:$0xf]
                  %637 = vst [vmem:[%s447 + $0x178] sm:$0xf] %v636
                  %v638 = vld [vmem:[%s446 + $0x474] sm:$0xf]
                  %639 = vst [vmem:[%s447 + $0x17c] sm:$0xf] %v638
                $region59: #{generator_forward.11} parent=46 // loop_footer
                  %s445 = sadd.s32 1, %s441
                $region60: #{generator_forward.11} parent=46 // loop_footer_branch
                  %440 = sbr.rel target = $region56
                $region61: #{generator_forward.11} parent=46 // loop_exit
                  _
              $region47: #{generator_forward.11} parent=31 // pred_fallthru
                _
            $region32: #{generator_forward.11} parent=27 // pred_fallthru
              _
            // Predicated region
            $region33: #{generator_forward.11} parent=27 // pred_check
              _
            $region34: #{generator_forward.11} parent=27 // pred_check_branch
              %227 = sbr.rel (0) target = $region36
            $region35: #{generator_forward.11} parent=27 // pred_region
              loop: start=0, step=1, limit=1
              $region37: #{generator_forward.11} parent=35 // loop_pre_header
                _
              $region38: #{generator_forward.11} parent=35 // loop_header
                %s230 = sphi 0, %s234
                %p231 = scmp.ge.s32.totalorder %s230, 1
                %s235 = sphi %s221, %s221
                %s236 = sphi %s219, %s219
              $region39: #{generator_forward.11} parent=35 // loop_header_branch
                %233 = sbr.rel (%p231) target = $region43
              $region40: #{generator_forward.11} parent=35 // loop_body
                %v237 = vld [vmem:[%s235] sm:$0xf]
                %238 = vst [vmem:[%s236] sm:$0xf] %v237
                %v239 = vld [vmem:[%s235 + $0xc] sm:$0xf]
                %240 = vst [vmem:[%s236 + $0x4] sm:$0xf] %v239
                %v241 = vld [vmem:[%s235 + $0x18] sm:$0xf]
                %242 = vst [vmem:[%s236 + $0x8] sm:$0xf] %v241
                %v243 = vld [vmem:[%s235 + $0x24] sm:$0xf]
                %244 = vst [vmem:[%s236 + $0xc] sm:$0xf] %v243
                %v245 = vld [vmem:[%s235 + $0x30] sm:$0xf]
                %246 = vst [vmem:[%s236 + $0x10] sm:$0xf] %v245
                %v247 = vld [vmem:[%s235 + $0x3c] sm:$0xf]
                %248 = vst [vmem:[%s236 + $0x14] sm:$0xf] %v247
                %v249 = vld [vmem:[%s235 + $0x48] sm:$0xf]
                %250 = vst [vmem:[%s236 + $0x18] sm:$0xf] %v249
                %v251 = vld [vmem:[%s235 + $0x54] sm:$0xf]
                %252 = vst [vmem:[%s236 + $0x1c] sm:$0xf] %v251
                %v253 = vld [vmem:[%s235 + $0x60] sm:$0xf]
                %254 = vst [vmem:[%s236 + $0x20] sm:$0xf] %v253
                %v255 = vld [vmem:[%s235 + $0x6c] sm:$0xf]
                %256 = vst [vmem:[%s236 + $0x24] sm:$0xf] %v255
                %v257 = vld [vmem:[%s235 + $0x78] sm:$0xf]
                %258 = vst [vmem:[%s236 + $0x28] sm:$0xf] %v257
                %v259 = vld [vmem:[%s235 + $0x84] sm:$0xf]
                %260 = vst [vmem:[%s236 + $0x2c] sm:$0xf] %v259
                %v261 = vld [vmem:[%s235 + $0x90] sm:$0xf]
                %262 = vst [vmem:[%s236 + $0x30] sm:$0xf] %v261
                %v263 = vld [vmem:[%s235 + $0x9c] sm:$0xf]
                %264 = vst [vmem:[%s236 + $0x34] sm:$0xf] %v263
                %v265 = vld [vmem:[%s235 + $0xa8] sm:$0xf]
                %266 = vst [vmem:[%s236 + $0x38] sm:$0xf] %v265
                %v267 = vld [vmem:[%s235 + $0xb4] sm:$0xf]
                %268 = vst [vmem:[%s236 + $0x3c] sm:$0xf] %v267
                %v269 = vld [vmem:[%s235 + $0xc0] sm:$0xf]
                %270 = vst [vmem:[%s236 + $0x40] sm:$0xf] %v269
                %v271 = vld [vmem:[%s235 + $0xcc] sm:$0xf]
                %272 = vst [vmem:[%s236 + $0x44] sm:$0xf] %v271
                %v273 = vld [vmem:[%s235 + $0xd8] sm:$0xf]
                %274 = vst [vmem:[%s236 + $0x48] sm:$0xf] %v273
                %v275 = vld [vmem:[%s235 + $0xe4] sm:$0xf]
                %276 = vst [vmem:[%s236 + $0x4c] sm:$0xf] %v275
                %v277 = vld [vmem:[%s235 + $0xf0] sm:$0xf]
                %278 = vst [vmem:[%s236 + $0x50] sm:$0xf] %v277
                %v279 = vld [vmem:[%s235 + $0xfc] sm:$0xf]
                %280 = vst [vmem:[%s236 + $0x54] sm:$0xf] %v279
                %v281 = vld [vmem:[%s235 + $0x108] sm:$0xf]
                %282 = vst [vmem:[%s236 + $0x58] sm:$0xf] %v281
                %v283 = vld [vmem:[%s235 + $0x114] sm:$0xf]
                %284 = vst [vmem:[%s236 + $0x5c] sm:$0xf] %v283
                %v285 = vld [vmem:[%s235 + $0x120] sm:$0xf]
                %286 = vst [vmem:[%s236 + $0x60] sm:$0xf] %v285
                %v287 = vld [vmem:[%s235 + $0x12c] sm:$0xf]
                %288 = vst [vmem:[%s236 + $0x64] sm:$0xf] %v287
                %v289 = vld [vmem:[%s235 + $0x138] sm:$0xf]
                %290 = vst [vmem:[%s236 + $0x68] sm:$0xf] %v289
                %v291 = vld [vmem:[%s235 + $0x144] sm:$0xf]
                %292 = vst [vmem:[%s236 + $0x6c] sm:$0xf] %v291
                %v293 = vld [vmem:[%s235 + $0x150] sm:$0xf]
                %294 = vst [vmem:[%s236 + $0x70] sm:$0xf] %v293
                %v295 = vld [vmem:[%s235 + $0x15c] sm:$0xf]
                %296 = vst [vmem:[%s236 + $0x74] sm:$0xf] %v295
                %v297 = vld [vmem:[%s235 + $0x168] sm:$0xf]
                %298 = vst [vmem:[%s236 + $0x78] sm:$0xf] %v297
                %v299 = vld [vmem:[%s235 + $0x174] sm:$0xf]
                %300 = vst [vmem:[%s236 + $0x7c] sm:$0xf] %v299
                %v301 = vld [vmem:[%s235 + $0x180] sm:$0xf]
                %302 = vst [vmem:[%s236 + $0x80] sm:$0xf] %v301
                %v303 = vld [vmem:[%s235 + $0x18c] sm:$0xf]
                %304 = vst [vmem:[%s236 + $0x84] sm:$0xf] %v303
                %v305 = vld [vmem:[%s235 + $0x198] sm:$0xf]
                %306 = vst [vmem:[%s236 + $0x88] sm:$0xf] %v305
                %v307 = vld [vmem:[%s235 + $0x1a4] sm:$0xf]
                %308 = vst [vmem:[%s236 + $0x8c] sm:$0xf] %v307
                %v309 = vld [vmem:[%s235 + $0x1b0] sm:$0xf]
                %310 = vst [vmem:[%s236 + $0x90] sm:$0xf] %v309
                %v311 = vld [vmem:[%s235 + $0x1bc] sm:$0xf]
                %312 = vst [vmem:[%s236 + $0x94] sm:$0xf] %v311
                %v313 = vld [vmem:[%s235 + $0x1c8] sm:$0xf]
                %314 = vst [vmem:[%s236 + $0x98] sm:$0xf] %v313
                %v315 = vld [vmem:[%s235 + $0x1d4] sm:$0xf]
                %316 = vst [vmem:[%s236 + $0x9c] sm:$0xf] %v315
                %v317 = vld [vmem:[%s235 + $0x1e0] sm:$0xf]
                %318 = vst [vmem:[%s236 + $0xa0] sm:$0xf] %v317
                %v319 = vld [vmem:[%s235 + $0x1ec] sm:$0xf]
                %320 = vst [vmem:[%s236 + $0xa4] sm:$0xf] %v319
                %v321 = vld [vmem:[%s235 + $0x1f8] sm:$0xf]
                %322 = vst [vmem:[%s236 + $0xa8] sm:$0xf] %v321
                %v323 = vld [vmem:[%s235 + $0x204] sm:$0xf]
                %324 = vst [vmem:[%s236 + $0xac] sm:$0xf] %v323
                %v325 = vld [vmem:[%s235 + $0x210] sm:$0xf]
                %326 = vst [vmem:[%s236 + $0xb0] sm:$0xf] %v325
                %v327 = vld [vmem:[%s235 + $0x21c] sm:$0xf]
                %328 = vst [vmem:[%s236 + $0xb4] sm:$0xf] %v327
                %v329 = vld [vmem:[%s235 + $0x228] sm:$0xf]
                %330 = vst [vmem:[%s236 + $0xb8] sm:$0xf] %v329
                %v331 = vld [vmem:[%s235 + $0x234] sm:$0xf]
                %332 = vst [vmem:[%s236 + $0xbc] sm:$0xf] %v331
                %v333 = vld [vmem:[%s235 + $0x240] sm:$0xf]
                %334 = vst [vmem:[%s236 + $0xc0] sm:$0xf] %v333
                %v335 = vld [vmem:[%s235 + $0x24c] sm:$0xf]
                %336 = vst [vmem:[%s236 + $0xc4] sm:$0xf] %v335
                %v337 = vld [vmem:[%s235 + $0x258] sm:$0xf]
                %338 = vst [vmem:[%s236 + $0xc8] sm:$0xf] %v337
                %v339 = vld [vmem:[%s235 + $0x264] sm:$0xf]
                %340 = vst [vmem:[%s236 + $0xcc] sm:$0xf] %v339
                %v341 = vld [vmem:[%s235 + $0x270] sm:$0xf]
                %342 = vst [vmem:[%s236 + $0xd0] sm:$0xf] %v341
                %v343 = vld [vmem:[%s235 + $0x27c] sm:$0xf]
                %344 = vst [vmem:[%s236 + $0xd4] sm:$0xf] %v343
                %v345 = vld [vmem:[%s235 + $0x288] sm:$0xf]
                %346 = vst [vmem:[%s236 + $0xd8] sm:$0xf] %v345
                %v347 = vld [vmem:[%s235 + $0x294] sm:$0xf]
                %348 = vst [vmem:[%s236 + $0xdc] sm:$0xf] %v347
                %v349 = vld [vmem:[%s235 + $0x2a0] sm:$0xf]
                %350 = vst [vmem:[%s236 + $0xe0] sm:$0xf] %v349
                %v351 = vld [vmem:[%s235 + $0x2ac] sm:$0xf]
                %352 = vst [vmem:[%s236 + $0xe4] sm:$0xf] %v351
                %v353 = vld [vmem:[%s235 + $0x2b8] sm:$0xf]
                %354 = vst [vmem:[%s236 + $0xe8] sm:$0xf] %v353
                %v355 = vld [vmem:[%s235 + $0x2c4] sm:$0xf]
                %356 = vst [vmem:[%s236 + $0xec] sm:$0xf] %v355
                %v357 = vld [vmem:[%s235 + $0x2d0] sm:$0xf]
                %358 = vst [vmem:[%s236 + $0xf0] sm:$0xf] %v357
                %v359 = vld [vmem:[%s235 + $0x2dc] sm:$0xf]
                %360 = vst [vmem:[%s236 + $0xf4] sm:$0xf] %v359
                %v361 = vld [vmem:[%s235 + $0x2e8] sm:$0xf]
                %362 = vst [vmem:[%s236 + $0xf8] sm:$0xf] %v361
                %v363 = vld [vmem:[%s235 + $0x2f4] sm:$0xf]
                %364 = vst [vmem:[%s236 + $0xfc] sm:$0xf] %v363
                %v365 = vld [vmem:[%s235 + $0x300] sm:$0xf]
                %366 = vst [vmem:[%s236 + $0x100] sm:$0xf] %v365
                %v367 = vld [vmem:[%s235 + $0x30c] sm:$0xf]
                %368 = vst [vmem:[%s236 + $0x104] sm:$0xf] %v367
                %v369 = vld [vmem:[%s235 + $0x318] sm:$0xf]
                %370 = vst [vmem:[%s236 + $0x108] sm:$0xf] %v369
                %v371 = vld [vmem:[%s235 + $0x324] sm:$0xf]
                %372 = vst [vmem:[%s236 + $0x10c] sm:$0xf] %v371
                %v373 = vld [vmem:[%s235 + $0x330] sm:$0xf]
                %374 = vst [vmem:[%s236 + $0x110] sm:$0xf] %v373
                %v375 = vld [vmem:[%s235 + $0x33c] sm:$0xf]
                %376 = vst [vmem:[%s236 + $0x114] sm:$0xf] %v375
                %v377 = vld [vmem:[%s235 + $0x348] sm:$0xf]
                %378 = vst [vmem:[%s236 + $0x118] sm:$0xf] %v377
                %v379 = vld [vmem:[%s235 + $0x354] sm:$0xf]
                %380 = vst [vmem:[%s236 + $0x11c] sm:$0xf] %v379
                %v381 = vld [vmem:[%s235 + $0x360] sm:$0xf]
                %382 = vst [vmem:[%s236 + $0x120] sm:$0xf] %v381
                %v383 = vld [vmem:[%s235 + $0x36c] sm:$0xf]
                %384 = vst [vmem:[%s236 + $0x124] sm:$0xf] %v383
                %v385 = vld [vmem:[%s235 + $0x378] sm:$0xf]
                %386 = vst [vmem:[%s236 + $0x128] sm:$0xf] %v385
                %v387 = vld [vmem:[%s235 + $0x384] sm:$0xf]
                %388 = vst [vmem:[%s236 + $0x12c] sm:$0xf] %v387
                %v389 = vld [vmem:[%s235 + $0x390] sm:$0xf]
                %390 = vst [vmem:[%s236 + $0x130] sm:$0xf] %v389
                %v391 = vld [vmem:[%s235 + $0x39c] sm:$0xf]
                %392 = vst [vmem:[%s236 + $0x134] sm:$0xf] %v391
                %v393 = vld [vmem:[%s235 + $0x3a8] sm:$0xf]
                %394 = vst [vmem:[%s236 + $0x138] sm:$0xf] %v393
                %v395 = vld [vmem:[%s235 + $0x3b4] sm:$0xf]
                %396 = vst [vmem:[%s236 + $0x13c] sm:$0xf] %v395
                %v397 = vld [vmem:[%s235 + $0x3c0] sm:$0xf]
                %398 = vst [vmem:[%s236 + $0x140] sm:$0xf] %v397
                %v399 = vld [vmem:[%s235 + $0x3cc] sm:$0xf]
                %400 = vst [vmem:[%s236 + $0x144] sm:$0xf] %v399
                %v401 = vld [vmem:[%s235 + $0x3d8] sm:$0xf]
                %402 = vst [vmem:[%s236 + $0x148] sm:$0xf] %v401
                %v403 = vld [vmem:[%s235 + $0x3e4] sm:$0xf]
                %404 = vst [vmem:[%s236 + $0x14c] sm:$0xf] %v403
                %v405 = vld [vmem:[%s235 + $0x3f0] sm:$0xf]
                %406 = vst [vmem:[%s236 + $0x150] sm:$0xf] %v405
                %v407 = vld [vmem:[%s235 + $0x3fc] sm:$0xf]
                %408 = vst [vmem:[%s236 + $0x154] sm:$0xf] %v407
                %v409 = vld [vmem:[%s235 + $0x408] sm:$0xf]
                %410 = vst [vmem:[%s236 + $0x158] sm:$0xf] %v409
                %v411 = vld [vmem:[%s235 + $0x414] sm:$0xf]
                %412 = vst [vmem:[%s236 + $0x15c] sm:$0xf] %v411
                %v413 = vld [vmem:[%s235 + $0x420] sm:$0xf]
                %414 = vst [vmem:[%s236 + $0x160] sm:$0xf] %v413
                %v415 = vld [vmem:[%s235 + $0x42c] sm:$0xf]
                %416 = vst [vmem:[%s236 + $0x164] sm:$0xf] %v415
                %v417 = vld [vmem:[%s235 + $0x438] sm:$0xf]
                %418 = vst [vmem:[%s236 + $0x168] sm:$0xf] %v417
                %v419 = vld [vmem:[%s235 + $0x444] sm:$0xf]
                %420 = vst [vmem:[%s236 + $0x16c] sm:$0xf] %v419
                %v421 = vld [vmem:[%s235 + $0x450] sm:$0xf]
                %422 = vst [vmem:[%s236 + $0x170] sm:$0xf] %v421
                %v423 = vld [vmem:[%s235 + $0x45c] sm:$0xf]
                %424 = vst [vmem:[%s236 + $0x174] sm:$0xf] %v423
                %v425 = vld [vmem:[%s235 + $0x468] sm:$0xf]
                %426 = vst [vmem:[%s236 + $0x178] sm:$0xf] %v425
                %v427 = vld [vmem:[%s235 + $0x474] sm:$0xf]
                %428 = vst [vmem:[%s236 + $0x17c] sm:$0xf] %v427
              $region41: #{generator_forward.11} parent=35 // loop_footer
                %s234 = sadd.s32 1, %s230
              $region42: #{generator_forward.11} parent=35 // loop_footer_branch
                %229 = sbr.rel target = $region38
              $region43: #{generator_forward.11} parent=35 // loop_exit
                _
            $region36: #{generator_forward.11} parent=27 // pred_fallthru
              _
          $region28: #{generator_forward.11} parent=23 // pred_fallthru
            _
          %640 = vnop
        $region24: #{generator_forward.11} parent=19 // pred_fallthru
          _
        // Predicated region
        $region62: #{generator_forward.11} parent=19 // pred_check
          %p641 = pneg %p98
        $region63: #{generator_forward.11} parent=19 // pred_check_branch
          %643 = sbr.rel (%p641) target = $region65
        $region64: #{generator_forward.11} parent=19 // pred_region
          %s644 = sand.u32 %s88, 1
          %s645 = sand.u32 %s88, 1
          %s646 = smul.addr %s645, 56
          %s647 = scalar_lea.vmem [#allocation3], %s646
          %s648 = smul.u32 7, %s20
          %s649 = smul.addr %s648, 3
          %s650 = sadd.s32 %s19, %s649
          %s651 = smul.addr %s650, 8
          %s652 = scalar_lea.vmem %s2, %s651
          // Predicated region
          $region66: #{generator_forward.11} parent=64 // pred_check
            _
          $region67: #{generator_forward.11} parent=64 // pred_check_branch
            %654 = sbr.rel (0) target = $region69
          $region68: #{generator_forward.11} parent=64 // pred_region
            // Predicated region
            $region70: #{generator_forward.11} parent=68 // pred_check
              _
            $region71: #{generator_forward.11} parent=68 // pred_check_branch
              %656 = sbr.rel (0) target = $region73
            $region72: #{generator_forward.11} parent=68 // pred_region
              // Predicated region
              $region85: #{generator_forward.11} parent=72 // pred_check
                _
              $region86: #{generator_forward.11} parent=72 // pred_check_branch
                %683 = sbr.rel (0) target = $region88
              $region87: #{generator_forward.11} parent=72 // pred_region
                loop: start=0, step=1, limit=1
                $region89: #{generator_forward.11} parent=87 // loop_pre_header
                  _
                $region90: #{generator_forward.11} parent=87 // loop_header
                  %s685 = sphi 0, %s689
                  %p686 = scmp.ge.s32.totalorder %s685, 1
                  %s690 = sphi %s652, %s652
                  %s691 = sphi %s647, %s647
                $region91: #{generator_forward.11} parent=87 // loop_header_branch
                  %688 = sbr.rel (%p686) target = $region95
                $region92: #{generator_forward.11} parent=87 // loop_body
                  %v692 = vld [vmem:[%s690] sm:$0xff]
                  %693 = vst [vmem:[%s691] sm:$0xff] %v692
                  %v694 = vld [vmem:[%s690 + $0x18] sm:$0xff]
                  %695 = vst [vmem:[%s691 + $0x8] sm:$0xff] %v694
                  %v696 = vld [vmem:[%s690 + $0x30] sm:$0xff]
                  %697 = vst [vmem:[%s691 + $0x10] sm:$0xff] %v696
                  %v698 = vld [vmem:[%s690 + $0x48] sm:$0xff]
                  %699 = vst [vmem:[%s691 + $0x18] sm:$0xff] %v698
                  %v700 = vld [vmem:[%s690 + $0x60] sm:$0xff]
                  %701 = vst [vmem:[%s691 + $0x20] sm:$0xff] %v700
                  %v702 = vld [vmem:[%s690 + $0x78] sm:$0xff]
                  %703 = vst [vmem:[%s691 + $0x28] sm:$0xff] %v702
                  %v704 = vld [vmem:[%s690 + $0x90] sm:$0xff]
                  %705 = vst [vmem:[%s691 + $0x30] sm:$0xff] %v704
                $region93: #{generator_forward.11} parent=87 // loop_footer
                  %s689 = sadd.s32 1, %s685
                $region94: #{generator_forward.11} parent=87 // loop_footer_branch
                  %684 = sbr.rel target = $region90
                $region95: #{generator_forward.11} parent=87 // loop_exit
                  _
              $region88: #{generator_forward.11} parent=72 // pred_fallthru
                _
              // Predicated region
              $region96: #{generator_forward.11} parent=72 // pred_check
                _
              $region97: #{generator_forward.11} parent=72 // pred_check_branch
                %707 = sbr.rel target = $region99
              $region98: #{generator_forward.11} parent=72 // pred_region
                _
              $region99: #{generator_forward.11} parent=72 // pred_fallthru
                _
            $region73: #{generator_forward.11} parent=68 // pred_fallthru
              _
            // Predicated region
            $region74: #{generator_forward.11} parent=68 // pred_check
              _
            $region75: #{generator_forward.11} parent=68 // pred_check_branch
              %658 = sbr.rel target = $region77
            $region76: #{generator_forward.11} parent=68 // pred_region
              loop: start=0, step=1, limit=1
              $region78: #{generator_forward.11} parent=76 // loop_pre_header
                _
              $region79: #{generator_forward.11} parent=76 // loop_header
                %s661 = sphi 0, %s665
                %p662 = scmp.ge.s32.totalorder %s661, 1
                %s666 = sphi %s652, %s652
                %s667 = sphi %s647, %s647
              $region80: #{generator_forward.11} parent=76 // loop_header_branch
                %664 = sbr.rel (%p662) target = $region84
              $region81: #{generator_forward.11} parent=76 // loop_body
                %v668 = vld [vmem:[%s666] sm:$0xff]
                %669 = vst [vmem:[%s667] sm:$0xff] %v668
                %v670 = vld [vmem:[%s666 + $0x18] sm:$0xff]
                %671 = vst [vmem:[%s667 + $0x8] sm:$0xff] %v670
                %v672 = vld [vmem:[%s666 + $0x30] sm:$0xff]
                %673 = vst [vmem:[%s667 + $0x10] sm:$0xff] %v672
                %v674 = vld [vmem:[%s666 + $0x48] sm:$0xff]
                %675 = vst [vmem:[%s667 + $0x18] sm:$0xff] %v674
                %v676 = vld [vmem:[%s666 + $0x60] sm:$0xff]
                %677 = vst [vmem:[%s667 + $0x20] sm:$0xff] %v676
                %v678 = vld [vmem:[%s666 + $0x78] sm:$0xff]
                %679 = vst [vmem:[%s667 + $0x28] sm:$0xff] %v678
                %v680 = vld [vmem:[%s666 + $0x90] sm:$0xff]
                %681 = vst [vmem:[%s667 + $0x30] sm:$0xff] %v680
              $region82: #{generator_forward.11} parent=76 // loop_footer
                %s665 = sadd.s32 1, %s661
              $region83: #{generator_forward.11} parent=76 // loop_footer_branch
                %660 = sbr.rel target = $region79
              $region84: #{generator_forward.11} parent=76 // loop_exit
                _
            $region77: #{generator_forward.11} parent=68 // pred_fallthru
              _
          $region69: #{generator_forward.11} parent=64 // pred_fallthru
            _
          %708 = vnop
        $region65: #{generator_forward.11} parent=19 // pred_fallthru
          _
      $region20: #{generator_forward.11} parent=5 // pred_fallthru
        _
      %p709 = scmp.le.s32.totalorder 1, %s12
      %p710 = scmp.lt.s32.totalorder %s12, 4
      %p711 = pnand %p709, %p710
      %p712 = pneg %p711
      // Predicated region
      $region100: #{generator_forward.11} parent=5 // pred_check
        _
      $region101: #{generator_forward.11} parent=5 // pred_check_branch
        %714 = sbr.rel (%p711) target = $region103
      $region102: #{generator_forward.11} parent=5 // pred_region
        %s715 = ssub.s32 %s12, 1
        %s716 = sand.u32 %s63, 1
        %s717 = sand.u32 %s63, 1
        %s718 = smul.addr %s717, 384
        %s719 = scalar_lea.vmem [#allocation2], %s718
        // Predicated region
        $region104: #{generator_forward.11} parent=102 // pred_check
          %p720 = pneg %p76
        $region105: #{generator_forward.11} parent=102 // pred_check_branch
          %722 = sbr.rel (%p720) target = $region107
        $region106: #{generator_forward.11} parent=102 // pred_region
          _
        $region107: #{generator_forward.11} parent=102 // pred_fallthru
          _
        %s723 = sand.u32 %s91, 1
        %s724 = sand.u32 %s91, 1
        %s725 = smul.addr %s724, 56
        %s726 = scalar_lea.vmem [#allocation3], %s725
        // Predicated region
        $region108: #{generator_forward.11} parent=102 // pred_check
          %p727 = pneg %p104
        $region109: #{generator_forward.11} parent=102 // pred_check_branch
          %729 = sbr.rel (%p727) target = $region111
        $region110: #{generator_forward.11} parent=102 // pred_region
          _
        $region111: #{generator_forward.11} parent=102 // pred_fallthru
          _
        %s730 = smul.u32 7, %s22
        %p731 = scmp.lt.s32.totalorder %s730, 6
        %s732 = scalar_select %p731, %s730, 6
        %s733 = smul.addr %s732, 6
        %s734 = smul.addr %s733, 4
        %s735 = scalar_lea.vmem %s0, %s734
        %p736 = pneg %p50
        %p737 = pneg %p47
        %s738 = sand.u32 %s63, 1
        %s739 = sand.u32 %s63, 1
        %s740 = smul.addr %s739, 384
        %s741 = scalar_lea.vmem [#allocation2], %s740
        %p742 = pneg %p76
        %p743 = pneg %p73
        %s744 = sand.u32 %s91, 1
        %s745 = sand.u32 %s91, 1
        %s746 = smul.addr %s745, 56
        %s747 = scalar_lea.vmem [#allocation3], %s746
        %p748 = pneg %p104
        %p749 = pneg %p101
        %p750 = pneg %p132
        %p751 = pneg %p129
        %s752 = sand.u32 %s119, 1
        %s753 = sand.u32 %s119, 1
        %s754 = smul.addr %s753, 56
        %s755 = scalar_lea.vmem [#allocation4], %s754
        %p756 = pneg %p158
        %p757 = pneg %p155
        %p758 = scmp.lt.s32.totalorder %s21, 2
        %s759 = scalar_select %p758, %s21, 2
        %s760 = scalar_lea.vmem %s4, %s759
        %p761 = pneg %p184
        %p762 = pneg %p181
        %p763 = scmp.lt.s32.totalorder %s21, 2
        %s764 = scalar_select %p763, %s21, 2
        %s765 = scalar_lea.vmem %s5, %s764
        %s766 = smul.u32 7, %s22
        %p767 = scmp.lt.s32.totalorder %s766, 6
        %s768 = scalar_select %p767, %s766, 6
        %s769 = smul.addr %s768, 6
        %s770 = smul.addr %s769, 4
        %s771 = scalar_lea.vmem %s0, %s770
        %s772 = smul.u32 7, %s22
        %s773 = smul.u32 7, %s22
        %s774 = smul.u32 7, %s22
        %p775 = scmp.lt.s32.totalorder %s21, 2
        %s776 = scalar_select %p775, %s21, 2
        %s777 = scalar_lea.vmem %s4, %s776
        %p778 = scmp.lt.s32.totalorder %s21, 2
        %s779 = scalar_select %p778, %s21, 2
        %s780 = scalar_lea.vmem %s5, %s779
        %p782 = scmp.eq.s32.totalorder %s22, 0
        // Predicated region
        $region112: #{generator_forward.11} parent=102 // pred_check
          %p783 = pneg %p782
        $region113: #{generator_forward.11} parent=102 // pred_check_branch
          %785 = sbr.rel (%p783) target = $region115
        $region114: #{generator_forward.11} parent=102 // pred_region
          %786 = vst [vmem:[%s777] sm:$0x1] 0.0
          %787 = vst [vmem:[%s780] sm:$0x1] 0.0
        $region115: #{generator_forward.11} parent=102 // pred_fallthru
          _
        %v788 = vld [vmem:[%s771] sm:$0xff]
        %v789 = vld [vmem:[%s771 + $0x8] sm:$0xff]
        %v790 = vld [vmem:[%s771 + $0x10] sm:$0xff]
        %v791 = vld [vmem:[%s771 + $0x18] sm:$0xff]
        %v792 = vld [vmem:[%s771 + $0x20] sm:$0xff]
        %v793 = vld [vmem:[%s771 + $0x28] sm:$0xff]
        %v794 = vld [vmem:[%s771 + $0x30] sm:$0xff]
        %v795 = vld [vmem:[%s771 + $0x38] sm:$0xff]
        %v796 = vld [vmem:[%s771 + $0x40] sm:$0xff]
        %v797 = vld [vmem:[%s771 + $0x48] sm:$0xff]
        %v798 = vld [vmem:[%s771 + $0x50] sm:$0xff]
        %v799 = vld [vmem:[%s771 + $0x58] sm:$0xff]
        %v800 = vld [vmem:[%s771 + $0x60] sm:$0xff]
        %v801 = vld [vmem:[%s771 + $0x68] sm:$0xff]
        %v802 = vld [vmem:[%s771 + $0x70] sm:$0xff]
        %v803 = vld [vmem:[%s771 + $0x78] sm:$0xff]
        %v804 = vld [vmem:[%s771 + $0x80] sm:$0xff]
        %v805 = vld [vmem:[%s771 + $0x88] sm:$0xff]
        %v806 = vld [vmem:[%s771 + $0x90] sm:$0xff]
        %v807 = vld [vmem:[%s771 + $0x98] sm:$0xff]
        %v808 = vld [vmem:[%s771 + $0xa0] sm:$0xff]
        %v809 = vld [vmem:[%s719] sm:$0xf]
        %v810 = vld [vmem:[%s719 + $0x4] sm:$0xf]
        %v811 = vld [vmem:[%s719 + $0x8] sm:$0xf]
        %v812 = vld [vmem:[%s719 + $0xc] sm:$0xf]
        %v813 = vld [vmem:[%s719 + $0x10] sm:$0xf]
        %v814 = vld [vmem:[%s719 + $0x14] sm:$0xf]
        %v815 = vld [vmem:[%s719 + $0x18] sm:$0xf]
        %v816 = vld [vmem:[%s719 + $0x1c] sm:$0xf]
        %v817 = vld [vmem:[%s719 + $0x20] sm:$0xf]
        %v818 = vld [vmem:[%s719 + $0x24] sm:$0xf]
        %v819 = vld [vmem:[%s719 + $0x28] sm:$0xf]
        %v820 = vld [vmem:[%s719 + $0x2c] sm:$0xf]
        %v821 = vld [vmem:[%s719 + $0x30] sm:$0xf]
        %v822 = vld [vmem:[%s719 + $0x34] sm:$0xf]
        %v823 = vld [vmem:[%s719 + $0x38] sm:$0xf]
        %v824 = vld [vmem:[%s719 + $0x3c] sm:$0xf]
        %v825 = vld [vmem:[%s719 + $0x40] sm:$0xf]
        %v826 = vld [vmem:[%s719 + $0x44] sm:$0xf]
        %v827 = vld [vmem:[%s719 + $0x48] sm:$0xf]
        %v828 = vld [vmem:[%s719 + $0x4c] sm:$0xf]
        %v829 = vld [vmem:[%s719 + $0x50] sm:$0xf]
        %v830 = vld [vmem:[%s719 + $0x54] sm:$0xf]
        %v831 = vld [vmem:[%s719 + $0x58] sm:$0xf]
        %v832 = vld [vmem:[%s719 + $0x5c] sm:$0xf]
        %v833 = vld [vmem:[%s719 + $0x60] sm:$0xf]
        %v834 = vld [vmem:[%s719 + $0x64] sm:$0xf]
        %v835 = vld [vmem:[%s719 + $0x68] sm:$0xf]
        %v836 = vld [vmem:[%s719 + $0x6c] sm:$0xf]
        %v837 = vld [vmem:[%s719 + $0x70] sm:$0xf]
        %v838 = vld [vmem:[%s719 + $0x74] sm:$0xf]
        %v839 = vld [vmem:[%s719 + $0x78] sm:$0xf]
        %v840 = vld [vmem:[%s719 + $0x7c] sm:$0xf]
        %v841 = vld [vmem:[%s719 + $0x80] sm:$0xf]
        %v842 = vld [vmem:[%s719 + $0x84] sm:$0xf]
        %v843 = vld [vmem:[%s719 + $0x88] sm:$0xf]
        %v844 = vld [vmem:[%s719 + $0x8c] sm:$0xf]
        %v845 = vld [vmem:[%s719 + $0x90] sm:$0xf]
        %v846 = vld [vmem:[%s719 + $0x94] sm:$0xf]
        %v847 = vld [vmem:[%s719 + $0x98] sm:$0xf]
        %v848 = vld [vmem:[%s719 + $0x9c] sm:$0xf]
        %v849 = vld [vmem:[%s719 + $0xa0] sm:$0xf]
        %v850 = vld [vmem:[%s719 + $0xa4] sm:$0xf]
        %v851 = vld [vmem:[%s719 + $0xa8] sm:$0xf]
        %v852 = vld [vmem:[%s719 + $0xac] sm:$0xf]
        %v853 = vld [vmem:[%s719 + $0xb0] sm:$0xf]
        %v854 = vld [vmem:[%s719 + $0xb4] sm:$0xf]
        %v855 = vld [vmem:[%s719 + $0xb8] sm:$0xf]
        %v856 = vld [vmem:[%s719 + $0xbc] sm:$0xf]
        %v857 = vld [vmem:[%s719 + $0xc0] sm:$0xf]
        %v858 = vld [vmem:[%s719 + $0xc4] sm:$0xf]
        %v859 = vld [vmem:[%s719 + $0xc8] sm:$0xf]
        %v860 = vld [vmem:[%s719 + $0xcc] sm:$0xf]
        %v861 = vld [vmem:[%s719 + $0xd0] sm:$0xf]
        %v862 = vld [vmem:[%s719 + $0xd4] sm:$0xf]
        %v863 = vld [vmem:[%s719 + $0xd8] sm:$0xf]
        %v864 = vld [vmem:[%s719 + $0xdc] sm:$0xf]
        %v865 = vld [vmem:[%s719 + $0xe0] sm:$0xf]
        %v866 = vld [vmem:[%s719 + $0xe4] sm:$0xf]
        %v867 = vld [vmem:[%s719 + $0xe8] sm:$0xf]
        %v868 = vld [vmem:[%s719 + $0xec] sm:$0xf]
        %v869 = vld [vmem:[%s719 + $0xf0] sm:$0xf]
        %v870 = vld [vmem:[%s719 + $0xf4] sm:$0xf]
        %v871 = vld [vmem:[%s719 + $0xf8] sm:$0xf]
        %v872 = vld [vmem:[%s719 + $0xfc] sm:$0xf]
        %v873 = vld [vmem:[%s719 + $0x100] sm:$0xf]
        %v874 = vld [vmem:[%s719 + $0x104] sm:$0xf]
        %v875 = vld [vmem:[%s719 + $0x108] sm:$0xf]
        %v876 = vld [vmem:[%s719 + $0x10c] sm:$0xf]
        %v877 = vld [vmem:[%s719 + $0x110] sm:$0xf]
        %v878 = vld [vmem:[%s719 + $0x114] sm:$0xf]
        %v879 = vld [vmem:[%s719 + $0x118] sm:$0xf]
        %v880 = vld [vmem:[%s719 + $0x11c] sm:$0xf]
        %v881 = vld [vmem:[%s719 + $0x120] sm:$0xf]
        %v882 = vld [vmem:[%s719 + $0x124] sm:$0xf]
        %v883 = vld [vmem:[%s719 + $0x128] sm:$0xf]
        %v884 = vld [vmem:[%s719 + $0x12c] sm:$0xf]
        %v885 = vld [vmem:[%s719 + $0x130] sm:$0xf]
        %v886 = vld [vmem:[%s719 + $0x134] sm:$0xf]
        %v887 = vld [vmem:[%s719 + $0x138] sm:$0xf]
        %v888 = vld [vmem:[%s719 + $0x13c] sm:$0xf]
        %v889 = vld [vmem:[%s719 + $0x140] sm:$0xf]
        %v890 = vld [vmem:[%s719 + $0x144] sm:$0xf]
        %v891 = vld [vmem:[%s719 + $0x148] sm:$0xf]
        %v892 = vld [vmem:[%s719 + $0x14c] sm:$0xf]
        %v893 = vld [vmem:[%s719 + $0x150] sm:$0xf]
        %v894 = vld [vmem:[%s719 + $0x154] sm:$0xf]
        %v895 = vld [vmem:[%s719 + $0x158] sm:$0xf]
        %v896 = vld [vmem:[%s719 + $0x15c] sm:$0xf]
        %v897 = vld [vmem:[%s719 + $0x160] sm:$0xf]
        %v898 = vld [vmem:[%s719 + $0x164] sm:$0xf]
        %v899 = vld [vmem:[%s719 + $0x168] sm:$0xf]
        %v900 = vld [vmem:[%s719 + $0x16c] sm:$0xf]
        %v901 = vld [vmem:[%s719 + $0x170] sm:$0xf]
        %v902 = vld [vmem:[%s719 + $0x174] sm:$0xf]
        %v903 = vld [vmem:[%s719 + $0x178] sm:$0xf]
        %v904 = vld [vmem:[%s719 + $0x17c] sm:$0xf]
        %v926 = vunpack.c.l.b16 %v788
        %v927 = vunpack.c.h.b16 %v788
        %v928 = vunpack.c.l.b16 %v789
        %v929 = vunpack.c.h.b16 %v789
        %v930 = vunpack.c.l.b16 %v790
        %v931 = vunpack.c.h.b16 %v790
        %v932 = vunpack.c.l.b16 %v791
        %v933 = vunpack.c.h.b16 %v791
        %v934 = vunpack.c.l.b16 %v792
        %v935 = vunpack.c.h.b16 %v792
        %v936 = vunpack.c.l.b16 %v793
        %v937 = vunpack.c.h.b16 %v793
        %v938 = vunpack.c.l.b16 %v794
        %v939 = vunpack.c.h.b16 %v794
        %v940 = vunpack.c.l.b16 %v795
        %v941 = vunpack.c.h.b16 %v795
        %v942 = vunpack.c.l.b16 %v796
        %v943 = vunpack.c.h.b16 %v796
        %v944 = vunpack.c.l.b16 %v797
        %v945 = vunpack.c.h.b16 %v797
        %v946 = vunpack.c.l.b16 %v798
        %v947 = vunpack.c.h.b16 %v798
        %v948 = vunpack.c.l.b16 %v799
        %v949 = vunpack.c.h.b16 %v799
        %v950 = vunpack.c.l.b16 %v800
        %v951 = vunpack.c.h.b16 %v800
        %v952 = vunpack.c.l.b16 %v801
        %v953 = vunpack.c.h.b16 %v801
        %v954 = vunpack.c.l.b16 %v802
        %v955 = vunpack.c.h.b16 %v802
        %v956 = vunpack.c.l.b16 %v803
        %v957 = vunpack.c.h.b16 %v803
        %v958 = vunpack.c.l.b16 %v804
        %v959 = vunpack.c.h.b16 %v804
        %v960 = vunpack.c.l.b16 %v805
        %v961 = vunpack.c.h.b16 %v805
        %v962 = vunpack.c.l.b16 %v806
        %v963 = vunpack.c.h.b16 %v806
        %v964 = vunpack.c.l.b16 %v807
        %v965 = vunpack.c.h.b16 %v807
        %v966 = vunpack.c.l.b16 %v808
        %v967 = vunpack.c.h.b16 %v808
        %v968 = vpack.c.b16 %v932, %v926
        %v969 = vpack.c.b16 %v933, %v927
        %v970 = vpack.c.b16 %v934, %v928
        %v971 = vpack.c.b16 %v935, %v929
        %v972 = vpack.c.b16 %v936, %v930
        %v973 = vpack.c.b16 %v937, %v931
        %v974 = vpack.c.b16 %v944, %v938
        %v975 = vpack.c.b16 %v945, %v939
        %v976 = vpack.c.b16 %v946, %v940
        %v977 = vpack.c.b16 %v947, %v941
        %v978 = vpack.c.b16 %v948, %v942
        %v979 = vpack.c.b16 %v949, %v943
        %v980 = vpack.c.b16 %v956, %v950
        %v981 = vpack.c.b16 %v957, %v951
        %v982 = vpack.c.b16 %v958, %v952
        %v983 = vpack.c.b16 %v959, %v953
        %v984 = vpack.c.b16 %v960, %v954
        %v985 = vpack.c.b16 %v961, %v955
        %v986 = vpack.c.b16 %v962, %v962
        %v987 = vpack.c.b16 %v963, %v963
        %v988 = vpack.c.b16 %v964, %v964
        %v989 = vpack.c.b16 %v965, %v965
        %v990 = vpack.c.b16 %v966, %v966
        %v991 = vpack.c.b16 %v967, %v967
        %v1112 = vunpack.c.l.b16 %v809
        %v1113 = vunpack.c.l.b16 %v810
        %v1114 = vunpack.c.l.b16 %v811
        %v1115 = vunpack.c.l.b16 %v812
        %v1116 = vunpack.c.l.b16 %v813
        %v1117 = vunpack.c.l.b16 %v814
        %v1118 = vunpack.c.l.b16 %v815
        %v1119 = vunpack.c.l.b16 %v816
        %v1120 = vunpack.c.l.b16 %v817
        %v1121 = vunpack.c.l.b16 %v818
        %v1122 = vunpack.c.l.b16 %v819
        %v1123 = vunpack.c.l.b16 %v820
        %v1124 = vunpack.c.l.b16 %v821
        %v1125 = vunpack.c.l.b16 %v822
        %v1126 = vunpack.c.l.b16 %v823
        %v1127 = vunpack.c.l.b16 %v824
        %v1128 = vunpack.c.l.b16 %v825
        %v1129 = vunpack.c.l.b16 %v826
        %v1130 = vunpack.c.l.b16 %v827
        %v1131 = vunpack.c.l.b16 %v828
        %v1132 = vunpack.c.l.b16 %v829
        %v1133 = vunpack.c.l.b16 %v830
        %v1134 = vunpack.c.l.b16 %v831
        %v1135 = vunpack.c.l.b16 %v832
        %v1136 = vunpack.c.l.b16 %v833
        %v1137 = vunpack.c.l.b16 %v834
        %v1138 = vunpack.c.l.b16 %v835
        %v1139 = vunpack.c.l.b16 %v836
        %v1140 = vunpack.c.l.b16 %v837
        %v1141 = vunpack.c.l.b16 %v838
        %v1142 = vunpack.c.l.b16 %v839
        %v1143 = vunpack.c.l.b16 %v840
        %v1144 = vunpack.c.l.b16 %v841
        %v1145 = vunpack.c.l.b16 %v842
        %v1146 = vunpack.c.l.b16 %v843
        %v1147 = vunpack.c.l.b16 %v844
        %v1148 = vunpack.c.l.b16 %v845
        %v1149 = vunpack.c.l.b16 %v846
        %v1150 = vunpack.c.l.b16 %v847
        %v1151 = vunpack.c.l.b16 %v848
        %v1152 = vunpack.c.l.b16 %v849
        %v1153 = vunpack.c.l.b16 %v850
        %v1154 = vunpack.c.l.b16 %v851
        %v1155 = vunpack.c.l.b16 %v852
        %v1156 = vunpack.c.l.b16 %v853
        %v1157 = vunpack.c.l.b16 %v854
        %v1158 = vunpack.c.l.b16 %v855
        %v1159 = vunpack.c.l.b16 %v856
        %v1160 = vunpack.c.l.b16 %v857
        %v1161 = vunpack.c.l.b16 %v858
        %v1162 = vunpack.c.l.b16 %v859
        %v1163 = vunpack.c.l.b16 %v860
        %v1164 = vunpack.c.l.b16 %v861
        %v1165 = vunpack.c.l.b16 %v862
        %v1166 = vunpack.c.l.b16 %v863
        %v1167 = vunpack.c.l.b16 %v864
        %v1168 = vunpack.c.l.b16 %v865
        %v1169 = vunpack.c.l.b16 %v866
        %v1170 = vunpack.c.l.b16 %v867
        %v1171 = vunpack.c.l.b16 %v868
        %v1172 = vunpack.c.l.b16 %v869
        %v1173 = vunpack.c.l.b16 %v870
        %v1174 = vunpack.c.l.b16 %v871
        %v1175 = vunpack.c.l.b16 %v872
        %v1176 = vunpack.c.l.b16 %v873
        %v1177 = vunpack.c.l.b16 %v874
        %v1178 = vunpack.c.l.b16 %v875
        %v1179 = vunpack.c.l.b16 %v876
        %v1180 = vunpack.c.l.b16 %v877
        %v1181 = vunpack.c.l.b16 %v878
        %v1182 = vunpack.c.l.b16 %v879
        %v1183 = vunpack.c.l.b16 %v880
        %v1184 = vunpack.c.l.b16 %v881
        %v1185 = vunpack.c.l.b16 %v882
        %v1186 = vunpack.c.l.b16 %v883
        %v1187 = vunpack.c.l.b16 %v884
        %v1188 = vunpack.c.l.b16 %v885
        %v1189 = vunpack.c.l.b16 %v886
        %v1190 = vunpack.c.l.b16 %v887
        %v1191 = vunpack.c.l.b16 %v888
        %v1192 = vunpack.c.l.b16 %v889
        %v1193 = vunpack.c.l.b16 %v890
        %v1194 = vunpack.c.l.b16 %v891
        %v1195 = vunpack.c.l.b16 %v892
        %v1196 = vunpack.c.l.b16 %v893
        %v1197 = vunpack.c.l.b16 %v894
        %v1198 = vunpack.c.l.b16 %v895
        %v1199 = vunpack.c.l.b16 %v896
        %v1200 = vunpack.c.l.b16 %v897
        %v1201 = vunpack.c.l.b16 %v898
        %v1202 = vunpack.c.l.b16 %v899
        %v1203 = vunpack.c.l.b16 %v900
        %v1204 = vunpack.c.l.b16 %v901
        %v1205 = vunpack.c.l.b16 %v902
        %v1206 = vunpack.c.l.b16 %v903
        %v1207 = vunpack.c.l.b16 %v904
        %v1208 = vpack.c.b16 %v1113, %v1112
        %v1209 = vpack.c.b16 %v1115, %v1114
        %v1210 = vpack.c.b16 %v1117, %v1116
        %v1211 = vpack.c.b16 %v1119, %v1118
        %v1212 = vpack.c.b16 %v1121, %v1120
        %v1213 = vpack.c.b16 %v1123, %v1122
        %v1214 = vpack.c.b16 %v1125, %v1124
        %v1215 = vpack.c.b16 %v1127, %v1126
        %v1216 = vpack.c.b16 %v1129, %v1128
        %v1217 = vpack.c.b16 %v1131, %v1130
        %v1218 = vpack.c.b16 %v1133, %v1132
        %v1219 = vpack.c.b16 %v1135, %v1134
        %v1220 = vpack.c.b16 %v1137, %v1136
        %v1221 = vpack.c.b16 %v1139, %v1138
        %v1222 = vpack.c.b16 %v1141, %v1140
        %v1223 = vpack.c.b16 %v1143, %v1142
        %v1224 = vpack.c.b16 %v1145, %v1144
        %v1225 = vpack.c.b16 %v1147, %v1146
        %v1226 = vpack.c.b16 %v1149, %v1148
        %v1227 = vpack.c.b16 %v1151, %v1150
        %v1228 = vpack.c.b16 %v1153, %v1152
        %v1229 = vpack.c.b16 %v1155, %v1154
        %v1230 = vpack.c.b16 %v1157, %v1156
        %v1231 = vpack.c.b16 %v1159, %v1158
        %v1232 = vpack.c.b16 %v1161, %v1160
        %v1233 = vpack.c.b16 %v1163, %v1162
        %v1234 = vpack.c.b16 %v1165, %v1164
        %v1235 = vpack.c.b16 %v1167, %v1166
        %v1236 = vpack.c.b16 %v1169, %v1168
        %v1237 = vpack.c.b16 %v1171, %v1170
        %v1238 = vpack.c.b16 %v1173, %v1172
        %v1239 = vpack.c.b16 %v1175, %v1174
        %v1240 = vpack.c.b16 %v1177, %v1176
        %v1241 = vpack.c.b16 %v1179, %v1178
        %v1242 = vpack.c.b16 %v1181, %v1180
        %v1243 = vpack.c.b16 %v1183, %v1182
        %v1244 = vpack.c.b16 %v1185, %v1184
        %v1245 = vpack.c.b16 %v1187, %v1186
        %v1246 = vpack.c.b16 %v1189, %v1188
        %v1247 = vpack.c.b16 %v1191, %v1190
        %v1248 = vpack.c.b16 %v1193, %v1192
        %v1249 = vpack.c.b16 %v1195, %v1194
        %v1250 = vpack.c.b16 %v1197, %v1196
        %v1251 = vpack.c.b16 %v1199, %v1198
        %v1252 = vpack.c.b16 %v1201, %v1200
        %v1253 = vpack.c.b16 %v1203, %v1202
        %v1254 = vpack.c.b16 %v1205, %v1204
        %v1255 = vpack.c.b16 %v1207, %v1206
        %1304 = vmatprep.subr.bf16.mxu0 0
        %1305 = vmatpush1.bf16.msra.mxu0 %v1208
        %1306 = vmatprep.subr.bf16.mxu0 0
        %1307 = vmatpush1.bf16.msra.mxu0 %v1209
        %1308 = vmatprep.subr.bf16.mxu0 0
        %1309 = vmatpush1.bf16.msra.mxu0 %v1210
        %1310 = vmatprep.subr.bf16.mxu0 0
        %1311 = vmatpush1.bf16.msra.mxu0 %v1211
        %1312 = vmatprep.subr.bf16.mxu0 0
        %1313 = vmatpush1.bf16.msra.mxu0 %v1212
        %1314 = vmatprep.subr.bf16.mxu0 0
        %1315 = vmatpush1.bf16.msra.mxu0 %v1213
        %1316 = vmatprep.subr.bf16.mxu0 0
        %1317 = vmatpush1.bf16.msra.mxu0 %v1214
        %1318 = vmatprep.subr.bf16.mxu0 0
        %1319 = vmatpush1.bf16.msra.mxu0 %v1215
        %1320 = vmatprep.subr.bf16.mxu0 0
        %1321 = vmatpush1.bf16.msra.mxu0 %v1216
        %1322 = vmatprep.subr.bf16.mxu0 0
        %1323 = vmatpush1.bf16.msra.mxu0 %v1217
        %1324 = vmatprep.subr.bf16.mxu0 0
        %1325 = vmatpush1.bf16.msra.mxu0 %v1218
        %1326 = vmatprep.subr.bf16.mxu0 0
        %1327 = vmatpush1.bf16.msra.mxu0 %v1219
        %1328 = vmatprep.subr.bf16.mxu0 0
        %1329 = vmatpush1.bf16.msra.mxu0 %v1220
        %1330 = vmatprep.subr.bf16.mxu0 0
        %1331 = vmatpush1.bf16.msra.mxu0 %v1221
        %1332 = vmatprep.subr.bf16.mxu0 0
        %1333 = vmatpush1.bf16.msra.mxu0 %v1222
        %1334 = vmatprep.subr.bf16.mxu0 0
        %1335 = vmatpush1.bf16.msra.mxu0 %v1223
        %1336 = vmatprep.mubr.bf16.mxu0 %v969
        %1337 = vmatmul.mubr.bf16.gmra.mrb[0].mxu0 %v968
        %v1338 = vpop.f32.mrb[0].mxu0
        %v1339 = vadd.f32 0.0, %v1338
        %v1340 = vpop.f32.mrb[0].mxu0
        %v1341 = vpop.f32.mrb[0].mxu0
        %v1342 = vadd.f32 0.0, %v1341
        %v1343 = vpop.f32.mrb[0].mxu0
        %1344 = vmatprep.mubr.bf16.mxu0 %v975
        %1345 = vmatmul.mubr.bf16.gmra.mrb[0].mxu0 %v974
        %v1346 = vpop.f32.mrb[0].mxu0
        %v1347 = vadd.f32 0.0, %v1346
        %v1348 = vpop.f32.mrb[0].mxu0
        %v1349 = vpop.f32.mrb[0].mxu0
        %v1350 = vadd.f32 0.0, %v1349
        %v1351 = vpop.f32.mrb[0].mxu0
        %1352 = vmatprep.mubr.bf16.mxu0 %v981
        %1353 = vmatmul.mubr.bf16.gmra.mrb[0].mxu0 %v980
        %v1354 = vpop.f32.mrb[0].mxu0
        %v1355 = vadd.f32 0.0, %v1354
        %v1356 = vpop.f32.mrb[0].mxu0
        %v1357 = vpop.f32.mrb[0].mxu0
        %v1358 = vadd.f32 0.0, %v1357
        %v1359 = vpop.f32.mrb[0].mxu0
        %1360 = vmatprep.mubr.bf16.mxu0 %v987
        %1361 = vmatmul.mubr.bf16.gmra.mrb[0].mxu0 %v986
        %v1362 = vpop.f32.mrb[0].mxu0
        %v1363 = vadd.f32 0.0, %v1362
        %v1364 = vpop.f32.mrb[0].mxu0
        %v1365 = vpop.f32.mrb[0].mxu0
        %v1366 = vpop.f32.mrb[0].mxu0
        %1367 = vdwg.mxu0
        %1368 = vmatprep.subr.bf16.mxu0 0
        %1369 = vmatpush1.bf16.msra.mxu0 %v1224
        %1370 = vmatprep.subr.bf16.mxu0 0
        %1371 = vmatpush1.bf16.msra.mxu0 %v1225
        %1372 = vmatprep.subr.bf16.mxu0 0
        %1373 = vmatpush1.bf16.msra.mxu0 %v1226
        %1374 = vmatprep.subr.bf16.mxu0 0
        %1375 = vmatpush1.bf16.msra.mxu0 %v1227
        %1376 = vmatprep.subr.bf16.mxu0 0
        %1377 = vmatpush1.bf16.msra.mxu0 %v1228
        %1378 = vmatprep.subr.bf16.mxu0 0
        %1379 = vmatpush1.bf16.msra.mxu0 %v1229
        %1380 = vmatprep.subr.bf16.mxu0 0
        %1381 = vmatpush1.bf16.msra.mxu0 %v1230
        %1382 = vmatprep.subr.bf16.mxu0 0
        %1383 = vmatpush1.bf16.msra.mxu0 %v1231
        %1384 = vmatprep.subr.bf16.mxu0 0
        %1385 = vmatpush1.bf16.msra.mxu0 %v1232
        %1386 = vmatprep.subr.bf16.mxu0 0
        %1387 = vmatpush1.bf16.msra.mxu0 %v1233
        %1388 = vmatprep.subr.bf16.mxu0 0
        %1389 = vmatpush1.bf16.msra.mxu0 %v1234
        %1390 = vmatprep.subr.bf16.mxu0 0
        %1391 = vmatpush1.bf16.msra.mxu0 %v1235
        %1392 = vmatprep.subr.bf16.mxu0 0
        %1393 = vmatpush1.bf16.msra.mxu0 %v1236
        %1394 = vmatprep.subr.bf16.mxu0 0
        %1395 = vmatpush1.bf16.msra.mxu0 %v1237
        %1396 = vmatprep.subr.bf16.mxu0 0
        %1397 = vmatpush1.bf16.msra.mxu0 %v1238
        %1398 = vmatprep.subr.bf16.mxu0 0
        %1399 = vmatpush1.bf16.msra.mxu0 %v1239
        %1400 = vmatprep.mubr.bf16.mxu0 %v971
        %1401 = vmatmul.mubr.bf16.gmra.mrb[0].mxu0 %v970
        %v1402 = vpop.f32.mrb[0].mxu0
        %v1403 = vadd.f32 %v1339, %v1402
        %v1404 = vpop.f32.mrb[0].mxu0
        %v1405 = vpop.f32.mrb[0].mxu0
        %v1406 = vadd.f32 %v1342, %v1405
        %v1407 = vpop.f32.mrb[0].mxu0
        %1408 = vmatprep.mubr.bf16.mxu0 %v977
        %1409 = vmatmul.mubr.bf16.gmra.mrb[0].mxu0 %v976
        %v1410 = vpop.f32.mrb[0].mxu0
        %v1411 = vadd.f32 %v1347, %v1410
        %v1412 = vpop.f32.mrb[0].mxu0
        %v1413 = vpop.f32.mrb[0].mxu0
        %v1414 = vadd.f32 %v1350, %v1413
        %v1415 = vpop.f32.mrb[0].mxu0
        %1416 = vmatprep.mubr.bf16.mxu0 %v983
        %1417 = vmatmul.mubr.bf16.gmra.mrb[0].mxu0 %v982
        %v1418 = vpop.f32.mrb[0].mxu0
        %v1419 = vadd.f32 %v1355, %v1418
        %v1420 = vpop.f32.mrb[0].mxu0
        %v1421 = vpop.f32.mrb[0].mxu0
        %v1422 = vadd.f32 %v1358, %v1421
        %v1423 = vpop.f32.mrb[0].mxu0
        %1424 = vmatprep.mubr.bf16.mxu0 %v989
        %1425 = vmatmul.mubr.bf16.gmra.mrb[0].mxu0 %v988
        %v1426 = vpop.f32.mrb[0].mxu0
        %v1427 = vadd.f32 %v1363, %v1426
        %v1428 = vpop.f32.mrb[0].mxu0
        %v1429 = vpop.f32.mrb[0].mxu0
        %v1430 = vpop.f32.mrb[0].mxu0
        %1431 = vdwg.mxu0
        %1432 = vmatprep.subr.bf16.mxu0 0
        %1433 = vmatpush1.bf16.msra.mxu0 %v1240
        %1434 = vmatprep.subr.bf16.mxu0 0
        %1435 = vmatpush1.bf16.msra.mxu0 %v1241
        %1436 = vmatprep.subr.bf16.mxu0 0
        %1437 = vmatpush1.bf16.msra.mxu0 %v1242
        %1438 = vmatprep.subr.bf16.mxu0 0
        %1439 = vmatpush1.bf16.msra.mxu0 %v1243
        %1440 = vmatprep.subr.bf16.mxu0 0
        %1441 = vmatpush1.bf16.msra.mxu0 %v1244
        %1442 = vmatprep.subr.bf16.mxu0 0
        %1443 = vmatpush1.bf16.msra.mxu0 %v1245
        %1444 = vmatprep.subr.bf16.mxu0 0
        %1445 = vmatpush1.bf16.msra.mxu0 %v1246
        %1446 = vmatprep.subr.bf16.mxu0 0
        %1447 = vmatpush1.bf16.msra.mxu0 %v1247
        %1448 = vmatprep.subr.bf16.mxu0 0
        %1449 = vmatpush1.bf16.msra.mxu0 %v1248
        %1450 = vmatprep.subr.bf16.mxu0 0
        %1451 = vmatpush1.bf16.msra.mxu0 %v1249
        %1452 = vmatprep.subr.bf16.mxu0 0
        %1453 = vmatpush1.bf16.msra.mxu0 %v1250
        %1454 = vmatprep.subr.bf16.mxu0 0
        %1455 = vmatpush1.bf16.msra.mxu0 %v1251
        %1456 = vmatprep.subr.bf16.mxu0 0
        %1457 = vmatpush1.bf16.msra.mxu0 %v1252
        %1458 = vmatprep.subr.bf16.mxu0 0
        %1459 = vmatpush1.bf16.msra.mxu0 %v1253
        %1460 = vmatprep.subr.bf16.mxu0 0
        %1461 = vmatpush1.bf16.msra.mxu0 %v1254
        %1462 = vmatprep.subr.bf16.mxu0 0
        %1463 = vmatpush1.bf16.msra.mxu0 %v1255
        %1464 = vmatprep.mubr.bf16.mxu0 %v973
        %1465 = vmatmul.mubr.bf16.gmra.mrb[0].mxu0 %v972
        %v1466 = vpop.f32.mrb[0].mxu0
        %v1467 = vadd.f32 %v1403, %v1466
        %v1468 = vpop.f32.mrb[0].mxu0
        %v1469 = vpop.f32.mrb[0].mxu0
        %v1470 = vadd.f32 %v1406, %v1469
        %v1471 = vpop.f32.mrb[0].mxu0
        %1472 = vmatprep.mubr.bf16.mxu0 %v979
        %1473 = vmatmul.mubr.bf16.gmra.mrb[0].mxu0 %v978
        %v1474 = vpop.f32.mrb[0].mxu0
        %v1475 = vadd.f32 %v1411, %v1474
        %v1476 = vpop.f32.mrb[0].mxu0
        %v1477 = vpop.f32.mrb[0].mxu0
        %v1478 = vadd.f32 %v1414, %v1477
        %v1479 = vpop.f32.mrb[0].mxu0
        %1480 = vmatprep.mubr.bf16.mxu0 %v985
        %1481 = vmatmul.mubr.bf16.gmra.mrb[0].mxu0 %v984
        %v1482 = vpop.f32.mrb[0].mxu0
        %v1483 = vadd.f32 %v1419, %v1482
        %v1484 = vpop.f32.mrb[0].mxu0
        %v1485 = vpop.f32.mrb[0].mxu0
        %v1486 = vadd.f32 %v1422, %v1485
        %v1487 = vpop.f32.mrb[0].mxu0
        %1488 = vmatprep.mubr.bf16.mxu0 %v991
        %1489 = vmatmul.mubr.bf16.gmra.mrb[0].mxu0 %v990
        %v1490 = vpop.f32.mrb[0].mxu0
        %v1491 = vadd.f32 %v1427, %v1490
        %v1492 = vpop.f32.mrb[0].mxu0
        %v1493 = vpop.f32.mrb[0].mxu0
        %v1494 = vpop.f32.mrb[0].mxu0
        %1495 = vdwg.mxu0
        %1496 = vst [vmem:[%s755] sm:$0xff] %v1467
        %1497 = vst [vmem:[%s755 + $0x8] sm:$0xff] %v1470
        %1498 = vst [vmem:[%s755 + $0x10] sm:$0xff] %v1475
        %1499 = vst [vmem:[%s755 + $0x18] sm:$0xff] %v1478
        %1500 = vst [vmem:[%s755 + $0x20] sm:$0xff] %v1483
        %1501 = vst [vmem:[%s755 + $0x28] sm:$0xff] %v1486
        %1502 = vst [vmem:[%s755 + $0x30] sm:$0xff] %v1491
        %v1503 = vld [vmem:[%s726] sm:$0xff]
        %v1504 = vld [vmem:[%s726 + $0x8] sm:$0xff]
        %v1505 = vld [vmem:[%s726 + $0x10] sm:$0xff]
        %v1506 = vld [vmem:[%s726 + $0x18] sm:$0xff]
        %v1507 = vld [vmem:[%s726 + $0x20] sm:$0xff]
        %v1508 = vld [vmem:[%s726 + $0x28] sm:$0xff]
        %v1509 = vld [vmem:[%s726 + $0x30] sm:$0xff]
        %v1510 = vmul.f32 %v1467, %v1503
        %v1511 = vmul.f32 %v1470, %v1504
        %v1512 = vmul.f32 %v1475, %v1505
        %v1513 = vmul.f32 %v1478, %v1506
        %v1514 = vmul.f32 %v1483, %v1507
        %v1515 = vmul.f32 %v1486, %v1508
        %v1516 = vmul.f32 %v1491, %v1509
        %v1517 = vld [vmem:[%s777] sm:$0x1]
        %v1518 = vadd.f32 %v1510, %v1511
        %v1519 = vadd.f32 %v1518, %v1512
        %v1520 = vadd.f32 %v1519, %v1513
        %v1521 = vadd.f32 %v1520, %v1514
        %v1522 = vadd.f32 %v1521, %v1515
        %v1523 = vadd.f32 %v1522, %v1516
        %v1524 = vrot.slane %v1523, 4
        %v1525 = vadd.f32 %v1523, %v1524
        %v1526 = vrot.slane %v1525, 2
        %v1527 = vadd.f32 %v1525, %v1526
        %v1528 = vrot.slane %v1527, 1
        %v1529 = vadd.f32 %v1527, %v1528
        %v1530 = vadd.f32 %v1517, %v1529
        %1531 = vst [vmem:[%s777] sm:$0x1] %v1530
        %v1532 = vld [vmem:[%s780] sm:$0x1]
        %v1533 = vmul.f32 %v1467, %v1510
        %v1534 = vmul.f32 %v1470, %v1511
        %v1535 = vmul.f32 %v1475, %v1512
        %v1536 = vmul.f32 %v1478, %v1513
        %v1537 = vmul.f32 %v1483, %v1514
        %v1538 = vmul.f32 %v1486, %v1515
        %v1539 = vmul.f32 %v1491, %v1516
        %v1540 = vadd.f32 %v1533, %v1534
        %v1541 = vadd.f32 %v1540, %v1535
        %v1542 = vadd.f32 %v1541, %v1536
        %v1543 = vadd.f32 %v1542, %v1537
        %v1544 = vadd.f32 %v1543, %v1538
        %v1545 = vadd.f32 %v1544, %v1539
        %v1546 = vrot.slane %v1545, 4
        %v1547 = vadd.f32 %v1545, %v1546
        %v1548 = vrot.slane %v1547, 2
        %v1549 = vadd.f32 %v1547, %v1548
        %v1550 = vrot.slane %v1549, 1
        %v1551 = vadd.f32 %v1549, %v1550
        %v1552 = vadd.f32 %v1532, %v1551
        %1553 = vst [vmem:[%s780] sm:$0x1] %v1552
        %s1554 = sand.u32 %s119, 1
        %s1555 = sand.u32 %s119, 1
        %s1556 = smul.addr %s1555, 56
        %s1557 = scalar_lea.vmem [#allocation4], %s1556
        %p1558 = scmp.lt.s32.totalorder %s21, 2
        %s1559 = scalar_select %p1558, %s21, 2
        %s1560 = scalar_lea.vmem %s4, %s1559
        %p1561 = scmp.lt.s32.totalorder %s21, 2
        %s1562 = scalar_select %p1561, %s21, 2
        %s1563 = scalar_lea.vmem %s5, %s1562
        // Predicated region
        $region116: #{generator_forward.11} parent=102 // pred_check
          %p1564 = pneg %p129
        $region117: #{generator_forward.11} parent=102 // pred_check_branch
          %1566 = sbr.rel (%p1564) target = $region119
        $region118: #{generator_forward.11} parent=102 // pred_region
          %s1567 = smul.u32 7, %s22
          %s1568 = smul.addr %s1567, 3
          %s1569 = sadd.s32 %s21, %s1568
          %s1570 = smul.addr %s1569, 8
          %s1571 = scalar_lea.vmem %s3, %s1570
          // Predicated region
          $region120: #{generator_forward.11} parent=118 // pred_check
            _
          $region121: #{generator_forward.11} parent=118 // pred_check_branch
            %1573 = sbr.rel (0) target = $region123
          $region122: #{generator_forward.11} parent=118 // pred_region
            // Predicated region
            $region124: #{generator_forward.11} parent=122 // pred_check
              _
            $region125: #{generator_forward.11} parent=122 // pred_check_branch
              %1575 = sbr.rel (0) target = $region127
            $region126: #{generator_forward.11} parent=122 // pred_region
              // Predicated region
              $region139: #{generator_forward.11} parent=126 // pred_check
                _
              $region140: #{generator_forward.11} parent=126 // pred_check_branch
                %1602 = sbr.rel (0) target = $region142
              $region141: #{generator_forward.11} parent=126 // pred_region
                loop: start=0, step=1, limit=1
                $region143: #{generator_forward.11} parent=141 // loop_pre_header
                  _
                $region144: #{generator_forward.11} parent=141 // loop_header
                  %s1604 = sphi 0, %s1608
                  %p1605 = scmp.ge.s32.totalorder %s1604, 1
                  %s1609 = sphi %s1557, %s1557
                  %s1610 = sphi %s1571, %s1571
                $region145: #{generator_forward.11} parent=141 // loop_header_branch
                  %1607 = sbr.rel (%p1605) target = $region149
                $region146: #{generator_forward.11} parent=141 // loop_body
                  %v1611 = vld [vmem:[%s1609] sm:$0xff]
                  %1612 = vst [vmem:[%s1610] sm:$0xff] %v1611
                  %v1613 = vld [vmem:[%s1609 + $0x8] sm:$0xff]
                  %1614 = vst [vmem:[%s1610 + $0x18] sm:$0xff] %v1613
                  %v1615 = vld [vmem:[%s1609 + $0x10] sm:$0xff]
                  %1616 = vst [vmem:[%s1610 + $0x30] sm:$0xff] %v1615
                  %v1617 = vld [vmem:[%s1609 + $0x18] sm:$0xff]
                  %1618 = vst [vmem:[%s1610 + $0x48] sm:$0xff] %v1617
                  %v1619 = vld [vmem:[%s1609 + $0x20] sm:$0xff]
                  %1620 = vst [vmem:[%s1610 + $0x60] sm:$0xff] %v1619
                  %v1621 = vld [vmem:[%s1609 + $0x28] sm:$0xff]
                  %1622 = vst [vmem:[%s1610 + $0x78] sm:$0xff] %v1621
                  %v1623 = vld [vmem:[%s1609 + $0x30] sm:$0xff]
                  %1624 = vst [vmem:[%s1610 + $0x90] sm:$0xff] %v1623
                $region147: #{generator_forward.11} parent=141 // loop_footer
                  %s1608 = sadd.s32 1, %s1604
                $region148: #{generator_forward.11} parent=141 // loop_footer_branch
                  %1603 = sbr.rel target = $region144
                $region149: #{generator_forward.11} parent=141 // loop_exit
                  _
              $region142: #{generator_forward.11} parent=126 // pred_fallthru
                _
              // Predicated region
              $region150: #{generator_forward.11} parent=126 // pred_check
                _
              $region151: #{generator_forward.11} parent=126 // pred_check_branch
                %1626 = sbr.rel target = $region153
              $region152: #{generator_forward.11} parent=126 // pred_region
                _
              $region153: #{generator_forward.11} parent=126 // pred_fallthru
                _
            $region127: #{generator_forward.11} parent=122 // pred_fallthru
              _
            // Predicated region
            $region128: #{generator_forward.11} parent=122 // pred_check
              _
            $region129: #{generator_forward.11} parent=122 // pred_check_branch
              %1577 = sbr.rel target = $region131
            $region130: #{generator_forward.11} parent=122 // pred_region
              loop: start=0, step=1, limit=1
              $region132: #{generator_forward.11} parent=130 // loop_pre_header
                _
              $region133: #{generator_forward.11} parent=130 // loop_header
                %s1580 = sphi 0, %s1584
                %p1581 = scmp.ge.s32.totalorder %s1580, 1
                %s1585 = sphi %s1557, %s1557
                %s1586 = sphi %s1571, %s1571
              $region134: #{generator_forward.11} parent=130 // loop_header_branch
                %1583 = sbr.rel (%p1581) target = $region138
              $region135: #{generator_forward.11} parent=130 // loop_body
                %v1587 = vld [vmem:[%s1585] sm:$0xff]
                %1588 = vst [vmem:[%s1586] sm:$0xff] %v1587
                %v1589 = vld [vmem:[%s1585 + $0x8] sm:$0xff]
                %1590 = vst [vmem:[%s1586 + $0x18] sm:$0xff] %v1589
                %v1591 = vld [vmem:[%s1585 + $0x10] sm:$0xff]
                %1592 = vst [vmem:[%s1586 + $0x30] sm:$0xff] %v1591
                %v1593 = vld [vmem:[%s1585 + $0x18] sm:$0xff]
                %1594 = vst [vmem:[%s1586 + $0x48] sm:$0xff] %v1593
                %v1595 = vld [vmem:[%s1585 + $0x20] sm:$0xff]
                %1596 = vst [vmem:[%s1586 + $0x60] sm:$0xff] %v1595
                %v1597 = vld [vmem:[%s1585 + $0x28] sm:$0xff]
                %1598 = vst [vmem:[%s1586 + $0x78] sm:$0xff] %v1597
                %v1599 = vld [vmem:[%s1585 + $0x30] sm:$0xff]
                %1600 = vst [vmem:[%s1586 + $0x90] sm:$0xff] %v1599
              $region136: #{generator_forward.11} parent=130 // loop_footer
                %s1584 = sadd.s32 1, %s1580
              $region137: #{generator_forward.11} parent=130 // loop_footer_branch
                %1579 = sbr.rel target = $region133
              $region138: #{generator_forward.11} parent=130 // loop_exit
                _
            $region131: #{generator_forward.11} parent=122 // pred_fallthru
              _
          $region123: #{generator_forward.11} parent=118 // pred_fallthru
            _
          %1627 = vnop
        $region119: #{generator_forward.11} parent=102 // pred_fallthru
          _
        // Predicated region
        $region154: #{generator_forward.11} parent=102 // pred_check
          %p1628 = pneg %p155
        $region155: #{generator_forward.11} parent=102 // pred_check_branch
          %1630 = sbr.rel (%p1628) target = $region157
        $region156: #{generator_forward.11} parent=102 // pred_region
          _
        $region157: #{generator_forward.11} parent=102 // pred_fallthru
          _
        // Predicated region
        $region158: #{generator_forward.11} parent=102 // pred_check
          %p1631 = pneg %p181
        $region159: #{generator_forward.11} parent=102 // pred_check_branch
          %1633 = sbr.rel (%p1631) target = $region161
        $region160: #{generator_forward.11} parent=102 // pred_region
          _
        $region161: #{generator_forward.11} parent=102 // pred_fallthru
          _
      $region103: #{generator_forward.11} parent=5 // pred_fallthru
        _
      %p1634 = scmp.le.s32.totalorder 2, %s12
      // Predicated region
      $region162: #{generator_forward.11} parent=5 // pred_check
        %p1635 = pneg %p1634
      $region163: #{generator_forward.11} parent=5 // pred_check_branch
        %1637 = sbr.rel (%p1635) target = $region165
      $region164: #{generator_forward.11} parent=5 // pred_region
        %s1638 = ssub.s32 %s12, 2
        // Predicated region
        $region166: #{generator_forward.11} parent=164 // pred_check
          %p1639 = pneg %p135
        $region167: #{generator_forward.11} parent=164 // pred_check_branch
          %1641 = sbr.rel (%p1639) target = $region169
        $region168: #{generator_forward.11} parent=164 // pred_region
          %s1642 = sand.u32 %s120, 1
          %s1643 = sand.u32 %s120, 1
          %s1644 = smul.addr %s1643, 56
          %s1645 = scalar_lea.vmem [#allocation4], %s1644
        $region169: #{generator_forward.11} parent=164 // pred_fallthru
          _
        // Predicated region
        $region170: #{generator_forward.11} parent=164 // pred_check
          %p1646 = pneg %p161
        $region171: #{generator_forward.11} parent=164 // pred_check_branch
          %1648 = sbr.rel (%p1646) target = $region173
        $region172: #{generator_forward.11} parent=164 // pred_region
          %p1649 = scmp.lt.s32.totalorder %s23, 2
          %s1650 = scalar_select %p1649, %s23, 2
          %s1651 = scalar_lea.vmem %s4, %s1650
        $region173: #{generator_forward.11} parent=164 // pred_fallthru
          _
        // Predicated region
        $region174: #{generator_forward.11} parent=164 // pred_check
          %p1652 = pneg %p187
        $region175: #{generator_forward.11} parent=164 // pred_check_branch
          %1654 = sbr.rel (%p1652) target = $region177
        $region176: #{generator_forward.11} parent=164 // pred_region
          %p1655 = scmp.lt.s32.totalorder %s23, 2
          %s1656 = scalar_select %p1655, %s23, 2
          %s1657 = scalar_lea.vmem %s5, %s1656
        $region177: #{generator_forward.11} parent=164 // pred_fallthru
          _
      $region165: #{generator_forward.11} parent=5 // pred_fallthru
        _
    $region6: #{generator_forward.11} parent=1 // loop_footer
      %s16 = sadd.s32 1, %s12
    $region7: #{generator_forward.11} parent=1 // loop_footer_branch
      %11 = sbr.rel target = $region3
    $region8: #{generator_forward.11} parent=1 // loop_exit
      _

// kernel: tile.58
$region0: #{tile.58}
  #allocation0 [shape = 's32[1]{0}', space=sflag, size = 0x4, scoped, tag = 'scoped memory for tile.58']
  %s0 = inlined_call_operand.vmem [shape: f32[48], index: 0, kind: input, shape index: {}]
  %s1 = inlined_call_operand.vmem [shape: f32[4,48], index: 1, kind: output, shape index: {}]
  // Predicated region
  $region2: #{tile.58} parent=0 // pred_check
    _
  $region3: #{tile.58} parent=0 // pred_check_branch
    %3 = sbr.rel (0) target = $region5
  $region4: #{tile.58} parent=0 // pred_region
    _
  $region5: #{tile.58} parent=0 // pred_fallthru
    _
  %v4 = vld [vmem:[%s0] ss:$0 sm:$0xff]
  %5 = vst [vmem:[%s1] sm:$0xf] %v4

// kernel: tile.59
$region0: #{tile.59}
  %s0 = inlined_call_operand.vmem [shape: f32[4,48], index: 0, kind: input, shape index: {}]
  %s1 = inlined_call_operand.vmem [shape: f32[192], index: 1, kind: output, shape index: {}]
  $region1: #{tile.59} parent=0
    #allocation0 [shape = 'u8[4096]{0}', space=vmem, size = 0x1000, scoped, tag = 'scoped mem for output reshape']
    #allocation1 [shape = 'u8[4096]{0}', space=vmem, size = 0x1000, scoped, tag = 'scoped mem for input reshape']
    %s3 = sshllo.u32 0, 4
    %v4 = vld [vmem:[%s0] sm:%s3]
    %5 = vst [vmem:[#allocation1] sm:%s3] %v4
    %v6 = vld [vmem:[#allocation1] sm:$0x1]
    %vm7 = vcmask 392192
    %8 = vst.msk [vmem:[#allocation0] sm:$0x1] %vm7, %v6
    %s9 = scalar_lea.vmem [#allocation1], 2
    %v10 = vld [vmem:[%s9] sm:$0x1]
    %s11 = scalar_lea.vmem [#allocation1], 2
    %v12 = vld [vmem:[%s11] sm:$0x1]
    %vm13 = vcmask 261120
    %v14 = vsel %vm13, %v12, %v10
    %15 = vrot.lane.b32.xlu0 %v14, 96
    %v16 = vpop.permute.xlu0 %15
    %vm17 = vcmask 130048
    %s18 = scalar_lea.vmem [#allocation0], 1
    %19 = vst.msk [vmem:[%s18] sm:$0x1] %vm17, %v16
    %vm20 = vcmask 1048320
    %21 = vst.msk [vmem:[#allocation0] sm:$0x1] %vm20, %v16
    %s22 = scalar_lea.vmem [#allocation1], 1
    %v23 = vld [vmem:[%s22] sm:$0x1]
    %24 = vrot.lane.b32.xlu0 %v23, 48
    %v25 = vpop.permute.xlu0 %24
    %vm26 = vcmask 785792
    %27 = vst.msk [vmem:[#allocation0] sm:$0x1] %vm26, %v25
    %s28 = scalar_lea.vmem [#allocation1], 3
    %v29 = vld [vmem:[%s28] sm:$0x1]
    %30 = vrot.lane.b32.xlu0 %v29, 16
    %v31 = vpop.permute.xlu0 %30
    %vm32 = vcmask 523392
    %s33 = scalar_lea.vmem [#allocation0], 1
    %34 = vst.msk [vmem:[%s33] sm:$0x1] %vm32, %v31
    %s36 = sshllo.u32 0, 2
    %v38 = vld [vmem:[#allocation0] sm:%s36]
    %s39 = sshllo.u32 0, 2
    %40 = vst [vmem:[%s1] sm:%s39] %v38

// kernel: generator_forward.14
$region0: #{generator_forward.14}
  #allocation0 [shape = 'u32[]', space=smem, size = 0x4, offset = 0x4, fixed_abs, tag = 'smem constant byte address 0x4 - core index']
  #allocation1 [shape = 'u32[144,128]{1,0:T(1,128)}', space=vmem, size = 0x12000, scoped, tag = 'internal scratch']
  %s0 = inlined_call_operand.vmem [shape: f32[168,256], index: 0, kind: input, shape index: {}]
  %s1 = inlined_call_operand.vmem [shape: f32[1,256], index: 1, kind: input, shape index: {}]
  %s2 = inlined_call_operand.vmem [shape: f32[1,256], index: 2, kind: input, shape index: {}]
  %s3 = inlined_call_operand.vmem [shape: bf16[168,256], index: 3, kind: output, shape index: {}]
  %s4 = sld [smem:[#allocation0]]
  $region22: #{generator_forward.14} parent=0
    _
  %s6 = ssub.s32 1, %s4
  %s7 = scalar_select 0, %s6, %s4
  // Predicated region
  $region2: #{generator_forward.14} parent=0 // pred_check
    _
  $region3: #{generator_forward.14} parent=0 // pred_check_branch
    %9 = sbr.rel (0) target = $region5
  $region4: #{generator_forward.14} parent=0 // pred_region
    _
  $region5: #{generator_forward.14} parent=0 // pred_fallthru
    _
  // Predicated region
  $region6: #{generator_forward.14} parent=0 // pred_check
    _
  $region7: #{generator_forward.14} parent=0 // pred_check_branch
    %11 = sbr.rel (0) target = $region9
  $region8: #{generator_forward.14} parent=0 // pred_region
    _
  $region9: #{generator_forward.14} parent=0 // pred_fallthru
    _
  // Predicated region
  $region10: #{generator_forward.14} parent=0 // pred_check
    _
  $region11: #{generator_forward.14} parent=0 // pred_check_branch
    %13 = sbr.rel (0) target = $region13
  $region12: #{generator_forward.14} parent=0 // pred_region
    _
  $region13: #{generator_forward.14} parent=0 // pred_fallthru
    _
  %v14 = vld [vmem:[%s0] sm:$0xff]
  %v15 = vld [vmem:[%s0 + $0x8] sm:$0xff]
  %v16 = vld [vmem:[%s0 + $0x10] sm:$0xff]
  %v17 = vld [vmem:[%s0 + $0x18] sm:$0xff]
  %v18 = vld [vmem:[%s0 + $0x20] sm:$0xff]
  %v19 = vld [vmem:[%s0 + $0x28] sm:$0xff]
  %v20 = vld [vmem:[%s0 + $0x30] sm:$0xff]
  %v21 = vld [vmem:[%s0 + $0x38] sm:$0xff]
  %v22 = vld [vmem:[%s0 + $0x40] sm:$0xff]
  %v23 = vld [vmem:[%s0 + $0x48] sm:$0xff]
  %v24 = vld [vmem:[%s0 + $0x50] sm:$0xff]
  %v25 = vld [vmem:[%s0 + $0x58] sm:$0xff]
  %v26 = vld [vmem:[%s0 + $0x60] sm:$0xff]
  %v27 = vld [vmem:[%s0 + $0x68] sm:$0xff]
  %v28 = vld [vmem:[%s0 + $0x70] sm:$0xff]
  %v29 = vld [vmem:[%s0 + $0x78] sm:$0xff]
  %v30 = vld [vmem:[%s0 + $0x80] sm:$0xff]
  %v31 = vld [vmem:[%s0 + $0x88] sm:$0xff]
  %v32 = vld [vmem:[%s0 + $0x90] sm:$0xff]
  %v33 = vld [vmem:[%s0 + $0x98] sm:$0xff]
  %v34 = vld [vmem:[%s0 + $0xa0] sm:$0xff]
  %v35 = vld [vmem:[%s0 + $0xa8] sm:$0xff]
  %v36 = vld [vmem:[%s0 + $0xb0] sm:$0xff]
  %v37 = vld [vmem:[%s0 + $0xb8] sm:$0xff]
  %v38 = vld [vmem:[%s0 + $0xc0] sm:$0xff]
  %v39 = vld [vmem:[%s0 + $0xc8] sm:$0xff]
  %v40 = vld [vmem:[%s0 + $0xd0] sm:$0xff]
  %v41 = vld [vmem:[%s0 + $0xd8] sm:$0xff]
  %v42 = vld [vmem:[%s0 + $0xe0] sm:$0xff]
  %v43 = vld [vmem:[%s0 + $0xe8] sm:$0xff]
  %v44 = vld [vmem:[%s0 + $0xf0] sm:$0xff]
  %v45 = vld [vmem:[%s0 + $0xf8] sm:$0xff]
  %v46 = vld [vmem:[%s0 + $0x100] sm:$0xff]
  %v47 = vld [vmem:[%s0 + $0x108] sm:$0xff]
  %v48 = vld [vmem:[%s0 + $0x110] sm:$0xff]
  %v49 = vld [vmem:[%s0 + $0x118] sm:$0xff]
  %v50 = vld [vmem:[%s0 + $0x120] sm:$0xff]
  %v51 = vld [vmem:[%s0 + $0x128] sm:$0xff]
  %v52 = vld [vmem:[%s0 + $0x130] sm:$0xff]
  %v53 = vld [vmem:[%s0 + $0x138] sm:$0xff]
  %v54 = vld [vmem:[%s0 + $0x140] sm:$0xff]
  %v55 = vld [vmem:[%s0 + $0x148] sm:$0xff]
  %v56 = vld [vmem:[%s1] sm:$0x3]
  %v58 = vlaneseq
  %v59 = vshrl.u32 %v58, 7
  %v60 = vsub.s32 0, %v59
  %v61 = vrot.slane %v56, %v60
  %v62 = vlaneseq
  %v63 = vshrl.u32 %v62, 7
  %v64 = vsub.s32 1, %v63
  %v65 = vrot.slane %v56, %v64
  %v68 = vmul.f32 %v14, %v61
  %v69 = vmul.f32 %v15, %v65
  %v70 = vmul.f32 %v16, %v61
  %v71 = vmul.f32 %v17, %v65
  %v72 = vmul.f32 %v18, %v61
  %v73 = vmul.f32 %v19, %v65
  %v74 = vmul.f32 %v20, %v61
  %v75 = vmul.f32 %v21, %v65
  %v76 = vmul.f32 %v22, %v61
  %v77 = vmul.f32 %v23, %v65
  %v78 = vmul.f32 %v24, %v61
  %v79 = vmul.f32 %v25, %v65
  %v80 = vmul.f32 %v26, %v61
  %v81 = vmul.f32 %v27, %v65
  %v82 = vmul.f32 %v28, %v61
  %v83 = vmul.f32 %v29, %v65
  %v84 = vmul.f32 %v30, %v61
  %v85 = vmul.f32 %v31, %v65
  %v86 = vmul.f32 %v32, %v61
  %v87 = vmul.f32 %v33, %v65
  %v88 = vmul.f32 %v34, %v61
  %v89 = vmul.f32 %v35, %v65
  %v90 = vmul.f32 %v36, %v61
  %v91 = vmul.f32 %v37, %v65
  %v92 = vmul.f32 %v38, %v61
  %v93 = vmul.f32 %v39, %v65
  %v94 = vmul.f32 %v40, %v61
  %v95 = vmul.f32 %v41, %v65
  %v96 = vmul.f32 %v42, %v61
  %v97 = vmul.f32 %v43, %v65
  %v98 = vmul.f32 %v44, %v61
  %v99 = vmul.f32 %v45, %v65
  %v100 = vmul.f32 %v46, %v61
  %v101 = vmul.f32 %v47, %v65
  %v102 = vmul.f32 %v48, %v61
  %v103 = vmul.f32 %v49, %v65
  %v104 = vmul.f32 %v50, %v61
  %v105 = vmul.f32 %v51, %v65
  %v106 = vmul.f32 %v52, %v61
  %v107 = vmul.f32 %v53, %v65
  %v108 = vmul.f32 %v54, %v61
  %v109 = vmul.f32 %v55, %v65
  %v110 = vld [vmem:[%s2] sm:$0x3]
  %v112 = vlaneseq
  %v113 = vshrl.u32 %v112, 7
  %v114 = vsub.s32 0, %v113
  %v115 = vrot.slane %v110, %v114
  %v116 = vlaneseq
  %v117 = vshrl.u32 %v116, 7
  %v118 = vsub.s32 1, %v117
  %v119 = vrot.slane %v110, %v118
  %v122 = vadd.f32 %v68, %v115
  %v123 = vadd.f32 %v69, %v119
  %v124 = vadd.f32 %v70, %v115
  %v125 = vadd.f32 %v71, %v119
  %v126 = vadd.f32 %v72, %v115
  %v127 = vadd.f32 %v73, %v119
  %v128 = vadd.f32 %v74, %v115
  %v129 = vadd.f32 %v75, %v119
  %v130 = vadd.f32 %v76, %v115
  %v131 = vadd.f32 %v77, %v119
  %v132 = vadd.f32 %v78, %v115
  %v133 = vadd.f32 %v79, %v119
  %v134 = vadd.f32 %v80, %v115
  %v135 = vadd.f32 %v81, %v119
  %v136 = vadd.f32 %v82, %v115
  %v137 = vadd.f32 %v83, %v119
  %v138 = vadd.f32 %v84, %v115
  %v139 = vadd.f32 %v85, %v119
  %v140 = vadd.f32 %v86, %v115
  %v141 = vadd.f32 %v87, %v119
  %v142 = vadd.f32 %v88, %v115
  %v143 = vadd.f32 %v89, %v119
  %v144 = vadd.f32 %v90, %v115
  %v145 = vadd.f32 %v91, %v119
  %v146 = vadd.f32 %v92, %v115
  %v147 = vadd.f32 %v93, %v119
  %v148 = vadd.f32 %v94, %v115
  %v149 = vadd.f32 %v95, %v119
  %v150 = vadd.f32 %v96, %v115
  %v151 = vadd.f32 %v97, %v119
  %v152 = vadd.f32 %v98, %v115
  %v153 = vadd.f32 %v99, %v119
  %v154 = vadd.f32 %v100, %v115
  %v155 = vadd.f32 %v101, %v119
  %v156 = vadd.f32 %v102, %v115
  %v157 = vadd.f32 %v103, %v119
  %v158 = vadd.f32 %v104, %v115
  %v159 = vadd.f32 %v105, %v119
  %v160 = vadd.f32 %v106, %v115
  %v161 = vadd.f32 %v107, %v119
  %v162 = vadd.f32 %v108, %v115
  %v163 = vadd.f32 %v109, %v119
  %v164 = vmax.f32 %v122, 0.0
  %v165 = vmax.f32 %v123, 0.0
  %v166 = vmax.f32 %v124, 0.0
  %v167 = vmax.f32 %v125, 0.0
  %v168 = vmax.f32 %v126, 0.0
  %v169 = vmax.f32 %v127, 0.0
  %v170 = vmax.f32 %v128, 0.0
  %v171 = vmax.f32 %v129, 0.0
  %v172 = vmax.f32 %v130, 0.0
  %v173 = vmax.f32 %v131, 0.0
  %v174 = vmax.f32 %v132, 0.0
  %v175 = vmax.f32 %v133, 0.0
  %v176 = vmax.f32 %v134, 0.0
  %v177 = vmax.f32 %v135, 0.0
  %v178 = vmax.f32 %v136, 0.0
  %v179 = vmax.f32 %v137, 0.0
  %v180 = vmax.f32 %v138, 0.0
  %v181 = vmax.f32 %v139, 0.0
  %v182 = vmax.f32 %v140, 0.0
  %v183 = vmax.f32 %v141, 0.0
  %v184 = vmax.f32 %v142, 0.0
  %v185 = vmax.f32 %v143, 0.0
  %v186 = vmax.f32 %v144, 0.0
  %v187 = vmax.f32 %v145, 0.0
  %v188 = vmax.f32 %v146, 0.0
  %v189 = vmax.f32 %v147, 0.0
  %v190 = vmax.f32 %v148, 0.0
  %v191 = vmax.f32 %v149, 0.0
  %v192 = vmax.f32 %v150, 0.0
  %v193 = vmax.f32 %v151, 0.0
  %v194 = vmax.f32 %v152, 0.0
  %v195 = vmax.f32 %v153, 0.0
  %v196 = vmax.f32 %v154, 0.0
  %v197 = vmax.f32 %v155, 0.0
  %v198 = vmax.f32 %v156, 0.0
  %v199 = vmax.f32 %v157, 0.0
  %v200 = vmax.f32 %v158, 0.0
  %v201 = vmax.f32 %v159, 0.0
  %v202 = vmax.f32 %v160, 0.0
  %v203 = vmax.f32 %v161, 0.0
  %v204 = vmax.f32 %v162, 0.0
  %v205 = vmax.f32 %v163, 0.0
  %v206 = vpack.c.bf16 %v166, %v164
  %v207 = vpack.c.bf16 %v167, %v165
  %v208 = vpack.c.bf16 %v170, %v168
  %v209 = vpack.c.bf16 %v171, %v169
  %v210 = vpack.c.bf16 %v174, %v172
  %v211 = vpack.c.bf16 %v175, %v173
  %v212 = vpack.c.bf16 %v178, %v176
  %v213 = vpack.c.bf16 %v179, %v177
  %v214 = vpack.c.bf16 %v182, %v180
  %v215 = vpack.c.bf16 %v183, %v181
  %v216 = vpack.c.bf16 %v186, %v184
  %v217 = vpack.c.bf16 %v187, %v185
  %v218 = vpack.c.bf16 %v190, %v188
  %v219 = vpack.c.bf16 %v191, %v189
  %v220 = vpack.c.bf16 %v194, %v192
  %v221 = vpack.c.bf16 %v195, %v193
  %v222 = vpack.c.bf16 %v198, %v196
  %v223 = vpack.c.bf16 %v199, %v197
  %v224 = vpack.c.bf16 %v202, %v200
  %v225 = vpack.c.bf16 %v203, %v201
  %v226 = vpack.c.bf16 %v204, %v204
  %v227 = vpack.c.bf16 %v205, %v205
  %v250 = vunpack.c.l.b16 %v206
  %v251 = vunpack.c.l.b16 %v207
  %v252 = vunpack.c.h.b16 %v206
  %v253 = vunpack.c.h.b16 %v207
  %v254 = vunpack.c.l.b16 %v208
  %v255 = vunpack.c.l.b16 %v209
  %v256 = vunpack.c.h.b16 %v208
  %v257 = vunpack.c.h.b16 %v209
  %v258 = vunpack.c.l.b16 %v210
  %v259 = vunpack.c.l.b16 %v211
  %v260 = vunpack.c.h.b16 %v210
  %v261 = vunpack.c.h.b16 %v211
  %v262 = vunpack.c.l.b16 %v212
  %v263 = vunpack.c.l.b16 %v213
  %v264 = vunpack.c.h.b16 %v212
  %v265 = vunpack.c.h.b16 %v213
  %v266 = vunpack.c.l.b16 %v214
  %v267 = vunpack.c.l.b16 %v215
  %v268 = vunpack.c.h.b16 %v214
  %v269 = vunpack.c.h.b16 %v215
  %v270 = vunpack.c.l.b16 %v216
  %v271 = vunpack.c.l.b16 %v217
  %v272 = vunpack.c.h.b16 %v216
  %v273 = vunpack.c.h.b16 %v217
  %v274 = vunpack.c.l.b16 %v218
  %v275 = vunpack.c.l.b16 %v219
  %v276 = vunpack.c.h.b16 %v218
  %v277 = vunpack.c.h.b16 %v219
  %v278 = vunpack.c.l.b16 %v220
  %v279 = vunpack.c.l.b16 %v221
  %v280 = vunpack.c.h.b16 %v220
  %v281 = vunpack.c.h.b16 %v221
  %v282 = vunpack.c.l.b16 %v222
  %v283 = vunpack.c.l.b16 %v223
  %v284 = vunpack.c.h.b16 %v222
  %v285 = vunpack.c.h.b16 %v223
  %v286 = vunpack.c.l.b16 %v224
  %v287 = vunpack.c.l.b16 %v225
  %v288 = vunpack.c.h.b16 %v224
  %v289 = vunpack.c.h.b16 %v225
  %v290 = vunpack.c.l.b16 %v226
  %v291 = vunpack.c.l.b16 %v227
  %v292 = vpack.c.b16 %v251, %v250
  %v293 = vpack.c.b16 %v253, %v252
  %v294 = vpack.c.b16 %v255, %v254
  %v295 = vpack.c.b16 %v257, %v256
  %v296 = vpack.c.b16 %v259, %v258
  %v297 = vpack.c.b16 %v261, %v260
  %v298 = vpack.c.b16 %v263, %v262
  %v299 = vpack.c.b16 %v265, %v264
  %v300 = vpack.c.b16 %v267, %v266
  %v301 = vpack.c.b16 %v269, %v268
  %v302 = vpack.c.b16 %v271, %v270
  %v303 = vpack.c.b16 %v273, %v272
  %v304 = vpack.c.b16 %v275, %v274
  %v305 = vpack.c.b16 %v277, %v276
  %v306 = vpack.c.b16 %v279, %v278
  %v307 = vpack.c.b16 %v281, %v280
  %v308 = vpack.c.b16 %v283, %v282
  %v309 = vpack.c.b16 %v285, %v284
  %v310 = vpack.c.b16 %v287, %v286
  %v311 = vpack.c.b16 %v289, %v288
  %v312 = vpack.c.b16 %v291, %v290
  %334 = vst [vmem:[%s3] sm:$0xff] %v292
  %335 = vst [vmem:[%s3 + $0x8] sm:$0xff] %v293
  %336 = vst [vmem:[%s3 + $0x10] sm:$0xff] %v294
  %337 = vst [vmem:[%s3 + $0x18] sm:$0xff] %v295
  %338 = vst [vmem:[%s3 + $0x20] sm:$0xff] %v296
  %339 = vst [vmem:[%s3 + $0x28] sm:$0xff] %v297
  %340 = vst [vmem:[%s3 + $0x30] sm:$0xff] %v298
  %341 = vst [vmem:[%s3 + $0x38] sm:$0xff] %v299
  %342 = vst [vmem:[%s3 + $0x40] sm:$0xff] %v300
  %343 = vst [vmem:[%s3 + $0x48] sm:$0xff] %v301
  %344 = vst [vmem:[%s3 + $0x50] sm:$0xff] %v302
  %345 = vst [vmem:[%s3 + $0x58] sm:$0xff] %v303
  %346 = vst [vmem:[%s3 + $0x60] sm:$0xff] %v304
  %347 = vst [vmem:[%s3 + $0x68] sm:$0xff] %v305
  %348 = vst [vmem:[%s3 + $0x70] sm:$0xff] %v306
  %349 = vst [vmem:[%s3 + $0x78] sm:$0xff] %v307
  %350 = vst [vmem:[%s3 + $0x80] sm:$0xff] %v308
  %351 = vst [vmem:[%s3 + $0x88] sm:$0xff] %v309
  %352 = vst [vmem:[%s3 + $0x90] sm:$0xff] %v310
  %353 = vst [vmem:[%s3 + $0x98] sm:$0xff] %v311
  %354 = vst [vmem:[%s3 + $0xa0] sm:$0xff] %v312
  // Predicated region
  $region14: #{generator_forward.14} parent=0 // pred_check
    _
  $region15: #{generator_forward.14} parent=0 // pred_check_branch
    %356 = sbr.rel (0) target = $region17
  $region16: #{generator_forward.14} parent=0 // pred_region
    _
  $region17: #{generator_forward.14} parent=0 // pred_fallthru
    _
  // Predicated region
  $region18: #{generator_forward.14} parent=0 // pred_check
    _
  $region19: #{generator_forward.14} parent=0 // pred_check_branch
    %358 = sbr.rel (0) target = $region21
  $region20: #{generator_forward.14} parent=0 // pred_region
    _
  $region21: #{generator_forward.14} parent=0 // pred_fallthru
    _

// kernel: generator_forward.13
$region0: #{generator_forward.13}
  #allocation0 [shape = 'u32[]', space=smem, size = 0x4, offset = 0x4, fixed_abs, tag = 'smem constant byte address 0x4 - core index']
  #allocation1 [shape = 'u32[144,128]{1,0:T(1,128)}', space=vmem, size = 0x12000, scoped, tag = 'internal scratch']
  %s0 = inlined_call_operand.vmem [shape: bf16[168,384], index: 0, kind: input, shape index: {}]
  %s1 = inlined_call_operand.vmem [shape: bf16[384,256], index: 1, kind: input, shape index: {}]
  %s2 = inlined_call_operand.vmem [shape: f32[168,256], index: 2, kind: input, shape index: {}]
  %s3 = inlined_call_operand.vmem [shape: f32[168,256], index: 3, kind: output, shape index: {0}]
  %s4 = inlined_call_operand.vmem [shape: f32[1,256], index: 4, kind: output, shape index: {1}]
  %s5 = inlined_call_operand.vmem [shape: f32[1,256], index: 5, kind: output, shape index: {2}]
  %6 = xla_tuple %s3, %s4, %s5
  %s7 = sld [smem:[#allocation0]]
  $region42: #{generator_forward.13} parent=0
    _
  %s9 = ssub.s32 1, %s7
  %s10 = scalar_select 0, %s9, %s7
  // Predicated region
  $region2: #{generator_forward.13} parent=0 // pred_check
    _
  $region3: #{generator_forward.13} parent=0 // pred_check_branch
    %12 = sbr.rel (0) target = $region5
  $region4: #{generator_forward.13} parent=0 // pred_region
    _
  $region5: #{generator_forward.13} parent=0 // pred_fallthru
    _
  // Predicated region
  $region6: #{generator_forward.13} parent=0 // pred_check
    _
  $region7: #{generator_forward.13} parent=0 // pred_check_branch
    %14 = sbr.rel (0) target = $region9
  $region8: #{generator_forward.13} parent=0 // pred_region
    _
  $region9: #{generator_forward.13} parent=0 // pred_fallthru
    _
  // Predicated region
  $region10: #{generator_forward.13} parent=0 // pred_check
    _
  $region11: #{generator_forward.13} parent=0 // pred_check_branch
    %16 = sbr.rel (0) target = $region13
  $region12: #{generator_forward.13} parent=0 // pred_region
    _
  $region13: #{generator_forward.13} parent=0 // pred_fallthru
    _
  %p18 = scmp.eq.s32.totalorder 0, 0
  // Predicated region
  $region14: #{generator_forward.13} parent=0 // pred_check
    %p19 = pneg %p18
  $region15: #{generator_forward.13} parent=0 // pred_check_branch
    %21 = sbr.rel (%p19) target = $region17
  $region16: #{generator_forward.13} parent=0 // pred_region
    %v22 = vlaneseq
    %vm23 = vcmp.ge.s32.totalorder %v22, 0
    %vm24 = vcmp.lt.s32.totalorder %v22, 256
    %vm25 = vmand %vm23, %vm24
    %26 = vst.msk [vmem:[%s4] sm:$0x3] %vm25, 0.0
    %27 = vst.msk [vmem:[%s5] sm:$0x3] %vm25, 0.0
  $region17: #{generator_forward.13} parent=0 // pred_fallthru
    _
  %v28 = vld [vmem:[%s0] sm:$0xff]
  %v29 = vld [vmem:[%s0 + $0x8] sm:$0xf]
  %v30 = vld [vmem:[%s0 + $0xc] sm:$0xff]
  %v31 = vld [vmem:[%s0 + $0x14] sm:$0xf]
  %v32 = vld [vmem:[%s0 + $0x18] sm:$0xff]
  %v33 = vld [vmem:[%s0 + $0x20] sm:$0xf]
  %v34 = vld [vmem:[%s0 + $0x24] sm:$0xff]
  %v35 = vld [vmem:[%s0 + $0x2c] sm:$0xf]
  %v36 = vld [vmem:[%s0 + $0x30] sm:$0xff]
  %v37 = vld [vmem:[%s0 + $0x38] sm:$0xf]
  %v38 = vld [vmem:[%s0 + $0x3c] sm:$0xff]
  %v39 = vld [vmem:[%s0 + $0x44] sm:$0xf]
  %v40 = vld [vmem:[%s0 + $0x48] sm:$0xff]
  %v41 = vld [vmem:[%s0 + $0x50] sm:$0xf]
  %v42 = vld [vmem:[%s0 + $0x54] sm:$0xff]
  %v43 = vld [vmem:[%s0 + $0x5c] sm:$0xf]
  %v44 = vld [vmem:[%s0 + $0x60] sm:$0xff]
  %v45 = vld [vmem:[%s0 + $0x68] sm:$0xf]
  %v46 = vld [vmem:[%s0 + $0x6c] sm:$0xff]
  %v47 = vld [vmem:[%s0 + $0x74] sm:$0xf]
  %v48 = vld [vmem:[%s0 + $0x78] sm:$0xff]
  %v49 = vld [vmem:[%s0 + $0x80] sm:$0xf]
  %v50 = vld [vmem:[%s0 + $0x84] sm:$0xff]
  %v51 = vld [vmem:[%s0 + $0x8c] sm:$0xf]
  %v52 = vld [vmem:[%s0 + $0x90] sm:$0xff]
  %v53 = vld [vmem:[%s0 + $0x98] sm:$0xf]
  %v54 = vld [vmem:[%s0 + $0x9c] sm:$0xff]
  %v55 = vld [vmem:[%s0 + $0xa4] sm:$0xf]
  %v56 = vld [vmem:[%s0 + $0xa8] sm:$0xff]
  %v57 = vld [vmem:[%s0 + $0xb0] sm:$0xf]
  %v58 = vld [vmem:[%s0 + $0xb4] sm:$0xff]
  %v59 = vld [vmem:[%s0 + $0xbc] sm:$0xf]
  %v60 = vld [vmem:[%s0 + $0xc0] sm:$0xff]
  %v61 = vld [vmem:[%s0 + $0xc8] sm:$0xf]
  %v62 = vld [vmem:[%s0 + $0xcc] sm:$0xff]
  %v63 = vld [vmem:[%s0 + $0xd4] sm:$0xf]
  %v64 = vld [vmem:[%s0 + $0xd8] sm:$0xff]
  %v65 = vld [vmem:[%s0 + $0xe0] sm:$0xf]
  %v66 = vld [vmem:[%s0 + $0xe4] sm:$0xff]
  %v67 = vld [vmem:[%s0 + $0xec] sm:$0xf]
  %v68 = vld [vmem:[%s0 + $0xf0] sm:$0xff]
  %v69 = vld [vmem:[%s0 + $0xf8] sm:$0xf]
  %v70 = vld [vmem:[%s1] sm:$0xff]
  %v71 = vld [vmem:[%s1 + $0x8] sm:$0xff]
  %v72 = vld [vmem:[%s1 + $0x10] sm:$0xff]
  %v73 = vld [vmem:[%s1 + $0x18] sm:$0xff]
  %v74 = vld [vmem:[%s1 + $0x20] sm:$0xff]
  %v75 = vld [vmem:[%s1 + $0x28] sm:$0xff]
  %v76 = vld [vmem:[%s1 + $0x30] sm:$0xff]
  %v77 = vld [vmem:[%s1 + $0x38] sm:$0xff]
  %v78 = vld [vmem:[%s1 + $0x40] sm:$0xff]
  %v79 = vld [vmem:[%s1 + $0x48] sm:$0xff]
  %v80 = vld [vmem:[%s1 + $0x50] sm:$0xff]
  %v81 = vld [vmem:[%s1 + $0x58] sm:$0xff]
  %v82 = vld [vmem:[%s1 + $0x60] sm:$0xff]
  %v83 = vld [vmem:[%s1 + $0x68] sm:$0xff]
  %v84 = vld [vmem:[%s1 + $0x70] sm:$0xff]
  %v85 = vld [vmem:[%s1 + $0x78] sm:$0xff]
  %v86 = vld [vmem:[%s1 + $0x80] sm:$0xff]
  %v87 = vld [vmem:[%s1 + $0x88] sm:$0xff]
  %v88 = vld [vmem:[%s1 + $0x90] sm:$0xff]
  %v89 = vld [vmem:[%s1 + $0x98] sm:$0xff]
  %v90 = vld [vmem:[%s1 + $0xa0] sm:$0xff]
  %v91 = vld [vmem:[%s1 + $0xa8] sm:$0xff]
  %v92 = vld [vmem:[%s1 + $0xb0] sm:$0xff]
  %v93 = vld [vmem:[%s1 + $0xb8] sm:$0xff]
  %v94 = vld [vmem:[%s1 + $0xc0] sm:$0xff]
  %v95 = vld [vmem:[%s1 + $0xc8] sm:$0xff]
  %v96 = vld [vmem:[%s1 + $0xd0] sm:$0xff]
  %v97 = vld [vmem:[%s1 + $0xd8] sm:$0xff]
  %v98 = vld [vmem:[%s1 + $0xe0] sm:$0xff]
  %v99 = vld [vmem:[%s1 + $0xe8] sm:$0xff]
  %v100 = vld [vmem:[%s1 + $0xf0] sm:$0xff]
  %v101 = vld [vmem:[%s1 + $0xf8] sm:$0xff]
  %v102 = vld [vmem:[%s1 + $0x100] sm:$0xff]
  %v103 = vld [vmem:[%s1 + $0x108] sm:$0xff]
  %v104 = vld [vmem:[%s1 + $0x110] sm:$0xff]
  %v105 = vld [vmem:[%s1 + $0x118] sm:$0xff]
  %v106 = vld [vmem:[%s1 + $0x120] sm:$0xff]
  %v107 = vld [vmem:[%s1 + $0x128] sm:$0xff]
  %v108 = vld [vmem:[%s1 + $0x130] sm:$0xff]
  %v109 = vld [vmem:[%s1 + $0x138] sm:$0xff]
  %v110 = vld [vmem:[%s1 + $0x140] sm:$0xff]
  %v111 = vld [vmem:[%s1 + $0x148] sm:$0xff]
  %v112 = vld [vmem:[%s1 + $0x150] sm:$0xff]
  %v113 = vld [vmem:[%s1 + $0x158] sm:$0xff]
  %v114 = vld [vmem:[%s1 + $0x160] sm:$0xff]
  %v115 = vld [vmem:[%s1 + $0x168] sm:$0xff]
  %v116 = vld [vmem:[%s1 + $0x170] sm:$0xff]
  %v117 = vld [vmem:[%s1 + $0x178] sm:$0xff]
  %v160 = vunpack.c.l.b16 %v28
  %v161 = vunpack.c.h.b16 %v28
  %v162 = vunpack.c.l.b16 %v29
  %v163 = vunpack.c.l.b16 %v30
  %v164 = vunpack.c.h.b16 %v30
  %v165 = vunpack.c.l.b16 %v31
  %v166 = vunpack.c.l.b16 %v32
  %v167 = vunpack.c.h.b16 %v32
  %v168 = vunpack.c.l.b16 %v33
  %v169 = vunpack.c.l.b16 %v34
  %v170 = vunpack.c.h.b16 %v34
  %v171 = vunpack.c.l.b16 %v35
  %v172 = vunpack.c.l.b16 %v36
  %v173 = vunpack.c.h.b16 %v36
  %v174 = vunpack.c.l.b16 %v37
  %v175 = vunpack.c.l.b16 %v38
  %v176 = vunpack.c.h.b16 %v38
  %v177 = vunpack.c.l.b16 %v39
  %v178 = vunpack.c.l.b16 %v40
  %v179 = vunpack.c.h.b16 %v40
  %v180 = vunpack.c.l.b16 %v41
  %v181 = vunpack.c.l.b16 %v42
  %v182 = vunpack.c.h.b16 %v42
  %v183 = vunpack.c.l.b16 %v43
  %v184 = vunpack.c.l.b16 %v44
  %v185 = vunpack.c.h.b16 %v44
  %v186 = vunpack.c.l.b16 %v45
  %v187 = vunpack.c.l.b16 %v46
  %v188 = vunpack.c.h.b16 %v46
  %v189 = vunpack.c.l.b16 %v47
  %v190 = vunpack.c.l.b16 %v48
  %v191 = vunpack.c.h.b16 %v48
  %v192 = vunpack.c.l.b16 %v49
  %v193 = vunpack.c.l.b16 %v50
  %v194 = vunpack.c.h.b16 %v50
  %v195 = vunpack.c.l.b16 %v51
  %v196 = vunpack.c.l.b16 %v52
  %v197 = vunpack.c.h.b16 %v52
  %v198 = vunpack.c.l.b16 %v53
  %v199 = vunpack.c.l.b16 %v54
  %v200 = vunpack.c.h.b16 %v54
  %v201 = vunpack.c.l.b16 %v55
  %v202 = vunpack.c.l.b16 %v56
  %v203 = vunpack.c.h.b16 %v56
  %v204 = vunpack.c.l.b16 %v57
  %v205 = vunpack.c.l.b16 %v58
  %v206 = vunpack.c.h.b16 %v58
  %v207 = vunpack.c.l.b16 %v59
  %v208 = vunpack.c.l.b16 %v60
  %v209 = vunpack.c.h.b16 %v60
  %v210 = vunpack.c.l.b16 %v61
  %v211 = vunpack.c.l.b16 %v62
  %v212 = vunpack.c.h.b16 %v62
  %v213 = vunpack.c.l.b16 %v63
  %v214 = vunpack.c.l.b16 %v64
  %v215 = vunpack.c.h.b16 %v64
  %v216 = vunpack.c.l.b16 %v65
  %v217 = vunpack.c.l.b16 %v66
  %v218 = vunpack.c.h.b16 %v66
  %v219 = vunpack.c.l.b16 %v67
  %v220 = vunpack.c.l.b16 %v68
  %v221 = vunpack.c.h.b16 %v68
  %v222 = vunpack.c.l.b16 %v69
  %v223 = vpack.c.b16 %v163, %v160
  %v224 = vpack.c.b16 %v164, %v161
  %v225 = vpack.c.b16 %v165, %v162
  %v226 = vpack.c.b16 %v169, %v166
  %v227 = vpack.c.b16 %v170, %v167
  %v228 = vpack.c.b16 %v171, %v168
  %v229 = vpack.c.b16 %v175, %v172
  %v230 = vpack.c.b16 %v176, %v173
  %v231 = vpack.c.b16 %v177, %v174
  %v232 = vpack.c.b16 %v181, %v178
  %v233 = vpack.c.b16 %v182, %v179
  %v234 = vpack.c.b16 %v183, %v180
  %v235 = vpack.c.b16 %v187, %v184
  %v236 = vpack.c.b16 %v188, %v185
  %v237 = vpack.c.b16 %v189, %v186
  %v238 = vpack.c.b16 %v193, %v190
  %v239 = vpack.c.b16 %v194, %v191
  %v240 = vpack.c.b16 %v195, %v192
  %v241 = vpack.c.b16 %v199, %v196
  %v242 = vpack.c.b16 %v200, %v197
  %v243 = vpack.c.b16 %v201, %v198
  %v244 = vpack.c.b16 %v205, %v202
  %v245 = vpack.c.b16 %v206, %v203
  %v246 = vpack.c.b16 %v207, %v204
  %v247 = vpack.c.b16 %v211, %v208
  %v248 = vpack.c.b16 %v212, %v209
  %v249 = vpack.c.b16 %v213, %v210
  %v250 = vpack.c.b16 %v217, %v214
  %v251 = vpack.c.b16 %v218, %v215
  %v252 = vpack.c.b16 %v219, %v216
  %v253 = vpack.c.b16 %v220, %v220
  %v254 = vpack.c.b16 %v221, %v221
  %v255 = vpack.c.b16 %v222, %v222
  %v337 = vunpack.c.l.b16 %v70
  %v338 = vunpack.c.h.b16 %v70
  %v339 = vunpack.c.l.b16 %v71
  %v340 = vunpack.c.h.b16 %v71
  %v341 = vunpack.c.l.b16 %v72
  %v342 = vunpack.c.h.b16 %v72
  %v343 = vunpack.c.l.b16 %v73
  %v344 = vunpack.c.h.b16 %v73
  %v345 = vunpack.c.l.b16 %v74
  %v346 = vunpack.c.h.b16 %v74
  %v347 = vunpack.c.l.b16 %v75
  %v348 = vunpack.c.h.b16 %v75
  %v349 = vunpack.c.l.b16 %v76
  %v350 = vunpack.c.h.b16 %v76
  %v351 = vunpack.c.l.b16 %v77
  %v352 = vunpack.c.h.b16 %v77
  %v353 = vunpack.c.l.b16 %v78
  %v354 = vunpack.c.h.b16 %v78
  %v355 = vunpack.c.l.b16 %v79
  %v356 = vunpack.c.h.b16 %v79
  %v357 = vunpack.c.l.b16 %v80
  %v358 = vunpack.c.h.b16 %v80
  %v359 = vunpack.c.l.b16 %v81
  %v360 = vunpack.c.h.b16 %v81
  %v361 = vunpack.c.l.b16 %v82
  %v362 = vunpack.c.h.b16 %v82
  %v363 = vunpack.c.l.b16 %v83
  %v364 = vunpack.c.h.b16 %v83
  %v365 = vunpack.c.l.b16 %v84
  %v366 = vunpack.c.h.b16 %v84
  %v367 = vunpack.c.l.b16 %v85
  %v368 = vunpack.c.h.b16 %v85
  %v369 = vunpack.c.l.b16 %v86
  %v370 = vunpack.c.h.b16 %v86
  %v371 = vunpack.c.l.b16 %v87
  %v372 = vunpack.c.h.b16 %v87
  %v373 = vunpack.c.l.b16 %v88
  %v374 = vunpack.c.h.b16 %v88
  %v375 = vunpack.c.l.b16 %v89
  %v376 = vunpack.c.h.b16 %v89
  %v377 = vunpack.c.l.b16 %v90
  %v378 = vunpack.c.h.b16 %v90
  %v379 = vunpack.c.l.b16 %v91
  %v380 = vunpack.c.h.b16 %v91
  %v381 = vunpack.c.l.b16 %v92
  %v382 = vunpack.c.h.b16 %v92
  %v383 = vunpack.c.l.b16 %v93
  %v384 = vunpack.c.h.b16 %v93
  %v385 = vunpack.c.l.b16 %v94
  %v386 = vunpack.c.h.b16 %v94
  %v387 = vunpack.c.l.b16 %v95
  %v388 = vunpack.c.h.b16 %v95
  %v389 = vunpack.c.l.b16 %v96
  %v390 = vunpack.c.h.b16 %v96
  %v391 = vunpack.c.l.b16 %v97
  %v392 = vunpack.c.h.b16 %v97
  %v393 = vunpack.c.l.b16 %v98
  %v394 = vunpack.c.h.b16 %v98
  %v395 = vunpack.c.l.b16 %v99
  %v396 = vunpack.c.h.b16 %v99
  %v397 = vunpack.c.l.b16 %v100
  %v398 = vunpack.c.h.b16 %v100
  %v399 = vunpack.c.l.b16 %v101
  %v400 = vunpack.c.h.b16 %v101
  %v401 = vunpack.c.l.b16 %v102
  %v402 = vunpack.c.h.b16 %v102
  %v403 = vunpack.c.l.b16 %v103
  %v404 = vunpack.c.h.b16 %v103
  %v405 = vunpack.c.l.b16 %v104
  %v406 = vunpack.c.h.b16 %v104
  %v407 = vunpack.c.l.b16 %v105
  %v408 = vunpack.c.h.b16 %v105
  %v409 = vunpack.c.l.b16 %v106
  %v410 = vunpack.c.h.b16 %v106
  %v411 = vunpack.c.l.b16 %v107
  %v412 = vunpack.c.h.b16 %v107
  %v413 = vunpack.c.l.b16 %v108
  %v414 = vunpack.c.h.b16 %v108
  %v415 = vunpack.c.l.b16 %v109
  %v416 = vunpack.c.h.b16 %v109
  %v417 = vunpack.c.l.b16 %v110
  %v418 = vunpack.c.h.b16 %v110
  %v419 = vunpack.c.l.b16 %v111
  %v420 = vunpack.c.h.b16 %v111
  %v421 = vunpack.c.l.b16 %v112
  %v422 = vunpack.c.h.b16 %v112
  %v423 = vunpack.c.l.b16 %v113
  %v424 = vunpack.c.h.b16 %v113
  %v425 = vunpack.c.l.b16 %v114
  %v426 = vunpack.c.h.b16 %v114
  %v427 = vunpack.c.l.b16 %v115
  %v428 = vunpack.c.h.b16 %v115
  %v429 = vunpack.c.l.b16 %v116
  %v430 = vunpack.c.h.b16 %v116
  %v431 = vunpack.c.l.b16 %v117
  %v432 = vunpack.c.h.b16 %v117
  %v433 = vpack.c.b16 %v339, %v337
  %v434 = vpack.c.b16 %v340, %v338
  %v435 = vpack.c.b16 %v343, %v341
  %v436 = vpack.c.b16 %v344, %v342
  %v437 = vpack.c.b16 %v347, %v345
  %v438 = vpack.c.b16 %v348, %v346
  %v439 = vpack.c.b16 %v351, %v349
  %v440 = vpack.c.b16 %v352, %v350
  %v441 = vpack.c.b16 %v355, %v353
  %v442 = vpack.c.b16 %v356, %v354
  %v443 = vpack.c.b16 %v359, %v357
  %v444 = vpack.c.b16 %v360, %v358
  %v445 = vpack.c.b16 %v363, %v361
  %v446 = vpack.c.b16 %v364, %v362
  %v447 = vpack.c.b16 %v367, %v365
  %v448 = vpack.c.b16 %v368, %v366
  %v449 = vpack.c.b16 %v371, %v369
  %v450 = vpack.c.b16 %v372, %v370
  %v451 = vpack.c.b16 %v375, %v373
  %v452 = vpack.c.b16 %v376, %v374
  %v453 = vpack.c.b16 %v379, %v377
  %v454 = vpack.c.b16 %v380, %v378
  %v455 = vpack.c.b16 %v383, %v381
  %v456 = vpack.c.b16 %v384, %v382
  %v457 = vpack.c.b16 %v387, %v385
  %v458 = vpack.c.b16 %v388, %v386
  %v459 = vpack.c.b16 %v391, %v389
  %v460 = vpack.c.b16 %v392, %v390
  %v461 = vpack.c.b16 %v395, %v393
  %v462 = vpack.c.b16 %v396, %v394
  %v463 = vpack.c.b16 %v399, %v397
  %v464 = vpack.c.b16 %v400, %v398
  %v465 = vpack.c.b16 %v403, %v401
  %v466 = vpack.c.b16 %v404, %v402
  %v467 = vpack.c.b16 %v407, %v405
  %v468 = vpack.c.b16 %v408, %v406
  %v469 = vpack.c.b16 %v411, %v409
  %v470 = vpack.c.b16 %v412, %v410
  %v471 = vpack.c.b16 %v415, %v413
  %v472 = vpack.c.b16 %v416, %v414
  %v473 = vpack.c.b16 %v419, %v417
  %v474 = vpack.c.b16 %v420, %v418
  %v475 = vpack.c.b16 %v423, %v421
  %v476 = vpack.c.b16 %v424, %v422
  %v477 = vpack.c.b16 %v427, %v425
  %v478 = vpack.c.b16 %v428, %v426
  %v479 = vpack.c.b16 %v431, %v429
  %v480 = vpack.c.b16 %v432, %v430
  %529 = vmatprep.subr.bf16.mxu0 %v434
  %530 = vmatpush1.bf16.msra.mxu0 %v433
  %531 = vmatprep.subr.bf16.mxu0 %v436
  %532 = vmatpush1.bf16.msra.mxu0 %v435
  %533 = vmatprep.subr.bf16.mxu0 %v438
  %534 = vmatpush1.bf16.msra.mxu0 %v437
  %535 = vmatprep.subr.bf16.mxu0 %v440
  %536 = vmatpush1.bf16.msra.mxu0 %v439
  %537 = vmatprep.subr.bf16.mxu0 %v442
  %538 = vmatpush1.bf16.msra.mxu0 %v441
  %539 = vmatprep.subr.bf16.mxu0 %v444
  %540 = vmatpush1.bf16.msra.mxu0 %v443
  %541 = vmatprep.subr.bf16.mxu0 %v446
  %542 = vmatpush1.bf16.msra.mxu0 %v445
  %543 = vmatprep.subr.bf16.mxu0 %v448
  %544 = vmatpush1.bf16.msra.mxu0 %v447
  %545 = vmatprep.subr.bf16.mxu0 %v450
  %546 = vmatpush1.bf16.msra.mxu0 %v449
  %547 = vmatprep.subr.bf16.mxu0 %v452
  %548 = vmatpush1.bf16.msra.mxu0 %v451
  %549 = vmatprep.subr.bf16.mxu0 %v454
  %550 = vmatpush1.bf16.msra.mxu0 %v453
  %551 = vmatprep.subr.bf16.mxu0 %v456
  %552 = vmatpush1.bf16.msra.mxu0 %v455
  %553 = vmatprep.subr.bf16.mxu0 %v458
  %554 = vmatpush1.bf16.msra.mxu0 %v457
  %555 = vmatprep.subr.bf16.mxu0 %v460
  %556 = vmatpush1.bf16.msra.mxu0 %v459
  %557 = vmatprep.subr.bf16.mxu0 %v462
  %558 = vmatpush1.bf16.msra.mxu0 %v461
  %559 = vmatprep.subr.bf16.mxu0 %v464
  %560 = vmatpush1.bf16.msra.mxu0 %v463
  %561 = vmatprep.mubr.bf16.mxu0 %v224
  %562 = vmatmul.mubr.bf16.gmra.mrb[0].mxu0 %v223
  %v563 = vpop.f32.mrb[0].mxu0
  %v564 = vadd.f32 0.0, %v563
  %v565 = vpop.f32.mrb[0].mxu0
  %v566 = vadd.f32 0.0, %v565
  %v567 = vpop.f32.mrb[0].mxu0
  %v568 = vadd.f32 0.0, %v567
  %v569 = vpop.f32.mrb[0].mxu0
  %v570 = vadd.f32 0.0, %v569
  %571 = vmatprep.mubr.bf16.mxu0 %v227
  %572 = vmatmul.mubr.bf16.gmra.mrb[0].mxu0 %v226
  %v573 = vpop.f32.mrb[0].mxu0
  %v574 = vadd.f32 0.0, %v573
  %v575 = vpop.f32.mrb[0].mxu0
  %v576 = vadd.f32 0.0, %v575
  %v577 = vpop.f32.mrb[0].mxu0
  %v578 = vadd.f32 0.0, %v577
  %v579 = vpop.f32.mrb[0].mxu0
  %v580 = vadd.f32 0.0, %v579
  %581 = vmatprep.mubr.bf16.mxu0 %v230
  %582 = vmatmul.mubr.bf16.gmra.mrb[0].mxu0 %v229
  %v583 = vpop.f32.mrb[0].mxu0
  %v584 = vadd.f32 0.0, %v583
  %v585 = vpop.f32.mrb[0].mxu0
  %v586 = vadd.f32 0.0, %v585
  %v587 = vpop.f32.mrb[0].mxu0
  %v588 = vadd.f32 0.0, %v587
  %v589 = vpop.f32.mrb[0].mxu0
  %v590 = vadd.f32 0.0, %v589
  %591 = vmatprep.mubr.bf16.mxu0 %v233
  %592 = vmatmul.mubr.bf16.gmra.mrb[0].mxu0 %v232
  %v593 = vpop.f32.mrb[0].mxu0
  %v594 = vadd.f32 0.0, %v593
  %v595 = vpop.f32.mrb[0].mxu0
  %v596 = vadd.f32 0.0, %v595
  %v597 = vpop.f32.mrb[0].mxu0
  %v598 = vadd.f32 0.0, %v597
  %v599 = vpop.f32.mrb[0].mxu0
  %v600 = vadd.f32 0.0, %v599
  %601 = vmatprep.mubr.bf16.mxu0 %v236
  %602 = vmatmul.mubr.bf16.gmra.mrb[0].mxu0 %v235
  %v603 = vpop.f32.mrb[0].mxu0
  %v604 = vadd.f32 0.0, %v603
  %v605 = vpop.f32.mrb[0].mxu0
  %v606 = vadd.f32 0.0, %v605
  %v607 = vpop.f32.mrb[0].mxu0
  %v608 = vadd.f32 0.0, %v607
  %v609 = vpop.f32.mrb[0].mxu0
  %v610 = vadd.f32 0.0, %v609
  %611 = vmatprep.mubr.bf16.mxu0 %v239
  %612 = vmatmul.mubr.bf16.gmra.mrb[0].mxu0 %v238
  %v613 = vpop.f32.mrb[0].mxu0
  %v614 = vadd.f32 0.0, %v613
  %v615 = vpop.f32.mrb[0].mxu0
  %v616 = vadd.f32 0.0, %v615
  %v617 = vpop.f32.mrb[0].mxu0
  %v618 = vadd.f32 0.0, %v617
  %v619 = vpop.f32.mrb[0].mxu0
  %v620 = vadd.f32 0.0, %v619
  %621 = vmatprep.mubr.bf16.mxu0 %v242
  %622 = vmatmul.mubr.bf16.gmra.mrb[0].mxu0 %v241
  %v623 = vpop.f32.mrb[0].mxu0
  %v624 = vadd.f32 0.0, %v623
  %v625 = vpop.f32.mrb[0].mxu0
  %v626 = vadd.f32 0.0, %v625
  %v627 = vpop.f32.mrb[0].mxu0
  %v628 = vadd.f32 0.0, %v627
  %v629 = vpop.f32.mrb[0].mxu0
  %v630 = vadd.f32 0.0, %v629
  %631 = vmatprep.mubr.bf16.mxu0 %v245
  %632 = vmatmul.mubr.bf16.gmra.mrb[0].mxu0 %v244
  %v633 = vpop.f32.mrb[0].mxu0
  %v634 = vadd.f32 0.0, %v633
  %v635 = vpop.f32.mrb[0].mxu0
  %v636 = vadd.f32 0.0, %v635
  %v637 = vpop.f32.mrb[0].mxu0
  %v638 = vadd.f32 0.0, %v637
  %v639 = vpop.f32.mrb[0].mxu0
  %v640 = vadd.f32 0.0, %v639
  %641 = vmatprep.mubr.bf16.mxu0 %v248
  %642 = vmatmul.mubr.bf16.gmra.mrb[0].mxu0 %v247
  %v643 = vpop.f32.mrb[0].mxu0
  %v644 = vadd.f32 0.0, %v643
  %v645 = vpop.f32.mrb[0].mxu0
  %v646 = vadd.f32 0.0, %v645
  %v647 = vpop.f32.mrb[0].mxu0
  %v648 = vadd.f32 0.0, %v647
  %v649 = vpop.f32.mrb[0].mxu0
  %v650 = vadd.f32 0.0, %v649
  %651 = vmatprep.mubr.bf16.mxu0 %v251
  %652 = vmatmul.mubr.bf16.gmra.mrb[0].mxu0 %v250
  %v653 = vpop.f32.mrb[0].mxu0
  %v654 = vadd.f32 0.0, %v653
  %v655 = vpop.f32.mrb[0].mxu0
  %v656 = vadd.f32 0.0, %v655
  %v657 = vpop.f32.mrb[0].mxu0
  %v658 = vadd.f32 0.0, %v657
  %v659 = vpop.f32.mrb[0].mxu0
  %v660 = vadd.f32 0.0, %v659
  %661 = vmatprep.mubr.bf16.mxu0 %v254
  %662 = vmatmul.mubr.bf16.gmra.mrb[0].mxu0 %v253
  %v663 = vpop.f32.mrb[0].mxu0
  %v664 = vadd.f32 0.0, %v663
  %v665 = vpop.f32.mrb[0].mxu0
  %v666 = vadd.f32 0.0, %v665
  %v667 = vpop.f32.mrb[0].mxu0
  %v668 = vpop.f32.mrb[0].mxu0
  %669 = vdwg.mxu0
  %670 = vmatprep.subr.bf16.mxu0 %v466
  %671 = vmatpush1.bf16.msra.mxu0 %v465
  %672 = vmatprep.subr.bf16.mxu0 %v468
  %673 = vmatpush1.bf16.msra.mxu0 %v467
  %674 = vmatprep.subr.bf16.mxu0 %v470
  %675 = vmatpush1.bf16.msra.mxu0 %v469
  %676 = vmatprep.subr.bf16.mxu0 %v472
  %677 = vmatpush1.bf16.msra.mxu0 %v471
  %678 = vmatprep.subr.bf16.mxu0 %v474
  %679 = vmatpush1.bf16.msra.mxu0 %v473
  %680 = vmatprep.subr.bf16.mxu0 %v476
  %681 = vmatpush1.bf16.msra.mxu0 %v475
  %682 = vmatprep.subr.bf16.mxu0 %v478
  %683 = vmatpush1.bf16.msra.mxu0 %v477
  %684 = vmatprep.subr.bf16.mxu0 %v480
  %685 = vmatpush1.bf16.msra.mxu0 %v479
  %686 = vmatprep.subr.bf16.mxu0 0
  %687 = vmatpush1.bf16.msra.mxu0 0
  %688 = vmatprep.subr.bf16.mxu0 0
  %689 = vmatpush1.bf16.msra.mxu0 0
  %690 = vmatprep.subr.bf16.mxu0 0
  %691 = vmatpush1.bf16.msra.mxu0 0
  %692 = vmatprep.subr.bf16.mxu0 0
  %693 = vmatpush1.bf16.msra.mxu0 0
  %694 = vmatprep.subr.bf16.mxu0 0
  %695 = vmatpush1.bf16.msra.mxu0 0
  %696 = vmatprep.subr.bf16.mxu0 0
  %697 = vmatpush1.bf16.msra.mxu0 0
  %698 = vmatprep.subr.bf16.mxu0 0
  %699 = vmatpush1.bf16.msra.mxu0 0
  %700 = vmatprep.subr.bf16.mxu0 0
  %701 = vmatpush1.bf16.msra.mxu0 0
  %702 = vmatprep.mubr.bf16.mxu0 0
  %703 = vmatmul.mubr.bf16.gmra.mrb[0].mxu0 %v225
  %v704 = vpop.f32.mrb[0].mxu0
  %v705 = vadd.f32 %v564, %v704
  %v706 = vpop.f32.mrb[0].mxu0
  %v707 = vadd.f32 %v566, %v706
  %v708 = vpop.f32.mrb[0].mxu0
  %v709 = vadd.f32 %v568, %v708
  %v710 = vpop.f32.mrb[0].mxu0
  %v711 = vadd.f32 %v570, %v710
  %712 = vmatprep.mubr.bf16.mxu0 0
  %713 = vmatmul.mubr.bf16.gmra.mrb[0].mxu0 %v228
  %v714 = vpop.f32.mrb[0].mxu0
  %v715 = vadd.f32 %v574, %v714
  %v716 = vpop.f32.mrb[0].mxu0
  %v717 = vadd.f32 %v576, %v716
  %v718 = vpop.f32.mrb[0].mxu0
  %v719 = vadd.f32 %v578, %v718
  %v720 = vpop.f32.mrb[0].mxu0
  %v721 = vadd.f32 %v580, %v720
  %722 = vmatprep.mubr.bf16.mxu0 0
  %723 = vmatmul.mubr.bf16.gmra.mrb[0].mxu0 %v231
  %v724 = vpop.f32.mrb[0].mxu0
  %v725 = vadd.f32 %v584, %v724
  %v726 = vpop.f32.mrb[0].mxu0
  %v727 = vadd.f32 %v586, %v726
  %v728 = vpop.f32.mrb[0].mxu0
  %v729 = vadd.f32 %v588, %v728
  %v730 = vpop.f32.mrb[0].mxu0
  %v731 = vadd.f32 %v590, %v730
  %732 = vmatprep.mubr.bf16.mxu0 0
  %733 = vmatmul.mubr.bf16.gmra.mrb[0].mxu0 %v234
  %v734 = vpop.f32.mrb[0].mxu0
  %v735 = vadd.f32 %v594, %v734
  %v736 = vpop.f32.mrb[0].mxu0
  %v737 = vadd.f32 %v596, %v736
  %v738 = vpop.f32.mrb[0].mxu0
  %v739 = vadd.f32 %v598, %v738
  %v740 = vpop.f32.mrb[0].mxu0
  %v741 = vadd.f32 %v600, %v740
  %742 = vmatprep.mubr.bf16.mxu0 0
  %743 = vmatmul.mubr.bf16.gmra.mrb[0].mxu0 %v237
  %v744 = vpop.f32.mrb[0].mxu0
  %v745 = vadd.f32 %v604, %v744
  %v746 = vpop.f32.mrb[0].mxu0
  %v747 = vadd.f32 %v606, %v746
  %v748 = vpop.f32.mrb[0].mxu0
  %v749 = vadd.f32 %v608, %v748
  %v750 = vpop.f32.mrb[0].mxu0
  %v751 = vadd.f32 %v610, %v750
  %752 = vmatprep.mubr.bf16.mxu0 0
  %753 = vmatmul.mubr.bf16.gmra.mrb[0].mxu0 %v240
  %v754 = vpop.f32.mrb[0].mxu0
  %v755 = vadd.f32 %v614, %v754
  %v756 = vpop.f32.mrb[0].mxu0
  %v757 = vadd.f32 %v616, %v756
  %v758 = vpop.f32.mrb[0].mxu0
  %v759 = vadd.f32 %v618, %v758
  %v760 = vpop.f32.mrb[0].mxu0
  %v761 = vadd.f32 %v620, %v760
  %762 = vmatprep.mubr.bf16.mxu0 0
  %763 = vmatmul.mubr.bf16.gmra.mrb[0].mxu0 %v243
  %v764 = vpop.f32.mrb[0].mxu0
  %v765 = vadd.f32 %v624, %v764
  %v766 = vpop.f32.mrb[0].mxu0
  %v767 = vadd.f32 %v626, %v766
  %v768 = vpop.f32.mrb[0].mxu0
  %v769 = vadd.f32 %v628, %v768
  %v770 = vpop.f32.mrb[0].mxu0
  %v771 = vadd.f32 %v630, %v770
  %772 = vmatprep.mubr.bf16.mxu0 0
  %773 = vmatmul.mubr.bf16.gmra.mrb[0].mxu0 %v246
  %v774 = vpop.f32.mrb[0].mxu0
  %v775 = vadd.f32 %v634, %v774
  %v776 = vpop.f32.mrb[0].mxu0
  %v777 = vadd.f32 %v636, %v776
  %v778 = vpop.f32.mrb[0].mxu0
  %v779 = vadd.f32 %v638, %v778
  %v780 = vpop.f32.mrb[0].mxu0
  %v781 = vadd.f32 %v640, %v780
  %782 = vmatprep.mubr.bf16.mxu0 0
  %783 = vmatmul.mubr.bf16.gmra.mrb[0].mxu0 %v249
  %v784 = vpop.f32.mrb[0].mxu0
  %v785 = vadd.f32 %v644, %v784
  %v786 = vpop.f32.mrb[0].mxu0
  %v787 = vadd.f32 %v646, %v786
  %v788 = vpop.f32.mrb[0].mxu0
  %v789 = vadd.f32 %v648, %v788
  %v790 = vpop.f32.mrb[0].mxu0
  %v791 = vadd.f32 %v650, %v790
  %792 = vmatprep.mubr.bf16.mxu0 0
  %793 = vmatmul.mubr.bf16.gmra.mrb[0].mxu0 %v252
  %v794 = vpop.f32.mrb[0].mxu0
  %v795 = vadd.f32 %v654, %v794
  %v796 = vpop.f32.mrb[0].mxu0
  %v797 = vadd.f32 %v656, %v796
  %v798 = vpop.f32.mrb[0].mxu0
  %v799 = vadd.f32 %v658, %v798
  %v800 = vpop.f32.mrb[0].mxu0
  %v801 = vadd.f32 %v660, %v800
  %802 = vmatprep.mubr.bf16.mxu0 0
  %803 = vmatmul.mubr.bf16.gmra.mrb[0].mxu0 %v255
  %v804 = vpop.f32.mrb[0].mxu0
  %v805 = vadd.f32 %v664, %v804
  %v806 = vpop.f32.mrb[0].mxu0
  %v807 = vadd.f32 %v666, %v806
  %v808 = vpop.f32.mrb[0].mxu0
  %v809 = vpop.f32.mrb[0].mxu0
  %810 = vdwg.mxu0
  %811 = vst [vmem:[%s3] sm:$0xff] %v705
  %812 = vst [vmem:[%s3 + $0x8] sm:$0xff] %v707
  %813 = vst [vmem:[%s3 + $0x10] sm:$0xff] %v709
  %814 = vst [vmem:[%s3 + $0x18] sm:$0xff] %v711
  %815 = vst [vmem:[%s3 + $0x20] sm:$0xff] %v715
  %816 = vst [vmem:[%s3 + $0x28] sm:$0xff] %v717
  %817 = vst [vmem:[%s3 + $0x30] sm:$0xff] %v719
  %818 = vst [vmem:[%s3 + $0x38] sm:$0xff] %v721
  %819 = vst [vmem:[%s3 + $0x40] sm:$0xff] %v725
  %820 = vst [vmem:[%s3 + $0x48] sm:$0xff] %v727
  %821 = vst [vmem:[%s3 + $0x50] sm:$0xff] %v729
  %822 = vst [vmem:[%s3 + $0x58] sm:$0xff] %v731
  %823 = vst [vmem:[%s3 + $0x60] sm:$0xff] %v735
  %824 = vst [vmem:[%s3 + $0x68] sm:$0xff] %v737
  %825 = vst [vmem:[%s3 + $0x70] sm:$0xff] %v739
  %826 = vst [vmem:[%s3 + $0x78] sm:$0xff] %v741
  %827 = vst [vmem:[%s3 + $0x80] sm:$0xff] %v745
  %828 = vst [vmem:[%s3 + $0x88] sm:$0xff] %v747
  %829 = vst [vmem:[%s3 + $0x90] sm:$0xff] %v749
  %830 = vst [vmem:[%s3 + $0x98] sm:$0xff] %v751
  %831 = vst [vmem:[%s3 + $0xa0] sm:$0xff] %v755
  %832 = vst [vmem:[%s3 + $0xa8] sm:$0xff] %v757
  %833 = vst [vmem:[%s3 + $0xb0] sm:$0xff] %v759
  %834 = vst [vmem:[%s3 + $0xb8] sm:$0xff] %v761
  %835 = vst [vmem:[%s3 + $0xc0] sm:$0xff] %v765
  %836 = vst [vmem:[%s3 + $0xc8] sm:$0xff] %v767
  %837 = vst [vmem:[%s3 + $0xd0] sm:$0xff] %v769
  %838 = vst [vmem:[%s3 + $0xd8] sm:$0xff] %v771
  %839 = vst [vmem:[%s3 + $0xe0] sm:$0xff] %v775
  %840 = vst [vmem:[%s3 + $0xe8] sm:$0xff] %v777
  %841 = vst [vmem:[%s3 + $0xf0] sm:$0xff] %v779
  %842 = vst [vmem:[%s3 + $0xf8] sm:$0xff] %v781
  %843 = vst [vmem:[%s3 + $0x100] sm:$0xff] %v785
  %844 = vst [vmem:[%s3 + $0x108] sm:$0xff] %v787
  %845 = vst [vmem:[%s3 + $0x110] sm:$0xff] %v789
  %846 = vst [vmem:[%s3 + $0x118] sm:$0xff] %v791
  %847 = vst [vmem:[%s3 + $0x120] sm:$0xff] %v795
  %848 = vst [vmem:[%s3 + $0x128] sm:$0xff] %v797
  %849 = vst [vmem:[%s3 + $0x130] sm:$0xff] %v799
  %850 = vst [vmem:[%s3 + $0x138] sm:$0xff] %v801
  %851 = vst [vmem:[%s3 + $0x140] sm:$0xff] %v805
  %852 = vst [vmem:[%s3 + $0x148] sm:$0xff] %v807
  %v853 = vld [vmem:[%s2] sm:$0xff]
  %v854 = vld [vmem:[%s2 + $0x8] sm:$0xff]
  %v855 = vld [vmem:[%s2 + $0x10] sm:$0xff]
  %v856 = vld [vmem:[%s2 + $0x18] sm:$0xff]
  %v857 = vld [vmem:[%s2 + $0x20] sm:$0xff]
  %v858 = vld [vmem:[%s2 + $0x28] sm:$0xff]
  %v859 = vld [vmem:[%s2 + $0x30] sm:$0xff]
  %v860 = vld [vmem:[%s2 + $0x38] sm:$0xff]
  %v861 = vld [vmem:[%s2 + $0x40] sm:$0xff]
  %v862 = vld [vmem:[%s2 + $0x48] sm:$0xff]
  %v863 = vld [vmem:[%s2 + $0x50] sm:$0xff]
  %v864 = vld [vmem:[%s2 + $0x58] sm:$0xff]
  %v865 = vld [vmem:[%s2 + $0x60] sm:$0xff]
  %v866 = vld [vmem:[%s2 + $0x68] sm:$0xff]
  %v867 = vld [vmem:[%s2 + $0x70] sm:$0xff]
  %v868 = vld [vmem:[%s2 + $0x78] sm:$0xff]
  %v869 = vld [vmem:[%s2 + $0x80] sm:$0xff]
  %v870 = vld [vmem:[%s2 + $0x88] sm:$0xff]
  %v871 = vld [vmem:[%s2 + $0x90] sm:$0xff]
  %v872 = vld [vmem:[%s2 + $0x98] sm:$0xff]
  %v873 = vld [vmem:[%s2 + $0xa0] sm:$0xff]
  %v874 = vld [vmem:[%s2 + $0xa8] sm:$0xff]
  %v875 = vld [vmem:[%s2 + $0xb0] sm:$0xff]
  %v876 = vld [vmem:[%s2 + $0xb8] sm:$0xff]
  %v877 = vld [vmem:[%s2 + $0xc0] sm:$0xff]
  %v878 = vld [vmem:[%s2 + $0xc8] sm:$0xff]
  %v879 = vld [vmem:[%s2 + $0xd0] sm:$0xff]
  %v880 = vld [vmem:[%s2 + $0xd8] sm:$0xff]
  %v881 = vld [vmem:[%s2 + $0xe0] sm:$0xff]
  %v882 = vld [vmem:[%s2 + $0xe8] sm:$0xff]
  %v883 = vld [vmem:[%s2 + $0xf0] sm:$0xff]
  %v884 = vld [vmem:[%s2 + $0xf8] sm:$0xff]
  %v885 = vld [vmem:[%s2 + $0x100] sm:$0xff]
  %v886 = vld [vmem:[%s2 + $0x108] sm:$0xff]
  %v887 = vld [vmem:[%s2 + $0x110] sm:$0xff]
  %v888 = vld [vmem:[%s2 + $0x118] sm:$0xff]
  %v889 = vld [vmem:[%s2 + $0x120] sm:$0xff]
  %v890 = vld [vmem:[%s2 + $0x128] sm:$0xff]
  %v891 = vld [vmem:[%s2 + $0x130] sm:$0xff]
  %v892 = vld [vmem:[%s2 + $0x138] sm:$0xff]
  %v893 = vld [vmem:[%s2 + $0x140] sm:$0xff]
  %v894 = vld [vmem:[%s2 + $0x148] sm:$0xff]
  %v895 = vmul.f32 %v705, %v853
  %v896 = vmul.f32 %v707, %v854
  %v897 = vmul.f32 %v709, %v855
  %v898 = vmul.f32 %v711, %v856
  %v899 = vmul.f32 %v715, %v857
  %v900 = vmul.f32 %v717, %v858
  %v901 = vmul.f32 %v719, %v859
  %v902 = vmul.f32 %v721, %v860
  %v903 = vmul.f32 %v725, %v861
  %v904 = vmul.f32 %v727, %v862
  %v905 = vmul.f32 %v729, %v863
  %v906 = vmul.f32 %v731, %v864
  %v907 = vmul.f32 %v735, %v865
  %v908 = vmul.f32 %v737, %v866
  %v909 = vmul.f32 %v739, %v867
  %v910 = vmul.f32 %v741, %v868
  %v911 = vmul.f32 %v745, %v869
  %v912 = vmul.f32 %v747, %v870
  %v913 = vmul.f32 %v749, %v871
  %v914 = vmul.f32 %v751, %v872
  %v915 = vmul.f32 %v755, %v873
  %v916 = vmul.f32 %v757, %v874
  %v917 = vmul.f32 %v759, %v875
  %v918 = vmul.f32 %v761, %v876
  %v919 = vmul.f32 %v765, %v877
  %v920 = vmul.f32 %v767, %v878
  %v921 = vmul.f32 %v769, %v879
  %v922 = vmul.f32 %v771, %v880
  %v923 = vmul.f32 %v775, %v881
  %v924 = vmul.f32 %v777, %v882
  %v925 = vmul.f32 %v779, %v883
  %v926 = vmul.f32 %v781, %v884
  %v927 = vmul.f32 %v785, %v885
  %v928 = vmul.f32 %v787, %v886
  %v929 = vmul.f32 %v789, %v887
  %v930 = vmul.f32 %v791, %v888
  %v931 = vmul.f32 %v795, %v889
  %v932 = vmul.f32 %v797, %v890
  %v933 = vmul.f32 %v799, %v891
  %v934 = vmul.f32 %v801, %v892
  %v935 = vmul.f32 %v805, %v893
  %v936 = vmul.f32 %v807, %v894
  %v937 = vld [vmem:[%s4] sm:$0x3]
  %v938 = vadd.f32 %v895, %v897
  %v939 = vadd.f32 %v938, %v899
  %v940 = vadd.f32 %v939, %v901
  %v941 = vadd.f32 %v940, %v903
  %v942 = vadd.f32 %v941, %v905
  %v943 = vadd.f32 %v942, %v907
  %v944 = vadd.f32 %v943, %v909
  %v945 = vadd.f32 %v944, %v911
  %v946 = vadd.f32 %v945, %v913
  %v947 = vadd.f32 %v946, %v915
  %v948 = vadd.f32 %v947, %v917
  %v949 = vadd.f32 %v948, %v919
  %v950 = vadd.f32 %v949, %v921
  %v951 = vadd.f32 %v950, %v923
  %v952 = vadd.f32 %v951, %v925
  %v953 = vadd.f32 %v952, %v927
  %v954 = vadd.f32 %v953, %v929
  %v955 = vadd.f32 %v954, %v931
  %v956 = vadd.f32 %v955, %v933
  %v957 = vadd.f32 %v956, %v935
  %v958 = vrot.slane %v957, 4
  %v959 = vadd.f32 %v957, %v958
  %v960 = vrot.slane %v959, 2
  %v961 = vadd.f32 %v959, %v960
  %v962 = vrot.slane %v961, 1
  %v963 = vadd.f32 %v961, %v962
  %v964 = vadd.f32 %v896, %v898
  %v965 = vadd.f32 %v964, %v900
  %v966 = vadd.f32 %v965, %v902
  %v967 = vadd.f32 %v966, %v904
  %v968 = vadd.f32 %v967, %v906
  %v969 = vadd.f32 %v968, %v908
  %v970 = vadd.f32 %v969, %v910
  %v971 = vadd.f32 %v970, %v912
  %v972 = vadd.f32 %v971, %v914
  %v973 = vadd.f32 %v972, %v916
  %v974 = vadd.f32 %v973, %v918
  %v975 = vadd.f32 %v974, %v920
  %v976 = vadd.f32 %v975, %v922
  %v977 = vadd.f32 %v976, %v924
  %v978 = vadd.f32 %v977, %v926
  %v979 = vadd.f32 %v978, %v928
  %v980 = vadd.f32 %v979, %v930
  %v981 = vadd.f32 %v980, %v932
  %v982 = vadd.f32 %v981, %v934
  %v983 = vadd.f32 %v982, %v936
  %v984 = vrot.slane %v983, 4
  %v985 = vadd.f32 %v983, %v984
  %v986 = vrot.slane %v985, 2
  %v987 = vadd.f32 %v985, %v986
  %v988 = vrot.slane %v987, 1
  %v989 = vadd.f32 %v987, %v988
  %v992 = vcombine.low %v963, %v989
  %v994 = vunpack.c.l.s4 1966171168
  %v995 = vunpack.c.0.s8 %v994
  %v996 = vlaneseq
  %v997 = vshrl.u32 %v996, 7
  %v998 = vsub.s32 %v995, %v997
  %v999 = vrot.slane %v992, %v998
  %v1001 = vunpack.c.l.s4 1966171168
  %v1002 = vunpack.c.0.s8 %v1001
  %v1003 = vlaneseq
  %v1004 = vshrl.u32 %v1003, 7
  %v1005 = vsub.s32 %v1002, %v1004
  %v1006 = vrot.slane %v999, %v1005
  %v1008 = vadd.f32 %v937, %v1006
  %v1009 = vlaneseq
  %vm1010 = vcmp.ge.s32.totalorder %v1009, 0
  %vm1011 = vcmp.lt.s32.totalorder %v1009, 256
  %vm1012 = vmand %vm1010, %vm1011
  %1013 = vst.msk [vmem:[%s4] sm:$0x3] %vm1012, %v1008
  %v1014 = vld [vmem:[%s5] sm:$0x3]
  %v1015 = vmul.f32 %v705, %v895
  %v1016 = vmul.f32 %v707, %v896
  %v1017 = vmul.f32 %v709, %v897
  %v1018 = vmul.f32 %v711, %v898
  %v1019 = vmul.f32 %v715, %v899
  %v1020 = vmul.f32 %v717, %v900
  %v1021 = vmul.f32 %v719, %v901
  %v1022 = vmul.f32 %v721, %v902
  %v1023 = vmul.f32 %v725, %v903
  %v1024 = vmul.f32 %v727, %v904
  %v1025 = vmul.f32 %v729, %v905
  %v1026 = vmul.f32 %v731, %v906
  %v1027 = vmul.f32 %v735, %v907
  %v1028 = vmul.f32 %v737, %v908
  %v1029 = vmul.f32 %v739, %v909
  %v1030 = vmul.f32 %v741, %v910
  %v1031 = vmul.f32 %v745, %v911
  %v1032 = vmul.f32 %v747, %v912
  %v1033 = vmul.f32 %v749, %v913
  %v1034 = vmul.f32 %v751, %v914
  %v1035 = vmul.f32 %v755, %v915
  %v1036 = vmul.f32 %v757, %v916
  %v1037 = vmul.f32 %v759, %v917
  %v1038 = vmul.f32 %v761, %v918
  %v1039 = vmul.f32 %v765, %v919
  %v1040 = vmul.f32 %v767, %v920
  %v1041 = vmul.f32 %v769, %v921
  %v1042 = vmul.f32 %v771, %v922
  %v1043 = vmul.f32 %v775, %v923
  %v1044 = vmul.f32 %v777, %v924
  %v1045 = vmul.f32 %v779, %v925
  %v1046 = vmul.f32 %v781, %v926
  %v1047 = vmul.f32 %v785, %v927
  %v1048 = vmul.f32 %v787, %v928
  %v1049 = vmul.f32 %v789, %v929
  %v1050 = vmul.f32 %v791, %v930
  %v1051 = vmul.f32 %v795, %v931
  %v1052 = vmul.f32 %v797, %v932
  %v1053 = vmul.f32 %v799, %v933
  %v1054 = vmul.f32 %v801, %v934
  %v1055 = vmul.f32 %v805, %v935
  %v1056 = vmul.f32 %v807, %v936
  %v1057 = vadd.f32 %v1015, %v1017
  %v1058 = vadd.f32 %v1057, %v1019
  %v1059 = vadd.f32 %v1058, %v1021
  %v1060 = vadd.f32 %v1059, %v1023
  %v1061 = vadd.f32 %v1060, %v1025
  %v1062 = vadd.f32 %v1061, %v1027
  %v1063 = vadd.f32 %v1062, %v1029
  %v1064 = vadd.f32 %v1063, %v1031
  %v1065 = vadd.f32 %v1064, %v1033
  %v1066 = vadd.f32 %v1065, %v1035
  %v1067 = vadd.f32 %v1066, %v1037
  %v1068 = vadd.f32 %v1067, %v1039
  %v1069 = vadd.f32 %v1068, %v1041
  %v1070 = vadd.f32 %v1069, %v1043
  %v1071 = vadd.f32 %v1070, %v1045
  %v1072 = vadd.f32 %v1071, %v1047
  %v1073 = vadd.f32 %v1072, %v1049
  %v1074 = vadd.f32 %v1073, %v1051
  %v1075 = vadd.f32 %v1074, %v1053
  %v1076 = vadd.f32 %v1075, %v1055
  %v1077 = vrot.slane %v1076, 4
  %v1078 = vadd.f32 %v1076, %v1077
  %v1079 = vrot.slane %v1078, 2
  %v1080 = vadd.f32 %v1078, %v1079
  %v1081 = vrot.slane %v1080, 1
  %v1082 = vadd.f32 %v1080, %v1081
  %v1083 = vadd.f32 %v1016, %v1018
  %v1084 = vadd.f32 %v1083, %v1020
  %v1085 = vadd.f32 %v1084, %v1022
  %v1086 = vadd.f32 %v1085, %v1024
  %v1087 = vadd.f32 %v1086, %v1026
  %v1088 = vadd.f32 %v1087, %v1028
  %v1089 = vadd.f32 %v1088, %v1030
  %v1090 = vadd.f32 %v1089, %v1032
  %v1091 = vadd.f32 %v1090, %v1034
  %v1092 = vadd.f32 %v1091, %v1036
  %v1093 = vadd.f32 %v1092, %v1038
  %v1094 = vadd.f32 %v1093, %v1040
  %v1095 = vadd.f32 %v1094, %v1042
  %v1096 = vadd.f32 %v1095, %v1044
  %v1097 = vadd.f32 %v1096, %v1046
  %v1098 = vadd.f32 %v1097, %v1048
  %v1099 = vadd.f32 %v1098, %v1050
  %v1100 = vadd.f32 %v1099, %v1052
  %v1101 = vadd.f32 %v1100, %v1054
  %v1102 = vadd.f32 %v1101, %v1056
  %v1103 = vrot.slane %v1102, 4
  %v1104 = vadd.f32 %v1102, %v1103
  %v1105 = vrot.slane %v1104, 2
  %v1106 = vadd.f32 %v1104, %v1105
  %v1107 = vrot.slane %v1106, 1
  %v1108 = vadd.f32 %v1106, %v1107
  %v1111 = vcombine.low %v1082, %v1108
  %v1113 = vunpack.c.l.s4 1966171168
  %v1114 = vunpack.c.0.s8 %v1113
  %v1115 = vlaneseq
  %v1116 = vshrl.u32 %v1115, 7
  %v1117 = vsub.s32 %v1114, %v1116
  %v1118 = vrot.slane %v1111, %v1117
  %v1120 = vunpack.c.l.s4 1966171168
  %v1121 = vunpack.c.0.s8 %v1120
  %v1122 = vlaneseq
  %v1123 = vshrl.u32 %v1122, 7
  %v1124 = vsub.s32 %v1121, %v1123
  %v1125 = vrot.slane %v1118, %v1124
  %v1127 = vadd.f32 %v1014, %v1125
  %1128 = vst.msk [vmem:[%s5] sm:$0x3] %vm1012, %v1127
  // Predicated region
  $region18: #{generator_forward.13} parent=0 // pred_check
    _
  $region19: #{generator_forward.13} parent=0 // pred_check_branch
    %1130 = sbr.rel (0) target = $region21
  $region20: #{generator_forward.13} parent=0 // pred_region
    _
  $region21: #{generator_forward.13} parent=0 // pred_fallthru
    _
  // Predicated region
  $region22: #{generator_forward.13} parent=0 // pred_check
    _
  $region23: #{generator_forward.13} parent=0 // pred_check_branch
    %1132 = sbr.rel (0) target = $region25
  $region24: #{generator_forward.13} parent=0 // pred_region
    _
  $region25: #{generator_forward.13} parent=0 // pred_fallthru
    _
  // Predicated region
  $region26: #{generator_forward.13} parent=0 // pred_check
    _
  $region27: #{generator_forward.13} parent=0 // pred_check_branch
    %1134 = sbr.rel (0) target = $region29
  $region28: #{generator_forward.13} parent=0 // pred_region
    _
  $region29: #{generator_forward.13} parent=0 // pred_fallthru
    _
  // Predicated region
  $region30: #{generator_forward.13} parent=0 // pred_check
    _
  $region31: #{generator_forward.13} parent=0 // pred_check_branch
    %1136 = sbr.rel (0) target = $region33
  $region32: #{generator_forward.13} parent=0 // pred_region
    _
  $region33: #{generator_forward.13} parent=0 // pred_fallthru
    _
  // Predicated region
  $region34: #{generator_forward.13} parent=0 // pred_check
    _
  $region35: #{generator_forward.13} parent=0 // pred_check_branch
    %1138 = sbr.rel (0) target = $region37
  $region36: #{generator_forward.13} parent=0 // pred_region
    _
  $region37: #{generator_forward.13} parent=0 // pred_fallthru
    _
  // Predicated region
  $region38: #{generator_forward.13} parent=0 // pred_check
    _
  $region39: #{generator_forward.13} parent=0 // pred_check_branch
    %1140 = sbr.rel (0) target = $region41
  $region40: #{generator_forward.13} parent=0 // pred_region
    _
  $region41: #{generator_forward.13} parent=0 // pred_fallthru
    _

// kernel: generator_forward.15
$region0: #{generator_forward.15}
  #allocation0 [shape = 'u32[]', space=smem, size = 0x4, offset = 0x4, fixed_abs, tag = 'smem constant byte address 0x4 - core index']
  #allocation1 [shape = 'u32[144,128]{1,0:T(1,128)}', space=vmem, size = 0x12000, scoped, tag = 'internal scratch']
  %s0 = inlined_call_operand.vmem [shape: bf16[768,192], index: 0, kind: input, shape index: {}]
  %s1 = inlined_call_operand.vmem [shape: bf16[192,128], index: 1, kind: input, shape index: {}]
  %s2 = inlined_call_operand.vmem [shape: f32[1,128], index: 2, kind: input, shape index: {}]
  %s3 = inlined_call_operand.vmem [shape: f32[1,128], index: 3, kind: input, shape index: {}]
  %s4 = inlined_call_operand.vmem [shape: f32[768,128], index: 4, kind: output, shape index: {}]
  %s5 = sld [smem:[#allocation0]]
  $region49: #{generator_forward.15} parent=0
    _
  %s7 = ssub.s32 1, %s5
  %s8 = scalar_select 0, %s7, %s5
  loop: start=0, step=1, limit=5
  $region2: #{generator_forward.15} parent=0 // loop_pre_header
    _
  $region3: #{generator_forward.15} parent=0 // loop_header
    %s10 = sphi 0, %s14
    %p11 = scmp.ge.s32.totalorder %s10, 5
    %s17 = sphi 0, %s29
    %s18 = sphi 0, %s25
    %s19 = sphi 0, %s17
    %s20 = sphi 0, %s18
    %s21 = sphi 0, %s19
    %s22 = sphi 0, %s20
    %s32 = sphi 0, %s34
    %s35 = sphi 0, %s32
    %s36 = sphi 0, %s35
    %s52 = sphi 0, %s36
    %s58 = sphi 0, %s60
    %s61 = sphi 0, %s58
    %s62 = sphi 0, %s61
    %s78 = sphi 0, %s62
    %s84 = sphi 0, %s86
    %s87 = sphi 0, %s84
    %s88 = sphi 0, %s87
    %s104 = sphi 0, %s88
    %s110 = sphi 0, %s112
    %s113 = sphi 0, %s110
    %s114 = sphi 0, %s113
    %s130 = sphi 0, %s114
    %s138 = sphi 0, %s140
    %s141 = sphi 0, %s138
    %s142 = sphi 0, %s141
    %s158 = sphi 0, %s142
  $region4: #{generator_forward.15} parent=0 // loop_header_branch
    %13 = sbr.rel (%p11) target = $region8
  $region5: #{generator_forward.15} parent=0 // loop_body
    %s15 = ssub.s32 %s10, 1
    %s16 = ssub.s32 %s10, 2
    %s23 = sadd.s32 1, %s18
    %p24 = scmp.ge.s32.totalorder %s23, 1
    %s25 = scalar_select %p24, 0, %s23
    %s26 = sadd.s32 1, %s17
    %s27 = scalar_select %p24, %s26, %s17
    %p28 = scmp.ge.s32.totalorder %s27, 3
    %s29 = scalar_select %p28, 0, %s27
    %s30 = ssub.s32 %s17, %s29
    %p31 = scmp.eq.s32.totalorder %s30, 0
    %s33 = sadd.s32 %s32, 1
    %s34 = scalar_select %p31, %s32, %s33
    %p37 = pneg %p31
    %p38 = scmp.eq.s32.totalorder %s10, 2
    %p39 = por %p37, %p38
    %p40 = scmp.ne.s32.totalorder %s32, %s35
    %p41 = scmp.eq.s32.totalorder %s10, 0
    %p42 = por %p40, %p41
    %p43 = scmp.ne.s32.totalorder %s32, %s35
    %p44 = scmp.eq.s32.totalorder %s15, 2
    %p45 = por %p43, %p44
    %p46 = scmp.ne.s32.totalorder %s35, %s36
    %p47 = scmp.eq.s32.totalorder %s15, 0
    %p48 = por %p46, %p47
    %p49 = scmp.ne.s32.totalorder %s35, %s36
    %p50 = scmp.eq.s32.totalorder %s16, 2
    %p51 = por %p49, %p50
    %p53 = scmp.ne.s32.totalorder %s36, %s52
    %p54 = scmp.eq.s32.totalorder %s16, 0
    %p55 = por %p53, %p54
    %s56 = ssub.s32 %s18, %s25
    %p57 = scmp.eq.s32.totalorder %s56, 0
    %s59 = sadd.s32 %s58, 1
    %s60 = scalar_select %p57, %s58, %s59
    %p63 = pneg %p57
    %p64 = scmp.eq.s32.totalorder %s10, 2
    %p65 = por %p63, %p64
    %p66 = scmp.ne.s32.totalorder %s58, %s61
    %p67 = scmp.eq.s32.totalorder %s10, 0
    %p68 = por %p66, %p67
    %p69 = scmp.ne.s32.totalorder %s58, %s61
    %p70 = scmp.eq.s32.totalorder %s15, 2
    %p71 = por %p69, %p70
    %p72 = scmp.ne.s32.totalorder %s61, %s62
    %p73 = scmp.eq.s32.totalorder %s15, 0
    %p74 = por %p72, %p73
    %p75 = scmp.ne.s32.totalorder %s61, %s62
    %p76 = scmp.eq.s32.totalorder %s16, 2
    %p77 = por %p75, %p76
    %p79 = scmp.ne.s32.totalorder %s62, %s78
    %p80 = scmp.eq.s32.totalorder %s16, 0
    %p81 = por %p79, %p80
    %s82 = ssub.s32 %s18, %s25
    %p83 = scmp.eq.s32.totalorder %s82, 0
    %s85 = sadd.s32 %s84, 1
    %s86 = scalar_select %p83, %s84, %s85
    %p89 = pneg %p83
    %p90 = scmp.eq.s32.totalorder %s10, 2
    %p91 = por %p89, %p90
    %p92 = scmp.ne.s32.totalorder %s84, %s87
    %p93 = scmp.eq.s32.totalorder %s10, 0
    %p94 = por %p92, %p93
    %p95 = scmp.ne.s32.totalorder %s84, %s87
    %p96 = scmp.eq.s32.totalorder %s15, 2
    %p97 = por %p95, %p96
    %p98 = scmp.ne.s32.totalorder %s87, %s88
    %p99 = scmp.eq.s32.totalorder %s15, 0
    %p100 = por %p98, %p99
    %p101 = scmp.ne.s32.totalorder %s87, %s88
    %p102 = scmp.eq.s32.totalorder %s16, 2
    %p103 = por %p101, %p102
    %p105 = scmp.ne.s32.totalorder %s88, %s104
    %p106 = scmp.eq.s32.totalorder %s16, 0
    %p107 = por %p105, %p106
    %s108 = ssub.s32 %s18, %s25
    %p109 = scmp.eq.s32.totalorder %s108, 0
    %s111 = sadd.s32 %s110, 1
    %s112 = scalar_select %p109, %s110, %s111
    %p115 = pneg %p109
    %p116 = scmp.eq.s32.totalorder %s10, 2
    %p117 = por %p115, %p116
    %p118 = scmp.ne.s32.totalorder %s110, %s113
    %p119 = scmp.eq.s32.totalorder %s10, 0
    %p120 = por %p118, %p119
    %p121 = scmp.ne.s32.totalorder %s110, %s113
    %p122 = scmp.eq.s32.totalorder %s15, 2
    %p123 = por %p121, %p122
    %p124 = scmp.ne.s32.totalorder %s113, %s114
    %p125 = scmp.eq.s32.totalorder %s15, 0
    %p126 = por %p124, %p125
    %p127 = scmp.ne.s32.totalorder %s113, %s114
    %p128 = scmp.eq.s32.totalorder %s16, 2
    %p129 = por %p127, %p128
    %p131 = scmp.ne.s32.totalorder %s114, %s130
    %p132 = scmp.eq.s32.totalorder %s16, 0
    %p133 = por %p131, %p132
    %s134 = ssub.s32 %s17, %s29
    %s135 = ssub.s32 %s18, %s25
    %s136 = sor.u32 %s134, %s135
    %p137 = scmp.eq.s32.totalorder %s136, 0
    %s139 = sadd.s32 %s138, 1
    %s140 = scalar_select %p137, %s138, %s139
    %p143 = pneg %p137
    %p144 = scmp.eq.s32.totalorder %s10, 2
    %p145 = por %p143, %p144
    %p146 = scmp.ne.s32.totalorder %s138, %s141
    %p147 = scmp.eq.s32.totalorder %s10, 0
    %p148 = por %p146, %p147
    %p149 = scmp.ne.s32.totalorder %s138, %s141
    %p150 = scmp.eq.s32.totalorder %s15, 2
    %p151 = por %p149, %p150
    %p152 = scmp.ne.s32.totalorder %s141, %s142
    %p153 = scmp.eq.s32.totalorder %s15, 0
    %p154 = por %p152, %p153
    %p155 = scmp.ne.s32.totalorder %s141, %s142
    %p156 = scmp.eq.s32.totalorder %s16, 2
    %p157 = por %p155, %p156
    %p159 = scmp.ne.s32.totalorder %s142, %s158
    %p160 = scmp.eq.s32.totalorder %s16, 0
    %p161 = por %p159, %p160
    %p162 = scmp.le.s32.totalorder 1, %s10
    %p163 = scmp.lt.s32.totalorder %s10, 4
    %p164 = pnand %p162, %p163
    %p165 = pneg %p164
    // Predicated region
    $region9: #{generator_forward.15} parent=5 // pred_check
      _
    $region10: #{generator_forward.15} parent=5 // pred_check_branch
      %167 = sbr.rel (%p164) target = $region12
    $region11: #{generator_forward.15} parent=5 // pred_region
      %s168 = ssub.s32 %s10, 1
      // Predicated region
      $region13: #{generator_forward.15} parent=11 // pred_check
        %p169 = pneg %p74
      $region14: #{generator_forward.15} parent=11 // pred_check_branch
        %171 = sbr.rel (%p169) target = $region16
      $region15: #{generator_forward.15} parent=11 // pred_region
        %p172 = scmp.lt.s32.totalorder %s20, 0
        %s173 = scalar_select %p172, %s20, 0
        %s174 = smul.addr %s173, 4
        %s175 = scalar_lea.vmem %s1, %s174
      $region16: #{generator_forward.15} parent=11 // pred_fallthru
        _
      // Predicated region
      $region17: #{generator_forward.15} parent=11 // pred_check
        %p176 = pneg %p100
      $region18: #{generator_forward.15} parent=11 // pred_check_branch
        %178 = sbr.rel (%p176) target = $region20
      $region19: #{generator_forward.15} parent=11 // pred_region
        %p179 = scmp.lt.s32.totalorder %s20, 0
        %s180 = scalar_select %p179, %s20, 0
        %s181 = scalar_lea.vmem %s2, %s180
      $region20: #{generator_forward.15} parent=11 // pred_fallthru
        _
      // Predicated region
      $region21: #{generator_forward.15} parent=11 // pred_check
        %p182 = pneg %p126
      $region22: #{generator_forward.15} parent=11 // pred_check_branch
        %184 = sbr.rel (%p182) target = $region24
      $region23: #{generator_forward.15} parent=11 // pred_region
        %p185 = scmp.lt.s32.totalorder %s20, 0
        %s186 = scalar_select %p185, %s20, 0
        %s187 = scalar_lea.vmem %s3, %s186
      $region24: #{generator_forward.15} parent=11 // pred_fallthru
        _
    $region12: #{generator_forward.15} parent=5 // pred_fallthru
      _
    %p188 = scmp.lt.s32.totalorder %s10, 3
    // Predicated region
    $region25: #{generator_forward.15} parent=5 // pred_check
      %p189 = pneg %p188
    $region26: #{generator_forward.15} parent=5 // pred_check_branch
      %191 = sbr.rel (%p189) target = $region28
    $region27: #{generator_forward.15} parent=5 // pred_region
      // Predicated region
      $region29: #{generator_forward.15} parent=27 // pred_check
        %p192 = pneg %p42
      $region30: #{generator_forward.15} parent=27 // pred_check_branch
        %194 = sbr.rel (%p192) target = $region32
      $region31: #{generator_forward.15} parent=27 // pred_region
        %s195 = smul.u32 32, %s17
        %p196 = scmp.lt.s32.totalorder %s195, 95
        %s197 = scalar_select %p196, %s195, 95
        %s198 = smul.addr %s197, 2
        %s199 = smul.addr %s198, 4
        %s200 = scalar_lea.vmem %s0, %s199
        %s201 = smul.u32 32, %s17
      $region32: #{generator_forward.15} parent=27 // pred_fallthru
        _
    $region28: #{generator_forward.15} parent=5 // pred_fallthru
      _
    %p202 = scmp.le.s32.totalorder 1, %s10
    %p203 = scmp.lt.s32.totalorder %s10, 4
    %p204 = pnand %p202, %p203
    %p205 = pneg %p204
    // Predicated region
    $region33: #{generator_forward.15} parent=5 // pred_check
      _
    $region34: #{generator_forward.15} parent=5 // pred_check_branch
      %207 = sbr.rel (%p204) target = $region36
    $region35: #{generator_forward.15} parent=5 // pred_region
      %s208 = ssub.s32 %s10, 1
      %s209 = smul.u32 32, %s19
      %p210 = scmp.lt.s32.totalorder %s209, 95
      %s211 = scalar_select %p210, %s209, 95
      %s212 = smul.addr %s211, 2
      %s213 = smul.addr %s212, 4
      %s214 = scalar_lea.vmem %s0, %s213
      %p215 = pneg %p48
      %p216 = pneg %p45
      %p217 = scmp.lt.s32.totalorder %s20, 0
      %s218 = scalar_select %p217, %s20, 0
      %s219 = smul.addr %s218, 4
      %s220 = scalar_lea.vmem %s1, %s219
      %p221 = pneg %p74
      %p222 = pneg %p71
      %p223 = scmp.lt.s32.totalorder %s20, 0
      %s224 = scalar_select %p223, %s20, 0
      %s225 = scalar_lea.vmem %s2, %s224
      %p226 = pneg %p100
      %p227 = pneg %p97
      %p228 = scmp.lt.s32.totalorder %s20, 0
      %s229 = scalar_select %p228, %s20, 0
      %s230 = scalar_lea.vmem %s3, %s229
      %p231 = pneg %p126
      %p232 = pneg %p123
      %p233 = pneg %p154
      %p234 = pneg %p151
      %s235 = smul.u32 32, %s19
      %p236 = scmp.lt.s32.totalorder %s235, 95
      %s237 = scalar_select %p236, %s235, 95
      %p238 = scmp.lt.s32.totalorder %s20, 0
      %s239 = scalar_select %p238, %s20, 0
      %s240 = sadd.s32 %s239, %s237
      %s241 = smul.addr %s240, 8
      %s242 = scalar_lea.vmem %s4, %s241
      %s243 = smul.u32 32, %s19
      %p244 = scmp.lt.s32.totalorder %s243, 95
      %s245 = scalar_select %p244, %s243, 95
      %s246 = smul.addr %s245, 2
      %s247 = smul.addr %s246, 4
      %s248 = scalar_lea.vmem %s0, %s247
      %s249 = smul.u32 32, %s19
      %p250 = scmp.lt.s32.totalorder %s20, 0
      %s251 = scalar_select %p250, %s20, 0
      %s252 = smul.addr %s251, 4
      %s253 = scalar_lea.vmem %s1, %s252
      %p254 = scmp.lt.s32.totalorder %s20, 0
      %s255 = scalar_select %p254, %s20, 0
      %s256 = scalar_lea.vmem %s2, %s255
      %p257 = scmp.lt.s32.totalorder %s20, 0
      %s258 = scalar_select %p257, %s20, 0
      %s259 = scalar_lea.vmem %s3, %s258
      %s260 = smul.u32 32, %s19
      %p261 = scmp.lt.s32.totalorder %s260, 95
      %s262 = scalar_select %p261, %s260, 95
      %p263 = scmp.lt.s32.totalorder %s20, 0
      %s264 = scalar_select %p263, %s20, 0
      %s265 = sadd.s32 %s264, %s262
      %s266 = smul.addr %s265, 8
      %s267 = scalar_lea.vmem %s4, %s266
      %s268 = smul.u32 32, %s19
      %v270 = vld [vmem:[%s248] sm:$0xff]
      %v271 = vld [vmem:[%s248 + $0x8] sm:$0xff]
      %v272 = vld [vmem:[%s248 + $0x10] sm:$0xff]
      %v273 = vld [vmem:[%s248 + $0x18] sm:$0xff]
      %v274 = vld [vmem:[%s248 + $0x20] sm:$0xff]
      %v275 = vld [vmem:[%s248 + $0x28] sm:$0xff]
      %v276 = vld [vmem:[%s248 + $0x30] sm:$0xff]
      %v277 = vld [vmem:[%s248 + $0x38] sm:$0xff]
      %v278 = vld [vmem:[%s248 + $0x40] sm:$0xff]
      %v279 = vld [vmem:[%s248 + $0x48] sm:$0xff]
      %v280 = vld [vmem:[%s248 + $0x50] sm:$0xff]
      %v281 = vld [vmem:[%s248 + $0x58] sm:$0xff]
      %v282 = vld [vmem:[%s248 + $0x60] sm:$0xff]
      %v283 = vld [vmem:[%s248 + $0x68] sm:$0xff]
      %v284 = vld [vmem:[%s248 + $0x70] sm:$0xff]
      %v285 = vld [vmem:[%s248 + $0x78] sm:$0xff]
      %v286 = vld [vmem:[%s248 + $0x80] sm:$0xff]
      %v287 = vld [vmem:[%s248 + $0x88] sm:$0xff]
      %v288 = vld [vmem:[%s248 + $0x90] sm:$0xff]
      %v289 = vld [vmem:[%s248 + $0x98] sm:$0xff]
      %v290 = vld [vmem:[%s248 + $0xa0] sm:$0xff]
      %v291 = vld [vmem:[%s248 + $0xa8] sm:$0xff]
      %v292 = vld [vmem:[%s248 + $0xb0] sm:$0xff]
      %v293 = vld [vmem:[%s248 + $0xb8] sm:$0xff]
      %v294 = vld [vmem:[%s248 + $0xc0] sm:$0xff]
      %v295 = vld [vmem:[%s248 + $0xc8] sm:$0xff]
      %v296 = vld [vmem:[%s248 + $0xd0] sm:$0xff]
      %v297 = vld [vmem:[%s248 + $0xd8] sm:$0xff]
      %v298 = vld [vmem:[%s248 + $0xe0] sm:$0xff]
      %v299 = vld [vmem:[%s248 + $0xe8] sm:$0xff]
      %v300 = vld [vmem:[%s248 + $0xf0] sm:$0xff]
      %v301 = vld [vmem:[%s248 + $0xf8] sm:$0xff]
      %v302 = vld [vmem:[%s253] sm:$0xf]
      %v303 = vld [vmem:[%s253 + $0x4] sm:$0xf]
      %v304 = vld [vmem:[%s253 + $0x8] sm:$0xf]
      %v305 = vld [vmem:[%s253 + $0xc] sm:$0xf]
      %v306 = vld [vmem:[%s253 + $0x10] sm:$0xf]
      %v307 = vld [vmem:[%s253 + $0x14] sm:$0xf]
      %v308 = vld [vmem:[%s253 + $0x18] sm:$0xf]
      %v309 = vld [vmem:[%s253 + $0x1c] sm:$0xf]
      %v310 = vld [vmem:[%s253 + $0x20] sm:$0xf]
      %v311 = vld [vmem:[%s253 + $0x24] sm:$0xf]
      %v312 = vld [vmem:[%s253 + $0x28] sm:$0xf]
      %v313 = vld [vmem:[%s253 + $0x2c] sm:$0xf]
      %v314 = vld [vmem:[%s253 + $0x30] sm:$0xf]
      %v315 = vld [vmem:[%s253 + $0x34] sm:$0xf]
      %v316 = vld [vmem:[%s253 + $0x38] sm:$0xf]
      %v317 = vld [vmem:[%s253 + $0x3c] sm:$0xf]
      %v318 = vld [vmem:[%s253 + $0x40] sm:$0xf]
      %v319 = vld [vmem:[%s253 + $0x44] sm:$0xf]
      %v320 = vld [vmem:[%s253 + $0x48] sm:$0xf]
      %v321 = vld [vmem:[%s253 + $0x4c] sm:$0xf]
      %v322 = vld [vmem:[%s253 + $0x50] sm:$0xf]
      %v323 = vld [vmem:[%s253 + $0x54] sm:$0xf]
      %v324 = vld [vmem:[%s253 + $0x58] sm:$0xf]
      %v325 = vld [vmem:[%s253 + $0x5c] sm:$0xf]
      %v358 = vunpack.c.l.b16 %v270
      %v359 = vunpack.c.h.b16 %v270
      %v360 = vunpack.c.l.b16 %v271
      %v361 = vunpack.c.h.b16 %v271
      %v362 = vunpack.c.l.b16 %v272
      %v363 = vunpack.c.h.b16 %v272
      %v364 = vunpack.c.l.b16 %v273
      %v365 = vunpack.c.h.b16 %v273
      %v366 = vunpack.c.l.b16 %v274
      %v367 = vunpack.c.h.b16 %v274
      %v368 = vunpack.c.l.b16 %v275
      %v369 = vunpack.c.h.b16 %v275
      %v370 = vunpack.c.l.b16 %v276
      %v371 = vunpack.c.h.b16 %v276
      %v372 = vunpack.c.l.b16 %v277
      %v373 = vunpack.c.h.b16 %v277
      %v374 = vunpack.c.l.b16 %v278
      %v375 = vunpack.c.h.b16 %v278
      %v376 = vunpack.c.l.b16 %v279
      %v377 = vunpack.c.h.b16 %v279
      %v378 = vunpack.c.l.b16 %v280
      %v379 = vunpack.c.h.b16 %v280
      %v380 = vunpack.c.l.b16 %v281
      %v381 = vunpack.c.h.b16 %v281
      %v382 = vunpack.c.l.b16 %v282
      %v383 = vunpack.c.h.b16 %v282
      %v384 = vunpack.c.l.b16 %v283
      %v385 = vunpack.c.h.b16 %v283
      %v386 = vunpack.c.l.b16 %v284
      %v387 = vunpack.c.h.b16 %v284
      %v388 = vunpack.c.l.b16 %v285
      %v389 = vunpack.c.h.b16 %v285
      %v390 = vunpack.c.l.b16 %v286
      %v391 = vunpack.c.h.b16 %v286
      %v392 = vunpack.c.l.b16 %v287
      %v393 = vunpack.c.h.b16 %v287
      %v394 = vunpack.c.l.b16 %v288
      %v395 = vunpack.c.h.b16 %v288
      %v396 = vunpack.c.l.b16 %v289
      %v397 = vunpack.c.h.b16 %v289
      %v398 = vunpack.c.l.b16 %v290
      %v399 = vunpack.c.h.b16 %v290
      %v400 = vunpack.c.l.b16 %v291
      %v401 = vunpack.c.h.b16 %v291
      %v402 = vunpack.c.l.b16 %v292
      %v403 = vunpack.c.h.b16 %v292
      %v404 = vunpack.c.l.b16 %v293
      %v405 = vunpack.c.h.b16 %v293
      %v406 = vunpack.c.l.b16 %v294
      %v407 = vunpack.c.h.b16 %v294
      %v408 = vunpack.c.l.b16 %v295
      %v409 = vunpack.c.h.b16 %v295
      %v410 = vunpack.c.l.b16 %v296
      %v411 = vunpack.c.h.b16 %v296
      %v412 = vunpack.c.l.b16 %v297
      %v413 = vunpack.c.h.b16 %v297
      %v414 = vunpack.c.l.b16 %v298
      %v415 = vunpack.c.h.b16 %v298
      %v416 = vunpack.c.l.b16 %v299
      %v417 = vunpack.c.h.b16 %v299
      %v418 = vunpack.c.l.b16 %v300
      %v419 = vunpack.c.h.b16 %v300
      %v420 = vunpack.c.l.b16 %v301
      %v421 = vunpack.c.h.b16 %v301
      %v422 = vpack.c.b16 %v360, %v358
      %v423 = vpack.c.b16 %v361, %v359
      %v424 = vpack.c.b16 %v364, %v362
      %v425 = vpack.c.b16 %v365, %v363
      %v426 = vpack.c.b16 %v368, %v366
      %v427 = vpack.c.b16 %v369, %v367
      %v428 = vpack.c.b16 %v372, %v370
      %v429 = vpack.c.b16 %v373, %v371
      %v430 = vpack.c.b16 %v376, %v374
      %v431 = vpack.c.b16 %v377, %v375
      %v432 = vpack.c.b16 %v380, %v378
      %v433 = vpack.c.b16 %v381, %v379
      %v434 = vpack.c.b16 %v384, %v382
      %v435 = vpack.c.b16 %v385, %v383
      %v436 = vpack.c.b16 %v388, %v386
      %v437 = vpack.c.b16 %v389, %v387
      %v438 = vpack.c.b16 %v392, %v390
      %v439 = vpack.c.b16 %v393, %v391
      %v440 = vpack.c.b16 %v396, %v394
      %v441 = vpack.c.b16 %v397, %v395
      %v442 = vpack.c.b16 %v400, %v398
      %v443 = vpack.c.b16 %v401, %v399
      %v444 = vpack.c.b16 %v404, %v402
      %v445 = vpack.c.b16 %v405, %v403
      %v446 = vpack.c.b16 %v408, %v406
      %v447 = vpack.c.b16 %v409, %v407
      %v448 = vpack.c.b16 %v412, %v410
      %v449 = vpack.c.b16 %v413, %v411
      %v450 = vpack.c.b16 %v416, %v414
      %v451 = vpack.c.b16 %v417, %v415
      %v452 = vpack.c.b16 %v420, %v418
      %v453 = vpack.c.b16 %v421, %v419
      %v494 = vunpack.c.l.b16 %v302
      %v495 = vunpack.c.l.b16 %v303
      %v496 = vunpack.c.l.b16 %v304
      %v497 = vunpack.c.l.b16 %v305
      %v498 = vunpack.c.l.b16 %v306
      %v499 = vunpack.c.l.b16 %v307
      %v500 = vunpack.c.l.b16 %v308
      %v501 = vunpack.c.l.b16 %v309
      %v502 = vunpack.c.l.b16 %v310
      %v503 = vunpack.c.l.b16 %v311
      %v504 = vunpack.c.l.b16 %v312
      %v505 = vunpack.c.l.b16 %v313
      %v506 = vunpack.c.l.b16 %v314
      %v507 = vunpack.c.l.b16 %v315
      %v508 = vunpack.c.l.b16 %v316
      %v509 = vunpack.c.l.b16 %v317
      %v510 = vunpack.c.l.b16 %v318
      %v511 = vunpack.c.l.b16 %v319
      %v512 = vunpack.c.l.b16 %v320
      %v513 = vunpack.c.l.b16 %v321
      %v514 = vunpack.c.l.b16 %v322
      %v515 = vunpack.c.l.b16 %v323
      %v516 = vunpack.c.l.b16 %v324
      %v517 = vunpack.c.l.b16 %v325
      %v518 = vpack.c.b16 %v495, %v494
      %v519 = vpack.c.b16 %v497, %v496
      %v520 = vpack.c.b16 %v499, %v498
      %v521 = vpack.c.b16 %v501, %v500
      %v522 = vpack.c.b16 %v503, %v502
      %v523 = vpack.c.b16 %v505, %v504
      %v524 = vpack.c.b16 %v507, %v506
      %v525 = vpack.c.b16 %v509, %v508
      %v526 = vpack.c.b16 %v511, %v510
      %v527 = vpack.c.b16 %v513, %v512
      %v528 = vpack.c.b16 %v515, %v514
      %v529 = vpack.c.b16 %v517, %v516
      %vm542 = vcmask 523264
      %v544 = vsel %vm542, %v423, 0
      %v547 = vsel %vm542, %v425, 0
      %v550 = vsel %vm542, %v427, 0
      %v553 = vsel %vm542, %v429, 0
      %v556 = vsel %vm542, %v431, 0
      %v559 = vsel %vm542, %v433, 0
      %v562 = vsel %vm542, %v435, 0
      %v565 = vsel %vm542, %v437, 0
      %v568 = vsel %vm542, %v439, 0
      %v571 = vsel %vm542, %v441, 0
      %v574 = vsel %vm542, %v443, 0
      %v577 = vsel %vm542, %v445, 0
      %v580 = vsel %vm542, %v447, 0
      %v583 = vsel %vm542, %v449, 0
      %v586 = vsel %vm542, %v451, 0
      %v589 = vsel %vm542, %v453, 0
      %591 = vmatprep.subr.bf16.mxu0 0
      %592 = vmatpush1.bf16.msra.mxu0 %v518
      %593 = vmatprep.subr.bf16.mxu0 0
      %594 = vmatpush1.bf16.msra.mxu0 %v519
      %595 = vmatprep.subr.bf16.mxu0 0
      %596 = vmatpush1.bf16.msra.mxu0 %v520
      %597 = vmatprep.subr.bf16.mxu0 0
      %598 = vmatpush1.bf16.msra.mxu0 %v521
      %599 = vmatprep.subr.bf16.mxu0 0
      %600 = vmatpush1.bf16.msra.mxu0 %v522
      %601 = vmatprep.subr.bf16.mxu0 0
      %602 = vmatpush1.bf16.msra.mxu0 %v523
      %603 = vmatprep.subr.bf16.mxu0 0
      %604 = vmatpush1.bf16.msra.mxu0 %v524
      %605 = vmatprep.subr.bf16.mxu0 0
      %606 = vmatpush1.bf16.msra.mxu0 %v525
      %607 = vmatprep.subr.bf16.mxu0 0
      %608 = vmatpush1.bf16.msra.mxu0 %v526
      %609 = vmatprep.subr.bf16.mxu0 0
      %610 = vmatpush1.bf16.msra.mxu0 %v527
      %611 = vmatprep.subr.bf16.mxu0 0
      %612 = vmatpush1.bf16.msra.mxu0 %v528
      %613 = vmatprep.subr.bf16.mxu0 0
      %614 = vmatpush1.bf16.msra.mxu0 %v529
      %615 = vmatprep.subr.bf16.mxu0 0
      %616 = vmatpush1.bf16.msra.mxu0 0
      %617 = vmatprep.subr.bf16.mxu0 0
      %618 = vmatpush1.bf16.msra.mxu0 0
      %619 = vmatprep.subr.bf16.mxu0 0
      %620 = vmatpush1.bf16.msra.mxu0 0
      %621 = vmatprep.subr.bf16.mxu0 0
      %622 = vmatpush1.bf16.msra.mxu0 0
      %623 = vmatprep.mubr.bf16.mxu0 %v544
      %624 = vmatmul.mubr.bf16.gmra.mrb[0].mxu0 %v422
      %v625 = vpop.f32.mrb[0].mxu0
      %v626 = vadd.f32 0.0, %v625
      %v627 = vpop.f32.mrb[0].mxu0
      %v628 = vpop.f32.mrb[0].mxu0
      %v629 = vadd.f32 0.0, %v628
      %v630 = vpop.f32.mrb[0].mxu0
      %631 = vmatprep.mubr.bf16.mxu0 %v547
      %632 = vmatmul.mubr.bf16.gmra.mrb[0].mxu0 %v424
      %v633 = vpop.f32.mrb[0].mxu0
      %v634 = vadd.f32 0.0, %v633
      %v635 = vpop.f32.mrb[0].mxu0
      %v636 = vpop.f32.mrb[0].mxu0
      %v637 = vadd.f32 0.0, %v636
      %v638 = vpop.f32.mrb[0].mxu0
      %639 = vmatprep.mubr.bf16.mxu0 %v550
      %640 = vmatmul.mubr.bf16.gmra.mrb[0].mxu0 %v426
      %v641 = vpop.f32.mrb[0].mxu0
      %v642 = vadd.f32 0.0, %v641
      %v643 = vpop.f32.mrb[0].mxu0
      %v644 = vpop.f32.mrb[0].mxu0
      %v645 = vadd.f32 0.0, %v644
      %v646 = vpop.f32.mrb[0].mxu0
      %647 = vmatprep.mubr.bf16.mxu0 %v553
      %648 = vmatmul.mubr.bf16.gmra.mrb[0].mxu0 %v428
      %v649 = vpop.f32.mrb[0].mxu0
      %v650 = vadd.f32 0.0, %v649
      %v651 = vpop.f32.mrb[0].mxu0
      %v652 = vpop.f32.mrb[0].mxu0
      %v653 = vadd.f32 0.0, %v652
      %v654 = vpop.f32.mrb[0].mxu0
      %655 = vmatprep.mubr.bf16.mxu0 %v556
      %656 = vmatmul.mubr.bf16.gmra.mrb[0].mxu0 %v430
      %v657 = vpop.f32.mrb[0].mxu0
      %v658 = vadd.f32 0.0, %v657
      %v659 = vpop.f32.mrb[0].mxu0
      %v660 = vpop.f32.mrb[0].mxu0
      %v661 = vadd.f32 0.0, %v660
      %v662 = vpop.f32.mrb[0].mxu0
      %663 = vmatprep.mubr.bf16.mxu0 %v559
      %664 = vmatmul.mubr.bf16.gmra.mrb[0].mxu0 %v432
      %v665 = vpop.f32.mrb[0].mxu0
      %v666 = vadd.f32 0.0, %v665
      %v667 = vpop.f32.mrb[0].mxu0
      %v668 = vpop.f32.mrb[0].mxu0
      %v669 = vadd.f32 0.0, %v668
      %v670 = vpop.f32.mrb[0].mxu0
      %671 = vmatprep.mubr.bf16.mxu0 %v562
      %672 = vmatmul.mubr.bf16.gmra.mrb[0].mxu0 %v434
      %v673 = vpop.f32.mrb[0].mxu0
      %v674 = vadd.f32 0.0, %v673
      %v675 = vpop.f32.mrb[0].mxu0
      %v676 = vpop.f32.mrb[0].mxu0
      %v677 = vadd.f32 0.0, %v676
      %v678 = vpop.f32.mrb[0].mxu0
      %679 = vmatprep.mubr.bf16.mxu0 %v565
      %680 = vmatmul.mubr.bf16.gmra.mrb[0].mxu0 %v436
      %v681 = vpop.f32.mrb[0].mxu0
      %v682 = vadd.f32 0.0, %v681
      %v683 = vpop.f32.mrb[0].mxu0
      %v684 = vpop.f32.mrb[0].mxu0
      %v685 = vadd.f32 0.0, %v684
      %v686 = vpop.f32.mrb[0].mxu0
      %687 = vmatprep.mubr.bf16.mxu0 %v568
      %688 = vmatmul.mubr.bf16.gmra.mrb[0].mxu0 %v438
      %v689 = vpop.f32.mrb[0].mxu0
      %v690 = vadd.f32 0.0, %v689
      %v691 = vpop.f32.mrb[0].mxu0
      %v692 = vpop.f32.mrb[0].mxu0
      %v693 = vadd.f32 0.0, %v692
      %v694 = vpop.f32.mrb[0].mxu0
      %695 = vmatprep.mubr.bf16.mxu0 %v571
      %696 = vmatmul.mubr.bf16.gmra.mrb[0].mxu0 %v440
      %v697 = vpop.f32.mrb[0].mxu0
      %v698 = vadd.f32 0.0, %v697
      %v699 = vpop.f32.mrb[0].mxu0
      %v700 = vpop.f32.mrb[0].mxu0
      %v701 = vadd.f32 0.0, %v700
      %v702 = vpop.f32.mrb[0].mxu0
      %703 = vmatprep.mubr.bf16.mxu0 %v574
      %704 = vmatmul.mubr.bf16.gmra.mrb[0].mxu0 %v442
      %v705 = vpop.f32.mrb[0].mxu0
      %v706 = vadd.f32 0.0, %v705
      %v707 = vpop.f32.mrb[0].mxu0
      %v708 = vpop.f32.mrb[0].mxu0
      %v709 = vadd.f32 0.0, %v708
      %v710 = vpop.f32.mrb[0].mxu0
      %711 = vmatprep.mubr.bf16.mxu0 %v577
      %712 = vmatmul.mubr.bf16.gmra.mrb[0].mxu0 %v444
      %v713 = vpop.f32.mrb[0].mxu0
      %v714 = vadd.f32 0.0, %v713
      %v715 = vpop.f32.mrb[0].mxu0
      %v716 = vpop.f32.mrb[0].mxu0
      %v717 = vadd.f32 0.0, %v716
      %v718 = vpop.f32.mrb[0].mxu0
      %719 = vmatprep.mubr.bf16.mxu0 %v580
      %720 = vmatmul.mubr.bf16.gmra.mrb[0].mxu0 %v446
      %v721 = vpop.f32.mrb[0].mxu0
      %v722 = vadd.f32 0.0, %v721
      %v723 = vpop.f32.mrb[0].mxu0
      %v724 = vpop.f32.mrb[0].mxu0
      %v725 = vadd.f32 0.0, %v724
      %v726 = vpop.f32.mrb[0].mxu0
      %727 = vmatprep.mubr.bf16.mxu0 %v583
      %728 = vmatmul.mubr.bf16.gmra.mrb[0].mxu0 %v448
      %v729 = vpop.f32.mrb[0].mxu0
      %v730 = vadd.f32 0.0, %v729
      %v731 = vpop.f32.mrb[0].mxu0
      %v732 = vpop.f32.mrb[0].mxu0
      %v733 = vadd.f32 0.0, %v732
      %v734 = vpop.f32.mrb[0].mxu0
      %735 = vmatprep.mubr.bf16.mxu0 %v586
      %736 = vmatmul.mubr.bf16.gmra.mrb[0].mxu0 %v450
      %v737 = vpop.f32.mrb[0].mxu0
      %v738 = vadd.f32 0.0, %v737
      %v739 = vpop.f32.mrb[0].mxu0
      %v740 = vpop.f32.mrb[0].mxu0
      %v741 = vadd.f32 0.0, %v740
      %v742 = vpop.f32.mrb[0].mxu0
      %743 = vmatprep.mubr.bf16.mxu0 %v589
      %744 = vmatmul.mubr.bf16.gmra.mrb[0].mxu0 %v452
      %v745 = vpop.f32.mrb[0].mxu0
      %v746 = vadd.f32 0.0, %v745
      %v747 = vpop.f32.mrb[0].mxu0
      %v748 = vpop.f32.mrb[0].mxu0
      %v749 = vadd.f32 0.0, %v748
      %v750 = vpop.f32.mrb[0].mxu0
      %751 = vdwg.mxu0
      %v752 = vld [vmem:[%s256] sm:$0x1]
      %v754 = vlaneseq
      %v755 = vshrl.u32 %v754, 7
      %v756 = vsub.s32 0, %v755
      %v757 = vrot.slane %v752, %v756
      %v759 = vmul.f32 %v626, %v757
      %v760 = vmul.f32 %v629, %v757
      %v761 = vmul.f32 %v634, %v757
      %v762 = vmul.f32 %v637, %v757
      %v763 = vmul.f32 %v642, %v757
      %v764 = vmul.f32 %v645, %v757
      %v765 = vmul.f32 %v650, %v757
      %v766 = vmul.f32 %v653, %v757
      %v767 = vmul.f32 %v658, %v757
      %v768 = vmul.f32 %v661, %v757
      %v769 = vmul.f32 %v666, %v757
      %v770 = vmul.f32 %v669, %v757
      %v771 = vmul.f32 %v674, %v757
      %v772 = vmul.f32 %v677, %v757
      %v773 = vmul.f32 %v682, %v757
      %v774 = vmul.f32 %v685, %v757
      %v775 = vmul.f32 %v690, %v757
      %v776 = vmul.f32 %v693, %v757
      %v777 = vmul.f32 %v698, %v757
      %v778 = vmul.f32 %v701, %v757
      %v779 = vmul.f32 %v706, %v757
      %v780 = vmul.f32 %v709, %v757
      %v781 = vmul.f32 %v714, %v757
      %v782 = vmul.f32 %v717, %v757
      %v783 = vmul.f32 %v722, %v757
      %v784 = vmul.f32 %v725, %v757
      %v785 = vmul.f32 %v730, %v757
      %v786 = vmul.f32 %v733, %v757
      %v787 = vmul.f32 %v738, %v757
      %v788 = vmul.f32 %v741, %v757
      %v789 = vmul.f32 %v746, %v757
      %v790 = vmul.f32 %v749, %v757
      %v791 = vld [vmem:[%s259] sm:$0x1]
      %v793 = vlaneseq
      %v794 = vshrl.u32 %v793, 7
      %v795 = vsub.s32 0, %v794
      %v796 = vrot.slane %v791, %v795
      %v798 = vadd.f32 %v759, %v796
      %v799 = vadd.f32 %v760, %v796
      %v800 = vadd.f32 %v761, %v796
      %v801 = vadd.f32 %v762, %v796
      %v802 = vadd.f32 %v763, %v796
      %v803 = vadd.f32 %v764, %v796
      %v804 = vadd.f32 %v765, %v796
      %v805 = vadd.f32 %v766, %v796
      %v806 = vadd.f32 %v767, %v796
      %v807 = vadd.f32 %v768, %v796
      %v808 = vadd.f32 %v769, %v796
      %v809 = vadd.f32 %v770, %v796
      %v810 = vadd.f32 %v771, %v796
      %v811 = vadd.f32 %v772, %v796
      %v812 = vadd.f32 %v773, %v796
      %v813 = vadd.f32 %v774, %v796
      %v814 = vadd.f32 %v775, %v796
      %v815 = vadd.f32 %v776, %v796
      %v816 = vadd.f32 %v777, %v796
      %v817 = vadd.f32 %v778, %v796
      %v818 = vadd.f32 %v779, %v796
      %v819 = vadd.f32 %v780, %v796
      %v820 = vadd.f32 %v781, %v796
      %v821 = vadd.f32 %v782, %v796
      %v822 = vadd.f32 %v783, %v796
      %v823 = vadd.f32 %v784, %v796
      %v824 = vadd.f32 %v785, %v796
      %v825 = vadd.f32 %v786, %v796
      %v826 = vadd.f32 %v787, %v796
      %v827 = vadd.f32 %v788, %v796
      %v828 = vadd.f32 %v789, %v796
      %v829 = vadd.f32 %v790, %v796
      %v830 = vtanh.pop %v798
      %v831 = vtanh.pop %v799
      %v832 = vtanh.pop %v800
      %v833 = vtanh.pop %v801
      %v834 = vtanh.pop %v802
      %v835 = vtanh.pop %v803
      %v836 = vtanh.pop %v804
      %v837 = vtanh.pop %v805
      %v838 = vtanh.pop %v806
      %v839 = vtanh.pop %v807
      %v840 = vtanh.pop %v808
      %v841 = vtanh.pop %v809
      %v842 = vtanh.pop %v810
      %v843 = vtanh.pop %v811
      %v844 = vtanh.pop %v812
      %v845 = vtanh.pop %v813
      %v846 = vtanh.pop %v814
      %v847 = vtanh.pop %v815
      %v848 = vtanh.pop %v816
      %v849 = vtanh.pop %v817
      %v850 = vtanh.pop %v818
      %v851 = vtanh.pop %v819
      %v852 = vtanh.pop %v820
      %v853 = vtanh.pop %v821
      %v854 = vtanh.pop %v822
      %v855 = vtanh.pop %v823
      %v856 = vtanh.pop %v824
      %v857 = vtanh.pop %v825
      %v858 = vtanh.pop %v826
      %v859 = vtanh.pop %v827
      %v860 = vtanh.pop %v828
      %v861 = vtanh.pop %v829
      %862 = vst [vmem:[%s267] sm:$0xff] %v830
      %863 = vst [vmem:[%s267 + $0x8] sm:$0xff] %v831
      %864 = vst [vmem:[%s267 + $0x10] sm:$0xff] %v832
      %865 = vst [vmem:[%s267 + $0x18] sm:$0xff] %v833
      %866 = vst [vmem:[%s267 + $0x20] sm:$0xff] %v834
      %867 = vst [vmem:[%s267 + $0x28] sm:$0xff] %v835
      %868 = vst [vmem:[%s267 + $0x30] sm:$0xff] %v836
      %869 = vst [vmem:[%s267 + $0x38] sm:$0xff] %v837
      %870 = vst [vmem:[%s267 + $0x40] sm:$0xff] %v838
      %871 = vst [vmem:[%s267 + $0x48] sm:$0xff] %v839
      %872 = vst [vmem:[%s267 + $0x50] sm:$0xff] %v840
      %873 = vst [vmem:[%s267 + $0x58] sm:$0xff] %v841
      %874 = vst [vmem:[%s267 + $0x60] sm:$0xff] %v842
      %875 = vst [vmem:[%s267 + $0x68] sm:$0xff] %v843
      %876 = vst [vmem:[%s267 + $0x70] sm:$0xff] %v844
      %877 = vst [vmem:[%s267 + $0x78] sm:$0xff] %v845
      %878 = vst [vmem:[%s267 + $0x80] sm:$0xff] %v846
      %879 = vst [vmem:[%s267 + $0x88] sm:$0xff] %v847
      %880 = vst [vmem:[%s267 + $0x90] sm:$0xff] %v848
      %881 = vst [vmem:[%s267 + $0x98] sm:$0xff] %v849
      %882 = vst [vmem:[%s267 + $0xa0] sm:$0xff] %v850
      %883 = vst [vmem:[%s267 + $0xa8] sm:$0xff] %v851
      %884 = vst [vmem:[%s267 + $0xb0] sm:$0xff] %v852
      %885 = vst [vmem:[%s267 + $0xb8] sm:$0xff] %v853
      %886 = vst [vmem:[%s267 + $0xc0] sm:$0xff] %v854
      %887 = vst [vmem:[%s267 + $0xc8] sm:$0xff] %v855
      %888 = vst [vmem:[%s267 + $0xd0] sm:$0xff] %v856
      %889 = vst [vmem:[%s267 + $0xd8] sm:$0xff] %v857
      %890 = vst [vmem:[%s267 + $0xe0] sm:$0xff] %v858
      %891 = vst [vmem:[%s267 + $0xe8] sm:$0xff] %v859
      %892 = vst [vmem:[%s267 + $0xf0] sm:$0xff] %v860
      %893 = vst [vmem:[%s267 + $0xf8] sm:$0xff] %v861
      %s894 = smul.u32 32, %s19
      %p895 = scmp.lt.s32.totalorder %s894, 95
      %s896 = scalar_select %p895, %s894, 95
      %p897 = scmp.lt.s32.totalorder %s20, 0
      %s898 = scalar_select %p897, %s20, 0
      %s899 = sadd.s32 %s898, %s896
      %s900 = smul.addr %s899, 8
      %s901 = scalar_lea.vmem %s4, %s900
      // Predicated region
      $region37: #{generator_forward.15} parent=35 // pred_check
        %p902 = pneg %p151
      $region38: #{generator_forward.15} parent=35 // pred_check_branch
        %904 = sbr.rel (%p902) target = $region40
      $region39: #{generator_forward.15} parent=35 // pred_region
        %s905 = smul.u32 32, %s19
      $region40: #{generator_forward.15} parent=35 // pred_fallthru
        _
    $region36: #{generator_forward.15} parent=5 // pred_fallthru
      _
    %p906 = scmp.le.s32.totalorder 2, %s10
    // Predicated region
    $region41: #{generator_forward.15} parent=5 // pred_check
      %p907 = pneg %p906
    $region42: #{generator_forward.15} parent=5 // pred_check_branch
      %909 = sbr.rel (%p907) target = $region44
    $region43: #{generator_forward.15} parent=5 // pred_region
      %s910 = ssub.s32 %s10, 2
      // Predicated region
      $region45: #{generator_forward.15} parent=43 // pred_check
        %p911 = pneg %p157
      $region46: #{generator_forward.15} parent=43 // pred_check_branch
        %913 = sbr.rel (%p911) target = $region48
      $region47: #{generator_forward.15} parent=43 // pred_region
        %s914 = smul.u32 32, %s21
        %p915 = scmp.lt.s32.totalorder %s914, 95
        %s916 = scalar_select %p915, %s914, 95
        %p917 = scmp.lt.s32.totalorder %s22, 0
        %s918 = scalar_select %p917, %s22, 0
        %s919 = sadd.s32 %s918, %s916
        %s920 = smul.addr %s919, 8
        %s921 = scalar_lea.vmem %s4, %s920
      $region48: #{generator_forward.15} parent=43 // pred_fallthru
        _
    $region44: #{generator_forward.15} parent=5 // pred_fallthru
      _
  $region6: #{generator_forward.15} parent=0 // loop_footer
    %s14 = sadd.s32 1, %s10
  $region7: #{generator_forward.15} parent=0 // loop_footer_branch
    %9 = sbr.rel target = $region3
  $region8: #{generator_forward.15} parent=0 // loop_exit
    _

</llo_original>
